<compile_context>
chip_gen: v5e
topology: v5e:2x2
jax: 0.10.0
libtpu: 0.0.40
codegen_flags: <defaults>
</compile_context>

<pallas_src>
from functools import partial

import numpy as np
import jax
import jax.numpy as jnp
from jax import lax
from jax.experimental import pallas as pl
from jax.experimental.pallas import tpu as pltpu


LEAKY_SLOPE = 0.01                      # nn.LeakyReLU default
VMEM_LIMIT_BYTES = 48 * 1024 * 1024     # explicit scoped-VMEM cap (safe on v5e/v6e/v7x)


# ---------------------------------------------------------------------------
# Kernel 1: fused LeakyReLU -> Conv3d(3x3x3, pad=1) -> +bias -> LeakyReLU for
# one output depth slice, in the "channels folded into lanes" layout.  The
# result is written zero-padded (D/H/W halo of zeros) so kernel 2 can consume
# it directly without another padding pass.
# ---------------------------------------------------------------------------
def _conv1_kernel(xm1_ref, x0_ref, xp1_ref, w_ref, b_ref, o_ref, *,
                  H, W, C0, C1, slope):
    dd = pl.program_id(1)
    interior = jnp.logical_and(dd > 0, dd < pl.num_programs(1) - 1)

    @pl.when(jnp.logical_not(interior))
    def _():
        # depth border of the zero-padded output
        o_ref[...] = jnp.zeros(o_ref.shape, o_ref.dtype)

    @pl.when(interior)
    def _():
        w_all = w_ref[...]                                  # (27, W*C0, W*C1)
        acc = jnp.zeros((H, W * C1), jnp.float32)
        slabs = (xm1_ref, x0_ref, xp1_ref)
        tap = 0
        for kd in range(3):
            xs = slabs[kd][...]                             # (H+2, (W+2)*C0)
            xs = jnp.where(xs >= 0, xs, slope * xs)         # LeakyReLU on input
            for kh in range(3):
                for kw in range(3):
                    win = xs[kh:kh + H, kw * C0:kw * C0 + W * C0]
                    acc = acc + jnp.dot(win, w_all[tap],
                                        preferred_element_type=jnp.float32)
                    tap += 1
        acc = acc + b_ref[...].astype(jnp.float32)          # (1, W*C1) broadcast
        acc = jnp.where(acc >= 0, acc, slope * acc)         # LeakyReLU on output
        o_ref[...] = jnp.zeros(o_ref.shape, o_ref.dtype)    # zero H/W halo
        o_ref[1:H + 1, C1:C1 + W * C1] = acc.astype(o_ref.dtype)


# ---------------------------------------------------------------------------
# Kernel 2: fused Conv3d(3x3x3, pad=1) -> +bias  (+)  Conv3d(1x1x1) -> +bias,
# residual add, and 2x2(x2) average pooling.  Processes one pooled output
# depth slice per grid step; pooling over H and W is done with tiny constant
# 0/1 matmuls (the W-pool matrix is pre-scaled by 1/window).
# ---------------------------------------------------------------------------
def _conv2_pool_kernel(*refs, H, W, C0, C1, C2, pd):
    nh = pd + 2
    h_refs = refs[:nh]                      # zero-padded conv1 activations (depth window)
    x_refs = refs[nh:nh + pd]               # zero-padded input slabs for the 1x1x1 conv
    w2_ref, b2_ref, w3_ref, b3_ref, hpool_ref, wpool_ref, o_ref = refs[nh + pd:]

    w2 = w2_ref[...]                        # (27, W*C1, W*C2)
    b2 = b2_ref[...].astype(jnp.float32)    # (1, W*C2)
    w3 = w3_ref[...]                        # (W*C0, W*C2)
    b3 = b3_ref[...].astype(jnp.float32)    # (1, W*C2)
    hpool = hpool_ref[...]                  # (H/2, H)          0/1 row-pool matrix
    wpool = wpool_ref[...]                  # (W*C2, (W/2)*C2)  0/1 col-pool (pre-scaled)

    hsum = jnp.zeros((H // 2, W * C2), jnp.float32)
    for i in range(pd):                     # output depth slices inside the pool window
        acc = jnp.zeros((H, W * C2), jnp.float32)
        tap = 0
        for kd in range(3):
            hs = h_refs[i + kd][...]        # (H+2, (W+2)*C1)
            for kh in range(3):
                for kw in range(3):
                    win = hs[kh:kh + H, kw * C1:kw * C1 + W * C1]
                    acc = acc + jnp.dot(win, w2[tap],
                                        preferred_element_type=jnp.float32)
                    tap += 1
        acc = acc + b2                                          # conv2 (no activation)
        xc = x_refs[i][1:H + 1, C0:C0 + W * C0]                 # centre of padded x
        z = jnp.dot(xc, w3, preferred_element_type=jnp.float32) + b3
        s = acc + z                                             # residual add, (H, W*C2)
        hsum = hsum + jnp.dot(hpool, s, preferred_element_type=jnp.float32)

    pooled = jnp.dot(hsum, wpool, preferred_element_type=jnp.float32)  # (H/2, (W/2)*C2)
    o_ref[...] = pooled.astype(o_ref.dtype)


# ---------------------------------------------------------------------------
# Wrapper: layout prep (transpose / zero pad / block-diagonal weights) in JAX,
# all arithmetic inside the two Pallas kernels.
# ---------------------------------------------------------------------------
def disblock3d_forward(x_ncdhw, params, compute_dtype=jnp.float32):
    n, c0, d, h, w = x_ncdhw.shape
    assert h % 2 == 0 and w % 2 == 0, "H and W must be even for the 2x2 pooling"
    c1 = params["w1"].shape[0]
    c2 = params["w2"].shape[0]
    cd = compute_dtype
    dpad = d + 2

    # channels-last, zero-pad D/H/W by 1, fold channels into the lane axis.
    x_cl = jnp.transpose(x_ncdhw, (0, 2, 3, 4, 1)).astype(cd)
    x_pad = jnp.pad(x_cl, ((0, 0), (1, 1), (1, 1), (1, 1), (0, 0)))
    x_pad = x_pad.reshape(n, dpad, h + 2, (w + 2) * c0)

    # per-tap conv weights -> block-diagonal "channels-in-lanes" matmul weights.
    eye_w = jnp.eye(w, dtype=jnp.float32)
    w1t = jnp.transpose(params["w1"], (2, 3, 4, 1, 0)).reshape(27, c0, c1)
    w2t = jnp.transpose(params["w2"], (2, 3, 4, 1, 0)).reshape(27, c1, c2)
    w3m = params["w3"].reshape(c2, c0).T
    w1bd = jnp.einsum("uv,tcf->tucvf", eye_w, w1t).reshape(27, w * c0, w * c1).astype(cd)
    w2bd = jnp.einsum("uv,tcf->tucvf", eye_w, w2t).reshape(27, w * c1, w * c2).astype(cd)
    w3bd = jnp.einsum("uv,cf->ucvf", eye_w, w3m).reshape(w * c0, w * c2).astype(cd)
    b1t = jnp.tile(params["b1"].reshape(1, c1), (1, w)).astype(jnp.float32)
    b2t = jnp.tile(params["b2"].reshape(1, c2), (1, w)).astype(jnp.float32)
    b3t = jnp.tile(params["b3"].reshape(1, c2), (1, w)).astype(jnp.float32)

    cp = pltpu.CompilerParams(dimension_semantics=("parallel", "parallel"),
                              vmem_limit_bytes=VMEM_LIMIT_BYTES)

    # ---- conv1: LeakyReLU -> conv3x3x3 -> +b1 -> LeakyReLU (zero-padded out) ----
    def x_slab_spec(off):
        def imap(ni, dd):
            return (ni, jnp.clip(dd + off, 0, dpad - 1), 0, 0)
        return pl.BlockSpec((None, None, h + 2, (w + 2) * c0), imap)

    h1 = pl.pallas_call(
        partial(_conv1_kernel, H=h, W=w, C0=c0, C1=c1, slope=LEAKY_SLOPE),
        out_shape=jax.ShapeDtypeStruct((n, dpad, h + 2, (w + 2) * c1), cd),
        grid=(n, dpad),
        in_specs=[x_slab_spec(-1), x_slab_spec(0), x_slab_spec(+1),
                  pl.BlockSpec((27, w * c0, w * c1), lambda ni, dd: (0, 0, 0)),
                  pl.BlockSpec((1, w * c1), lambda ni, dd: (0, 0))],
        out_specs=pl.BlockSpec((None, None, h + 2, (w + 2) * c1),
                               lambda ni, dd: (ni, dd, 0, 0)),
        compiler_params=cp,
    )(x_pad, x_pad, x_pad, w1bd, b1t)

    # ---- conv2 + 1x1x1 conv + residual add + average pool (fused epilogue) ----
    pool_d = d > 1
    pd = 2 if pool_d else 1
    d_out = d // 2 if pool_d else d
    hp, wp = h // 2, w // 2
    inv_win = 1.0 / float(pd * 4)

    hpool = jnp.repeat(jnp.eye(hp, dtype=jnp.float32), 2, axis=1)            # (H/2, H)
    wpool = jnp.einsum("uv,cf->ucvf",
                       jnp.repeat(jnp.eye(wp, dtype=jnp.float32), 2, axis=0),
                       jnp.eye(c2, dtype=jnp.float32))
    wpool = wpool.reshape(w * c2, wp * c2) * inv_win                         # (W*C2, (W/2)*C2)

    def h1_slab_spec(j):
        def imap(ni, dp):
            return (ni, pd * dp + j, 0, 0)
        return pl.BlockSpec((None, None, h + 2, (w + 2) * c1), imap)

    def xz_slab_spec(i):
        def imap(ni, dp):
            return (ni, pd * dp + i + 1, 0, 0)
        return pl.BlockSpec((None, None, h + 2, (w + 2) * c0), imap)

    pooled = pl.pallas_call(
        partial(_conv2_pool_kernel, H=h, W=w, C0=c0, C1=c1, C2=c2, pd=pd),
        out_shape=jax.ShapeDtypeStruct((n, d_out, hp, wp * c2), jnp.float32),
        grid=(n, d_out),
        in_specs=([h1_slab_spec(j) for j in range(pd + 2)]
                  + [xz_slab_spec(i) for i in range(pd)]
                  + [pl.BlockSpec((27, w * c1, w * c2), lambda ni, dp: (0, 0, 0)),
                     pl.BlockSpec((1, w * c2), lambda ni, dp: (0, 0)),
                     pl.BlockSpec((w * c0, w * c2), lambda ni, dp: (0, 0)),
                     pl.BlockSpec((1, w * c2), lambda ni, dp: (0, 0)),
                     pl.BlockSpec((hp, h), lambda ni, dp: (0, 0)),
                     pl.BlockSpec((w * c2, wp * c2), lambda ni, dp: (0, 0))]),
        out_specs=pl.BlockSpec((None, None, hp, wp * c2),
                               lambda ni, dp: (ni, dp, 0, 0)),
        compiler_params=cp,
    )(*([h1] * (pd + 2) + [x_pad] * pd + [w2bd, b2t, w3bd, b3t, hpool, wpool]))

    out = pooled.reshape(n, d_out, hp, wp, c2)
    return jnp.transpose(out, (0, 4, 1, 2, 3))          # back to NCDHW


# ---------------------------------------------------------------------------
# Pure-JAX reference (correctness check only).
# ---------------------------------------------------------------------------
def ref_forward(x, params):
    def lrelu(v):
        return jnp.where(v >= 0, v, LEAKY_SLOPE * v)

    def conv(v, wgt, b, pad):
        dn = lax.conv_dimension_numbers(v.shape, wgt.shape, ("NCDHW", "OIDHW", "NCDHW"))
        out = lax.conv_general_dilated(v, wgt, window_strides=(1, 1, 1),
                                       padding=[(pad, pad)] * 3,
                                       dimension_numbers=dn)
        return out + b.reshape(1, -1, 1, 1, 1)

    y = conv(lrelu(x), params["w1"], params["b1"], 1)
    y = conv(lrelu(y), params["w2"], params["b2"], 1)
    z = conv(x, params["w3"], params["b3"], 0)
    win = (1, 1, 2, 2, 2) if x.shape[2] > 1 else (1, 1, 1, 2, 2)

    def pool(v):
        s = lax.reduce_window(v, 0.0, lax.add, win, win, "VALID")
        return s / float(np.prod(win))

    return pool(y) + pool(z)


if __name__ == "__main__":
    key = jax.random.PRNGKey(0)
    channels = (4, 8, 8)
    n, d, h, w = 2, 4, 16, 16

    keys = jax.random.split(key, 8)
    x = jax.random.normal(keys[0], (n, channels[0], d, h, w), jnp.float32)
    params = {
        "w1": 0.1 * jax.random.normal(keys[1], (channels[1], channels[0], 3, 3, 3), jnp.float32),
        "b1": 0.1 * jax.random.normal(keys[2], (channels[1],), jnp.float32),
        "w2": 0.1 * jax.random.normal(keys[3], (channels[2], channels[1], 3, 3, 3), jnp.float32),
        "b2": 0.1 * jax.random.normal(keys[4], (channels[2],), jnp.float32),
        "w3": 0.1 * jax.random.normal(keys[5], (channels[2], channels[0], 1, 1, 1), jnp.float32),
        "b3": 0.1 * jax.random.normal(keys[6], (channels[2],), jnp.float32),
    }

    fwd = jax.jit(disblock3d_forward, static_argnames=("compute_dtype",))
    ref = ref_forward(x, params)

    # float32 path: strict check against the XLA reference.
    out_f32 = jax.block_until_ready(fwd(x, params, compute_dtype=jnp.float32))
    assert out_f32.shape == ref.shape, (out_f32.shape, ref.shape)
    np.testing.assert_allclose(np.asarray(out_f32), np.asarray(ref), rtol=1e-4, atol=1e-4)

    # bfloat16 compute path (f32 accumulation): looser check.
    out_bf16 = jax.block_until_ready(fwd(x, params, compute_dtype=jnp.bfloat16))
    np.testing.assert_allclose(np.asarray(out_bf16), np.asarray(ref), rtol=5e-2, atol=5e-2)

    # depth-1 branch (avg_pool3d((1, 2, 2))).
    x1 = jax.random.normal(keys[7], (1, channels[0], 1, 8, 8), jnp.float32)
    out1 = jax.block_until_ready(fwd(x1, params, compute_dtype=jnp.float32))
    ref1 = ref_forward(x1, params)
    assert out1.shape == ref1.shape, (out1.shape, ref1.shape)
    np.testing.assert_allclose(np.asarray(out1), np.asarray(ref1), rtol=1e-4, atol=1e-4)

    print("KERNEL_OK")
</pallas_src>

<mosaic_0001>
module attributes {stable_mosaic.version = 11 : i64} {
  func.func @_conv1_kernel(%arg0: i32, %arg1: i32, %arg2: memref<1x1x18x72xf32, #tpu.memory_space<vmem>>, %arg3: memref<1x1x18x72xf32, #tpu.memory_space<vmem>>, %arg4: memref<1x1x18x72xf32, #tpu.memory_space<vmem>>, %arg5: memref<27x64x128xf32, #tpu.memory_space<vmem>>, %arg6: memref<1x128xf32, #tpu.memory_space<vmem>>, %arg7: memref<1x1x18x144xf32, #tpu.memory_space<vmem>>) attributes {dimension_semantics = [#tpu.dimension_semantics<parallel>, #tpu.dimension_semantics<parallel>], iteration_bounds = array<i64: 2, 6>, scalar_prefetch = 0 : i64, scratch_operands = 0 : i64, tpu.core_type = #tpu.core_type<tc>, window_params = [{transform_indices = @transform_0, window_bounds = array<i64: 1, 1, 18, 72>}, {transform_indices = @transform_1, window_bounds = array<i64: 1, 1, 18, 72>}, {transform_indices = @transform_2, window_bounds = array<i64: 1, 1, 18, 72>}, {pipeline_mode = #tpu.pipeline_mode<synchronous>, transform_indices = @transform_3, window_bounds = array<i64: 27, 64, 128>}, {pipeline_mode = #tpu.pipeline_mode<synchronous>, transform_indices = @transform_4, window_bounds = array<i64: 1, 128>}, {transform_indices = @transform_5, window_bounds = array<i64: 1, 1, 18, 144>}]} {
    %c0_i32 = arith.constant 0 : i32
    %0 = arith.cmpi sgt, %arg1, %c0_i32 : i32
    %c5_i32 = arith.constant 5 : i32
    %1 = arith.cmpi slt, %arg1, %c5_i32 : i32
    %2 = arith.andi %0, %1 : i1
    %true = arith.constant true
    %3 = arith.xori %2, %true : i1
    %4 = arith.extui %3 : i1 to i32
    %c0_i32_0 = arith.constant 0 : i32
    %5 = arith.cmpi ne, %4, %c0_i32_0 : i32
    scf.if %5 {
      %cst = arith.constant 0.000000e+00 : f32
      %8 = vector.broadcast %cst : f32 to vector<18x144xf32>
      %c0 = arith.constant 0 : index
      %c0_2 = arith.constant 0 : index
      %c0_3 = arith.constant 0 : index
      %c0_4 = arith.constant 0 : index
      %9 = vector.load %arg7[%c0, %c0_2, %c0_3, %c0_4] : memref<1x1x18x144xf32, #tpu.memory_space<vmem>>, vector<1x1x18x144xf32>
      %10 = vector.shape_cast %9 : vector<1x1x18x144xf32> to vector<18x144xf32>
      %11 = vector.shape_cast %8 : vector<18x144xf32> to vector<1x1x18x144xf32>
      tpu.vector_store %arg7[%c0, %c0_2, %c0_3, %c0_4], %11 {strides = array<i32>} : memref<1x1x18x144xf32, #tpu.memory_space<vmem>>, vector<1x1x18x144xf32>,
    } else {
    }
    %6 = arith.extui %2 : i1 to i32
    %c0_i32_1 = arith.constant 0 : i32
    %7 = arith.cmpi ne, %6, %c0_i32_1 : i32
    scf.if %7 {
      %c0 = arith.constant 0 : index
      %c0_2 = arith.constant 0 : index
      %c0_3 = arith.constant 0 : index
      %8 = vector.load %arg5[%c0, %c0_2, %c0_3] : memref<27x64x128xf32, #tpu.memory_space<vmem>>, vector<27x64x128xf32>
      %cst = arith.constant 0.000000e+00 : f32
      %9 = vector.broadcast %cst : f32 to vector<16x128xf32>
      %c0_4 = arith.constant 0 : index
      %c0_5 = arith.constant 0 : index
      %c0_6 = arith.constant 0 : index
      %c0_7 = arith.constant 0 : index
      %10 = vector.load %arg2[%c0_4, %c0_5, %c0_6, %c0_7] : memref<1x1x18x72xf32, #tpu.memory_space<vmem>>, vector<1x1x18x72xf32>
      %11 = vector.shape_cast %10 : vector<1x1x18x72xf32> to vector<18x72xf32>
      %cst_8 = arith.constant 0.000000e+00 : f32
      %12 = vector.broadcast %cst_8 : f32 to vector<18x72xf32>
      %13 = arith.cmpf oge, %11, %12 : vector<18x72xf32>
      %cst_9 = arith.constant 0.00999999977 : f32
      %14 = vector.broadcast %cst_9 : f32 to vector<18x72xf32>
      %15 = arith.mulf %14, %11 : vector<18x72xf32>
      %16 = arith.select %13, %11, %15 : vector<18x72xi1>, vector<18x72xf32>
      %17 = vector.extract_strided_slice %16 {offsets = [0, 0], sizes = [16, 64], strides = [1, 1]} : vector<18x72xf32> to vector<16x64xf32>
      %18 = vector.extract_strided_slice %8 {offsets = [0, 0, 0], sizes = [1, 64, 128], strides = [1, 1, 1]} : vector<27x64x128xf32> to vector<1x64x128xf32>
      %19 = vector.shape_cast %18 : vector<1x64x128xf32> to vector<64x128xf32>
      %cst_10 = arith.constant dense<0.000000e+00> : vector<16x128xf32>
      %20 = tpu.matmul %17, %19, %cst_10 {dimension_numbers = #tpu.dot_dimension_numbers<[1], [0], [0], [1], [0, 0, 1, 1], [], []>} : vector<16x64xf32>, vector<64x128xf32>, vector<16x128xf32> -> vector<16x128xf32>
      %21 = arith.addf %9, %20 : vector<16x128xf32>
      %22 = vector.extract_strided_slice %16 {offsets = [0, 4], sizes = [16, 64], strides = [1, 1]} : vector<18x72xf32> to vector<16x64xf32>
      %23 = vector.extract_strided_slice %8 {offsets = [1, 0, 0], sizes = [1, 64, 128], strides = [1, 1, 1]} : vector<27x64x128xf32> to vector<1x64x128xf32>
      %24 = vector.shape_cast %23 : vector<1x64x128xf32> to vector<64x128xf32>
      %cst_11 = arith.constant dense<0.000000e+00> : vector<16x128xf32>
      %25 = tpu.matmul %22, %24, %cst_11 {dimension_numbers = #tpu.dot_dimension_numbers<[1], [0], [0], [1], [0, 0, 1, 1], [], []>} : vector<16x64xf32>, vector<64x128xf32>, vector<16x128xf32> -> vector<16x128xf32>
      %26 = arith.addf %21, %25 : vector<16x128xf32>
      %27 = vector.extract_strided_slice %16 {offsets = [0, 8], sizes = [16, 64], strides = [1, 1]} : vector<18x72xf32> to vector<16x64xf32>
      %28 = vector.extract_strided_slice %8 {offsets = [2, 0, 0], sizes = [1, 64, 128], strides = [1, 1, 1]} : vector<27x64x128xf32> to vector<1x64x128xf32>
      %29 = vector.shape_cast %28 : vector<1x64x128xf32> to vector<64x128xf32>
      %cst_12 = arith.constant dense<0.000000e+00> : vector<16x128xf32>
      %30 = tpu.matmul %27, %29, %cst_12 {dimension_numbers = #tpu.dot_dimension_numbers<[1], [0], [0], [1], [0, 0, 1, 1], [], []>} : vector<16x64xf32>, vector<64x128xf32>, vector<16x128xf32> -> vector<16x128xf32>
      %31 = arith.addf %26, %30 : vector<16x128xf32>
      %32 = vector.extract_strided_slice %16 {offsets = [1, 0], sizes = [16, 64], strides = [1, 1]} : vector<18x72xf32> to vector<16x64xf32>
      %33 = vector.extract_strided_slice %8 {offsets = [3, 0, 0], sizes = [1, 64, 128], strides = [1, 1, 1]} : vector<27x64x128xf32> to vector<1x64x128xf32>
      %34 = vector.shape_cast %33 : vector<1x64x128xf32> to vector<64x128xf32>
      %cst_13 = arith.constant dense<0.000000e+00> : vector<16x128xf32>
      %35 = tpu.matmul %32, %34, %cst_13 {dimension_numbers = #tpu.dot_dimension_numbers<[1], [0], [0], [1], [0, 0, 1, 1], [], []>} : vector<16x64xf32>, vector<64x128xf32>, vector<16x128xf32> -> vector<16x128xf32>
      %36 = arith.addf %31, %35 : vector<16x128xf32>
      %37 = vector.extract_strided_slice %16 {offsets = [1, 4], sizes = [16, 64], strides = [1, 1]} : vector<18x72xf32> to vector<16x64xf32>
      %38 = vector.extract_strided_slice %8 {offsets = [4, 0, 0], sizes = [1, 64, 128], strides = [1, 1, 1]} : vector<27x64x128xf32> to vector<1x64x128xf32>
      %39 = vector.shape_cast %38 : vector<1x64x128xf32> to vector<64x128xf32>
      %cst_14 = arith.constant dense<0.000000e+00> : vector<16x128xf32>
      %40 = tpu.matmul %37, %39, %cst_14 {dimension_numbers = #tpu.dot_dimension_numbers<[1], [0], [0], [1], [0, 0, 1, 1], [], []>} : vector<16x64xf32>, vector<64x128xf32>, vector<16x128xf32> -> vector<16x128xf32>
      %41 = arith.addf %36, %40 : vector<16x128xf32>
      %42 = vector.extract_strided_slice %16 {offsets = [1, 8], sizes = [16, 64], strides = [1, 1]} : vector<18x72xf32> to vector<16x64xf32>
      %43 = vector.extract_strided_slice %8 {offsets = [5, 0, 0], sizes = [1, 64, 128], strides = [1, 1, 1]} : vector<27x64x128xf32> to vector<1x64x128xf32>
      %44 = vector.shape_cast %43 : vector<1x64x128xf32> to vector<64x128xf32>
      %cst_15 = arith.constant dense<0.000000e+00> : vector<16x128xf32>
      %45 = tpu.matmul %42, %44, %cst_15 {dimension_numbers = #tpu.dot_dimension_numbers<[1], [0], [0], [1], [0, 0, 1, 1], [], []>} : vector<16x64xf32>, vector<64x128xf32>, vector<16x128xf32> -> vector<16x128xf32>
      %46 = arith.addf %41, %45 : vector<16x128xf32>
      %47 = vector.extract_strided_slice %16 {offsets = [2, 0], sizes = [16, 64], strides = [1, 1]} : vector<18x72xf32> to vector<16x64xf32>
      %48 = vector.extract_strided_slice %8 {offsets = [6, 0, 0], sizes = [1, 64, 128], strides = [1, 1, 1]} : vector<27x64x128xf32> to vector<1x64x128xf32>
      %49 = vector.shape_cast %48 : vector<1x64x128xf32> to vector<64x128xf32>
      %cst_16 = arith.constant dense<0.000000e+00> : vector<16x128xf32>
      %50 = tpu.matmul %47, %49, %cst_16 {dimension_numbers = #tpu.dot_dimension_numbers<[1], [0], [0], [1], [0, 0, 1, 1], [], []>} : vector<16x64xf32>, vector<64x128xf32>, vector<16x128xf32> -> vector<16x128xf32>
      %51 = arith.addf %46, %50 : vector<16x128xf32>
      %52 = vector.extract_strided_slice %16 {offsets = [2, 4], sizes = [16, 64], strides = [1, 1]} : vector<18x72xf32> to vector<16x64xf32>
      %53 = vector.extract_strided_slice %8 {offsets = [7, 0, 0], sizes = [1, 64, 128], strides = [1, 1, 1]} : vector<27x64x128xf32> to vector<1x64x128xf32>
      %54 = vector.shape_cast %53 : vector<1x64x128xf32> to vector<64x128xf32>
      %cst_17 = arith.constant dense<0.000000e+00> : vector<16x128xf32>
      %55 = tpu.matmul %52, %54, %cst_17 {dimension_numbers = #tpu.dot_dimension_numbers<[1], [0], [0], [1], [0, 0, 1, 1], [], []>} : vector<16x64xf32>, vector<64x128xf32>, vector<16x128xf32> -> vector<16x128xf32>
      %56 = arith.addf %51, %55 : vector<16x128xf32>
      %57 = vector.extract_strided_slice %16 {offsets = [2, 8], sizes = [16, 64], strides = [1, 1]} : vector<18x72xf32> to vector<16x64xf32>
      %58 = vector.extract_strided_slice %8 {offsets = [8, 0, 0], sizes = [1, 64, 128], strides = [1, 1, 1]} : vector<27x64x128xf32> to vector<1x64x128xf32>
      %59 = vector.shape_cast %58 : vector<1x64x128xf32> to vector<64x128xf32>
      %cst_18 = arith.constant dense<0.000000e+00> : vector<16x128xf32>
      %60 = tpu.matmul %57, %59, %cst_18 {dimension_numbers = #tpu.dot_dimension_numbers<[1], [0], [0], [1], [0, 0, 1, 1], [], []>} : vector<16x64xf32>, vector<64x128xf32>, vector<16x128xf32> -> vector<16x128xf32>
      %61 = arith.addf %56, %60 : vector<16x128xf32>
      %c0_19 = arith.constant 0 : index
      %c0_20 = arith.constant 0 : index
      %c0_21 = arith.constant 0 : index
      %c0_22 = arith.constant 0 : index
      %62 = vector.load %arg3[%c0_19, %c0_20, %c0_21, %c0_22] : memref<1x1x18x72xf32, #tpu.memory_space<vmem>>, vector<1x1x18x72xf32>
      %63 = vector.shape_cast %62 : vector<1x1x18x72xf32> to vector<18x72xf32>
      %cst_23 = arith.constant 0.000000e+00 : f32
      %64 = vector.broadcast %cst_23 : f32 to vector<18x72xf32>
      %65 = arith.cmpf oge, %63, %64 : vector<18x72xf32>
      %cst_24 = arith.constant 0.00999999977 : f32
      %66 = vector.broadcast %cst_24 : f32 to vector<18x72xf32>
      %67 = arith.mulf %66, %63 : vector<18x72xf32>
      %68 = arith.select %65, %63, %67 : vector<18x72xi1>, vector<18x72xf32>
      %69 = vector.extract_strided_slice %68 {offsets = [0, 0], sizes = [16, 64], strides = [1, 1]} : vector<18x72xf32> to vector<16x64xf32>
      %70 = vector.extract_strided_slice %8 {offsets = [9, 0, 0], sizes = [1, 64, 128], strides = [1, 1, 1]} : vector<27x64x128xf32> to vector<1x64x128xf32>
      %71 = vector.shape_cast %70 : vector<1x64x128xf32> to vector<64x128xf32>
      %cst_25 = arith.constant dense<0.000000e+00> : vector<16x128xf32>
      %72 = tpu.matmul %69, %71, %cst_25 {dimension_numbers = #tpu.dot_dimension_numbers<[1], [0], [0], [1], [0, 0, 1, 1], [], []>} : vector<16x64xf32>, vector<64x128xf32>, vector<16x128xf32> -> vector<16x128xf32>
      %73 = arith.addf %61, %72 : vector<16x128xf32>
      %74 = vector.extract_strided_slice %68 {offsets = [0, 4], sizes = [16, 64], strides = [1, 1]} : vector<18x72xf32> to vector<16x64xf32>
      %75 = vector.extract_strided_slice %8 {offsets = [10, 0, 0], sizes = [1, 64, 128], strides = [1, 1, 1]} : vector<27x64x128xf32> to vector<1x64x128xf32>
      %76 = vector.shape_cast %75 : vector<1x64x128xf32> to vector<64x128xf32>
      %cst_26 = arith.constant dense<0.000000e+00> : vector<16x128xf32>
      %77 = tpu.matmul %74, %76, %cst_26 {dimension_numbers = #tpu.dot_dimension_numbers<[1], [0], [0], [1], [0, 0, 1, 1], [], []>} : vector<16x64xf32>, vector<64x128xf32>, vector<16x128xf32> -> vector<16x128xf32>
      %78 = arith.addf %73, %77 : vector<16x128xf32>
      %79 = vector.extract_strided_slice %68 {offsets = [0, 8], sizes = [16, 64], strides = [1, 1]} : vector<18x72xf32> to vector<16x64xf32>
      %80 = vector.extract_strided_slice %8 {offsets = [11, 0, 0], sizes = [1, 64, 128], strides = [1, 1, 1]} : vector<27x64x128xf32> to vector<1x64x128xf32>
      %81 = vector.shape_cast %80 : vector<1x64x128xf32> to vector<64x128xf32>
      %cst_27 = arith.constant dense<0.000000e+00> : vector<16x128xf32>
      %82 = tpu.matmul %79, %81, %cst_27 {dimension_numbers = #tpu.dot_dimension_numbers<[1], [0], [0], [1], [0, 0, 1, 1], [], []>} : vector<16x64xf32>, vector<64x128xf32>, vector<16x128xf32> -> vector<16x128xf32>
      %83 = arith.addf %78, %82 : vector<16x128xf32>
      %84 = vector.extract_strided_slice %68 {offsets = [1, 0], sizes = [16, 64], strides = [1, 1]} : vector<18x72xf32> to vector<16x64xf32>
      %85 = vector.extract_strided_slice %8 {offsets = [12, 0, 0], sizes = [1, 64, 128], strides = [1, 1, 1]} : vector<27x64x128xf32> to vector<1x64x128xf32>
      %86 = vector.shape_cast %85 : vector<1x64x128xf32> to vector<64x128xf32>
      %cst_28 = arith.constant dense<0.000000e+00> : vector<16x128xf32>
      %87 = tpu.matmul %84, %86, %cst_28 {dimension_numbers = #tpu.dot_dimension_numbers<[1], [0], [0], [1], [0, 0, 1, 1], [], []>} : vector<16x64xf32>, vector<64x128xf32>, vector<16x128xf32> -> vector<16x128xf32>
      %88 = arith.addf %83, %87 : vector<16x128xf32>
      %89 = vector.extract_strided_slice %68 {offsets = [1, 4], sizes = [16, 64], strides = [1, 1]} : vector<18x72xf32> to vector<16x64xf32>
      %90 = vector.extract_strided_slice %8 {offsets = [13, 0, 0], sizes = [1, 64, 128], strides = [1, 1, 1]} : vector<27x64x128xf32> to vector<1x64x128xf32>
      %91 = vector.shape_cast %90 : vector<1x64x128xf32> to vector<64x128xf32>
      %cst_29 = arith.constant dense<0.000000e+00> : vector<16x128xf32>
      %92 = tpu.matmul %89, %91, %cst_29 {dimension_numbers = #tpu.dot_dimension_numbers<[1], [0], [0], [1], [0, 0, 1, 1], [], []>} : vector<16x64xf32>, vector<64x128xf32>, vector<16x128xf32> -> vector<16x128xf32>
      %93 = arith.addf %88, %92 : vector<16x128xf32>
      %94 = vector.extract_strided_slice %68 {offsets = [1, 8], sizes = [16, 64], strides = [1, 1]} : vector<18x72xf32> to vector<16x64xf32>
      %95 = vector.extract_strided_slice %8 {offsets = [14, 0, 0], sizes = [1, 64, 128], strides = [1, 1, 1]} : vector<27x64x128xf32> to vector<1x64x128xf32>
      %96 = vector.shape_cast %95 : vector<1x64x128xf32> to vector<64x128xf32>
      %cst_30 = arith.constant dense<0.000000e+00> : vector<16x128xf32>
      %97 = tpu.matmul %94, %96, %cst_30 {dimension_numbers = #tpu.dot_dimension_numbers<[1], [0], [0], [1], [0, 0, 1, 1], [], []>} : vector<16x64xf32>, vector<64x128xf32>, vector<16x128xf32> -> vector<16x128xf32>
      %98 = arith.addf %93, %97 : vector<16x128xf32>
      %99 = vector.extract_strided_slice %68 {offsets = [2, 0], sizes = [16, 64], strides = [1, 1]} : vector<18x72xf32> to vector<16x64xf32>
      %100 = vector.extract_strided_slice %8 {offsets = [15, 0, 0], sizes = [1, 64, 128], strides = [1, 1, 1]} : vector<27x64x128xf32> to vector<1x64x128xf32>
      %101 = vector.shape_cast %100 : vector<1x64x128xf32> to vector<64x128xf32>
      %cst_31 = arith.constant dense<0.000000e+00> : vector<16x128xf32>
      %102 = tpu.matmul %99, %101, %cst_31 {dimension_numbers = #tpu.dot_dimension_numbers<[1], [0], [0], [1], [0, 0, 1, 1], [], []>} : vector<16x64xf32>, vector<64x128xf32>, vector<16x128xf32> -> vector<16x128xf32>
      %103 = arith.addf %98, %102 : vector<16x128xf32>
      %104 = vector.extract_strided_slice %68 {offsets = [2, 4], sizes = [16, 64], strides = [1, 1]} : vector<18x72xf32> to vector<16x64xf32>
      %105 = vector.extract_strided_slice %8 {offsets = [16, 0, 0], sizes = [1, 64, 128], strides = [1, 1, 1]} : vector<27x64x128xf32> to vector<1x64x128xf32>
      %106 = vector.shape_cast %105 : vector<1x64x128xf32> to vector<64x128xf32>
      %cst_32 = arith.constant dense<0.000000e+00> : vector<16x128xf32>
      %107 = tpu.matmul %104, %106, %cst_32 {dimension_numbers = #tpu.dot_dimension_numbers<[1], [0], [0], [1], [0, 0, 1, 1], [], []>} : vector<16x64xf32>, vector<64x128xf32>, vector<16x128xf32> -> vector<16x128xf32>
      %108 = arith.addf %103, %107 : vector<16x128xf32>
      %109 = vector.extract_strided_slice %68 {offsets = [2, 8], sizes = [16, 64], strides = [1, 1]} : vector<18x72xf32> to vector<16x64xf32>
      %110 = vector.extract_strided_slice %8 {offsets = [17, 0, 0], sizes = [1, 64, 128], strides = [1, 1, 1]} : vector<27x64x128xf32> to vector<1x64x128xf32>
      %111 = vector.shape_cast %110 : vector<1x64x128xf32> to vector<64x128xf32>
      %cst_33 = arith.constant dense<0.000000e+00> : vector<16x128xf32>
      %112 = tpu.matmul %109, %111, %cst_33 {dimension_numbers = #tpu.dot_dimension_numbers<[1], [0], [0], [1], [0, 0, 1, 1], [], []>} : vector<16x64xf32>, vector<64x128xf32>, vector<16x128xf32> -> vector<16x128xf32>
      %113 = arith.addf %108, %112 : vector<16x128xf32>
      %c0_34 = arith.constant 0 : index
      %c0_35 = arith.constant 0 : index
      %c0_36 = arith.constant 0 : index
      %c0_37 = arith.constant 0 : index
      %114 = vector.load %arg4[%c0_34, %c0_35, %c0_36, %c0_37] : memref<1x1x18x72xf32, #tpu.memory_space<vmem>>, vector<1x1x18x72xf32>
      %115 = vector.shape_cast %114 : vector<1x1x18x72xf32> to vector<18x72xf32>
      %cst_38 = arith.constant 0.000000e+00 : f32
      %116 = vector.broadcast %cst_38 : f32 to vector<18x72xf32>
      %117 = arith.cmpf oge, %115, %116 : vector<18x72xf32>
      %cst_39 = arith.constant 0.00999999977 : f32
      %118 = vector.broadcast %cst_39 : f32 to vector<18x72xf32>
      %119 = arith.mulf %118, %115 : vector<18x72xf32>
      %120 = arith.select %117, %115, %119 : vector<18x72xi1>, vector<18x72xf32>
      %121 = vector.extract_strided_slice %120 {offsets = [0, 0], sizes = [16, 64], strides = [1, 1]} : vector<18x72xf32> to vector<16x64xf32>
      %122 = vector.extract_strided_slice %8 {offsets = [18, 0, 0], sizes = [1, 64, 128], strides = [1, 1, 1]} : vector<27x64x128xf32> to vector<1x64x128xf32>
      %123 = vector.shape_cast %122 : vector<1x64x128xf32> to vector<64x128xf32>
      %cst_40 = arith.constant dense<0.000000e+00> : vector<16x128xf32>
      %124 = tpu.matmul %121, %123, %cst_40 {dimension_numbers = #tpu.dot_dimension_numbers<[1], [0], [0], [1], [0, 0, 1, 1], [], []>} : vector<16x64xf32>, vector<64x128xf32>, vector<16x128xf32> -> vector<16x128xf32>
      %125 = arith.addf %113, %124 : vector<16x128xf32>
      %126 = vector.extract_strided_slice %120 {offsets = [0, 4], sizes = [16, 64], strides = [1, 1]} : vector<18x72xf32> to vector<16x64xf32>
      %127 = vector.extract_strided_slice %8 {offsets = [19, 0, 0], sizes = [1, 64, 128], strides = [1, 1, 1]} : vector<27x64x128xf32> to vector<1x64x128xf32>
      %128 = vector.shape_cast %127 : vector<1x64x128xf32> to vector<64x128xf32>
      %cst_41 = arith.constant dense<0.000000e+00> : vector<16x128xf32>
      %129 = tpu.matmul %126, %128, %cst_41 {dimension_numbers = #tpu.dot_dimension_numbers<[1], [0], [0], [1], [0, 0, 1, 1], [], []>} : vector<16x64xf32>, vector<64x128xf32>, vector<16x128xf32> -> vector<16x128xf32>
      %130 = arith.addf %125, %129 : vector<16x128xf32>
      %131 = vector.extract_strided_slice %120 {offsets = [0, 8], sizes = [16, 64], strides = [1, 1]} : vector<18x72xf32> to vector<16x64xf32>
      %132 = vector.extract_strided_slice %8 {offsets = [20, 0, 0], sizes = [1, 64, 128], strides = [1, 1, 1]} : vector<27x64x128xf32> to vector<1x64x128xf32>
      %133 = vector.shape_cast %132 : vector<1x64x128xf32> to vector<64x128xf32>
      %cst_42 = arith.constant dense<0.000000e+00> : vector<16x128xf32>
      %134 = tpu.matmul %131, %133, %cst_42 {dimension_numbers = #tpu.dot_dimension_numbers<[1], [0], [0], [1], [0, 0, 1, 1], [], []>} : vector<16x64xf32>, vector<64x128xf32>, vector<16x128xf32> -> vector<16x128xf32>
      %135 = arith.addf %130, %134 : vector<16x128xf32>
      %136 = vector.extract_strided_slice %120 {offsets = [1, 0], sizes = [16, 64], strides = [1, 1]} : vector<18x72xf32> to vector<16x64xf32>
      %137 = vector.extract_strided_slice %8 {offsets = [21, 0, 0], sizes = [1, 64, 128], strides = [1, 1, 1]} : vector<27x64x128xf32> to vector<1x64x128xf32>
      %138 = vector.shape_cast %137 : vector<1x64x128xf32> to vector<64x128xf32>
      %cst_43 = arith.constant dense<0.000000e+00> : vector<16x128xf32>
      %139 = tpu.matmul %136, %138, %cst_43 {dimension_numbers = #tpu.dot_dimension_numbers<[1], [0], [0], [1], [0, 0, 1, 1], [], []>} : vector<16x64xf32>, vector<64x128xf32>, vector<16x128xf32> -> vector<16x128xf32>
      %140 = arith.addf %135, %139 : vector<16x128xf32>
      %141 = vector.extract_strided_slice %120 {offsets = [1, 4], sizes = [16, 64], strides = [1, 1]} : vector<18x72xf32> to vector<16x64xf32>
      %142 = vector.extract_strided_slice %8 {offsets = [22, 0, 0], sizes = [1, 64, 128], strides = [1, 1, 1]} : vector<27x64x128xf32> to vector<1x64x128xf32>
      %143 = vector.shape_cast %142 : vector<1x64x128xf32> to vector<64x128xf32>
      %cst_44 = arith.constant dense<0.000000e+00> : vector<16x128xf32>
      %144 = tpu.matmul %141, %143, %cst_44 {dimension_numbers = #tpu.dot_dimension_numbers<[1], [0], [0], [1], [0, 0, 1, 1], [], []>} : vector<16x64xf32>, vector<64x128xf32>, vector<16x128xf32> -> vector<16x128xf32>
      %145 = arith.addf %140, %144 : vector<16x128xf32>
      %146 = vector.extract_strided_slice %120 {offsets = [1, 8], sizes = [16, 64], strides = [1, 1]} : vector<18x72xf32> to vector<16x64xf32>
      %147 = vector.extract_strided_slice %8 {offsets = [23, 0, 0], sizes = [1, 64, 128], strides = [1, 1, 1]} : vector<27x64x128xf32> to vector<1x64x128xf32>
      %148 = vector.shape_cast %147 : vector<1x64x128xf32> to vector<64x128xf32>
      %cst_45 = arith.constant dense<0.000000e+00> : vector<16x128xf32>
      %149 = tpu.matmul %146, %148, %cst_45 {dimension_numbers = #tpu.dot_dimension_numbers<[1], [0], [0], [1], [0, 0, 1, 1], [], []>} : vector<16x64xf32>, vector<64x128xf32>, vector<16x128xf32> -> vector<16x128xf32>
      %150 = arith.addf %145, %149 : vector<16x128xf32>
      %151 = vector.extract_strided_slice %120 {offsets = [2, 0], sizes = [16, 64], strides = [1, 1]} : vector<18x72xf32> to vector<16x64xf32>
      %152 = vector.extract_strided_slice %8 {offsets = [24, 0, 0], sizes = [1, 64, 128], strides = [1, 1, 1]} : vector<27x64x128xf32> to vector<1x64x128xf32>
      %153 = vector.shape_cast %152 : vector<1x64x128xf32> to vector<64x128xf32>
      %cst_46 = arith.constant dense<0.000000e+00> : vector<16x128xf32>
      %154 = tpu.matmul %151, %153, %cst_46 {dimension_numbers = #tpu.dot_dimension_numbers<[1], [0], [0], [1], [0, 0, 1, 1], [], []>} : vector<16x64xf32>, vector<64x128xf32>, vector<16x128xf32> -> vector<16x128xf32>
      %155 = arith.addf %150, %154 : vector<16x128xf32>
      %156 = vector.extract_strided_slice %120 {offsets = [2, 4], sizes = [16, 64], strides = [1, 1]} : vector<18x72xf32> to vector<16x64xf32>
      %157 = vector.extract_strided_slice %8 {offsets = [25, 0, 0], sizes = [1, 64, 128], strides = [1, 1, 1]} : vector<27x64x128xf32> to vector<1x64x128xf32>
      %158 = vector.shape_cast %157 : vector<1x64x128xf32> to vector<64x128xf32>
      %cst_47 = arith.constant dense<0.000000e+00> : vector<16x128xf32>
      %159 = tpu.matmul %156, %158, %cst_47 {dimension_numbers = #tpu.dot_dimension_numbers<[1], [0], [0], [1], [0, 0, 1, 1], [], []>} : vector<16x64xf32>, vector<64x128xf32>, vector<16x128xf32> -> vector<16x128xf32>
      %160 = arith.addf %155, %159 : vector<16x128xf32>
      %161 = vector.extract_strided_slice %120 {offsets = [2, 8], sizes = [16, 64], strides = [1, 1]} : vector<18x72xf32> to vector<16x64xf32>
      %162 = vector.extract_strided_slice %8 {offsets = [26, 0, 0], sizes = [1, 64, 128], strides = [1, 1, 1]} : vector<27x64x128xf32> to vector<1x64x128xf32>
      %163 = vector.shape_cast %162 : vector<1x64x128xf32> to vector<64x128xf32>
      %cst_48 = arith.constant dense<0.000000e+00> : vector<16x128xf32>
      %164 = tpu.matmul %161, %163, %cst_48 {dimension_numbers = #tpu.dot_dimension_numbers<[1], [0], [0], [1], [0, 0, 1, 1], [], []>} : vector<16x64xf32>, vector<64x128xf32>, vector<16x128xf32> -> vector<16x128xf32>
      %165 = arith.addf %160, %164 : vector<16x128xf32>
      %c0_49 = arith.constant 0 : index
      %c0_50 = arith.constant 0 : index
      %166 = vector.load %arg6[%c0_49, %c0_50] : memref<1x128xf32, #tpu.memory_space<vmem>>, vector<1x128xf32>
      %167 = vector.broadcast %166 : vector<1x128xf32> to vector<16x128xf32>
      %168 = arith.addf %165, %167 : vector<16x128xf32>
      %cst_51 = arith.constant 0.000000e+00 : f32
      %169 = vector.broadcast %cst_51 : f32 to vector<16x128xf32>
      %170 = arith.cmpf oge, %168, %169 : vector<16x128xf32>
      %cst_52 = arith.constant 0.00999999977 : f32
      %171 = vector.broadcast %cst_52 : f32 to vector<16x128xf32>
      %172 = arith.mulf %171, %168 : vector<16x128xf32>
      %173 = arith.select %170, %168, %172 : vector<16x128xi1>, vector<16x128xf32>
      %cst_53 = arith.constant 0.000000e+00 : f32
      %174 = vector.broadcast %cst_53 : f32 to vector<18x144xf32>
      %c0_54 = arith.constant 0 : index
      %c0_55 = arith.constant 0 : index
      %c0_56 = arith.constant 0 : index
      %c0_57 = arith.constant 0 : index
      %175 = vector.load %arg7[%c0_54, %c0_55, %c0_56, %c0_57] : memref<1x1x18x144xf32, #tpu.memory_space<vmem>>, vector<1x1x18x144xf32>
      %176 = vector.shape_cast %175 : vector<1x1x18x144xf32> to vector<18x144xf32>
      %177 = vector.shape_cast %174 : vector<18x144xf32> to vector<1x1x18x144xf32>
      tpu.vector_store %arg7[%c0_54, %c0_55, %c0_56, %c0_57], %177 {strides = array<i32>} : memref<1x1x18x144xf32, #tpu.memory_space<vmem>>, vector<1x1x18x144xf32>,
      %c0_58 = arith.constant 0 : index
      %c0_59 = arith.constant 0 : index
      %c1 = arith.constant 1 : index
      %c8 = arith.constant 8 : index
      %178 = vector.load %arg7[%c0_58, %c0_59, %c1, %c8] : memref<1x1x18x144xf32, #tpu.memory_space<vmem>>, vector<1x1x16x128xf32>
      %179 = vector.shape_cast %178 : vector<1x1x16x128xf32> to vector<16x128xf32>
      %180 = vector.shape_cast %173 : vector<16x128xf32> to vector<1x1x16x128xf32>
      tpu.vector_store %arg7[%c0_58, %c0_59, %c1, %c8], %180 {strides = array<i32>} : memref<1x1x18x144xf32, #tpu.memory_space<vmem>>, vector<1x1x16x128xf32>,
    } else {
    }
    return
  }
  func.func @transform_0(%arg0: i32, %arg1: i32) -> (i32, i32, i32, i32) {
    %c-1_i32 = arith.constant -1 : i32
    %0 = arith.addi %arg1, %c-1_i32 : i32
    %c0_i32 = arith.constant 0 : i32
    %c5_i32 = arith.constant 5 : i32
    %1 = arith.maxsi %c0_i32, %0 : i32
    %2 = arith.minsi %c5_i32, %1 : i32
    %c0_i32_0 = arith.constant 0 : i32
    %c0_i32_1 = arith.constant 0 : i32
    %c0_i32_2 = arith.constant 0 : i32
    return %arg0, %2, %c0_i32_0, %c0_i32_1 : i32, i32, i32, i32
  }
  func.func @transform_1(%arg0: i32, %arg1: i32) -> (i32, i32, i32, i32) {
    %c0_i32 = arith.constant 0 : i32
    %0 = arith.addi %arg1, %c0_i32 : i32
    %c0_i32_0 = arith.constant 0 : i32
    %c5_i32 = arith.constant 5 : i32
    %1 = arith.maxsi %c0_i32_0, %0 : i32
    %2 = arith.minsi %c5_i32, %1 : i32
    %c0_i32_1 = arith.constant 0 : i32
    %c0_i32_2 = arith.constant 0 : i32
    %c0_i32_3 = arith.constant 0 : i32
    return %arg0, %2, %c0_i32_1, %c0_i32_2 : i32, i32, i32, i32
  }
  func.func @transform_2(%arg0: i32, %arg1: i32) -> (i32, i32, i32, i32) {
    %c1_i32 = arith.constant 1 : i32
    %0 = arith.addi %arg1, %c1_i32 : i32
    %c0_i32 = arith.constant 0 : i32
    %c5_i32 = arith.constant 5 : i32
    %1 = arith.maxsi %c0_i32, %0 : i32
    %2 = arith.minsi %c5_i32, %1 : i32
    %c0_i32_0 = arith.constant 0 : i32
    %c0_i32_1 = arith.constant 0 : i32
    %c0_i32_2 = arith.constant 0 : i32
    return %arg0, %2, %c0_i32_0, %c0_i32_1 : i32, i32, i32, i32
  }
  func.func @transform_3(%arg0: i32, %arg1: i32) -> (i32, i32, i32) {
    %c0_i32 = arith.constant 0 : i32
    %c0_i32_0 = arith.constant 0 : i32
    %c0_i32_1 = arith.constant 0 : i32
    %c0_i32_2 = arith.constant 0 : i32
    return %c0_i32, %c0_i32_0, %c0_i32_1 : i32, i32, i32
  }
  func.func @transform_4(%arg0: i32, %arg1: i32) -> (i32, i32) {
    %c0_i32 = arith.constant 0 : i32
    %c0_i32_0 = arith.constant 0 : i32
    %c0_i32_1 = arith.constant 0 : i32
    return %c0_i32, %c0_i32_0 : i32, i32
  }
  func.func @transform_5(%arg0: i32, %arg1: i32) -> (i32, i32, i32, i32) {
    %c0_i32 = arith.constant 0 : i32
    %c0_i32_0 = arith.constant 0 : i32
    %c0_i32_1 = arith.constant 0 : i32
    return %arg0, %arg1, %c0_i32, %c0_i32_0 : i32, i32, i32, i32
  }
}

module attributes {stable_mosaic.version = 11 : i64} {
  func.func @_conv2_pool_kernel(%arg0: i32, %arg1: i32, %arg2: memref<1x1x18x144xf32, #tpu.memory_space<vmem>>, %arg3: memref<1x1x18x144xf32, #tpu.memory_space<vmem>>, %arg4: memref<1x1x18x144xf32, #tpu.memory_space<vmem>>, %arg5: memref<1x1x18x144xf32, #tpu.memory_space<vmem>>, %arg6: memref<1x1x18x72xf32, #tpu.memory_space<vmem>>, %arg7: memref<1x1x18x72xf32, #tpu.memory_space<vmem>>, %arg8: memref<27x128x128xf32, #tpu.memory_space<vmem>>, %arg9: memref<1x128xf32, #tpu.memory_space<vmem>>, %arg10: memref<64x128xf32, #tpu.memory_space<vmem>>, %arg11: memref<1x128xf32, #tpu.memory_space<vmem>>, %arg12: memref<8x16xf32, #tpu.memory_space<vmem>>, %arg13: memref<128x64xf32, #tpu.memory_space<vmem>>, %arg14: memref<1x1x8x64xf32, #tpu.memory_space<vmem>>) attributes {dimension_semantics = [#tpu.dimension_semantics<parallel>, #tpu.dimension_semantics<parallel>], iteration_bounds = array<i64: 2, 2>, scalar_prefetch = 0 : i64, scratch_operands = 0 : i64, tpu.core_type = #tpu.core_type<tc>, window_params = [{transform_indices = @transform_0, window_bounds = array<i64: 1, 1, 18, 144>}, {transform_indices = @transform_1, window_bounds = array<i64: 1, 1, 18, 144>}, {transform_indices = @transform_2, window_bounds = array<i64: 1, 1, 18, 144>}, {transform_indices = @transform_3, window_bounds = array<i64: 1, 1, 18, 144>}, {transform_indices = @transform_4, window_bounds = array<i64: 1, 1, 18, 72>}, {transform_indices = @transform_5, window_bounds = array<i64: 1, 1, 18, 72>}, {pipeline_mode = #tpu.pipeline_mode<synchronous>, transform_indices = @transform_6, window_bounds = array<i64: 27, 128, 128>}, {pipeline_mode = #tpu.pipeline_mode<synchronous>, transform_indices = @transform_7, window_bounds = array<i64: 1, 128>}, {pipeline_mode = #tpu.pipeline_mode<synchronous>, transform_indices = @transform_8, window_bounds = array<i64: 64, 128>}, {pipeline_mode = #tpu.pipeline_mode<synchronous>, transform_indices = @transform_9, window_bounds = array<i64: 1, 128>}, {pipeline_mode = #tpu.pipeline_mode<synchronous>, transform_indices = @transform_10, window_bounds = array<i64: 8, 16>}, {pipeline_mode = #tpu.pipeline_mode<synchronous>, transform_indices = @transform_11, window_bounds = array<i64: 128, 64>}, {transform_indices = @transform_12, window_bounds = array<i64: 1, 1, 8, 64>}]} {
    %c0 = arith.constant 0 : index
    %c0_0 = arith.constant 0 : index
    %c0_1 = arith.constant 0 : index
    %0 = vector.load %arg8[%c0, %c0_0, %c0_1] : memref<27x128x128xf32, #tpu.memory_space<vmem>>, vector<27x128x128xf32>
    %c0_2 = arith.constant 0 : index
    %c0_3 = arith.constant 0 : index
    %1 = vector.load %arg9[%c0_2, %c0_3] : memref<1x128xf32, #tpu.memory_space<vmem>>, vector<1x128xf32>
    %c0_4 = arith.constant 0 : index
    %c0_5 = arith.constant 0 : index
    %2 = vector.load %arg10[%c0_4, %c0_5] : memref<64x128xf32, #tpu.memory_space<vmem>>, vector<64x128xf32>
    %c0_6 = arith.constant 0 : index
    %c0_7 = arith.constant 0 : index
    %3 = vector.load %arg11[%c0_6, %c0_7] : memref<1x128xf32, #tpu.memory_space<vmem>>, vector<1x128xf32>
    %c0_8 = arith.constant 0 : index
    %c0_9 = arith.constant 0 : index
    %4 = vector.load %arg12[%c0_8, %c0_9] : memref<8x16xf32, #tpu.memory_space<vmem>>, vector<8x16xf32>
    %c0_10 = arith.constant 0 : index
    %c0_11 = arith.constant 0 : index
    %5 = vector.load %arg13[%c0_10, %c0_11] : memref<128x64xf32, #tpu.memory_space<vmem>>, vector<128x64xf32>
    %cst = arith.constant 0.000000e+00 : f32
    %6 = vector.broadcast %cst : f32 to vector<8x128xf32>
    %cst_12 = arith.constant 0.000000e+00 : f32
    %7 = vector.broadcast %cst_12 : f32 to vector<16x128xf32>
    %c0_13 = arith.constant 0 : index
    %c0_14 = arith.constant 0 : index
    %c0_15 = arith.constant 0 : index
    %c0_16 = arith.constant 0 : index
    %8 = vector.load %arg2[%c0_13, %c0_14, %c0_15, %c0_16] : memref<1x1x18x144xf32, #tpu.memory_space<vmem>>, vector<1x1x18x144xf32>
    %9 = vector.shape_cast %8 : vector<1x1x18x144xf32> to vector<18x144xf32>
    %10 = vector.extract_strided_slice %9 {offsets = [0, 0], sizes = [16, 128], strides = [1, 1]} : vector<18x144xf32> to vector<16x128xf32>
    %11 = vector.extract_strided_slice %0 {offsets = [0, 0, 0], sizes = [1, 128, 128], strides = [1, 1, 1]} : vector<27x128x128xf32> to vector<1x128x128xf32>
    %12 = vector.shape_cast %11 : vector<1x128x128xf32> to vector<128x128xf32>
    %cst_17 = arith.constant dense<0.000000e+00> : vector<16x128xf32>
    %13 = tpu.matmul %10, %12, %cst_17 {dimension_numbers = #tpu.dot_dimension_numbers<[1], [0], [0], [1], [0, 0, 1, 1], [], []>} : vector<16x128xf32>, vector<128x128xf32>, vector<16x128xf32> -> vector<16x128xf32>
    %14 = arith.addf %7, %13 : vector<16x128xf32>
    %15 = vector.extract_strided_slice %9 {offsets = [0, 8], sizes = [16, 128], strides = [1, 1]} : vector<18x144xf32> to vector<16x128xf32>
    %16 = vector.extract_strided_slice %0 {offsets = [1, 0, 0], sizes = [1, 128, 128], strides = [1, 1, 1]} : vector<27x128x128xf32> to vector<1x128x128xf32>
    %17 = vector.shape_cast %16 : vector<1x128x128xf32> to vector<128x128xf32>
    %cst_18 = arith.constant dense<0.000000e+00> : vector<16x128xf32>
    %18 = tpu.matmul %15, %17, %cst_18 {dimension_numbers = #tpu.dot_dimension_numbers<[1], [0], [0], [1], [0, 0, 1, 1], [], []>} : vector<16x128xf32>, vector<128x128xf32>, vector<16x128xf32> -> vector<16x128xf32>
    %19 = arith.addf %14, %18 : vector<16x128xf32>
    %20 = vector.extract_strided_slice %9 {offsets = [0, 16], sizes = [16, 128], strides = [1, 1]} : vector<18x144xf32> to vector<16x128xf32>
    %21 = vector.extract_strided_slice %0 {offsets = [2, 0, 0], sizes = [1, 128, 128], strides = [1, 1, 1]} : vector<27x128x128xf32> to vector<1x128x128xf32>
    %22 = vector.shape_cast %21 : vector<1x128x128xf32> to vector<128x128xf32>
    %cst_19 = arith.constant dense<0.000000e+00> : vector<16x128xf32>
    %23 = tpu.matmul %20, %22, %cst_19 {dimension_numbers = #tpu.dot_dimension_numbers<[1], [0], [0], [1], [0, 0, 1, 1], [], []>} : vector<16x128xf32>, vector<128x128xf32>, vector<16x128xf32> -> vector<16x128xf32>
    %24 = arith.addf %19, %23 : vector<16x128xf32>
    %25 = vector.extract_strided_slice %9 {offsets = [1, 0], sizes = [16, 128], strides = [1, 1]} : vector<18x144xf32> to vector<16x128xf32>
    %26 = vector.extract_strided_slice %0 {offsets = [3, 0, 0], sizes = [1, 128, 128], strides = [1, 1, 1]} : vector<27x128x128xf32> to vector<1x128x128xf32>
    %27 = vector.shape_cast %26 : vector<1x128x128xf32> to vector<128x128xf32>
    %cst_20 = arith.constant dense<0.000000e+00> : vector<16x128xf32>
    %28 = tpu.matmul %25, %27, %cst_20 {dimension_numbers = #tpu.dot_dimension_numbers<[1], [0], [0], [1], [0, 0, 1, 1], [], []>} : vector<16x128xf32>, vector<128x128xf32>, vector<16x128xf32> -> vector<16x128xf32>
    %29 = arith.addf %24, %28 : vector<16x128xf32>
    %30 = vector.extract_strided_slice %9 {offsets = [1, 8], sizes = [16, 128], strides = [1, 1]} : vector<18x144xf32> to vector<16x128xf32>
    %31 = vector.extract_strided_slice %0 {offsets = [4, 0, 0], sizes = [1, 128, 128], strides = [1, 1, 1]} : vector<27x128x128xf32> to vector<1x128x128xf32>
    %32 = vector.shape_cast %31 : vector<1x128x128xf32> to vector<128x128xf32>
    %cst_21 = arith.constant dense<0.000000e+00> : vector<16x128xf32>
    %33 = tpu.matmul %30, %32, %cst_21 {dimension_numbers = #tpu.dot_dimension_numbers<[1], [0], [0], [1], [0, 0, 1, 1], [], []>} : vector<16x128xf32>, vector<128x128xf32>, vector<16x128xf32> -> vector<16x128xf32>
    %34 = arith.addf %29, %33 : vector<16x128xf32>
    %35 = vector.extract_strided_slice %9 {offsets = [1, 16], sizes = [16, 128], strides = [1, 1]} : vector<18x144xf32> to vector<16x128xf32>
    %36 = vector.extract_strided_slice %0 {offsets = [5, 0, 0], sizes = [1, 128, 128], strides = [1, 1, 1]} : vector<27x128x128xf32> to vector<1x128x128xf32>
    %37 = vector.shape_cast %36 : vector<1x128x128xf32> to vector<128x128xf32>
    %cst_22 = arith.constant dense<0.000000e+00> : vector<16x128xf32>
    %38 = tpu.matmul %35, %37, %cst_22 {dimension_numbers = #tpu.dot_dimension_numbers<[1], [0], [0], [1], [0, 0, 1, 1], [], []>} : vector<16x128xf32>, vector<128x128xf32>, vector<16x128xf32> -> vector<16x128xf32>
    %39 = arith.addf %34, %38 : vector<16x128xf32>
    %40 = vector.extract_strided_slice %9 {offsets = [2, 0], sizes = [16, 128], strides = [1, 1]} : vector<18x144xf32> to vector<16x128xf32>
    %41 = vector.extract_strided_slice %0 {offsets = [6, 0, 0], sizes = [1, 128, 128], strides = [1, 1, 1]} : vector<27x128x128xf32> to vector<1x128x128xf32>
    %42 = vector.shape_cast %41 : vector<1x128x128xf32> to vector<128x128xf32>
    %cst_23 = arith.constant dense<0.000000e+00> : vector<16x128xf32>
    %43 = tpu.matmul %40, %42, %cst_23 {dimension_numbers = #tpu.dot_dimension_numbers<[1], [0], [0], [1], [0, 0, 1, 1], [], []>} : vector<16x128xf32>, vector<128x128xf32>, vector<16x128xf32> -> vector<16x128xf32>
    %44 = arith.addf %39, %43 : vector<16x128xf32>
    %45 = vector.extract_strided_slice %9 {offsets = [2, 8], sizes = [16, 128], strides = [1, 1]} : vector<18x144xf32> to vector<16x128xf32>
    %46 = vector.extract_strided_slice %0 {offsets = [7, 0, 0], sizes = [1, 128, 128], strides = [1, 1, 1]} : vector<27x128x128xf32> to vector<1x128x128xf32>
    %47 = vector.shape_cast %46 : vector<1x128x128xf32> to vector<128x128xf32>
    %cst_24 = arith.constant dense<0.000000e+00> : vector<16x128xf32>
    %48 = tpu.matmul %45, %47, %cst_24 {dimension_numbers = #tpu.dot_dimension_numbers<[1], [0], [0], [1], [0, 0, 1, 1], [], []>} : vector<16x128xf32>, vector<128x128xf32>, vector<16x128xf32> -> vector<16x128xf32>
    %49 = arith.addf %44, %48 : vector<16x128xf32>
    %50 = vector.extract_strided_slice %9 {offsets = [2, 16], sizes = [16, 128], strides = [1, 1]} : vector<18x144xf32> to vector<16x128xf32>
    %51 = vector.extract_strided_slice %0 {offsets = [8, 0, 0], sizes = [1, 128, 128], strides = [1, 1, 1]} : vector<27x128x128xf32> to vector<1x128x128xf32>
    %52 = vector.shape_cast %51 : vector<1x128x128xf32> to vector<128x128xf32>
    %cst_25 = arith.constant dense<0.000000e+00> : vector<16x128xf32>
    %53 = tpu.matmul %50, %52, %cst_25 {dimension_numbers = #tpu.dot_dimension_numbers<[1], [0], [0], [1], [0, 0, 1, 1], [], []>} : vector<16x128xf32>, vector<128x128xf32>, vector<16x128xf32> -> vector<16x128xf32>
    %54 = arith.addf %49, %53 : vector<16x128xf32>
    %c0_26 = arith.constant 0 : index
    %c0_27 = arith.constant 0 : index
    %c0_28 = arith.constant 0 : index
    %c0_29 = arith.constant 0 : index
    %55 = vector.load %arg3[%c0_26, %c0_27, %c0_28, %c0_29] : memref<1x1x18x144xf32, #tpu.memory_space<vmem>>, vector<1x1x18x144xf32>
    %56 = vector.shape_cast %55 : vector<1x1x18x144xf32> to vector<18x144xf32>
    %57 = vector.extract_strided_slice %56 {offsets = [0, 0], sizes = [16, 128], strides = [1, 1]} : vector<18x144xf32> to vector<16x128xf32>
    %58 = vector.extract_strided_slice %0 {offsets = [9, 0, 0], sizes = [1, 128, 128], strides = [1, 1, 1]} : vector<27x128x128xf32> to vector<1x128x128xf32>
    %59 = vector.shape_cast %58 : vector<1x128x128xf32> to vector<128x128xf32>
    %cst_30 = arith.constant dense<0.000000e+00> : vector<16x128xf32>
    %60 = tpu.matmul %57, %59, %cst_30 {dimension_numbers = #tpu.dot_dimension_numbers<[1], [0], [0], [1], [0, 0, 1, 1], [], []>} : vector<16x128xf32>, vector<128x128xf32>, vector<16x128xf32> -> vector<16x128xf32>
    %61 = arith.addf %54, %60 : vector<16x128xf32>
    %62 = vector.extract_strided_slice %56 {offsets = [0, 8], sizes = [16, 128], strides = [1, 1]} : vector<18x144xf32> to vector<16x128xf32>
    %63 = vector.extract_strided_slice %0 {offsets = [10, 0, 0], sizes = [1, 128, 128], strides = [1, 1, 1]} : vector<27x128x128xf32> to vector<1x128x128xf32>
    %64 = vector.shape_cast %63 : vector<1x128x128xf32> to vector<128x128xf32>
    %cst_31 = arith.constant dense<0.000000e+00> : vector<16x128xf32>
    %65 = tpu.matmul %62, %64, %cst_31 {dimension_numbers = #tpu.dot_dimension_numbers<[1], [0], [0], [1], [0, 0, 1, 1], [], []>} : vector<16x128xf32>, vector<128x128xf32>, vector<16x128xf32> -> vector<16x128xf32>
    %66 = arith.addf %61, %65 : vector<16x128xf32>
    %67 = vector.extract_strided_slice %56 {offsets = [0, 16], sizes = [16, 128], strides = [1, 1]} : vector<18x144xf32> to vector<16x128xf32>
    %68 = vector.extract_strided_slice %0 {offsets = [11, 0, 0], sizes = [1, 128, 128], strides = [1, 1, 1]} : vector<27x128x128xf32> to vector<1x128x128xf32>
    %69 = vector.shape_cast %68 : vector<1x128x128xf32> to vector<128x128xf32>
    %cst_32 = arith.constant dense<0.000000e+00> : vector<16x128xf32>
    %70 = tpu.matmul %67, %69, %cst_32 {dimension_numbers = #tpu.dot_dimension_numbers<[1], [0], [0], [1], [0, 0, 1, 1], [], []>} : vector<16x128xf32>, vector<128x128xf32>, vector<16x128xf32> -> vector<16x128xf32>
    %71 = arith.addf %66, %70 : vector<16x128xf32>
    %72 = vector.extract_strided_slice %56 {offsets = [1, 0], sizes = [16, 128], strides = [1, 1]} : vector<18x144xf32> to vector<16x128xf32>
    %73 = vector.extract_strided_slice %0 {offsets = [12, 0, 0], sizes = [1, 128, 128], strides = [1, 1, 1]} : vector<27x128x128xf32> to vector<1x128x128xf32>
    %74 = vector.shape_cast %73 : vector<1x128x128xf32> to vector<128x128xf32>
    %cst_33 = arith.constant dense<0.000000e+00> : vector<16x128xf32>
    %75 = tpu.matmul %72, %74, %cst_33 {dimension_numbers = #tpu.dot_dimension_numbers<[1], [0], [0], [1], [0, 0, 1, 1], [], []>} : vector<16x128xf32>, vector<128x128xf32>, vector<16x128xf32> -> vector<16x128xf32>
    %76 = arith.addf %71, %75 : vector<16x128xf32>
    %77 = vector.extract_strided_slice %56 {offsets = [1, 8], sizes = [16, 128], strides = [1, 1]} : vector<18x144xf32> to vector<16x128xf32>
    %78 = vector.extract_strided_slice %0 {offsets = [13, 0, 0], sizes = [1, 128, 128], strides = [1, 1, 1]} : vector<27x128x128xf32> to vector<1x128x128xf32>
    %79 = vector.shape_cast %78 : vector<1x128x128xf32> to vector<128x128xf32>
    %cst_34 = arith.constant dense<0.000000e+00> : vector<16x128xf32>
    %80 = tpu.matmul %77, %79, %cst_34 {dimension_numbers = #tpu.dot_dimension_numbers<[1], [0], [0], [1], [0, 0, 1, 1], [], []>} : vector<16x128xf32>, vector<128x128xf32>, vector<16x128xf32> -> vector<16x128xf32>
    %81 = arith.addf %76, %80 : vector<16x128xf32>
    %82 = vector.extract_strided_slice %56 {offsets = [1, 16], sizes = [16, 128], strides = [1, 1]} : vector<18x144xf32> to vector<16x128xf32>
    %83 = vector.extract_strided_slice %0 {offsets = [14, 0, 0], sizes = [1, 128, 128], strides = [1, 1, 1]} : vector<27x128x128xf32> to vector<1x128x128xf32>
    %84 = vector.shape_cast %83 : vector<1x128x128xf32> to vector<128x128xf32>
    %cst_35 = arith.constant dense<0.000000e+00> : vector<16x128xf32>
    %85 = tpu.matmul %82, %84, %cst_35 {dimension_numbers = #tpu.dot_dimension_numbers<[1], [0], [0], [1], [0, 0, 1, 1], [], []>} : vector<16x128xf32>, vector<128x128xf32>, vector<16x128xf32> -> vector<16x128xf32>
    %86 = arith.addf %81, %85 : vector<16x128xf32>
    %87 = vector.extract_strided_slice %56 {offsets = [2, 0], sizes = [16, 128], strides = [1, 1]} : vector<18x144xf32> to vector<16x128xf32>
    %88 = vector.extract_strided_slice %0 {offsets = [15, 0, 0], sizes = [1, 128, 128], strides = [1, 1, 1]} : vector<27x128x128xf32> to vector<1x128x128xf32>
    %89 = vector.shape_cast %88 : vector<1x128x128xf32> to vector<128x128xf32>
    %cst_36 = arith.constant dense<0.000000e+00> : vector<16x128xf32>
    %90 = tpu.matmul %87, %89, %cst_36 {dimension_numbers = #tpu.dot_dimension_numbers<[1], [0], [0], [1], [0, 0, 1, 1], [], []>} : vector<16x128xf32>, vector<128x128xf32>, vector<16x128xf32> -> vector<16x128xf32>
    %91 = arith.addf %86, %90 : vector<16x128xf32>
    %92 = vector.extract_strided_slice %56 {offsets = [2, 8], sizes = [16, 128], strides = [1, 1]} : vector<18x144xf32> to vector<16x128xf32>
    %93 = vector.extract_strided_slice %0 {offsets = [16, 0, 0], sizes = [1, 128, 128], strides = [1, 1, 1]} : vector<27x128x128xf32> to vector<1x128x128xf32>
    %94 = vector.shape_cast %93 : vector<1x128x128xf32> to vector<128x128xf32>
    %cst_37 = arith.constant dense<0.000000e+00> : vector<16x128xf32>
    %95 = tpu.matmul %92, %94, %cst_37 {dimension_numbers = #tpu.dot_dimension_numbers<[1], [0], [0], [1], [0, 0, 1, 1], [], []>} : vector<16x128xf32>, vector<128x128xf32>, vector<16x128xf32> -> vector<16x128xf32>
    %96 = arith.addf %91, %95 : vector<16x128xf32>
    %97 = vector.extract_strided_slice %56 {offsets = [2, 16], sizes = [16, 128], strides = [1, 1]} : vector<18x144xf32> to vector<16x128xf32>
    %98 = vector.extract_strided_slice %0 {offsets = [17, 0, 0], sizes = [1, 128, 128], strides = [1, 1, 1]} : vector<27x128x128xf32> to vector<1x128x128xf32>
    %99 = vector.shape_cast %98 : vector<1x128x128xf32> to vector<128x128xf32>
    %cst_38 = arith.constant dense<0.000000e+00> : vector<16x128xf32>
    %100 = tpu.matmul %97, %99, %cst_38 {dimension_numbers = #tpu.dot_dimension_numbers<[1], [0], [0], [1], [0, 0, 1, 1], [], []>} : vector<16x128xf32>, vector<128x128xf32>, vector<16x128xf32> -> vector<16x128xf32>
    %101 = arith.addf %96, %100 : vector<16x128xf32>
    %c0_39 = arith.constant 0 : index
    %c0_40 = arith.constant 0 : index
    %c0_41 = arith.constant 0 : index
    %c0_42 = arith.constant 0 : index
    %102 = vector.load %arg4[%c0_39, %c0_40, %c0_41, %c0_42] : memref<1x1x18x144xf32, #tpu.memory_space<vmem>>, vector<1x1x18x144xf32>
    %103 = vector.shape_cast %102 : vector<1x1x18x144xf32> to vector<18x144xf32>
    %104 = vector.extract_strided_slice %103 {offsets = [0, 0], sizes = [16, 128], strides = [1, 1]} : vector<18x144xf32> to vector<16x128xf32>
    %105 = vector.extract_strided_slice %0 {offsets = [18, 0, 0], sizes = [1, 128, 128], strides = [1, 1, 1]} : vector<27x128x128xf32> to vector<1x128x128xf32>
    %106 = vector.shape_cast %105 : vector<1x128x128xf32> to vector<128x128xf32>
    %cst_43 = arith.constant dense<0.000000e+00> : vector<16x128xf32>
    %107 = tpu.matmul %104, %106, %cst_43 {dimension_numbers = #tpu.dot_dimension_numbers<[1], [0], [0], [1], [0, 0, 1, 1], [], []>} : vector<16x128xf32>, vector<128x128xf32>, vector<16x128xf32> -> vector<16x128xf32>
    %108 = arith.addf %101, %107 : vector<16x128xf32>
    %109 = vector.extract_strided_slice %103 {offsets = [0, 8], sizes = [16, 128], strides = [1, 1]} : vector<18x144xf32> to vector<16x128xf32>
    %110 = vector.extract_strided_slice %0 {offsets = [19, 0, 0], sizes = [1, 128, 128], strides = [1, 1, 1]} : vector<27x128x128xf32> to vector<1x128x128xf32>
    %111 = vector.shape_cast %110 : vector<1x128x128xf32> to vector<128x128xf32>
    %cst_44 = arith.constant dense<0.000000e+00> : vector<16x128xf32>
    %112 = tpu.matmul %109, %111, %cst_44 {dimension_numbers = #tpu.dot_dimension_numbers<[1], [0], [0], [1], [0, 0, 1, 1], [], []>} : vector<16x128xf32>, vector<128x128xf32>, vector<16x128xf32> -> vector<16x128xf32>
    %113 = arith.addf %108, %112 : vector<16x128xf32>
    %114 = vector.extract_strided_slice %103 {offsets = [0, 16], sizes = [16, 128], strides = [1, 1]} : vector<18x144xf32> to vector<16x128xf32>
    %115 = vector.extract_strided_slice %0 {offsets = [20, 0, 0], sizes = [1, 128, 128], strides = [1, 1, 1]} : vector<27x128x128xf32> to vector<1x128x128xf32>
    %116 = vector.shape_cast %115 : vector<1x128x128xf32> to vector<128x128xf32>
    %cst_45 = arith.constant dense<0.000000e+00> : vector<16x128xf32>
    %117 = tpu.matmul %114, %116, %cst_45 {dimension_numbers = #tpu.dot_dimension_numbers<[1], [0], [0], [1], [0, 0, 1, 1], [], []>} : vector<16x128xf32>, vector<128x128xf32>, vector<16x128xf32> -> vector<16x128xf32>
    %118 = arith.addf %113, %117 : vector<16x128xf32>
    %119 = vector.extract_strided_slice %103 {offsets = [1, 0], sizes = [16, 128], strides = [1, 1]} : vector<18x144xf32> to vector<16x128xf32>
    %120 = vector.extract_strided_slice %0 {offsets = [21, 0, 0], sizes = [1, 128, 128], strides = [1, 1, 1]} : vector<27x128x128xf32> to vector<1x128x128xf32>
    %121 = vector.shape_cast %120 : vector<1x128x128xf32> to vector<128x128xf32>
    %cst_46 = arith.constant dense<0.000000e+00> : vector<16x128xf32>
    %122 = tpu.matmul %119, %121, %cst_46 {dimension_numbers = #tpu.dot_dimension_numbers<[1], [0], [0], [1], [0, 0, 1, 1], [], []>} : vector<16x128xf32>, vector<128x128xf32>, vector<16x128xf32> -> vector<16x128xf32>
    %123 = arith.addf %118, %122 : vector<16x128xf32>
    %124 = vector.extract_strided_slice %103 {offsets = [1, 8], sizes = [16, 128], strides = [1, 1]} : vector<18x144xf32> to vector<16x128xf32>
    %125 = vector.extract_strided_slice %0 {offsets = [22, 0, 0], sizes = [1, 128, 128], strides = [1, 1, 1]} : vector<27x128x128xf32> to vector<1x128x128xf32>
    %126 = vector.shape_cast %125 : vector<1x128x128xf32> to vector<128x128xf32>
    %cst_47 = arith.constant dense<0.000000e+00> : vector<16x128xf32>
    %127 = tpu.matmul %124, %126, %cst_47 {dimension_numbers = #tpu.dot_dimension_numbers<[1], [0], [0], [1], [0, 0, 1, 1], [], []>} : vector<16x128xf32>, vector<128x128xf32>, vector<16x128xf32> -> vector<16x128xf32>
    %128 = arith.addf %123, %127 : vector<16x128xf32>
    %129 = vector.extract_strided_slice %103 {offsets = [1, 16], sizes = [16, 128], strides = [1, 1]} : vector<18x144xf32> to vector<16x128xf32>
    %130 = vector.extract_strided_slice %0 {offsets = [23, 0, 0], sizes = [1, 128, 128], strides = [1, 1, 1]} : vector<27x128x128xf32> to vector<1x128x128xf32>
    %131 = vector.shape_cast %130 : vector<1x128x128xf32> to vector<128x128xf32>
    %cst_48 = arith.constant dense<0.000000e+00> : vector<16x128xf32>
    %132 = tpu.matmul %129, %131, %cst_48 {dimension_numbers = #tpu.dot_dimension_numbers<[1], [0], [0], [1], [0, 0, 1, 1], [], []>} : vector<16x128xf32>, vector<128x128xf32>, vector<16x128xf32> -> vector<16x128xf32>
    %133 = arith.addf %128, %132 : vector<16x128xf32>
    %134 = vector.extract_strided_slice %103 {offsets = [2, 0], sizes = [16, 128], strides = [1, 1]} : vector<18x144xf32> to vector<16x128xf32>
    %135 = vector.extract_strided_slice %0 {offsets = [24, 0, 0], sizes = [1, 128, 128], strides = [1, 1, 1]} : vector<27x128x128xf32> to vector<1x128x128xf32>
    %136 = vector.shape_cast %135 : vector<1x128x128xf32> to vector<128x128xf32>
    %cst_49 = arith.constant dense<0.000000e+00> : vector<16x128xf32>
    %137 = tpu.matmul %134, %136, %cst_49 {dimension_numbers = #tpu.dot_dimension_numbers<[1], [0], [0], [1], [0, 0, 1, 1], [], []>} : vector<16x128xf32>, vector<128x128xf32>, vector<16x128xf32> -> vector<16x128xf32>
    %138 = arith.addf %133, %137 : vector<16x128xf32>
    %139 = vector.extract_strided_slice %103 {offsets = [2, 8], sizes = [16, 128], strides = [1, 1]} : vector<18x144xf32> to vector<16x128xf32>
    %140 = vector.extract_strided_slice %0 {offsets = [25, 0, 0], sizes = [1, 128, 128], strides = [1, 1, 1]} : vector<27x128x128xf32> to vector<1x128x128xf32>
    %141 = vector.shape_cast %140 : vector<1x128x128xf32> to vector<128x128xf32>
    %cst_50 = arith.constant dense<0.000000e+00> : vector<16x128xf32>
    %142 = tpu.matmul %139, %141, %cst_50 {dimension_numbers = #tpu.dot_dimension_numbers<[1], [0], [0], [1], [0, 0, 1, 1], [], []>} : vector<16x128xf32>, vector<128x128xf32>, vector<16x128xf32> -> vector<16x128xf32>
    %143 = arith.addf %138, %142 : vector<16x128xf32>
    %144 = vector.extract_strided_slice %103 {offsets = [2, 16], sizes = [16, 128], strides = [1, 1]} : vector<18x144xf32> to vector<16x128xf32>
    %145 = vector.extract_strided_slice %0 {offsets = [26, 0, 0], sizes = [1, 128, 128], strides = [1, 1, 1]} : vector<27x128x128xf32> to vector<1x128x128xf32>
    %146 = vector.shape_cast %145 : vector<1x128x128xf32> to vector<128x128xf32>
    %cst_51 = arith.constant dense<0.000000e+00> : vector<16x128xf32>
    %147 = tpu.matmul %144, %146, %cst_51 {dimension_numbers = #tpu.dot_dimension_numbers<[1], [0], [0], [1], [0, 0, 1, 1], [], []>} : vector<16x128xf32>, vector<128x128xf32>, vector<16x128xf32> -> vector<16x128xf32>
    %148 = arith.addf %143, %147 : vector<16x128xf32>
    %149 = vector.broadcast %1 : vector<1x128xf32> to vector<16x128xf32>
    %150 = arith.addf %148, %149 : vector<16x128xf32>
    %c0_52 = arith.constant 0 : index
    %c0_53 = arith.constant 0 : index
    %c1 = arith.constant 1 : index
    %c4 = arith.constant 4 : index
    %151 = vector.load %arg6[%c0_52, %c0_53, %c1, %c4] : memref<1x1x18x72xf32, #tpu.memory_space<vmem>>, vector<1x1x16x64xf32>
    %152 = vector.shape_cast %151 : vector<1x1x16x64xf32> to vector<16x64xf32>
    %cst_54 = arith.constant dense<0.000000e+00> : vector<16x128xf32>
    %153 = tpu.matmul %152, %2, %cst_54 {dimension_numbers = #tpu.dot_dimension_numbers<[1], [0], [0], [1], [0, 0, 1, 1], [], []>} : vector<16x64xf32>, vector<64x128xf32>, vector<16x128xf32> -> vector<16x128xf32>
    %154 = vector.broadcast %3 : vector<1x128xf32> to vector<16x128xf32>
    %155 = arith.addf %153, %154 : vector<16x128xf32>
    %156 = arith.addf %150, %155 : vector<16x128xf32>
    %cst_55 = arith.constant dense<0.000000e+00> : vector<8x128xf32>
    %157 = tpu.matmul %4, %156, %cst_55 {dimension_numbers = #tpu.dot_dimension_numbers<[1], [0], [0], [1], [0, 0, 1, 1], [], []>} : vector<8x16xf32>, vector<16x128xf32>, vector<8x128xf32> -> vector<8x128xf32>
    %158 = arith.addf %6, %157 : vector<8x128xf32>
    %cst_56 = arith.constant 0.000000e+00 : f32
    %159 = vector.broadcast %cst_56 : f32 to vector<16x128xf32>
    %c0_57 = arith.constant 0 : index
    %c0_58 = arith.constant 0 : index
    %c0_59 = arith.constant 0 : index
    %c0_60 = arith.constant 0 : index
    %160 = vector.load %arg3[%c0_57, %c0_58, %c0_59, %c0_60] : memref<1x1x18x144xf32, #tpu.memory_space<vmem>>, vector<1x1x18x144xf32>
    %161 = vector.shape_cast %160 : vector<1x1x18x144xf32> to vector<18x144xf32>
    %162 = vector.extract_strided_slice %161 {offsets = [0, 0], sizes = [16, 128], strides = [1, 1]} : vector<18x144xf32> to vector<16x128xf32>
    %163 = vector.extract_strided_slice %0 {offsets = [0, 0, 0], sizes = [1, 128, 128], strides = [1, 1, 1]} : vector<27x128x128xf32> to vector<1x128x128xf32>
    %164 = vector.shape_cast %163 : vector<1x128x128xf32> to vector<128x128xf32>
    %cst_61 = arith.constant dense<0.000000e+00> : vector<16x128xf32>
    %165 = tpu.matmul %162, %164, %cst_61 {dimension_numbers = #tpu.dot_dimension_numbers<[1], [0], [0], [1], [0, 0, 1, 1], [], []>} : vector<16x128xf32>, vector<128x128xf32>, vector<16x128xf32> -> vector<16x128xf32>
    %166 = arith.addf %159, %165 : vector<16x128xf32>
    %167 = vector.extract_strided_slice %161 {offsets = [0, 8], sizes = [16, 128], strides = [1, 1]} : vector<18x144xf32> to vector<16x128xf32>
    %168 = vector.extract_strided_slice %0 {offsets = [1, 0, 0], sizes = [1, 128, 128], strides = [1, 1, 1]} : vector<27x128x128xf32> to vector<1x128x128xf32>
    %169 = vector.shape_cast %168 : vector<1x128x128xf32> to vector<128x128xf32>
    %cst_62 = arith.constant dense<0.000000e+00> : vector<16x128xf32>
    %170 = tpu.matmul %167, %169, %cst_62 {dimension_numbers = #tpu.dot_dimension_numbers<[1], [0], [0], [1], [0, 0, 1, 1], [], []>} : vector<16x128xf32>, vector<128x128xf32>, vector<16x128xf32> -> vector<16x128xf32>
    %171 = arith.addf %166, %170 : vector<16x128xf32>
    %172 = vector.extract_strided_slice %161 {offsets = [0, 16], sizes = [16, 128], strides = [1, 1]} : vector<18x144xf32> to vector<16x128xf32>
    %173 = vector.extract_strided_slice %0 {offsets = [2, 0, 0], sizes = [1, 128, 128], strides = [1, 1, 1]} : vector<27x128x128xf32> to vector<1x128x128xf32>
    %174 = vector.shape_cast %173 : vector<1x128x128xf32> to vector<128x128xf32>
    %cst_63 = arith.constant dense<0.000000e+00> : vector<16x128xf32>
    %175 = tpu.matmul %172, %174, %cst_63 {dimension_numbers = #tpu.dot_dimension_numbers<[1], [0], [0], [1], [0, 0, 1, 1], [], []>} : vector<16x128xf32>, vector<128x128xf32>, vector<16x128xf32> -> vector<16x128xf32>
    %176 = arith.addf %171, %175 : vector<16x128xf32>
    %177 = vector.extract_strided_slice %161 {offsets = [1, 0], sizes = [16, 128], strides = [1, 1]} : vector<18x144xf32> to vector<16x128xf32>
    %178 = vector.extract_strided_slice %0 {offsets = [3, 0, 0], sizes = [1, 128, 128], strides = [1, 1, 1]} : vector<27x128x128xf32> to vector<1x128x128xf32>
    %179 = vector.shape_cast %178 : vector<1x128x128xf32> to vector<128x128xf32>
    %cst_64 = arith.constant dense<0.000000e+00> : vector<16x128xf32>
    %180 = tpu.matmul %177, %179, %cst_64 {dimension_numbers = #tpu.dot_dimension_numbers<[1], [0], [0], [1], [0, 0, 1, 1], [], []>} : vector<16x128xf32>, vector<128x128xf32>, vector<16x128xf32> -> vector<16x128xf32>
    %181 = arith.addf %176, %180 : vector<16x128xf32>
    %182 = vector.extract_strided_slice %161 {offsets = [1, 8], sizes = [16, 128], strides = [1, 1]} : vector<18x144xf32> to vector<16x128xf32>
    %183 = vector.extract_strided_slice %0 {offsets = [4, 0, 0], sizes = [1, 128, 128], strides = [1, 1, 1]} : vector<27x128x128xf32> to vector<1x128x128xf32>
    %184 = vector.shape_cast %183 : vector<1x128x128xf32> to vector<128x128xf32>
    %cst_65 = arith.constant dense<0.000000e+00> : vector<16x128xf32>
    %185 = tpu.matmul %182, %184, %cst_65 {dimension_numbers = #tpu.dot_dimension_numbers<[1], [0], [0], [1], [0, 0, 1, 1], [], []>} : vector<16x128xf32>, vector<128x128xf32>, vector<16x128xf32> -> vector<16x128xf32>
    %186 = arith.addf %181, %185 : vector<16x128xf32>
    %187 = vector.extract_strided_slice %161 {offsets = [1, 16], sizes = [16, 128], strides = [1, 1]} : vector<18x144xf32> to vector<16x128xf32>
    %188 = vector.extract_strided_slice %0 {offsets = [5, 0, 0], sizes = [1, 128, 128], strides = [1, 1, 1]} : vector<27x128x128xf32> to vector<1x128x128xf32>
    %189 = vector.shape_cast %188 : vector<1x128x128xf32> to vector<128x128xf32>
    %cst_66 = arith.constant dense<0.000000e+00> : vector<16x128xf32>
    %190 = tpu.matmul %187, %189, %cst_66 {dimension_numbers = #tpu.dot_dimension_numbers<[1], [0], [0], [1], [0, 0, 1, 1], [], []>} : vector<16x128xf32>, vector<128x128xf32>, vector<16x128xf32> -> vector<16x128xf32>
    %191 = arith.addf %186, %190 : vector<16x128xf32>
    %192 = vector.extract_strided_slice %161 {offsets = [2, 0], sizes = [16, 128], strides = [1, 1]} : vector<18x144xf32> to vector<16x128xf32>
    %193 = vector.extract_strided_slice %0 {offsets = [6, 0, 0], sizes = [1, 128, 128], strides = [1, 1, 1]} : vector<27x128x128xf32> to vector<1x128x128xf32>
    %194 = vector.shape_cast %193 : vector<1x128x128xf32> to vector<128x128xf32>
    %cst_67 = arith.constant dense<0.000000e+00> : vector<16x128xf32>
    %195 = tpu.matmul %192, %194, %cst_67 {dimension_numbers = #tpu.dot_dimension_numbers<[1], [0], [0], [1], [0, 0, 1, 1], [], []>} : vector<16x128xf32>, vector<128x128xf32>, vector<16x128xf32> -> vector<16x128xf32>
    %196 = arith.addf %191, %195 : vector<16x128xf32>
    %197 = vector.extract_strided_slice %161 {offsets = [2, 8], sizes = [16, 128], strides = [1, 1]} : vector<18x144xf32> to vector<16x128xf32>
    %198 = vector.extract_strided_slice %0 {offsets = [7, 0, 0], sizes = [1, 128, 128], strides = [1, 1, 1]} : vector<27x128x128xf32> to vector<1x128x128xf32>
    %199 = vector.shape_cast %198 : vector<1x128x128xf32> to vector<128x128xf32>
    %cst_68 = arith.constant dense<0.000000e+00> : vector<16x128xf32>
    %200 = tpu.matmul %197, %199, %cst_68 {dimension_numbers = #tpu.dot_dimension_numbers<[1], [0], [0], [1], [0, 0, 1, 1], [], []>} : vector<16x128xf32>, vector<128x128xf32>, vector<16x128xf32> -> vector<16x128xf32>
    %201 = arith.addf %196, %200 : vector<16x128xf32>
    %202 = vector.extract_strided_slice %161 {offsets = [2, 16], sizes = [16, 128], strides = [1, 1]} : vector<18x144xf32> to vector<16x128xf32>
    %203 = vector.extract_strided_slice %0 {offsets = [8, 0, 0], sizes = [1, 128, 128], strides = [1, 1, 1]} : vector<27x128x128xf32> to vector<1x128x128xf32>
    %204 = vector.shape_cast %203 : vector<1x128x128xf32> to vector<128x128xf32>
    %cst_69 = arith.constant dense<0.000000e+00> : vector<16x128xf32>
    %205 = tpu.matmul %202, %204, %cst_69 {dimension_numbers = #tpu.dot_dimension_numbers<[1], [0], [0], [1], [0, 0, 1, 1], [], []>} : vector<16x128xf32>, vector<128x128xf32>, vector<16x128xf32> -> vector<16x128xf32>
    %206 = arith.addf %201, %205 : vector<16x128xf32>
    %c0_70 = arith.constant 0 : index
    %c0_71 = arith.constant 0 : index
    %c0_72 = arith.constant 0 : index
    %c0_73 = arith.constant 0 : index
    %207 = vector.load %arg4[%c0_70, %c0_71, %c0_72, %c0_73] : memref<1x1x18x144xf32, #tpu.memory_space<vmem>>, vector<1x1x18x144xf32>
    %208 = vector.shape_cast %207 : vector<1x1x18x144xf32> to vector<18x144xf32>
    %209 = vector.extract_strided_slice %208 {offsets = [0, 0], sizes = [16, 128], strides = [1, 1]} : vector<18x144xf32> to vector<16x128xf32>
    %210 = vector.extract_strided_slice %0 {offsets = [9, 0, 0], sizes = [1, 128, 128], strides = [1, 1, 1]} : vector<27x128x128xf32> to vector<1x128x128xf32>
    %211 = vector.shape_cast %210 : vector<1x128x128xf32> to vector<128x128xf32>
    %cst_74 = arith.constant dense<0.000000e+00> : vector<16x128xf32>
    %212 = tpu.matmul %209, %211, %cst_74 {dimension_numbers = #tpu.dot_dimension_numbers<[1], [0], [0], [1], [0, 0, 1, 1], [], []>} : vector<16x128xf32>, vector<128x128xf32>, vector<16x128xf32> -> vector<16x128xf32>
    %213 = arith.addf %206, %212 : vector<16x128xf32>
    %214 = vector.extract_strided_slice %208 {offsets = [0, 8], sizes = [16, 128], strides = [1, 1]} : vector<18x144xf32> to vector<16x128xf32>
    %215 = vector.extract_strided_slice %0 {offsets = [10, 0, 0], sizes = [1, 128, 128], strides = [1, 1, 1]} : vector<27x128x128xf32> to vector<1x128x128xf32>
    %216 = vector.shape_cast %215 : vector<1x128x128xf32> to vector<128x128xf32>
    %cst_75 = arith.constant dense<0.000000e+00> : vector<16x128xf32>
    %217 = tpu.matmul %214, %216, %cst_75 {dimension_numbers = #tpu.dot_dimension_numbers<[1], [0], [0], [1], [0, 0, 1, 1], [], []>} : vector<16x128xf32>, vector<128x128xf32>, vector<16x128xf32> -> vector<16x128xf32>
    %218 = arith.addf %213, %217 : vector<16x128xf32>
    %219 = vector.extract_strided_slice %208 {offsets = [0, 16], sizes = [16, 128], strides = [1, 1]} : vector<18x144xf32> to vector<16x128xf32>
    %220 = vector.extract_strided_slice %0 {offsets = [11, 0, 0], sizes = [1, 128, 128], strides = [1, 1, 1]} : vector<27x128x128xf32> to vector<1x128x128xf32>
    %221 = vector.shape_cast %220 : vector<1x128x128xf32> to vector<128x128xf32>
    %cst_76 = arith.constant dense<0.000000e+00> : vector<16x128xf32>
    %222 = tpu.matmul %219, %221, %cst_76 {dimension_numbers = #tpu.dot_dimension_numbers<[1], [0], [0], [1], [0, 0, 1, 1], [], []>} : vector<16x128xf32>, vector<128x128xf32>, vector<16x128xf32> -> vector<16x128xf32>
    %223 = arith.addf %218, %222 : vector<16x128xf32>
    %224 = vector.extract_strided_slice %208 {offsets = [1, 0], sizes = [16, 128], strides = [1, 1]} : vector<18x144xf32> to vector<16x128xf32>
    %225 = vector.extract_strided_slice %0 {offsets = [12, 0, 0], sizes = [1, 128, 128], strides = [1, 1, 1]} : vector<27x128x128xf32> to vector<1x128x128xf32>
    %226 = vector.shape_cast %225 : vector<1x128x128xf32> to vector<128x128xf32>
    %cst_77 = arith.constant dense<0.000000e+00> : vector<16x128xf32>
    %227 = tpu.matmul %224, %226, %cst_77 {dimension_numbers = #tpu.dot_dimension_numbers<[1], [0], [0], [1], [0, 0, 1, 1], [], []>} : vector<16x128xf32>, vector<128x128xf32>, vector<16x128xf32> -> vector<16x128xf32>
    %228 = arith.addf %223, %227 : vector<16x128xf32>
    %229 = vector.extract_strided_slice %208 {offsets = [1, 8], sizes = [16, 128], strides = [1, 1]} : vector<18x144xf32> to vector<16x128xf32>
    %230 = vector.extract_strided_slice %0 {offsets = [13, 0, 0], sizes = [1, 128, 128], strides = [1, 1, 1]} : vector<27x128x128xf32> to vector<1x128x128xf32>
    %231 = vector.shape_cast %230 : vector<1x128x128xf32> to vector<128x128xf32>
    %cst_78 = arith.constant dense<0.000000e+00> : vector<16x128xf32>
    %232 = tpu.matmul %229, %231, %cst_78 {dimension_numbers = #tpu.dot_dimension_numbers<[1], [0], [0], [1], [0, 0, 1, 1], [], []>} : vector<16x128xf32>, vector<128x128xf32>, vector<16x128xf32> -> vector<16x128xf32>
    %233 = arith.addf %228, %232 : vector<16x128xf32>
    %234 = vector.extract_strided_slice %208 {offsets = [1, 16], sizes = [16, 128], strides = [1, 1]} : vector<18x144xf32> to vector<16x128xf32>
    %235 = vector.extract_strided_slice %0 {offsets = [14, 0, 0], sizes = [1, 128, 128], strides = [1, 1, 1]} : vector<27x128x128xf32> to vector<1x128x128xf32>
    %236 = vector.shape_cast %235 : vector<1x128x128xf32> to vector<128x128xf32>
    %cst_79 = arith.constant dense<0.000000e+00> : vector<16x128xf32>
    %237 = tpu.matmul %234, %236, %cst_79 {dimension_numbers = #tpu.dot_dimension_numbers<[1], [0], [0], [1], [0, 0, 1, 1], [], []>} : vector<16x128xf32>, vector<128x128xf32>, vector<16x128xf32> -> vector<16x128xf32>
    %238 = arith.addf %233, %237 : vector<16x128xf32>
    %239 = vector.extract_strided_slice %208 {offsets = [2, 0], sizes = [16, 128], strides = [1, 1]} : vector<18x144xf32> to vector<16x128xf32>
    %240 = vector.extract_strided_slice %0 {offsets = [15, 0, 0], sizes = [1, 128, 128], strides = [1, 1, 1]} : vector<27x128x128xf32> to vector<1x128x128xf32>
    %241 = vector.shape_cast %240 : vector<1x128x128xf32> to vector<128x128xf32>
    %cst_80 = arith.constant dense<0.000000e+00> : vector<16x128xf32>
    %242 = tpu.matmul %239, %241, %cst_80 {dimension_numbers = #tpu.dot_dimension_numbers<[1], [0], [0], [1], [0, 0, 1, 1], [], []>} : vector<16x128xf32>, vector<128x128xf32>, vector<16x128xf32> -> vector<16x128xf32>
    %243 = arith.addf %238, %242 : vector<16x128xf32>
    %244 = vector.extract_strided_slice %208 {offsets = [2, 8], sizes = [16, 128], strides = [1, 1]} : vector<18x144xf32> to vector<16x128xf32>
    %245 = vector.extract_strided_slice %0 {offsets = [16, 0, 0], sizes = [1, 128, 128], strides = [1, 1, 1]} : vector<27x128x128xf32> to vector<1x128x128xf32>
    %246 = vector.shape_cast %245 : vector<1x128x128xf32> to vector<128x128xf32>
    %cst_81 = arith.constant dense<0.000000e+00> : vector<16x128xf32>
    %247 = tpu.matmul %244, %246, %cst_81 {dimension_numbers = #tpu.dot_dimension_numbers<[1], [0], [0], [1], [0, 0, 1, 1], [], []>} : vector<16x128xf32>, vector<128x128xf32>, vector<16x128xf32> -> vector<16x128xf32>
    %248 = arith.addf %243, %247 : vector<16x128xf32>
    %249 = vector.extract_strided_slice %208 {offsets = [2, 16], sizes = [16, 128], strides = [1, 1]} : vector<18x144xf32> to vector<16x128xf32>
    %250 = vector.extract_strided_slice %0 {offsets = [17, 0, 0], sizes = [1, 128, 128], strides = [1, 1, 1]} : vector<27x128x128xf32> to vector<1x128x128xf32>
    %251 = vector.shape_cast %250 : vector<1x128x128xf32> to vector<128x128xf32>
    %cst_82 = arith.constant dense<0.000000e+00> : vector<16x128xf32>
    %252 = tpu.matmul %249, %251, %cst_82 {dimension_numbers = #tpu.dot_dimension_numbers<[1], [0], [0], [1], [0, 0, 1, 1], [], []>} : vector<16x128xf32>, vector<128x128xf32>, vector<16x128xf32> -> vector<16x128xf32>
    %253 = arith.addf %248, %252 : vector<16x128xf32>
    %c0_83 = arith.constant 0 : index
    %c0_84 = arith.constant 0 : index
    %c0_85 = arith.constant 0 : index
    %c0_86 = arith.constant 0 : index
    %254 = vector.load %arg5[%c0_83, %c0_84, %c0_85, %c0_86] : memref<1x1x18x144xf32, #tpu.memory_space<vmem>>, vector<1x1x18x144xf32>
    %255 = vector.shape_cast %254 : vector<1x1x18x144xf32> to vector<18x144xf32>
    %256 = vector.extract_strided_slice %255 {offsets = [0, 0], sizes = [16, 128], strides = [1, 1]} : vector<18x144xf32> to vector<16x128xf32>
    %257 = vector.extract_strided_slice %0 {offsets = [18, 0, 0], sizes = [1, 128, 128], strides = [1, 1, 1]} : vector<27x128x128xf32> to vector<1x128x128xf32>
    %258 = vector.shape_cast %257 : vector<1x128x128xf32> to vector<128x128xf32>
    %cst_87 = arith.constant dense<0.000000e+00> : vector<16x128xf32>
    %259 = tpu.matmul %256, %258, %cst_87 {dimension_numbers = #tpu.dot_dimension_numbers<[1], [0], [0], [1], [0, 0, 1, 1], [], []>} : vector<16x128xf32>, vector<128x128xf32>, vector<16x128xf32> -> vector<16x128xf32>
    %260 = arith.addf %253, %259 : vector<16x128xf32>
    %261 = vector.extract_strided_slice %255 {offsets = [0, 8], sizes = [16, 128], strides = [1, 1]} : vector<18x144xf32> to vector<16x128xf32>
    %262 = vector.extract_strided_slice %0 {offsets = [19, 0, 0], sizes = [1, 128, 128], strides = [1, 1, 1]} : vector<27x128x128xf32> to vector<1x128x128xf32>
    %263 = vector.shape_cast %262 : vector<1x128x128xf32> to vector<128x128xf32>
    %cst_88 = arith.constant dense<0.000000e+00> : vector<16x128xf32>
    %264 = tpu.matmul %261, %263, %cst_88 {dimension_numbers = #tpu.dot_dimension_numbers<[1], [0], [0], [1], [0, 0, 1, 1], [], []>} : vector<16x128xf32>, vector<128x128xf32>, vector<16x128xf32> -> vector<16x128xf32>
    %265 = arith.addf %260, %264 : vector<16x128xf32>
    %266 = vector.extract_strided_slice %255 {offsets = [0, 16], sizes = [16, 128], strides = [1, 1]} : vector<18x144xf32> to vector<16x128xf32>
    %267 = vector.extract_strided_slice %0 {offsets = [20, 0, 0], sizes = [1, 128, 128], strides = [1, 1, 1]} : vector<27x128x128xf32> to vector<1x128x128xf32>
    %268 = vector.shape_cast %267 : vector<1x128x128xf32> to vector<128x128xf32>
    %cst_89 = arith.constant dense<0.000000e+00> : vector<16x128xf32>
    %269 = tpu.matmul %266, %268, %cst_89 {dimension_numbers = #tpu.dot_dimension_numbers<[1], [0], [0], [1], [0, 0, 1, 1], [], []>} : vector<16x128xf32>, vector<128x128xf32>, vector<16x128xf32> -> vector<16x128xf32>
    %270 = arith.addf %265, %269 : vector<16x128xf32>
    %271 = vector.extract_strided_slice %255 {offsets = [1, 0], sizes = [16, 128], strides = [1, 1]} : vector<18x144xf32> to vector<16x128xf32>
    %272 = vector.extract_strided_slice %0 {offsets = [21, 0, 0], sizes = [1, 128, 128], strides = [1, 1, 1]} : vector<27x128x128xf32> to vector<1x128x128xf32>
    %273 = vector.shape_cast %272 : vector<1x128x128xf32> to vector<128x128xf32>
    %cst_90 = arith.constant dense<0.000000e+00> : vector<16x128xf32>
    %274 = tpu.matmul %271, %273, %cst_90 {dimension_numbers = #tpu.dot_dimension_numbers<[1], [0], [0], [1], [0, 0, 1, 1], [], []>} : vector<16x128xf32>, vector<128x128xf32>, vector<16x128xf32> -> vector<16x128xf32>
    %275 = arith.addf %270, %274 : vector<16x128xf32>
    %276 = vector.extract_strided_slice %255 {offsets = [1, 8], sizes = [16, 128], strides = [1, 1]} : vector<18x144xf32> to vector<16x128xf32>
    %277 = vector.extract_strided_slice %0 {offsets = [22, 0, 0], sizes = [1, 128, 128], strides = [1, 1, 1]} : vector<27x128x128xf32> to vector<1x128x128xf32>
    %278 = vector.shape_cast %277 : vector<1x128x128xf32> to vector<128x128xf32>
    %cst_91 = arith.constant dense<0.000000e+00> : vector<16x128xf32>
    %279 = tpu.matmul %276, %278, %cst_91 {dimension_numbers = #tpu.dot_dimension_numbers<[1], [0], [0], [1], [0, 0, 1, 1], [], []>} : vector<16x128xf32>, vector<128x128xf32>, vector<16x128xf32> -> vector<16x128xf32>
    %280 = arith.addf %275, %279 : vector<16x128xf32>
    %281 = vector.extract_strided_slice %255 {offsets = [1, 16], sizes = [16, 128], strides = [1, 1]} : vector<18x144xf32> to vector<16x128xf32>
    %282 = vector.extract_strided_slice %0 {offsets = [23, 0, 0], sizes = [1, 128, 128], strides = [1, 1, 1]} : vector<27x128x128xf32> to vector<1x128x128xf32>
    %283 = vector.shape_cast %282 : vector<1x128x128xf32> to vector<128x128xf32>
    %cst_92 = arith.constant dense<0.000000e+00> : vector<16x128xf32>
    %284 = tpu.matmul %281, %283, %cst_92 {dimension_numbers = #tpu.dot_dimension_numbers<[1], [0], [0], [1], [0, 0, 1, 1], [], []>} : vector<16x128xf32>, vector<128x128xf32>, vector<16x128xf32> -> vector<16x128xf32>
    %285 = arith.addf %280, %284 : vector<16x128xf32>
    %286 = vector.extract_strided_slice %255 {offsets = [2, 0], sizes = [16, 128], strides = [1, 1]} : vector<18x144xf32> to vector<16x128xf32>
    %287 = vector.extract_strided_slice %0 {offsets = [24, 0, 0], sizes = [1, 128, 128], strides = [1, 1, 1]} : vector<27x128x128xf32> to vector<1x128x128xf32>
    %288 = vector.shape_cast %287 : vector<1x128x128xf32> to vector<128x128xf32>
    %cst_93 = arith.constant dense<0.000000e+00> : vector<16x128xf32>
    %289 = tpu.matmul %286, %288, %cst_93 {dimension_numbers = #tpu.dot_dimension_numbers<[1], [0], [0], [1], [0, 0, 1, 1], [], []>} : vector<16x128xf32>, vector<128x128xf32>, vector<16x128xf32> -> vector<16x128xf32>
    %290 = arith.addf %285, %289 : vector<16x128xf32>
    %291 = vector.extract_strided_slice %255 {offsets = [2, 8], sizes = [16, 128], strides = [1, 1]} : vector<18x144xf32> to vector<16x128xf32>
    %292 = vector.extract_strided_slice %0 {offsets = [25, 0, 0], sizes = [1, 128, 128], strides = [1, 1, 1]} : vector<27x128x128xf32> to vector<1x128x128xf32>
    %293 = vector.shape_cast %292 : vector<1x128x128xf32> to vector<128x128xf32>
    %cst_94 = arith.constant dense<0.000000e+00> : vector<16x128xf32>
    %294 = tpu.matmul %291, %293, %cst_94 {dimension_numbers = #tpu.dot_dimension_numbers<[1], [0], [0], [1], [0, 0, 1, 1], [], []>} : vector<16x128xf32>, vector<128x128xf32>, vector<16x128xf32> -> vector<16x128xf32>
    %295 = arith.addf %290, %294 : vector<16x128xf32>
    %296 = vector.extract_strided_slice %255 {offsets = [2, 16], sizes = [16, 128], strides = [1, 1]} : vector<18x144xf32> to vector<16x128xf32>
    %297 = vector.extract_strided_slice %0 {offsets = [26, 0, 0], sizes = [1, 128, 128], strides = [1, 1, 1]} : vector<27x128x128xf32> to vector<1x128x128xf32>
    %298 = vector.shape_cast %297 : vector<1x128x128xf32> to vector<128x128xf32>
    %cst_95 = arith.constant dense<0.000000e+00> : vector<16x128xf32>
    %299 = tpu.matmul %296, %298, %cst_95 {dimension_numbers = #tpu.dot_dimension_numbers<[1], [0], [0], [1], [0, 0, 1, 1], [], []>} : vector<16x128xf32>, vector<128x128xf32>, vector<16x128xf32> -> vector<16x128xf32>
    %300 = arith.addf %295, %299 : vector<16x128xf32>
    %301 = vector.broadcast %1 : vector<1x128xf32> to vector<16x128xf32>
    %302 = arith.addf %300, %301 : vector<16x128xf32>
    %c0_96 = arith.constant 0 : index
    %c0_97 = arith.constant 0 : index
    %c1_98 = arith.constant 1 : index
    %c4_99 = arith.constant 4 : index
    %303 = vector.load %arg7[%c0_96, %c0_97, %c1_98, %c4_99] : memref<1x1x18x72xf32, #tpu.memory_space<vmem>>, vector<1x1x16x64xf32>
    %304 = vector.shape_cast %303 : vector<1x1x16x64xf32> to vector<16x64xf32>
    %cst_100 = arith.constant dense<0.000000e+00> : vector<16x128xf32>
    %305 = tpu.matmul %304, %2, %cst_100 {dimension_numbers = #tpu.dot_dimension_numbers<[1], [0], [0], [1], [0, 0, 1, 1], [], []>} : vector<16x64xf32>, vector<64x128xf32>, vector<16x128xf32> -> vector<16x128xf32>
    %306 = vector.broadcast %3 : vector<1x128xf32> to vector<16x128xf32>
    %307 = arith.addf %305, %306 : vector<16x128xf32>
    %308 = arith.addf %302, %307 : vector<16x128xf32>
    %cst_101 = arith.constant dense<0.000000e+00> : vector<8x128xf32>
    %309 = tpu.matmul %4, %308, %cst_101 {dimension_numbers = #tpu.dot_dimension_numbers<[1], [0], [0], [1], [0, 0, 1, 1], [], []>} : vector<8x16xf32>, vector<16x128xf32>, vector<8x128xf32> -> vector<8x128xf32>
    %310 = arith.addf %158, %309 : vector<8x128xf32>
    %cst_102 = arith.constant dense<0.000000e+00> : vector<8x64xf32>
    %311 = tpu.matmul %310, %5, %cst_102 {dimension_numbers = #tpu.dot_dimension_numbers<[1], [0], [0], [1], [0, 0, 1, 1], [], []>} : vector<8x128xf32>, vector<128x64xf32>, vector<8x64xf32> -> vector<8x64xf32>
    %c0_103 = arith.constant 0 : index
    %c0_104 = arith.constant 0 : index
    %c0_105 = arith.constant 0 : index
    %c0_106 = arith.constant 0 : index
    %312 = vector.load %arg14[%c0_103, %c0_104, %c0_105, %c0_106] : memref<1x1x8x64xf32, #tpu.memory_space<vmem>>, vector<1x1x8x64xf32>
    %313 = vector.shape_cast %312 : vector<1x1x8x64xf32> to vector<8x64xf32>
    %314 = vector.shape_cast %311 : vector<8x64xf32> to vector<1x1x8x64xf32>
    tpu.vector_store %arg14[%c0_103, %c0_104, %c0_105, %c0_106], %314 {strides = array<i32>} : memref<1x1x8x64xf32, #tpu.memory_space<vmem>>, vector<1x1x8x64xf32>,
    return
  }
  func.func @transform_0(%arg0: i32, %arg1: i32) -> (i32, i32, i32, i32) {
    %c2_i32 = arith.constant 2 : i32
    %0 = arith.muli %c2_i32, %arg1 : i32
    %c0_i32 = arith.constant 0 : i32
    %1 = arith.addi %0, %c0_i32 : i32
    %c0_i32_0 = arith.constant 0 : i32
    %c0_i32_1 = arith.constant 0 : i32
    %c0_i32_2 = arith.constant 0 : i32
    return %arg0, %1, %c0_i32_0, %c0_i32_1 : i32, i32, i32, i32
  }
  func.func @transform_1(%arg0: i32, %arg1: i32) -> (i32, i32, i32, i32) {
    %c2_i32 = arith.constant 2 : i32
    %0 = arith.muli %c2_i32, %arg1 : i32
    %c1_i32 = arith.constant 1 : i32
    %1 = arith.addi %0, %c1_i32 : i32
    %c0_i32 = arith.constant 0 : i32
    %c0_i32_0 = arith.constant 0 : i32
    %c0_i32_1 = arith.constant 0 : i32
    return %arg0, %1, %c0_i32, %c0_i32_0 : i32, i32, i32, i32
  }
  func.func @transform_2(%arg0: i32, %arg1: i32) -> (i32, i32, i32, i32) {
    %c2_i32 = arith.constant 2 : i32
    %0 = arith.muli %c2_i32, %arg1 : i32
    %c2_i32_0 = arith.constant 2 : i32
    %1 = arith.addi %0, %c2_i32_0 : i32
    %c0_i32 = arith.constant 0 : i32
    %c0_i32_1 = arith.constant 0 : i32
    %c0_i32_2 = arith.constant 0 : i32
    return %arg0, %1, %c0_i32, %c0_i32_1 : i32, i32, i32, i32
  }
  func.func @transform_3(%arg0: i32, %arg1: i32) -> (i32, i32, i32, i32) {
    %c2_i32 = arith.constant 2 : i32
    %0 = arith.muli %c2_i32, %arg1 : i32
    %c3_i32 = arith.constant 3 : i32
    %1 = arith.addi %0, %c3_i32 : i32
    %c0_i32 = arith.constant 0 : i32
    %c0_i32_0 = arith.constant 0 : i32
    %c0_i32_1 = arith.constant 0 : i32
    return %arg0, %1, %c0_i32, %c0_i32_0 : i32, i32, i32, i32
  }
  func.func @transform_4(%arg0: i32, %arg1: i32) -> (i32, i32, i32, i32) {
    %c2_i32 = arith.constant 2 : i32
    %0 = arith.muli %c2_i32, %arg1 : i32
    %c0_i32 = arith.constant 0 : i32
    %1 = arith.addi %0, %c0_i32 : i32
    %c1_i32 = arith.constant 1 : i32
    %2 = arith.addi %1, %c1_i32 : i32
    %c0_i32_0 = arith.constant 0 : i32
    %c0_i32_1 = arith.constant 0 : i32
    %c0_i32_2 = arith.constant 0 : i32
    return %arg0, %2, %c0_i32_0, %c0_i32_1 : i32, i32, i32, i32
  }
  func.func @transform_5(%arg0: i32, %arg1: i32) -> (i32, i32, i32, i32) {
    %c2_i32 = arith.constant 2 : i32
    %0 = arith.muli %c2_i32, %arg1 : i32
    %c1_i32 = arith.constant 1 : i32
    %1 = arith.addi %0, %c1_i32 : i32
    %c1_i32_0 = arith.constant 1 : i32
    %2 = arith.addi %1, %c1_i32_0 : i32
    %c0_i32 = arith.constant 0 : i32
    %c0_i32_1 = arith.constant 0 : i32
    %c0_i32_2 = arith.constant 0 : i32
    return %arg0, %2, %c0_i32, %c0_i32_1 : i32, i32, i32, i32
  }
  func.func @transform_6(%arg0: i32, %arg1: i32) -> (i32, i32, i32) {
    %c0_i32 = arith.constant 0 : i32
    %c0_i32_0 = arith.constant 0 : i32
    %c0_i32_1 = arith.constant 0 : i32
    %c0_i32_2 = arith.constant 0 : i32
    return %c0_i32, %c0_i32_0, %c0_i32_1 : i32, i32, i32
  }
  func.func @transform_7(%arg0: i32, %arg1: i32) -> (i32, i32) {
    %c0_i32 = arith.constant 0 : i32
    %c0_i32_0 = arith.constant 0 : i32
    %c0_i32_1 = arith.constant 0 : i32
    return %c0_i32, %c0_i32_0 : i32, i32
  }
  func.func @transform_8(%arg0: i32, %arg1: i32) -> (i32, i32) {
    %c0_i32 = arith.constant 0 : i32
    %c0_i32_0 = arith.constant 0 : i32
    %c0_i32_1 = arith.constant 0 : i32
    return %c0_i32, %c0_i32_0 : i32, i32
  }
  func.func @transform_9(%arg0: i32, %arg1: i32) -> (i32, i32) {
    %c0_i32 = arith.constant 0 : i32
    %c0_i32_0 = arith.constant 0 : i32
    %c0_i32_1 = arith.constant 0 : i32
    return %c0_i32, %c0_i32_0 : i32, i32
  }
  func.func @transform_10(%arg0: i32, %arg1: i32) -> (i32, i32) {
    %c0_i32 = arith.constant 0 : i32
    %c0_i32_0 = arith.constant 0 : i32
    %c0_i32_1 = arith.constant 0 : i32
    return %c0_i32, %c0_i32_0 : i32, i32
  }
  func.func @transform_11(%arg0: i32, %arg1: i32) -> (i32, i32) {
    %c0_i32 = arith.constant 0 : i32
    %c0_i32_0 = arith.constant 0 : i32
    %c0_i32_1 = arith.constant 0 : i32
    return %c0_i32, %c0_i32_0 : i32, i32
  }
  func.func @transform_12(%arg0: i32, %arg1: i32) -> (i32, i32, i32, i32) {
    %c0_i32 = arith.constant 0 : i32
    %c0_i32_0 = arith.constant 0 : i32
    %c0_i32_1 = arith.constant 0 : i32
    return %arg0, %arg1, %c0_i32, %c0_i32_0 : i32, i32, i32, i32
  }
}

</mosaic_0001>

<llo_original>
// kernel: disblock3d_forward.2
$region0: #{disblock3d_forward.2}
  #allocation0 [shape = 'u32[]', space=smem, size = 0x4, offset = 0x4, fixed_abs, tag = 'smem constant byte address 0x4 - core index']
  #allocation1 [shape = 'u32[72,128]{1,0:T(1,128)}', space=vmem, size = 0x9000, scoped, tag = 'internal scratch']
  %s0 = inlined_call_operand.vmem [shape: f32[2,6,18,72], index: 0, kind: input, shape index: {}, may-alias: {0,1,2}]
  %s1 = inlined_call_operand.vmem [shape: f32[2,6,18,72], index: 1, kind: input, shape index: {}, may-alias: {0,1,2}]
  %s2 = inlined_call_operand.vmem [shape: f32[2,6,18,72], index: 2, kind: input, shape index: {}, may-alias: {0,1,2}]
  %s3 = inlined_call_operand.vmem [shape: f32[27,64,128], index: 3, kind: input, shape index: {}]
  %s4 = inlined_call_operand.vmem [shape: f32[1,128], index: 4, kind: input, shape index: {}]
  %s5 = inlined_call_operand.vmem [shape: f32[2,6,18,144], index: 5, kind: output, shape index: {}]
  %s6 = sld [smem:[#allocation0]]
  $region61: #{disblock3d_forward.2} parent=0
    _
  %s8 = ssub.s32 1, %s6
  %s9 = scalar_select 0, %s8, %s6
  loop: start=0, step=1, limit=14
  $region2: #{disblock3d_forward.2} parent=0 // loop_pre_header
    _
  $region3: #{disblock3d_forward.2} parent=0 // loop_header
    %s11 = sphi 0, %s15
    %p12 = scmp.ge.s32.totalorder %s11, 14
    %s18 = sphi 0, %s30
    %s19 = sphi 0, %s26
    %s20 = sphi 0, %s18
    %s21 = sphi 0, %s19
    %s22 = sphi 0, %s20
    %s23 = sphi 0, %s21
    %s45 = sphi 0, %s47
    %s48 = sphi 0, %s45
    %s49 = sphi 0, %s48
    %s65 = sphi 0, %s49
    %s81 = sphi 0, %s83
    %s84 = sphi 0, %s81
    %s85 = sphi 0, %s84
    %s101 = sphi 0, %s85
    %s119 = sphi 0, %s121
    %s122 = sphi 0, %s119
    %s123 = sphi 0, %s122
    %s139 = sphi 0, %s123
    %s143 = sphi 0, %s143
    %s145 = sphi 0, %s143
    %s146 = sphi 0, %s145
    %s160 = sphi 0, %s146
    %s164 = sphi 0, %s164
    %s166 = sphi 0, %s164
    %s167 = sphi 0, %s166
    %s181 = sphi 0, %s167
    %s189 = sphi 0, %s191
    %s192 = sphi 0, %s189
    %s193 = sphi 0, %s192
    %s209 = sphi 0, %s193
  $region4: #{disblock3d_forward.2} parent=0 // loop_header_branch
    %14 = sbr.rel (%p12) target = $region8
  $region5: #{disblock3d_forward.2} parent=0 // loop_body
    %s16 = ssub.s32 %s11, 1
    %s17 = ssub.s32 %s11, 2
    %s24 = sadd.s32 1, %s19
    %p25 = scmp.ge.s32.totalorder %s24, 6
    %s26 = scalar_select %p25, 0, %s24
    %s27 = sadd.s32 1, %s18
    %s28 = scalar_select %p25, %s27, %s18
    %p29 = scmp.ge.s32.totalorder %s28, 2
    %s30 = scalar_select %p29, 0, %s28
    %s31 = sadd.s32 %s19, 4294967295
    %p32 = scmp.gt.s32.totalorder %s31, 0
    %s33 = scalar_select %p32, %s31, 0
    %p34 = scmp.lt.s32.totalorder %s33, 5
    %s35 = scalar_select %p34, %s33, 5
    %s36 = sadd.s32 %s26, 4294967295
    %p37 = scmp.gt.s32.totalorder %s36, 0
    %s38 = scalar_select %p37, %s36, 0
    %p39 = scmp.lt.s32.totalorder %s38, 5
    %s40 = scalar_select %p39, %s38, 5
    %s41 = ssub.s32 %s18, %s30
    %s42 = ssub.s32 %s35, %s40
    %s43 = sor.u32 %s41, %s42
    %p44 = scmp.eq.s32.totalorder %s43, 0
    %s46 = sadd.s32 %s45, 1
    %s47 = scalar_select %p44, %s45, %s46
    %p50 = pneg %p44
    %p51 = scmp.eq.s32.totalorder %s11, 11
    %p52 = por %p50, %p51
    %p53 = scmp.ne.s32.totalorder %s45, %s48
    %p54 = scmp.eq.s32.totalorder %s11, 0
    %p55 = por %p53, %p54
    %p56 = scmp.ne.s32.totalorder %s45, %s48
    %p57 = scmp.eq.s32.totalorder %s16, 11
    %p58 = por %p56, %p57
    %p59 = scmp.ne.s32.totalorder %s48, %s49
    %p60 = scmp.eq.s32.totalorder %s16, 0
    %p61 = por %p59, %p60
    %p62 = scmp.ne.s32.totalorder %s48, %s49
    %p63 = scmp.eq.s32.totalorder %s17, 11
    %p64 = por %p62, %p63
    %p66 = scmp.ne.s32.totalorder %s49, %s65
    %p67 = scmp.eq.s32.totalorder %s17, 0
    %p68 = por %p66, %p67
    %p69 = scmp.gt.s32.totalorder %s19, 0
    %s70 = scalar_select %p69, %s19, 0
    %p71 = scmp.lt.s32.totalorder %s70, 5
    %s72 = scalar_select %p71, %s70, 5
    %p73 = scmp.gt.s32.totalorder %s26, 0
    %s74 = scalar_select %p73, %s26, 0
    %p75 = scmp.lt.s32.totalorder %s74, 5
    %s76 = scalar_select %p75, %s74, 5
    %s77 = ssub.s32 %s18, %s30
    %s78 = ssub.s32 %s72, %s76
    %s79 = sor.u32 %s77, %s78
    %p80 = scmp.eq.s32.totalorder %s79, 0
    %s82 = sadd.s32 %s81, 1
    %s83 = scalar_select %p80, %s81, %s82
    %p86 = pneg %p80
    %p87 = scmp.eq.s32.totalorder %s11, 11
    %p88 = por %p86, %p87
    %p89 = scmp.ne.s32.totalorder %s81, %s84
    %p90 = scmp.eq.s32.totalorder %s11, 0
    %p91 = por %p89, %p90
    %p92 = scmp.ne.s32.totalorder %s81, %s84
    %p93 = scmp.eq.s32.totalorder %s16, 11
    %p94 = por %p92, %p93
    %p95 = scmp.ne.s32.totalorder %s84, %s85
    %p96 = scmp.eq.s32.totalorder %s16, 0
    %p97 = por %p95, %p96
    %p98 = scmp.ne.s32.totalorder %s84, %s85
    %p99 = scmp.eq.s32.totalorder %s17, 11
    %p100 = por %p98, %p99
    %p102 = scmp.ne.s32.totalorder %s85, %s101
    %p103 = scmp.eq.s32.totalorder %s17, 0
    %p104 = por %p102, %p103
    %s105 = sadd.s32 %s19, 1
    %p106 = scmp.gt.s32.totalorder %s105, 0
    %s107 = scalar_select %p106, %s105, 0
    %p108 = scmp.lt.s32.totalorder %s107, 5
    %s109 = scalar_select %p108, %s107, 5
    %s110 = sadd.s32 %s26, 1
    %p111 = scmp.gt.s32.totalorder %s110, 0
    %s112 = scalar_select %p111, %s110, 0
    %p113 = scmp.lt.s32.totalorder %s112, 5
    %s114 = scalar_select %p113, %s112, 5
    %s115 = ssub.s32 %s18, %s30
    %s116 = ssub.s32 %s109, %s114
    %s117 = sor.u32 %s115, %s116
    %p118 = scmp.eq.s32.totalorder %s117, 0
    %s120 = sadd.s32 %s119, 1
    %s121 = scalar_select %p118, %s119, %s120
    %p124 = pneg %p118
    %p125 = scmp.eq.s32.totalorder %s11, 11
    %p126 = por %p124, %p125
    %p127 = scmp.ne.s32.totalorder %s119, %s122
    %p128 = scmp.eq.s32.totalorder %s11, 0
    %p129 = por %p127, %p128
    %p130 = scmp.ne.s32.totalorder %s119, %s122
    %p131 = scmp.eq.s32.totalorder %s16, 11
    %p132 = por %p130, %p131
    %p133 = scmp.ne.s32.totalorder %s122, %s123
    %p134 = scmp.eq.s32.totalorder %s16, 0
    %p135 = por %p133, %p134
    %p136 = scmp.ne.s32.totalorder %s122, %s123
    %p137 = scmp.eq.s32.totalorder %s17, 11
    %p138 = por %p136, %p137
    %p140 = scmp.ne.s32.totalorder %s123, %s139
    %p141 = scmp.eq.s32.totalorder %s17, 0
    %p142 = por %p140, %p141
    %s144 = sadd.s32 %s143, 1
    %p147 = scmp.eq.s32.totalorder %s11, 11
    %p148 = scmp.ne.s32.totalorder %s143, %s145
    %p149 = scmp.eq.s32.totalorder %s11, 0
    %p150 = por %p148, %p149
    %p151 = scmp.ne.s32.totalorder %s143, %s145
    %p152 = scmp.eq.s32.totalorder %s16, 11
    %p153 = por %p151, %p152
    %p154 = scmp.ne.s32.totalorder %s145, %s146
    %p155 = scmp.eq.s32.totalorder %s16, 0
    %p156 = por %p154, %p155
    %p157 = scmp.ne.s32.totalorder %s145, %s146
    %p158 = scmp.eq.s32.totalorder %s17, 11
    %p159 = por %p157, %p158
    %p161 = scmp.ne.s32.totalorder %s146, %s160
    %p162 = scmp.eq.s32.totalorder %s17, 0
    %p163 = por %p161, %p162
    %s165 = sadd.s32 %s164, 1
    %p168 = scmp.eq.s32.totalorder %s11, 11
    %p169 = scmp.ne.s32.totalorder %s164, %s166
    %p170 = scmp.eq.s32.totalorder %s11, 0
    %p171 = por %p169, %p170
    %p172 = scmp.ne.s32.totalorder %s164, %s166
    %p173 = scmp.eq.s32.totalorder %s16, 11
    %p174 = por %p172, %p173
    %p175 = scmp.ne.s32.totalorder %s166, %s167
    %p176 = scmp.eq.s32.totalorder %s16, 0
    %p177 = por %p175, %p176
    %p178 = scmp.ne.s32.totalorder %s166, %s167
    %p179 = scmp.eq.s32.totalorder %s17, 11
    %p180 = por %p178, %p179
    %p182 = scmp.ne.s32.totalorder %s167, %s181
    %p183 = scmp.eq.s32.totalorder %s17, 0
    %p184 = por %p182, %p183
    %s185 = ssub.s32 %s18, %s30
    %s186 = ssub.s32 %s19, %s26
    %s187 = sor.u32 %s185, %s186
    %p188 = scmp.eq.s32.totalorder %s187, 0
    %s190 = sadd.s32 %s189, 1
    %s191 = scalar_select %p188, %s189, %s190
    %p194 = pneg %p188
    %p195 = scmp.eq.s32.totalorder %s11, 11
    %p196 = por %p194, %p195
    %p197 = scmp.ne.s32.totalorder %s189, %s192
    %p198 = scmp.eq.s32.totalorder %s11, 0
    %p199 = por %p197, %p198
    %p200 = scmp.ne.s32.totalorder %s189, %s192
    %p201 = scmp.eq.s32.totalorder %s16, 11
    %p202 = por %p200, %p201
    %p203 = scmp.ne.s32.totalorder %s192, %s193
    %p204 = scmp.eq.s32.totalorder %s16, 0
    %p205 = por %p203, %p204
    %p206 = scmp.ne.s32.totalorder %s192, %s193
    %p207 = scmp.eq.s32.totalorder %s17, 11
    %p208 = por %p206, %p207
    %p210 = scmp.ne.s32.totalorder %s193, %s209
    %p211 = scmp.eq.s32.totalorder %s17, 0
    %p212 = por %p210, %p211
    %p213 = scmp.le.s32.totalorder 1, %s11
    %p214 = scmp.lt.s32.totalorder %s11, 13
    %p215 = pnand %p213, %p214
    %p216 = pneg %p215
    // Predicated region
    $region9: #{disblock3d_forward.2} parent=5 // pred_check
      _
    $region10: #{disblock3d_forward.2} parent=5 // pred_check_branch
      %218 = sbr.rel (%p215) target = $region12
    $region11: #{disblock3d_forward.2} parent=5 // pred_region
      %s219 = ssub.s32 %s11, 1
      // Predicated region
      $region13: #{disblock3d_forward.2} parent=11 // pred_check
        %p220 = pneg %p156
      $region14: #{disblock3d_forward.2} parent=11 // pred_check_branch
        %222 = sbr.rel (%p220) target = $region16
      $region15: #{disblock3d_forward.2} parent=11 // pred_region
        _
      $region16: #{disblock3d_forward.2} parent=11 // pred_fallthru
        _
      // Predicated region
      $region17: #{disblock3d_forward.2} parent=11 // pred_check
        %p223 = pneg %p177
      $region18: #{disblock3d_forward.2} parent=11 // pred_check_branch
        %225 = sbr.rel (%p223) target = $region20
      $region19: #{disblock3d_forward.2} parent=11 // pred_region
        _
      $region20: #{disblock3d_forward.2} parent=11 // pred_fallthru
        _
    $region12: #{disblock3d_forward.2} parent=5 // pred_fallthru
      _
    %p226 = scmp.lt.s32.totalorder %s11, 12
    // Predicated region
    $region21: #{disblock3d_forward.2} parent=5 // pred_check
      %p227 = pneg %p226
    $region22: #{disblock3d_forward.2} parent=5 // pred_check_branch
      %229 = sbr.rel (%p227) target = $region24
    $region23: #{disblock3d_forward.2} parent=5 // pred_region
      // Predicated region
      $region25: #{disblock3d_forward.2} parent=23 // pred_check
        %p230 = pneg %p55
      $region26: #{disblock3d_forward.2} parent=23 // pred_check_branch
        %232 = sbr.rel (%p230) target = $region28
      $region27: #{disblock3d_forward.2} parent=23 // pred_region
        %s233 = sadd.s32 %s19, 4294967295
        %p234 = scmp.gt.s32.totalorder %s233, 0
        %s235 = scalar_select %p234, %s233, 0
        %p236 = scmp.lt.s32.totalorder %s235, 5
        %s237 = scalar_select %p236, %s235, 5
        %p238 = scmp.lt.s32.totalorder %s18, 1
        %s239 = scalar_select %p238, %s18, 1
        %p240 = scmp.lt.s32.totalorder %s237, 5
        %s241 = scalar_select %p240, %s237, 5
        %s242 = smul.addr %s241, 3
        %s243 = smul.addr %s239, 18
        %s244 = sadd.s32 %s242, %s243
        %s245 = smul.addr %s244, 8
        %s246 = scalar_lea.vmem %s0, %s245
        %s247 = sadd.s32 %s19, 4294967295
        %p248 = scmp.gt.s32.totalorder %s247, 0
        %s249 = scalar_select %p248, %s247, 0
        %p250 = scmp.lt.s32.totalorder %s249, 5
        %s251 = scalar_select %p250, %s249, 5
      $region28: #{disblock3d_forward.2} parent=23 // pred_fallthru
        _
      // Predicated region
      $region29: #{disblock3d_forward.2} parent=23 // pred_check
        %p252 = pneg %p91
      $region30: #{disblock3d_forward.2} parent=23 // pred_check_branch
        %254 = sbr.rel (%p252) target = $region32
      $region31: #{disblock3d_forward.2} parent=23 // pred_region
        %p255 = scmp.gt.s32.totalorder %s19, 0
        %s256 = scalar_select %p255, %s19, 0
        %p257 = scmp.lt.s32.totalorder %s256, 5
        %s258 = scalar_select %p257, %s256, 5
        %p259 = scmp.lt.s32.totalorder %s18, 1
        %s260 = scalar_select %p259, %s18, 1
        %p261 = scmp.lt.s32.totalorder %s258, 5
        %s262 = scalar_select %p261, %s258, 5
        %s263 = smul.addr %s262, 3
        %s264 = smul.addr %s260, 18
        %s265 = sadd.s32 %s263, %s264
        %s266 = smul.addr %s265, 8
        %s267 = scalar_lea.vmem %s1, %s266
        %p268 = scmp.gt.s32.totalorder %s19, 0
        %s269 = scalar_select %p268, %s19, 0
        %p270 = scmp.lt.s32.totalorder %s269, 5
        %s271 = scalar_select %p270, %s269, 5
      $region32: #{disblock3d_forward.2} parent=23 // pred_fallthru
        _
      // Predicated region
      $region33: #{disblock3d_forward.2} parent=23 // pred_check
        %p272 = pneg %p129
      $region34: #{disblock3d_forward.2} parent=23 // pred_check_branch
        %274 = sbr.rel (%p272) target = $region36
      $region35: #{disblock3d_forward.2} parent=23 // pred_region
        %s275 = sadd.s32 %s19, 1
        %p276 = scmp.gt.s32.totalorder %s275, 0
        %s277 = scalar_select %p276, %s275, 0
        %p278 = scmp.lt.s32.totalorder %s277, 5
        %s279 = scalar_select %p278, %s277, 5
        %p280 = scmp.lt.s32.totalorder %s18, 1
        %s281 = scalar_select %p280, %s18, 1
        %p282 = scmp.lt.s32.totalorder %s279, 5
        %s283 = scalar_select %p282, %s279, 5
        %s284 = smul.addr %s283, 3
        %s285 = smul.addr %s281, 18
        %s286 = sadd.s32 %s284, %s285
        %s287 = smul.addr %s286, 8
        %s288 = scalar_lea.vmem %s2, %s287
        %s289 = sadd.s32 %s19, 1
        %p290 = scmp.gt.s32.totalorder %s289, 0
        %s291 = scalar_select %p290, %s289, 0
        %p292 = scmp.lt.s32.totalorder %s291, 5
        %s293 = scalar_select %p292, %s291, 5
      $region36: #{disblock3d_forward.2} parent=23 // pred_fallthru
        _
    $region24: #{disblock3d_forward.2} parent=5 // pred_fallthru
      _
    %p294 = scmp.le.s32.totalorder 1, %s11
    %p295 = scmp.lt.s32.totalorder %s11, 13
    %p296 = pnand %p294, %p295
    %p297 = pneg %p296
    // Predicated region
    $region37: #{disblock3d_forward.2} parent=5 // pred_check
      _
    $region38: #{disblock3d_forward.2} parent=5 // pred_check_branch
      %299 = sbr.rel (%p296) target = $region40
    $region39: #{disblock3d_forward.2} parent=5 // pred_region
      %s300 = ssub.s32 %s11, 1
      %s301 = sadd.s32 %s21, 4294967295
      %p302 = scmp.gt.s32.totalorder %s301, 0
      %s303 = scalar_select %p302, %s301, 0
      %p304 = scmp.lt.s32.totalorder %s303, 5
      %s305 = scalar_select %p304, %s303, 5
      %p306 = scmp.lt.s32.totalorder %s20, 1
      %s307 = scalar_select %p306, %s20, 1
      %p308 = scmp.lt.s32.totalorder %s305, 5
      %s309 = scalar_select %p308, %s305, 5
      %s310 = smul.addr %s309, 3
      %s311 = smul.addr %s307, 18
      %s312 = sadd.s32 %s310, %s311
      %s313 = smul.addr %s312, 8
      %s314 = scalar_lea.vmem %s0, %s313
      %p315 = pneg %p61
      %p316 = pneg %p58
      %p317 = scmp.gt.s32.totalorder %s21, 0
      %s318 = scalar_select %p317, %s21, 0
      %p319 = scmp.lt.s32.totalorder %s318, 5
      %s320 = scalar_select %p319, %s318, 5
      %p321 = scmp.lt.s32.totalorder %s20, 1
      %s322 = scalar_select %p321, %s20, 1
      %p323 = scmp.lt.s32.totalorder %s320, 5
      %s324 = scalar_select %p323, %s320, 5
      %s325 = smul.addr %s324, 3
      %s326 = smul.addr %s322, 18
      %s327 = sadd.s32 %s325, %s326
      %s328 = smul.addr %s327, 8
      %s329 = scalar_lea.vmem %s1, %s328
      %p330 = pneg %p97
      %p331 = pneg %p94
      %s332 = sadd.s32 %s21, 1
      %p333 = scmp.gt.s32.totalorder %s332, 0
      %s334 = scalar_select %p333, %s332, 0
      %p335 = scmp.lt.s32.totalorder %s334, 5
      %s336 = scalar_select %p335, %s334, 5
      %p337 = scmp.lt.s32.totalorder %s20, 1
      %s338 = scalar_select %p337, %s20, 1
      %p339 = scmp.lt.s32.totalorder %s336, 5
      %s340 = scalar_select %p339, %s336, 5
      %s341 = smul.addr %s340, 3
      %s342 = smul.addr %s338, 18
      %s343 = sadd.s32 %s341, %s342
      %s344 = smul.addr %s343, 8
      %s345 = scalar_lea.vmem %s2, %s344
      %p346 = pneg %p135
      %p347 = pneg %p132
      %p348 = pneg %p156
      %p349 = pneg %p153
      %p350 = pneg %p177
      %p351 = pneg %p174
      %p352 = pneg %p205
      %p353 = pneg %p202
      %p354 = scmp.lt.s32.totalorder %s20, 1
      %s355 = scalar_select %p354, %s20, 1
      %p356 = scmp.lt.s32.totalorder %s21, 5
      %s357 = scalar_select %p356, %s21, 5
      %s358 = smul.addr %s357, 6
      %s359 = smul.addr %s355, 36
      %s360 = sadd.s32 %s358, %s359
      %s361 = smul.addr %s360, 8
      %s362 = scalar_lea.vmem %s5, %s361
      %s363 = sadd.s32 %s21, 4294967295
      %p364 = scmp.gt.s32.totalorder %s363, 0
      %s365 = scalar_select %p364, %s363, 0
      %p366 = scmp.lt.s32.totalorder %s365, 5
      %s367 = scalar_select %p366, %s365, 5
      %p368 = scmp.lt.s32.totalorder %s20, 1
      %s369 = scalar_select %p368, %s20, 1
      %p370 = scmp.lt.s32.totalorder %s367, 5
      %s371 = scalar_select %p370, %s367, 5
      %s372 = smul.addr %s371, 3
      %s373 = smul.addr %s369, 18
      %s374 = sadd.s32 %s372, %s373
      %s375 = smul.addr %s374, 8
      %s376 = scalar_lea.vmem %s0, %s375
      %s377 = sadd.s32 %s21, 4294967295
      %p378 = scmp.gt.s32.totalorder %s377, 0
      %s379 = scalar_select %p378, %s377, 0
      %p380 = scmp.lt.s32.totalorder %s379, 5
      %s381 = scalar_select %p380, %s379, 5
      %p382 = scmp.gt.s32.totalorder %s21, 0
      %s383 = scalar_select %p382, %s21, 0
      %p384 = scmp.lt.s32.totalorder %s383, 5
      %s385 = scalar_select %p384, %s383, 5
      %p386 = scmp.lt.s32.totalorder %s20, 1
      %s387 = scalar_select %p386, %s20, 1
      %p388 = scmp.lt.s32.totalorder %s385, 5
      %s389 = scalar_select %p388, %s385, 5
      %s390 = smul.addr %s389, 3
      %s391 = smul.addr %s387, 18
      %s392 = sadd.s32 %s390, %s391
      %s393 = smul.addr %s392, 8
      %s394 = scalar_lea.vmem %s1, %s393
      %p395 = scmp.gt.s32.totalorder %s21, 0
      %s396 = scalar_select %p395, %s21, 0
      %p397 = scmp.lt.s32.totalorder %s396, 5
      %s398 = scalar_select %p397, %s396, 5
      %s399 = sadd.s32 %s21, 1
      %p400 = scmp.gt.s32.totalorder %s399, 0
      %s401 = scalar_select %p400, %s399, 0
      %p402 = scmp.lt.s32.totalorder %s401, 5
      %s403 = scalar_select %p402, %s401, 5
      %p404 = scmp.lt.s32.totalorder %s20, 1
      %s405 = scalar_select %p404, %s20, 1
      %p406 = scmp.lt.s32.totalorder %s403, 5
      %s407 = scalar_select %p406, %s403, 5
      %s408 = smul.addr %s407, 3
      %s409 = smul.addr %s405, 18
      %s410 = sadd.s32 %s408, %s409
      %s411 = smul.addr %s410, 8
      %s412 = scalar_lea.vmem %s2, %s411
      %s413 = sadd.s32 %s21, 1
      %p414 = scmp.gt.s32.totalorder %s413, 0
      %s415 = scalar_select %p414, %s413, 0
      %p416 = scmp.lt.s32.totalorder %s415, 5
      %s417 = scalar_select %p416, %s415, 5
      %p418 = scmp.lt.s32.totalorder %s20, 1
      %s419 = scalar_select %p418, %s20, 1
      %p420 = scmp.lt.s32.totalorder %s21, 5
      %s421 = scalar_select %p420, %s21, 5
      %s422 = smul.addr %s421, 6
      %s423 = smul.addr %s419, 36
      %s424 = sadd.s32 %s422, %s423
      %s425 = smul.addr %s424, 8
      %s426 = scalar_lea.vmem %s5, %s425
      %p427 = scmp.gt.s32.totalorder %s21, 0
      %p428 = scmp.lt.s32.totalorder %s21, 5
      %p429 = pnand %p427, %p428
      %p430 = pneg %p429
      // Predicated region
      $region41: #{disblock3d_forward.2} parent=39 // pred_check
        _
      $region42: #{disblock3d_forward.2} parent=39 // pred_check_branch
        %432 = sbr.rel (%p429) target = $region44
      $region43: #{disblock3d_forward.2} parent=39 // pred_region
        %v433 = vld [vmem:[%s3] sm:$0xff]
        %v434 = vld [vmem:[%s3 + $0x8] sm:$0xff]
        %v435 = vld [vmem:[%s3 + $0x10] sm:$0xff]
        %v436 = vld [vmem:[%s3 + $0x18] sm:$0xff]
        %v437 = vld [vmem:[%s3 + $0x20] sm:$0xff]
        %v438 = vld [vmem:[%s3 + $0x28] sm:$0xff]
        %v439 = vld [vmem:[%s3 + $0x30] sm:$0xff]
        %v440 = vld [vmem:[%s3 + $0x38] sm:$0xff]
        %v441 = vld [vmem:[%s3 + $0x40] sm:$0xff]
        %v442 = vld [vmem:[%s3 + $0x48] sm:$0xff]
        %v443 = vld [vmem:[%s3 + $0x50] sm:$0xff]
        %v444 = vld [vmem:[%s3 + $0x58] sm:$0xff]
        %v445 = vld [vmem:[%s3 + $0x60] sm:$0xff]
        %v446 = vld [vmem:[%s3 + $0x68] sm:$0xff]
        %v447 = vld [vmem:[%s3 + $0x70] sm:$0xff]
        %v448 = vld [vmem:[%s3 + $0x78] sm:$0xff]
        %v449 = vld [vmem:[%s3 + $0x80] sm:$0xff]
        %v450 = vld [vmem:[%s3 + $0x88] sm:$0xff]
        %v451 = vld [vmem:[%s3 + $0x90] sm:$0xff]
        %v452 = vld [vmem:[%s3 + $0x98] sm:$0xff]
        %v453 = vld [vmem:[%s3 + $0xa0] sm:$0xff]
        %v454 = vld [vmem:[%s3 + $0xa8] sm:$0xff]
        %v455 = vld [vmem:[%s3 + $0xb0] sm:$0xff]
        %v456 = vld [vmem:[%s3 + $0xb8] sm:$0xff]
        %v457 = vld [vmem:[%s3 + $0xc0] sm:$0xff]
        %v458 = vld [vmem:[%s3 + $0xc8] sm:$0xff]
        %v459 = vld [vmem:[%s3 + $0xd0] sm:$0xff]
        %v460 = vld [vmem:[%s3 + $0xd8] sm:$0xff]
        %v461 = vld [vmem:[%s3 + $0xe0] sm:$0xff]
        %v462 = vld [vmem:[%s3 + $0xe8] sm:$0xff]
        %v463 = vld [vmem:[%s3 + $0xf0] sm:$0xff]
        %v464 = vld [vmem:[%s3 + $0xf8] sm:$0xff]
        %v465 = vld [vmem:[%s3 + $0x100] sm:$0xff]
        %v466 = vld [vmem:[%s3 + $0x108] sm:$0xff]
        %v467 = vld [vmem:[%s3 + $0x110] sm:$0xff]
        %v468 = vld [vmem:[%s3 + $0x118] sm:$0xff]
        %v469 = vld [vmem:[%s3 + $0x120] sm:$0xff]
        %v470 = vld [vmem:[%s3 + $0x128] sm:$0xff]
        %v471 = vld [vmem:[%s3 + $0x130] sm:$0xff]
        %v472 = vld [vmem:[%s3 + $0x138] sm:$0xff]
        %v473 = vld [vmem:[%s3 + $0x140] sm:$0xff]
        %v474 = vld [vmem:[%s3 + $0x148] sm:$0xff]
        %v475 = vld [vmem:[%s3 + $0x150] sm:$0xff]
        %v476 = vld [vmem:[%s3 + $0x158] sm:$0xff]
        %v477 = vld [vmem:[%s3 + $0x160] sm:$0xff]
        %v478 = vld [vmem:[%s3 + $0x168] sm:$0xff]
        %v479 = vld [vmem:[%s3 + $0x170] sm:$0xff]
        %v480 = vld [vmem:[%s3 + $0x178] sm:$0xff]
        %v481 = vld [vmem:[%s3 + $0x180] sm:$0xff]
        %v482 = vld [vmem:[%s3 + $0x188] sm:$0xff]
        %v483 = vld [vmem:[%s3 + $0x190] sm:$0xff]
        %v484 = vld [vmem:[%s3 + $0x198] sm:$0xff]
        %v485 = vld [vmem:[%s3 + $0x1a0] sm:$0xff]
        %v486 = vld [vmem:[%s3 + $0x1a8] sm:$0xff]
        %v487 = vld [vmem:[%s3 + $0x1b0] sm:$0xff]
        %v488 = vld [vmem:[%s3 + $0x1b8] sm:$0xff]
        %v489 = vld [vmem:[%s3 + $0x1c0] sm:$0xff]
        %v490 = vld [vmem:[%s3 + $0x1c8] sm:$0xff]
        %v491 = vld [vmem:[%s3 + $0x1d0] sm:$0xff]
        %v492 = vld [vmem:[%s3 + $0x1d8] sm:$0xff]
        %v493 = vld [vmem:[%s3 + $0x1e0] sm:$0xff]
        %v494 = vld [vmem:[%s3 + $0x1e8] sm:$0xff]
        %v495 = vld [vmem:[%s3 + $0x1f0] sm:$0xff]
        %v496 = vld [vmem:[%s3 + $0x1f8] sm:$0xff]
        %v497 = vld [vmem:[%s3 + $0x200] sm:$0xff]
        %v498 = vld [vmem:[%s3 + $0x208] sm:$0xff]
        %v499 = vld [vmem:[%s3 + $0x210] sm:$0xff]
        %v500 = vld [vmem:[%s3 + $0x218] sm:$0xff]
        %v501 = vld [vmem:[%s3 + $0x220] sm:$0xff]
        %v502 = vld [vmem:[%s3 + $0x228] sm:$0xff]
        %v503 = vld [vmem:[%s3 + $0x230] sm:$0xff]
        %v504 = vld [vmem:[%s3 + $0x238] sm:$0xff]
        %v505 = vld [vmem:[%s3 + $0x240] sm:$0xff]
        %v506 = vld [vmem:[%s3 + $0x248] sm:$0xff]
        %v507 = vld [vmem:[%s3 + $0x250] sm:$0xff]
        %v508 = vld [vmem:[%s3 + $0x258] sm:$0xff]
        %v509 = vld [vmem:[%s3 + $0x260] sm:$0xff]
        %v510 = vld [vmem:[%s3 + $0x268] sm:$0xff]
        %v511 = vld [vmem:[%s3 + $0x270] sm:$0xff]
        %v512 = vld [vmem:[%s3 + $0x278] sm:$0xff]
        %v513 = vld [vmem:[%s3 + $0x280] sm:$0xff]
        %v514 = vld [vmem:[%s3 + $0x288] sm:$0xff]
        %v515 = vld [vmem:[%s3 + $0x290] sm:$0xff]
        %v516 = vld [vmem:[%s3 + $0x298] sm:$0xff]
        %v517 = vld [vmem:[%s3 + $0x2a0] sm:$0xff]
        %v518 = vld [vmem:[%s3 + $0x2a8] sm:$0xff]
        %v519 = vld [vmem:[%s3 + $0x2b0] sm:$0xff]
        %v520 = vld [vmem:[%s3 + $0x2b8] sm:$0xff]
        %v521 = vld [vmem:[%s3 + $0x2c0] sm:$0xff]
        %v522 = vld [vmem:[%s3 + $0x2c8] sm:$0xff]
        %v523 = vld [vmem:[%s3 + $0x2d0] sm:$0xff]
        %v524 = vld [vmem:[%s3 + $0x2d8] sm:$0xff]
        %v525 = vld [vmem:[%s3 + $0x2e0] sm:$0xff]
        %v526 = vld [vmem:[%s3 + $0x2e8] sm:$0xff]
        %v527 = vld [vmem:[%s3 + $0x2f0] sm:$0xff]
        %v528 = vld [vmem:[%s3 + $0x2f8] sm:$0xff]
        %v529 = vld [vmem:[%s3 + $0x300] sm:$0xff]
        %v530 = vld [vmem:[%s3 + $0x308] sm:$0xff]
        %v531 = vld [vmem:[%s3 + $0x310] sm:$0xff]
        %v532 = vld [vmem:[%s3 + $0x318] sm:$0xff]
        %v533 = vld [vmem:[%s3 + $0x320] sm:$0xff]
        %v534 = vld [vmem:[%s3 + $0x328] sm:$0xff]
        %v535 = vld [vmem:[%s3 + $0x330] sm:$0xff]
        %v536 = vld [vmem:[%s3 + $0x338] sm:$0xff]
        %v537 = vld [vmem:[%s3 + $0x340] sm:$0xff]
        %v538 = vld [vmem:[%s3 + $0x348] sm:$0xff]
        %v539 = vld [vmem:[%s3 + $0x350] sm:$0xff]
        %v540 = vld [vmem:[%s3 + $0x358] sm:$0xff]
        %v541 = vld [vmem:[%s3 + $0x360] sm:$0xff]
        %v542 = vld [vmem:[%s3 + $0x368] sm:$0xff]
        %v543 = vld [vmem:[%s3 + $0x370] sm:$0xff]
        %v544 = vld [vmem:[%s3 + $0x378] sm:$0xff]
        %v545 = vld [vmem:[%s3 + $0x380] sm:$0xff]
        %v546 = vld [vmem:[%s3 + $0x388] sm:$0xff]
        %v547 = vld [vmem:[%s3 + $0x390] sm:$0xff]
        %v548 = vld [vmem:[%s3 + $0x398] sm:$0xff]
        %v549 = vld [vmem:[%s3 + $0x3a0] sm:$0xff]
        %v550 = vld [vmem:[%s3 + $0x3a8] sm:$0xff]
        %v551 = vld [vmem:[%s3 + $0x3b0] sm:$0xff]
        %v552 = vld [vmem:[%s3 + $0x3b8] sm:$0xff]
        %v553 = vld [vmem:[%s3 + $0x3c0] sm:$0xff]
        %v554 = vld [vmem:[%s3 + $0x3c8] sm:$0xff]
        %v555 = vld [vmem:[%s3 + $0x3d0] sm:$0xff]
        %v556 = vld [vmem:[%s3 + $0x3d8] sm:$0xff]
        %v557 = vld [vmem:[%s3 + $0x3e0] sm:$0xff]
        %v558 = vld [vmem:[%s3 + $0x3e8] sm:$0xff]
        %v559 = vld [vmem:[%s3 + $0x3f0] sm:$0xff]
        %v560 = vld [vmem:[%s3 + $0x3f8] sm:$0xff]
        %v561 = vld [vmem:[%s3 + $0x400] sm:$0xff]
        %v562 = vld [vmem:[%s3 + $0x408] sm:$0xff]
        %v563 = vld [vmem:[%s3 + $0x410] sm:$0xff]
        %v564 = vld [vmem:[%s3 + $0x418] sm:$0xff]
        %v565 = vld [vmem:[%s3 + $0x420] sm:$0xff]
        %v566 = vld [vmem:[%s3 + $0x428] sm:$0xff]
        %v567 = vld [vmem:[%s3 + $0x430] sm:$0xff]
        %v568 = vld [vmem:[%s3 + $0x438] sm:$0xff]
        %v569 = vld [vmem:[%s3 + $0x440] sm:$0xff]
        %v570 = vld [vmem:[%s3 + $0x448] sm:$0xff]
        %v571 = vld [vmem:[%s3 + $0x450] sm:$0xff]
        %v572 = vld [vmem:[%s3 + $0x458] sm:$0xff]
        %v573 = vld [vmem:[%s3 + $0x460] sm:$0xff]
        %v574 = vld [vmem:[%s3 + $0x468] sm:$0xff]
        %v575 = vld [vmem:[%s3 + $0x470] sm:$0xff]
        %v576 = vld [vmem:[%s3 + $0x478] sm:$0xff]
        %v577 = vld [vmem:[%s3 + $0x480] sm:$0xff]
        %v578 = vld [vmem:[%s3 + $0x488] sm:$0xff]
        %v579 = vld [vmem:[%s3 + $0x490] sm:$0xff]
        %v580 = vld [vmem:[%s3 + $0x498] sm:$0xff]
        %v581 = vld [vmem:[%s3 + $0x4a0] sm:$0xff]
        %v582 = vld [vmem:[%s3 + $0x4a8] sm:$0xff]
        %v583 = vld [vmem:[%s3 + $0x4b0] sm:$0xff]
        %v584 = vld [vmem:[%s3 + $0x4b8] sm:$0xff]
        %v585 = vld [vmem:[%s3 + $0x4c0] sm:$0xff]
        %v586 = vld [vmem:[%s3 + $0x4c8] sm:$0xff]
        %v587 = vld [vmem:[%s3 + $0x4d0] sm:$0xff]
        %v588 = vld [vmem:[%s3 + $0x4d8] sm:$0xff]
        %v589 = vld [vmem:[%s3 + $0x4e0] sm:$0xff]
        %v590 = vld [vmem:[%s3 + $0x4e8] sm:$0xff]
        %v591 = vld [vmem:[%s3 + $0x4f0] sm:$0xff]
        %v592 = vld [vmem:[%s3 + $0x4f8] sm:$0xff]
        %v593 = vld [vmem:[%s3 + $0x500] sm:$0xff]
        %v594 = vld [vmem:[%s3 + $0x508] sm:$0xff]
        %v595 = vld [vmem:[%s3 + $0x510] sm:$0xff]
        %v596 = vld [vmem:[%s3 + $0x518] sm:$0xff]
        %v597 = vld [vmem:[%s3 + $0x520] sm:$0xff]
        %v598 = vld [vmem:[%s3 + $0x528] sm:$0xff]
        %v599 = vld [vmem:[%s3 + $0x530] sm:$0xff]
        %v600 = vld [vmem:[%s3 + $0x538] sm:$0xff]
        %v601 = vld [vmem:[%s3 + $0x540] sm:$0xff]
        %v602 = vld [vmem:[%s3 + $0x548] sm:$0xff]
        %v603 = vld [vmem:[%s3 + $0x550] sm:$0xff]
        %v604 = vld [vmem:[%s3 + $0x558] sm:$0xff]
        %v605 = vld [vmem:[%s3 + $0x560] sm:$0xff]
        %v606 = vld [vmem:[%s3 + $0x568] sm:$0xff]
        %v607 = vld [vmem:[%s3 + $0x570] sm:$0xff]
        %v608 = vld [vmem:[%s3 + $0x578] sm:$0xff]
        %v609 = vld [vmem:[%s3 + $0x580] sm:$0xff]
        %v610 = vld [vmem:[%s3 + $0x588] sm:$0xff]
        %v611 = vld [vmem:[%s3 + $0x590] sm:$0xff]
        %v612 = vld [vmem:[%s3 + $0x598] sm:$0xff]
        %v613 = vld [vmem:[%s3 + $0x5a0] sm:$0xff]
        %v614 = vld [vmem:[%s3 + $0x5a8] sm:$0xff]
        %v615 = vld [vmem:[%s3 + $0x5b0] sm:$0xff]
        %v616 = vld [vmem:[%s3 + $0x5b8] sm:$0xff]
        %v617 = vld [vmem:[%s3 + $0x5c0] sm:$0xff]
        %v618 = vld [vmem:[%s3 + $0x5c8] sm:$0xff]
        %v619 = vld [vmem:[%s3 + $0x5d0] sm:$0xff]
        %v620 = vld [vmem:[%s3 + $0x5d8] sm:$0xff]
        %v621 = vld [vmem:[%s3 + $0x5e0] sm:$0xff]
        %v622 = vld [vmem:[%s3 + $0x5e8] sm:$0xff]
        %v623 = vld [vmem:[%s3 + $0x5f0] sm:$0xff]
        %v624 = vld [vmem:[%s3 + $0x5f8] sm:$0xff]
        %v625 = vld [vmem:[%s3 + $0x600] sm:$0xff]
        %v626 = vld [vmem:[%s3 + $0x608] sm:$0xff]
        %v627 = vld [vmem:[%s3 + $0x610] sm:$0xff]
        %v628 = vld [vmem:[%s3 + $0x618] sm:$0xff]
        %v629 = vld [vmem:[%s3 + $0x620] sm:$0xff]
        %v630 = vld [vmem:[%s3 + $0x628] sm:$0xff]
        %v631 = vld [vmem:[%s3 + $0x630] sm:$0xff]
        %v632 = vld [vmem:[%s3 + $0x638] sm:$0xff]
        %v633 = vld [vmem:[%s3 + $0x640] sm:$0xff]
        %v634 = vld [vmem:[%s3 + $0x648] sm:$0xff]
        %v635 = vld [vmem:[%s3 + $0x650] sm:$0xff]
        %v636 = vld [vmem:[%s3 + $0x658] sm:$0xff]
        %v637 = vld [vmem:[%s3 + $0x660] sm:$0xff]
        %v638 = vld [vmem:[%s3 + $0x668] sm:$0xff]
        %v639 = vld [vmem:[%s3 + $0x670] sm:$0xff]
        %v640 = vld [vmem:[%s3 + $0x678] sm:$0xff]
        %v641 = vld [vmem:[%s3 + $0x680] sm:$0xff]
        %v642 = vld [vmem:[%s3 + $0x688] sm:$0xff]
        %v643 = vld [vmem:[%s3 + $0x690] sm:$0xff]
        %v644 = vld [vmem:[%s3 + $0x698] sm:$0xff]
        %v645 = vld [vmem:[%s3 + $0x6a0] sm:$0xff]
        %v646 = vld [vmem:[%s3 + $0x6a8] sm:$0xff]
        %v647 = vld [vmem:[%s3 + $0x6b0] sm:$0xff]
        %v648 = vld [vmem:[%s3 + $0x6b8] sm:$0xff]
        %v649 = vld [vmem:[%s376] sm:$0xff]
        %v650 = vld [vmem:[%s376 + $0x8] sm:$0xff]
        %v651 = vld [vmem:[%s376 + $0x10] sm:$0x3]
        %vm652 = vcmp.ge.f32.partialorder %v649, 0.0
        %vm653 = vcmp.ge.f32.partialorder %v650, 0.0
        %vm654 = vcmp.ge.f32.partialorder %v651, 0.0
        %v655 = vmul.f32 %v649, 0.01
        %v656 = vmul.f32 %v650, 0.01
        %v657 = vmul.f32 %v651, 0.01
        %v658 = vsel %vm652, %v649, %v655
        %v659 = vsel %vm653, %v650, %v656
        %v660 = vsel %vm654, %v651, %v657
        %663 = vrot.lane.b32.xlu0 %v658, 124
        %v664 = vpop.permute.xlu0 %663
        %665 = vrot.lane.b32.xlu0 %v659, 124
        %v666 = vpop.permute.xlu0 %665
        %vm667 = vcmask 523264
        %v668 = vsel %vm667, %v664, 0
        %v670 = vsel %vm667, %v666, 0
        %672 = vmatpush.msra.mxu0 0.0
        %673 = vmatpush.msra.mxu0 0.0
        %674 = vmatpush.msra.mxu0 0.0
        %675 = vmatpush.msra.mxu0 0.0
        %676 = vmatpush.msra.mxu0 0.0
        %677 = vmatpush.msra.mxu0 0.0
        %678 = vmatpush.msra.mxu0 0.0
        %679 = vmatpush.msra.mxu0 0.0
        %680 = vmatpush.msra.mxu0 %v448
        %681 = vmatpush.msra.mxu0 %v447
        %682 = vmatpush.msra.mxu0 %v446
        %683 = vmatpush.msra.mxu0 %v445
        %684 = vmatpush.msra.mxu0 %v444
        %685 = vmatpush.msra.mxu0 %v443
        %686 = vmatpush.msra.mxu0 %v442
        %687 = vmatpush.msra.mxu0 %v441
        %688 = vmatmul.f32.gmra.mxu0 %v668
        %v689 = vpop.f32.mrf.mxu0
        %v690 = vadd.f32 0.0, %v689
        %691 = vmatmul.f32.gmra.mxu0 %v670
        %v692 = vpop.f32.mrf.mxu0
        %v693 = vadd.f32 0.0, %v692
        %694 = vdwg.mxu0
        %v695 = vsel %vm667, %v658, 0
        %v697 = vsel %vm667, %v659, 0
        %699 = vmatpush.msra.mxu0 0.0
        %700 = vmatpush.msra.mxu0 0.0
        %701 = vmatpush.msra.mxu0 0.0
        %702 = vmatpush.msra.mxu0 0.0
        %703 = vmatpush.msra.mxu0 0.0
        %704 = vmatpush.msra.mxu0 0.0
        %705 = vmatpush.msra.mxu0 0.0
        %706 = vmatpush.msra.mxu0 0.0
        %707 = vmatpush.msra.mxu0 %v440
        %708 = vmatpush.msra.mxu0 %v439
        %709 = vmatpush.msra.mxu0 %v438
        %710 = vmatpush.msra.mxu0 %v437
        %711 = vmatpush.msra.mxu0 %v436
        %712 = vmatpush.msra.mxu0 %v435
        %713 = vmatpush.msra.mxu0 %v434
        %714 = vmatpush.msra.mxu0 %v433
        %715 = vmatmul.f32.gmra.mxu0 %v695
        %v716 = vpop.f32.mrf.mxu0
        %v717 = vadd.f32 %v690, %v716
        %718 = vmatmul.f32.gmra.mxu0 %v697
        %v719 = vpop.f32.mrf.mxu0
        %v720 = vadd.f32 %v693, %v719
        %721 = vdwg.mxu0
        %722 = vrot.lane.b32.xlu0 %v658, 120
        %v723 = vpop.permute.xlu0 %722
        %724 = vrot.lane.b32.xlu0 %v659, 120
        %v725 = vpop.permute.xlu0 %724
        %v726 = vsel %vm667, %v723, 0
        %v728 = vsel %vm667, %v725, 0
        %730 = vmatpush.msra.mxu0 0.0
        %731 = vmatpush.msra.mxu0 0.0
        %732 = vmatpush.msra.mxu0 0.0
        %733 = vmatpush.msra.mxu0 0.0
        %734 = vmatpush.msra.mxu0 0.0
        %735 = vmatpush.msra.mxu0 0.0
        %736 = vmatpush.msra.mxu0 0.0
        %737 = vmatpush.msra.mxu0 0.0
        %738 = vmatpush.msra.mxu0 %v456
        %739 = vmatpush.msra.mxu0 %v455
        %740 = vmatpush.msra.mxu0 %v454
        %741 = vmatpush.msra.mxu0 %v453
        %742 = vmatpush.msra.mxu0 %v452
        %743 = vmatpush.msra.mxu0 %v451
        %744 = vmatpush.msra.mxu0 %v450
        %745 = vmatpush.msra.mxu0 %v449
        %746 = vmatmul.f32.gmra.mxu0 %v726
        %v747 = vpop.f32.mrf.mxu0
        %v748 = vadd.f32 0.0, %v747
        %749 = vmatmul.f32.gmra.mxu0 %v728
        %v750 = vpop.f32.mrf.mxu0
        %v751 = vadd.f32 0.0, %v750
        %752 = vdwg.mxu0
        %v753 = vadd.f32 %v717, %v748
        %v754 = vadd.f32 %v720, %v751
        %vm756 = vcmask 1046528
        %v757 = vrot.slane %v658, 1
        %v758 = vrot.slane %v659, 1
        %v759 = vsel %vm756, %v757, %v758
        %v760 = vrot.slane %v660, 1
        %v761 = vsel %vm756, %v758, %v760
        %v762 = vsel %vm667, %v759, 0
        %v764 = vsel %vm667, %v761, 0
        %766 = vmatpush.msra.mxu0 0.0
        %767 = vmatpush.msra.mxu0 0.0
        %768 = vmatpush.msra.mxu0 0.0
        %769 = vmatpush.msra.mxu0 0.0
        %770 = vmatpush.msra.mxu0 0.0
        %771 = vmatpush.msra.mxu0 0.0
        %772 = vmatpush.msra.mxu0 0.0
        %773 = vmatpush.msra.mxu0 0.0
        %774 = vmatpush.msra.mxu0 %v464
        %775 = vmatpush.msra.mxu0 %v463
        %776 = vmatpush.msra.mxu0 %v462
        %777 = vmatpush.msra.mxu0 %v461
        %778 = vmatpush.msra.mxu0 %v460
        %779 = vmatpush.msra.mxu0 %v459
        %780 = vmatpush.msra.mxu0 %v458
        %781 = vmatpush.msra.mxu0 %v457
        %782 = vmatmul.f32.gmra.mxu0 %v762
        %v783 = vpop.f32.mrf.mxu0
        %v784 = vadd.f32 0.0, %v783
        %785 = vmatmul.f32.gmra.mxu0 %v764
        %v786 = vpop.f32.mrf.mxu0
        %v787 = vadd.f32 0.0, %v786
        %788 = vdwg.mxu0
        %v789 = vadd.f32 %v753, %v784
        %v790 = vadd.f32 %v754, %v787
        %791 = vrot.lane.b32.xlu0 %v759, 124
        %v792 = vpop.permute.xlu0 %791
        %793 = vrot.lane.b32.xlu0 %v761, 124
        %v794 = vpop.permute.xlu0 %793
        %v795 = vsel %vm667, %v792, 0
        %v797 = vsel %vm667, %v794, 0
        %799 = vmatpush.msra.mxu0 0.0
        %800 = vmatpush.msra.mxu0 0.0
        %801 = vmatpush.msra.mxu0 0.0
        %802 = vmatpush.msra.mxu0 0.0
        %803 = vmatpush.msra.mxu0 0.0
        %804 = vmatpush.msra.mxu0 0.0
        %805 = vmatpush.msra.mxu0 0.0
        %806 = vmatpush.msra.mxu0 0.0
        %807 = vmatpush.msra.mxu0 %v472
        %808 = vmatpush.msra.mxu0 %v471
        %809 = vmatpush.msra.mxu0 %v470
        %810 = vmatpush.msra.mxu0 %v469
        %811 = vmatpush.msra.mxu0 %v468
        %812 = vmatpush.msra.mxu0 %v467
        %813 = vmatpush.msra.mxu0 %v466
        %814 = vmatpush.msra.mxu0 %v465
        %815 = vmatmul.f32.gmra.mxu0 %v795
        %v816 = vpop.f32.mrf.mxu0
        %v817 = vadd.f32 0.0, %v816
        %818 = vmatmul.f32.gmra.mxu0 %v797
        %v819 = vpop.f32.mrf.mxu0
        %v820 = vadd.f32 0.0, %v819
        %821 = vdwg.mxu0
        %v822 = vadd.f32 %v789, %v817
        %v823 = vadd.f32 %v790, %v820
        %824 = vrot.lane.b32.xlu0 %v759, 120
        %v825 = vpop.permute.xlu0 %824
        %826 = vrot.lane.b32.xlu0 %v761, 120
        %v827 = vpop.permute.xlu0 %826
        %v828 = vsel %vm667, %v825, 0
        %v830 = vsel %vm667, %v827, 0
        %832 = vmatpush.msra.mxu0 0.0
        %833 = vmatpush.msra.mxu0 0.0
        %834 = vmatpush.msra.mxu0 0.0
        %835 = vmatpush.msra.mxu0 0.0
        %836 = vmatpush.msra.mxu0 0.0
        %837 = vmatpush.msra.mxu0 0.0
        %838 = vmatpush.msra.mxu0 0.0
        %839 = vmatpush.msra.mxu0 0.0
        %840 = vmatpush.msra.mxu0 %v480
        %841 = vmatpush.msra.mxu0 %v479
        %842 = vmatpush.msra.mxu0 %v478
        %843 = vmatpush.msra.mxu0 %v477
        %844 = vmatpush.msra.mxu0 %v476
        %845 = vmatpush.msra.mxu0 %v475
        %846 = vmatpush.msra.mxu0 %v474
        %847 = vmatpush.msra.mxu0 %v473
        %848 = vmatmul.f32.gmra.mxu0 %v828
        %v849 = vpop.f32.mrf.mxu0
        %v850 = vadd.f32 0.0, %v849
        %851 = vmatmul.f32.gmra.mxu0 %v830
        %v852 = vpop.f32.mrf.mxu0
        %v853 = vadd.f32 0.0, %v852
        %854 = vdwg.mxu0
        %v855 = vadd.f32 %v822, %v850
        %v856 = vadd.f32 %v823, %v853
        %vm857 = vcmask 1045504
        %v858 = vrot.slane %v658, 2
        %v859 = vrot.slane %v659, 2
        %v860 = vsel %vm857, %v858, %v859
        %v861 = vrot.slane %v660, 2
        %v862 = vsel %vm857, %v859, %v861
        %v863 = vsel %vm667, %v860, 0
        %v865 = vsel %vm667, %v862, 0
        %867 = vmatpush.msra.mxu0 0.0
        %868 = vmatpush.msra.mxu0 0.0
        %869 = vmatpush.msra.mxu0 0.0
        %870 = vmatpush.msra.mxu0 0.0
        %871 = vmatpush.msra.mxu0 0.0
        %872 = vmatpush.msra.mxu0 0.0
        %873 = vmatpush.msra.mxu0 0.0
        %874 = vmatpush.msra.mxu0 0.0
        %875 = vmatpush.msra.mxu0 %v488
        %876 = vmatpush.msra.mxu0 %v487
        %877 = vmatpush.msra.mxu0 %v486
        %878 = vmatpush.msra.mxu0 %v485
        %879 = vmatpush.msra.mxu0 %v484
        %880 = vmatpush.msra.mxu0 %v483
        %881 = vmatpush.msra.mxu0 %v482
        %882 = vmatpush.msra.mxu0 %v481
        %883 = vmatmul.f32.gmra.mxu0 %v863
        %v884 = vpop.f32.mrf.mxu0
        %v885 = vadd.f32 0.0, %v884
        %886 = vmatmul.f32.gmra.mxu0 %v865
        %v887 = vpop.f32.mrf.mxu0
        %v888 = vadd.f32 0.0, %v887
        %889 = vdwg.mxu0
        %v890 = vadd.f32 %v855, %v885
        %v891 = vadd.f32 %v856, %v888
        %892 = vrot.lane.b32.xlu0 %v860, 124
        %v893 = vpop.permute.xlu0 %892
        %894 = vrot.lane.b32.xlu0 %v862, 124
        %v895 = vpop.permute.xlu0 %894
        %v896 = vsel %vm667, %v893, 0
        %v898 = vsel %vm667, %v895, 0
        %900 = vmatpush.msra.mxu0 0.0
        %901 = vmatpush.msra.mxu0 0.0
        %902 = vmatpush.msra.mxu0 0.0
        %903 = vmatpush.msra.mxu0 0.0
        %904 = vmatpush.msra.mxu0 0.0
        %905 = vmatpush.msra.mxu0 0.0
        %906 = vmatpush.msra.mxu0 0.0
        %907 = vmatpush.msra.mxu0 0.0
        %908 = vmatpush.msra.mxu0 %v496
        %909 = vmatpush.msra.mxu0 %v495
        %910 = vmatpush.msra.mxu0 %v494
        %911 = vmatpush.msra.mxu0 %v493
        %912 = vmatpush.msra.mxu0 %v492
        %913 = vmatpush.msra.mxu0 %v491
        %914 = vmatpush.msra.mxu0 %v490
        %915 = vmatpush.msra.mxu0 %v489
        %916 = vmatmul.f32.gmra.mxu0 %v896
        %v917 = vpop.f32.mrf.mxu0
        %v918 = vadd.f32 0.0, %v917
        %919 = vmatmul.f32.gmra.mxu0 %v898
        %v920 = vpop.f32.mrf.mxu0
        %v921 = vadd.f32 0.0, %v920
        %922 = vdwg.mxu0
        %v923 = vadd.f32 %v890, %v918
        %v924 = vadd.f32 %v891, %v921
        %925 = vrot.lane.b32.xlu0 %v860, 120
        %v926 = vpop.permute.xlu0 %925
        %927 = vrot.lane.b32.xlu0 %v862, 120
        %v928 = vpop.permute.xlu0 %927
        %v929 = vsel %vm667, %v926, 0
        %v931 = vsel %vm667, %v928, 0
        %933 = vmatpush.msra.mxu0 0.0
        %934 = vmatpush.msra.mxu0 0.0
        %935 = vmatpush.msra.mxu0 0.0
        %936 = vmatpush.msra.mxu0 0.0
        %937 = vmatpush.msra.mxu0 0.0
        %938 = vmatpush.msra.mxu0 0.0
        %939 = vmatpush.msra.mxu0 0.0
        %940 = vmatpush.msra.mxu0 0.0
        %941 = vmatpush.msra.mxu0 %v504
        %942 = vmatpush.msra.mxu0 %v503
        %943 = vmatpush.msra.mxu0 %v502
        %944 = vmatpush.msra.mxu0 %v501
        %945 = vmatpush.msra.mxu0 %v500
        %946 = vmatpush.msra.mxu0 %v499
        %947 = vmatpush.msra.mxu0 %v498
        %948 = vmatpush.msra.mxu0 %v497
        %949 = vmatmul.f32.gmra.mxu0 %v929
        %v950 = vpop.f32.mrf.mxu0
        %v951 = vadd.f32 0.0, %v950
        %952 = vmatmul.f32.gmra.mxu0 %v931
        %v953 = vpop.f32.mrf.mxu0
        %v954 = vadd.f32 0.0, %v953
        %955 = vdwg.mxu0
        %v956 = vadd.f32 %v923, %v951
        %v957 = vadd.f32 %v924, %v954
        %v958 = vld [vmem:[%s394] sm:$0xff]
        %v959 = vld [vmem:[%s394 + $0x8] sm:$0xff]
        %v960 = vld [vmem:[%s394 + $0x10] sm:$0x3]
        %vm961 = vcmp.ge.f32.partialorder %v958, 0.0
        %vm962 = vcmp.ge.f32.partialorder %v959, 0.0
        %vm963 = vcmp.ge.f32.partialorder %v960, 0.0
        %v964 = vmul.f32 %v958, 0.01
        %v965 = vmul.f32 %v959, 0.01
        %v966 = vmul.f32 %v960, 0.01
        %v967 = vsel %vm961, %v958, %v964
        %v968 = vsel %vm962, %v959, %v965
        %v969 = vsel %vm963, %v960, %v966
        %v971 = vsel %vm667, %v967, 0
        %v974 = vsel %vm667, %v968, 0
        %976 = vmatpush.msra.mxu0 0.0
        %977 = vmatpush.msra.mxu0 0.0
        %978 = vmatpush.msra.mxu0 0.0
        %979 = vmatpush.msra.mxu0 0.0
        %980 = vmatpush.msra.mxu0 0.0
        %981 = vmatpush.msra.mxu0 0.0
        %982 = vmatpush.msra.mxu0 0.0
        %983 = vmatpush.msra.mxu0 0.0
        %984 = vmatpush.msra.mxu0 %v512
        %985 = vmatpush.msra.mxu0 %v511
        %986 = vmatpush.msra.mxu0 %v510
        %987 = vmatpush.msra.mxu0 %v509
        %988 = vmatpush.msra.mxu0 %v508
        %989 = vmatpush.msra.mxu0 %v507
        %990 = vmatpush.msra.mxu0 %v506
        %991 = vmatpush.msra.mxu0 %v505
        %992 = vmatmul.f32.gmra.mxu0 %v971
        %v993 = vpop.f32.mrf.mxu0
        %v994 = vadd.f32 0.0, %v993
        %995 = vmatmul.f32.gmra.mxu0 %v974
        %v996 = vpop.f32.mrf.mxu0
        %v997 = vadd.f32 0.0, %v996
        %998 = vdwg.mxu0
        %v999 = vadd.f32 %v956, %v994
        %v1000 = vadd.f32 %v957, %v997
        %1001 = vrot.lane.b32.xlu0 %v967, 124
        %v1002 = vpop.permute.xlu0 %1001
        %1003 = vrot.lane.b32.xlu0 %v968, 124
        %v1004 = vpop.permute.xlu0 %1003
        %v1005 = vsel %vm667, %v1002, 0
        %v1007 = vsel %vm667, %v1004, 0
        %1009 = vmatpush.msra.mxu0 0.0
        %1010 = vmatpush.msra.mxu0 0.0
        %1011 = vmatpush.msra.mxu0 0.0
        %1012 = vmatpush.msra.mxu0 0.0
        %1013 = vmatpush.msra.mxu0 0.0
        %1014 = vmatpush.msra.mxu0 0.0
        %1015 = vmatpush.msra.mxu0 0.0
        %1016 = vmatpush.msra.mxu0 0.0
        %1017 = vmatpush.msra.mxu0 %v520
        %1018 = vmatpush.msra.mxu0 %v519
        %1019 = vmatpush.msra.mxu0 %v518
        %1020 = vmatpush.msra.mxu0 %v517
        %1021 = vmatpush.msra.mxu0 %v516
        %1022 = vmatpush.msra.mxu0 %v515
        %1023 = vmatpush.msra.mxu0 %v514
        %1024 = vmatpush.msra.mxu0 %v513
        %1025 = vmatmul.f32.gmra.mxu0 %v1005
        %v1026 = vpop.f32.mrf.mxu0
        %v1027 = vadd.f32 0.0, %v1026
        %1028 = vmatmul.f32.gmra.mxu0 %v1007
        %v1029 = vpop.f32.mrf.mxu0
        %v1030 = vadd.f32 0.0, %v1029
        %1031 = vdwg.mxu0
        %v1032 = vadd.f32 %v999, %v1027
        %v1033 = vadd.f32 %v1000, %v1030
        %1034 = vrot.lane.b32.xlu0 %v967, 120
        %v1035 = vpop.permute.xlu0 %1034
        %1036 = vrot.lane.b32.xlu0 %v968, 120
        %v1037 = vpop.permute.xlu0 %1036
        %v1038 = vsel %vm667, %v1035, 0
        %v1040 = vsel %vm667, %v1037, 0
        %1042 = vmatpush.msra.mxu0 0.0
        %1043 = vmatpush.msra.mxu0 0.0
        %1044 = vmatpush.msra.mxu0 0.0
        %1045 = vmatpush.msra.mxu0 0.0
        %1046 = vmatpush.msra.mxu0 0.0
        %1047 = vmatpush.msra.mxu0 0.0
        %1048 = vmatpush.msra.mxu0 0.0
        %1049 = vmatpush.msra.mxu0 0.0
        %1050 = vmatpush.msra.mxu0 %v528
        %1051 = vmatpush.msra.mxu0 %v527
        %1052 = vmatpush.msra.mxu0 %v526
        %1053 = vmatpush.msra.mxu0 %v525
        %1054 = vmatpush.msra.mxu0 %v524
        %1055 = vmatpush.msra.mxu0 %v523
        %1056 = vmatpush.msra.mxu0 %v522
        %1057 = vmatpush.msra.mxu0 %v521
        %1058 = vmatmul.f32.gmra.mxu0 %v1038
        %v1059 = vpop.f32.mrf.mxu0
        %v1060 = vadd.f32 0.0, %v1059
        %1061 = vmatmul.f32.gmra.mxu0 %v1040
        %v1062 = vpop.f32.mrf.mxu0
        %v1063 = vadd.f32 0.0, %v1062
        %1064 = vdwg.mxu0
        %v1065 = vadd.f32 %v1032, %v1060
        %v1066 = vadd.f32 %v1033, %v1063
        %v1068 = vrot.slane %v967, 1
        %v1069 = vrot.slane %v968, 1
        %v1070 = vsel %vm756, %v1068, %v1069
        %v1071 = vrot.slane %v969, 1
        %v1072 = vsel %vm756, %v1069, %v1071
        %v1073 = vsel %vm667, %v1070, 0
        %v1075 = vsel %vm667, %v1072, 0
        %1077 = vmatpush.msra.mxu0 0.0
        %1078 = vmatpush.msra.mxu0 0.0
        %1079 = vmatpush.msra.mxu0 0.0
        %1080 = vmatpush.msra.mxu0 0.0
        %1081 = vmatpush.msra.mxu0 0.0
        %1082 = vmatpush.msra.mxu0 0.0
        %1083 = vmatpush.msra.mxu0 0.0
        %1084 = vmatpush.msra.mxu0 0.0
        %1085 = vmatpush.msra.mxu0 %v536
        %1086 = vmatpush.msra.mxu0 %v535
        %1087 = vmatpush.msra.mxu0 %v534
        %1088 = vmatpush.msra.mxu0 %v533
        %1089 = vmatpush.msra.mxu0 %v532
        %1090 = vmatpush.msra.mxu0 %v531
        %1091 = vmatpush.msra.mxu0 %v530
        %1092 = vmatpush.msra.mxu0 %v529
        %1093 = vmatmul.f32.gmra.mxu0 %v1073
        %v1094 = vpop.f32.mrf.mxu0
        %v1095 = vadd.f32 0.0, %v1094
        %1096 = vmatmul.f32.gmra.mxu0 %v1075
        %v1097 = vpop.f32.mrf.mxu0
        %v1098 = vadd.f32 0.0, %v1097
        %1099 = vdwg.mxu0
        %v1100 = vadd.f32 %v1065, %v1095
        %v1101 = vadd.f32 %v1066, %v1098
        %1102 = vrot.lane.b32.xlu0 %v1070, 124
        %v1103 = vpop.permute.xlu0 %1102
        %1104 = vrot.lane.b32.xlu0 %v1072, 124
        %v1105 = vpop.permute.xlu0 %1104
        %v1106 = vsel %vm667, %v1103, 0
        %v1108 = vsel %vm667, %v1105, 0
        %1110 = vmatpush.msra.mxu0 0.0
        %1111 = vmatpush.msra.mxu0 0.0
        %1112 = vmatpush.msra.mxu0 0.0
        %1113 = vmatpush.msra.mxu0 0.0
        %1114 = vmatpush.msra.mxu0 0.0
        %1115 = vmatpush.msra.mxu0 0.0
        %1116 = vmatpush.msra.mxu0 0.0
        %1117 = vmatpush.msra.mxu0 0.0
        %1118 = vmatpush.msra.mxu0 %v544
        %1119 = vmatpush.msra.mxu0 %v543
        %1120 = vmatpush.msra.mxu0 %v542
        %1121 = vmatpush.msra.mxu0 %v541
        %1122 = vmatpush.msra.mxu0 %v540
        %1123 = vmatpush.msra.mxu0 %v539
        %1124 = vmatpush.msra.mxu0 %v538
        %1125 = vmatpush.msra.mxu0 %v537
        %1126 = vmatmul.f32.gmra.mxu0 %v1106
        %v1127 = vpop.f32.mrf.mxu0
        %v1128 = vadd.f32 0.0, %v1127
        %1129 = vmatmul.f32.gmra.mxu0 %v1108
        %v1130 = vpop.f32.mrf.mxu0
        %v1131 = vadd.f32 0.0, %v1130
        %1132 = vdwg.mxu0
        %v1133 = vadd.f32 %v1100, %v1128
        %v1134 = vadd.f32 %v1101, %v1131
        %1135 = vrot.lane.b32.xlu0 %v1070, 120
        %v1136 = vpop.permute.xlu0 %1135
        %1137 = vrot.lane.b32.xlu0 %v1072, 120
        %v1138 = vpop.permute.xlu0 %1137
        %v1139 = vsel %vm667, %v1136, 0
        %v1141 = vsel %vm667, %v1138, 0
        %1143 = vmatpush.msra.mxu0 0.0
        %1144 = vmatpush.msra.mxu0 0.0
        %1145 = vmatpush.msra.mxu0 0.0
        %1146 = vmatpush.msra.mxu0 0.0
        %1147 = vmatpush.msra.mxu0 0.0
        %1148 = vmatpush.msra.mxu0 0.0
        %1149 = vmatpush.msra.mxu0 0.0
        %1150 = vmatpush.msra.mxu0 0.0
        %1151 = vmatpush.msra.mxu0 %v552
        %1152 = vmatpush.msra.mxu0 %v551
        %1153 = vmatpush.msra.mxu0 %v550
        %1154 = vmatpush.msra.mxu0 %v549
        %1155 = vmatpush.msra.mxu0 %v548
        %1156 = vmatpush.msra.mxu0 %v547
        %1157 = vmatpush.msra.mxu0 %v546
        %1158 = vmatpush.msra.mxu0 %v545
        %1159 = vmatmul.f32.gmra.mxu0 %v1139
        %v1160 = vpop.f32.mrf.mxu0
        %v1161 = vadd.f32 0.0, %v1160
        %1162 = vmatmul.f32.gmra.mxu0 %v1141
        %v1163 = vpop.f32.mrf.mxu0
        %v1164 = vadd.f32 0.0, %v1163
        %1165 = vdwg.mxu0
        %v1166 = vadd.f32 %v1133, %v1161
        %v1167 = vadd.f32 %v1134, %v1164
        %v1168 = vrot.slane %v967, 2
        %v1169 = vrot.slane %v968, 2
        %v1170 = vsel %vm857, %v1168, %v1169
        %v1171 = vrot.slane %v969, 2
        %v1172 = vsel %vm857, %v1169, %v1171
        %v1173 = vsel %vm667, %v1170, 0
        %v1175 = vsel %vm667, %v1172, 0
        %1177 = vmatpush.msra.mxu0 0.0
        %1178 = vmatpush.msra.mxu0 0.0
        %1179 = vmatpush.msra.mxu0 0.0
        %1180 = vmatpush.msra.mxu0 0.0
        %1181 = vmatpush.msra.mxu0 0.0
        %1182 = vmatpush.msra.mxu0 0.0
        %1183 = vmatpush.msra.mxu0 0.0
        %1184 = vmatpush.msra.mxu0 0.0
        %1185 = vmatpush.msra.mxu0 %v560
        %1186 = vmatpush.msra.mxu0 %v559
        %1187 = vmatpush.msra.mxu0 %v558
        %1188 = vmatpush.msra.mxu0 %v557
        %1189 = vmatpush.msra.mxu0 %v556
        %1190 = vmatpush.msra.mxu0 %v555
        %1191 = vmatpush.msra.mxu0 %v554
        %1192 = vmatpush.msra.mxu0 %v553
        %1193 = vmatmul.f32.gmra.mxu0 %v1173
        %v1194 = vpop.f32.mrf.mxu0
        %v1195 = vadd.f32 0.0, %v1194
        %1196 = vmatmul.f32.gmra.mxu0 %v1175
        %v1197 = vpop.f32.mrf.mxu0
        %v1198 = vadd.f32 0.0, %v1197
        %1199 = vdwg.mxu0
        %v1200 = vadd.f32 %v1166, %v1195
        %v1201 = vadd.f32 %v1167, %v1198
        %1202 = vrot.lane.b32.xlu0 %v1170, 124
        %v1203 = vpop.permute.xlu0 %1202
        %1204 = vrot.lane.b32.xlu0 %v1172, 124
        %v1205 = vpop.permute.xlu0 %1204
        %v1206 = vsel %vm667, %v1203, 0
        %v1208 = vsel %vm667, %v1205, 0
        %1210 = vmatpush.msra.mxu0 0.0
        %1211 = vmatpush.msra.mxu0 0.0
        %1212 = vmatpush.msra.mxu0 0.0
        %1213 = vmatpush.msra.mxu0 0.0
        %1214 = vmatpush.msra.mxu0 0.0
        %1215 = vmatpush.msra.mxu0 0.0
        %1216 = vmatpush.msra.mxu0 0.0
        %1217 = vmatpush.msra.mxu0 0.0
        %1218 = vmatpush.msra.mxu0 %v568
        %1219 = vmatpush.msra.mxu0 %v567
        %1220 = vmatpush.msra.mxu0 %v566
        %1221 = vmatpush.msra.mxu0 %v565
        %1222 = vmatpush.msra.mxu0 %v564
        %1223 = vmatpush.msra.mxu0 %v563
        %1224 = vmatpush.msra.mxu0 %v562
        %1225 = vmatpush.msra.mxu0 %v561
        %1226 = vmatmul.f32.gmra.mxu0 %v1206
        %v1227 = vpop.f32.mrf.mxu0
        %v1228 = vadd.f32 0.0, %v1227
        %1229 = vmatmul.f32.gmra.mxu0 %v1208
        %v1230 = vpop.f32.mrf.mxu0
        %v1231 = vadd.f32 0.0, %v1230
        %1232 = vdwg.mxu0
        %v1233 = vadd.f32 %v1200, %v1228
        %v1234 = vadd.f32 %v1201, %v1231
        %1235 = vrot.lane.b32.xlu0 %v1170, 120
        %v1236 = vpop.permute.xlu0 %1235
        %1237 = vrot.lane.b32.xlu0 %v1172, 120
        %v1238 = vpop.permute.xlu0 %1237
        %v1239 = vsel %vm667, %v1236, 0
        %v1241 = vsel %vm667, %v1238, 0
        %1243 = vmatpush.msra.mxu0 0.0
        %1244 = vmatpush.msra.mxu0 0.0
        %1245 = vmatpush.msra.mxu0 0.0
        %1246 = vmatpush.msra.mxu0 0.0
        %1247 = vmatpush.msra.mxu0 0.0
        %1248 = vmatpush.msra.mxu0 0.0
        %1249 = vmatpush.msra.mxu0 0.0
        %1250 = vmatpush.msra.mxu0 0.0
        %1251 = vmatpush.msra.mxu0 %v576
        %1252 = vmatpush.msra.mxu0 %v575
        %1253 = vmatpush.msra.mxu0 %v574
        %1254 = vmatpush.msra.mxu0 %v573
        %1255 = vmatpush.msra.mxu0 %v572
        %1256 = vmatpush.msra.mxu0 %v571
        %1257 = vmatpush.msra.mxu0 %v570
        %1258 = vmatpush.msra.mxu0 %v569
        %1259 = vmatmul.f32.gmra.mxu0 %v1239
        %v1260 = vpop.f32.mrf.mxu0
        %v1261 = vadd.f32 0.0, %v1260
        %1262 = vmatmul.f32.gmra.mxu0 %v1241
        %v1263 = vpop.f32.mrf.mxu0
        %v1264 = vadd.f32 0.0, %v1263
        %1265 = vdwg.mxu0
        %v1266 = vadd.f32 %v1233, %v1261
        %v1267 = vadd.f32 %v1234, %v1264
        %v1268 = vld [vmem:[%s412] sm:$0xff]
        %v1269 = vld [vmem:[%s412 + $0x8] sm:$0xff]
        %v1270 = vld [vmem:[%s412 + $0x10] sm:$0x3]
        %vm1271 = vcmp.ge.f32.partialorder %v1268, 0.0
        %vm1272 = vcmp.ge.f32.partialorder %v1269, 0.0
        %vm1273 = vcmp.ge.f32.partialorder %v1270, 0.0
        %v1274 = vmul.f32 %v1268, 0.01
        %v1275 = vmul.f32 %v1269, 0.01
        %v1276 = vmul.f32 %v1270, 0.01
        %v1277 = vsel %vm1271, %v1268, %v1274
        %v1278 = vsel %vm1272, %v1269, %v1275
        %v1279 = vsel %vm1273, %v1270, %v1276
        %v1281 = vsel %vm667, %v1277, 0
        %v1284 = vsel %vm667, %v1278, 0
        %1286 = vmatpush.msra.mxu0 0.0
        %1287 = vmatpush.msra.mxu0 0.0
        %1288 = vmatpush.msra.mxu0 0.0
        %1289 = vmatpush.msra.mxu0 0.0
        %1290 = vmatpush.msra.mxu0 0.0
        %1291 = vmatpush.msra.mxu0 0.0
        %1292 = vmatpush.msra.mxu0 0.0
        %1293 = vmatpush.msra.mxu0 0.0
        %1294 = vmatpush.msra.mxu0 %v584
        %1295 = vmatpush.msra.mxu0 %v583
        %1296 = vmatpush.msra.mxu0 %v582
        %1297 = vmatpush.msra.mxu0 %v581
        %1298 = vmatpush.msra.mxu0 %v580
        %1299 = vmatpush.msra.mxu0 %v579
        %1300 = vmatpush.msra.mxu0 %v578
        %1301 = vmatpush.msra.mxu0 %v577
        %1302 = vmatmul.f32.gmra.mxu0 %v1281
        %v1303 = vpop.f32.mrf.mxu0
        %v1304 = vadd.f32 0.0, %v1303
        %1305 = vmatmul.f32.gmra.mxu0 %v1284
        %v1306 = vpop.f32.mrf.mxu0
        %v1307 = vadd.f32 0.0, %v1306
        %1308 = vdwg.mxu0
        %v1309 = vadd.f32 %v1266, %v1304
        %v1310 = vadd.f32 %v1267, %v1307
        %1311 = vrot.lane.b32.xlu0 %v1277, 124
        %v1312 = vpop.permute.xlu0 %1311
        %1313 = vrot.lane.b32.xlu0 %v1278, 124
        %v1314 = vpop.permute.xlu0 %1313
        %v1315 = vsel %vm667, %v1312, 0
        %v1317 = vsel %vm667, %v1314, 0
        %1319 = vmatpush.msra.mxu0 0.0
        %1320 = vmatpush.msra.mxu0 0.0
        %1321 = vmatpush.msra.mxu0 0.0
        %1322 = vmatpush.msra.mxu0 0.0
        %1323 = vmatpush.msra.mxu0 0.0
        %1324 = vmatpush.msra.mxu0 0.0
        %1325 = vmatpush.msra.mxu0 0.0
        %1326 = vmatpush.msra.mxu0 0.0
        %1327 = vmatpush.msra.mxu0 %v592
        %1328 = vmatpush.msra.mxu0 %v591
        %1329 = vmatpush.msra.mxu0 %v590
        %1330 = vmatpush.msra.mxu0 %v589
        %1331 = vmatpush.msra.mxu0 %v588
        %1332 = vmatpush.msra.mxu0 %v587
        %1333 = vmatpush.msra.mxu0 %v586
        %1334 = vmatpush.msra.mxu0 %v585
        %1335 = vmatmul.f32.gmra.mxu0 %v1315
        %v1336 = vpop.f32.mrf.mxu0
        %v1337 = vadd.f32 0.0, %v1336
        %1338 = vmatmul.f32.gmra.mxu0 %v1317
        %v1339 = vpop.f32.mrf.mxu0
        %v1340 = vadd.f32 0.0, %v1339
        %1341 = vdwg.mxu0
        %v1342 = vadd.f32 %v1309, %v1337
        %v1343 = vadd.f32 %v1310, %v1340
        %1344 = vrot.lane.b32.xlu0 %v1277, 120
        %v1345 = vpop.permute.xlu0 %1344
        %1346 = vrot.lane.b32.xlu0 %v1278, 120
        %v1347 = vpop.permute.xlu0 %1346
        %v1348 = vsel %vm667, %v1345, 0
        %v1350 = vsel %vm667, %v1347, 0
        %1352 = vmatpush.msra.mxu0 0.0
        %1353 = vmatpush.msra.mxu0 0.0
        %1354 = vmatpush.msra.mxu0 0.0
        %1355 = vmatpush.msra.mxu0 0.0
        %1356 = vmatpush.msra.mxu0 0.0
        %1357 = vmatpush.msra.mxu0 0.0
        %1358 = vmatpush.msra.mxu0 0.0
        %1359 = vmatpush.msra.mxu0 0.0
        %1360 = vmatpush.msra.mxu0 %v600
        %1361 = vmatpush.msra.mxu0 %v599
        %1362 = vmatpush.msra.mxu0 %v598
        %1363 = vmatpush.msra.mxu0 %v597
        %1364 = vmatpush.msra.mxu0 %v596
        %1365 = vmatpush.msra.mxu0 %v595
        %1366 = vmatpush.msra.mxu0 %v594
        %1367 = vmatpush.msra.mxu0 %v593
        %1368 = vmatmul.f32.gmra.mxu0 %v1348
        %v1369 = vpop.f32.mrf.mxu0
        %v1370 = vadd.f32 0.0, %v1369
        %1371 = vmatmul.f32.gmra.mxu0 %v1350
        %v1372 = vpop.f32.mrf.mxu0
        %v1373 = vadd.f32 0.0, %v1372
        %1374 = vdwg.mxu0
        %v1375 = vadd.f32 %v1342, %v1370
        %v1376 = vadd.f32 %v1343, %v1373
        %v1378 = vrot.slane %v1277, 1
        %v1379 = vrot.slane %v1278, 1
        %v1380 = vsel %vm756, %v1378, %v1379
        %v1381 = vrot.slane %v1279, 1
        %v1382 = vsel %vm756, %v1379, %v1381
        %v1383 = vsel %vm667, %v1380, 0
        %v1385 = vsel %vm667, %v1382, 0
        %1387 = vmatpush.msra.mxu0 0.0
        %1388 = vmatpush.msra.mxu0 0.0
        %1389 = vmatpush.msra.mxu0 0.0
        %1390 = vmatpush.msra.mxu0 0.0
        %1391 = vmatpush.msra.mxu0 0.0
        %1392 = vmatpush.msra.mxu0 0.0
        %1393 = vmatpush.msra.mxu0 0.0
        %1394 = vmatpush.msra.mxu0 0.0
        %1395 = vmatpush.msra.mxu0 %v608
        %1396 = vmatpush.msra.mxu0 %v607
        %1397 = vmatpush.msra.mxu0 %v606
        %1398 = vmatpush.msra.mxu0 %v605
        %1399 = vmatpush.msra.mxu0 %v604
        %1400 = vmatpush.msra.mxu0 %v603
        %1401 = vmatpush.msra.mxu0 %v602
        %1402 = vmatpush.msra.mxu0 %v601
        %1403 = vmatmul.f32.gmra.mxu0 %v1383
        %v1404 = vpop.f32.mrf.mxu0
        %v1405 = vadd.f32 0.0, %v1404
        %1406 = vmatmul.f32.gmra.mxu0 %v1385
        %v1407 = vpop.f32.mrf.mxu0
        %v1408 = vadd.f32 0.0, %v1407
        %1409 = vdwg.mxu0
        %v1410 = vadd.f32 %v1375, %v1405
        %v1411 = vadd.f32 %v1376, %v1408
        %1412 = vrot.lane.b32.xlu0 %v1380, 124
        %v1413 = vpop.permute.xlu0 %1412
        %1414 = vrot.lane.b32.xlu0 %v1382, 124
        %v1415 = vpop.permute.xlu0 %1414
        %v1416 = vsel %vm667, %v1413, 0
        %v1418 = vsel %vm667, %v1415, 0
        %1420 = vmatpush.msra.mxu0 0.0
        %1421 = vmatpush.msra.mxu0 0.0
        %1422 = vmatpush.msra.mxu0 0.0
        %1423 = vmatpush.msra.mxu0 0.0
        %1424 = vmatpush.msra.mxu0 0.0
        %1425 = vmatpush.msra.mxu0 0.0
        %1426 = vmatpush.msra.mxu0 0.0
        %1427 = vmatpush.msra.mxu0 0.0
        %1428 = vmatpush.msra.mxu0 %v616
        %1429 = vmatpush.msra.mxu0 %v615
        %1430 = vmatpush.msra.mxu0 %v614
        %1431 = vmatpush.msra.mxu0 %v613
        %1432 = vmatpush.msra.mxu0 %v612
        %1433 = vmatpush.msra.mxu0 %v611
        %1434 = vmatpush.msra.mxu0 %v610
        %1435 = vmatpush.msra.mxu0 %v609
        %1436 = vmatmul.f32.gmra.mxu0 %v1416
        %v1437 = vpop.f32.mrf.mxu0
        %v1438 = vadd.f32 0.0, %v1437
        %1439 = vmatmul.f32.gmra.mxu0 %v1418
        %v1440 = vpop.f32.mrf.mxu0
        %v1441 = vadd.f32 0.0, %v1440
        %1442 = vdwg.mxu0
        %v1443 = vadd.f32 %v1410, %v1438
        %v1444 = vadd.f32 %v1411, %v1441
        %1445 = vrot.lane.b32.xlu0 %v1380, 120
        %v1446 = vpop.permute.xlu0 %1445
        %1447 = vrot.lane.b32.xlu0 %v1382, 120
        %v1448 = vpop.permute.xlu0 %1447
        %v1449 = vsel %vm667, %v1446, 0
        %v1451 = vsel %vm667, %v1448, 0
        %1453 = vmatpush.msra.mxu0 0.0
        %1454 = vmatpush.msra.mxu0 0.0
        %1455 = vmatpush.msra.mxu0 0.0
        %1456 = vmatpush.msra.mxu0 0.0
        %1457 = vmatpush.msra.mxu0 0.0
        %1458 = vmatpush.msra.mxu0 0.0
        %1459 = vmatpush.msra.mxu0 0.0
        %1460 = vmatpush.msra.mxu0 0.0
        %1461 = vmatpush.msra.mxu0 %v624
        %1462 = vmatpush.msra.mxu0 %v623
        %1463 = vmatpush.msra.mxu0 %v622
        %1464 = vmatpush.msra.mxu0 %v621
        %1465 = vmatpush.msra.mxu0 %v620
        %1466 = vmatpush.msra.mxu0 %v619
        %1467 = vmatpush.msra.mxu0 %v618
        %1468 = vmatpush.msra.mxu0 %v617
        %1469 = vmatmul.f32.gmra.mxu0 %v1449
        %v1470 = vpop.f32.mrf.mxu0
        %v1471 = vadd.f32 0.0, %v1470
        %1472 = vmatmul.f32.gmra.mxu0 %v1451
        %v1473 = vpop.f32.mrf.mxu0
        %v1474 = vadd.f32 0.0, %v1473
        %1475 = vdwg.mxu0
        %v1476 = vadd.f32 %v1443, %v1471
        %v1477 = vadd.f32 %v1444, %v1474
        %v1478 = vrot.slane %v1277, 2
        %v1479 = vrot.slane %v1278, 2
        %v1480 = vsel %vm857, %v1478, %v1479
        %v1481 = vrot.slane %v1279, 2
        %v1482 = vsel %vm857, %v1479, %v1481
        %v1483 = vsel %vm667, %v1480, 0
        %v1485 = vsel %vm667, %v1482, 0
        %1487 = vmatpush.msra.mxu0 0.0
        %1488 = vmatpush.msra.mxu0 0.0
        %1489 = vmatpush.msra.mxu0 0.0
        %1490 = vmatpush.msra.mxu0 0.0
        %1491 = vmatpush.msra.mxu0 0.0
        %1492 = vmatpush.msra.mxu0 0.0
        %1493 = vmatpush.msra.mxu0 0.0
        %1494 = vmatpush.msra.mxu0 0.0
        %1495 = vmatpush.msra.mxu0 %v632
        %1496 = vmatpush.msra.mxu0 %v631
        %1497 = vmatpush.msra.mxu0 %v630
        %1498 = vmatpush.msra.mxu0 %v629
        %1499 = vmatpush.msra.mxu0 %v628
        %1500 = vmatpush.msra.mxu0 %v627
        %1501 = vmatpush.msra.mxu0 %v626
        %1502 = vmatpush.msra.mxu0 %v625
        %1503 = vmatmul.f32.gmra.mxu0 %v1483
        %v1504 = vpop.f32.mrf.mxu0
        %v1505 = vadd.f32 0.0, %v1504
        %1506 = vmatmul.f32.gmra.mxu0 %v1485
        %v1507 = vpop.f32.mrf.mxu0
        %v1508 = vadd.f32 0.0, %v1507
        %1509 = vdwg.mxu0
        %v1510 = vadd.f32 %v1476, %v1505
        %v1511 = vadd.f32 %v1477, %v1508
        %1512 = vrot.lane.b32.xlu0 %v1480, 124
        %v1513 = vpop.permute.xlu0 %1512
        %1514 = vrot.lane.b32.xlu0 %v1482, 124
        %v1515 = vpop.permute.xlu0 %1514
        %v1516 = vsel %vm667, %v1513, 0
        %v1518 = vsel %vm667, %v1515, 0
        %1520 = vmatpush.msra.mxu0 0.0
        %1521 = vmatpush.msra.mxu0 0.0
        %1522 = vmatpush.msra.mxu0 0.0
        %1523 = vmatpush.msra.mxu0 0.0
        %1524 = vmatpush.msra.mxu0 0.0
        %1525 = vmatpush.msra.mxu0 0.0
        %1526 = vmatpush.msra.mxu0 0.0
        %1527 = vmatpush.msra.mxu0 0.0
        %1528 = vmatpush.msra.mxu0 %v640
        %1529 = vmatpush.msra.mxu0 %v639
        %1530 = vmatpush.msra.mxu0 %v638
        %1531 = vmatpush.msra.mxu0 %v637
        %1532 = vmatpush.msra.mxu0 %v636
        %1533 = vmatpush.msra.mxu0 %v635
        %1534 = vmatpush.msra.mxu0 %v634
        %1535 = vmatpush.msra.mxu0 %v633
        %1536 = vmatmul.f32.gmra.mxu0 %v1516
        %v1537 = vpop.f32.mrf.mxu0
        %v1538 = vadd.f32 0.0, %v1537
        %1539 = vmatmul.f32.gmra.mxu0 %v1518
        %v1540 = vpop.f32.mrf.mxu0
        %v1541 = vadd.f32 0.0, %v1540
        %1542 = vdwg.mxu0
        %v1543 = vadd.f32 %v1510, %v1538
        %v1544 = vadd.f32 %v1511, %v1541
        %1545 = vrot.lane.b32.xlu0 %v1480, 120
        %v1546 = vpop.permute.xlu0 %1545
        %1547 = vrot.lane.b32.xlu0 %v1482, 120
        %v1548 = vpop.permute.xlu0 %1547
        %v1549 = vsel %vm667, %v1546, 0
        %v1551 = vsel %vm667, %v1548, 0
        %1553 = vmatpush.msra.mxu0 0.0
        %1554 = vmatpush.msra.mxu0 0.0
        %1555 = vmatpush.msra.mxu0 0.0
        %1556 = vmatpush.msra.mxu0 0.0
        %1557 = vmatpush.msra.mxu0 0.0
        %1558 = vmatpush.msra.mxu0 0.0
        %1559 = vmatpush.msra.mxu0 0.0
        %1560 = vmatpush.msra.mxu0 0.0
        %1561 = vmatpush.msra.mxu0 %v648
        %1562 = vmatpush.msra.mxu0 %v647
        %1563 = vmatpush.msra.mxu0 %v646
        %1564 = vmatpush.msra.mxu0 %v645
        %1565 = vmatpush.msra.mxu0 %v644
        %1566 = vmatpush.msra.mxu0 %v643
        %1567 = vmatpush.msra.mxu0 %v642
        %1568 = vmatpush.msra.mxu0 %v641
        %1569 = vmatmul.f32.gmra.mxu0 %v1549
        %v1570 = vpop.f32.mrf.mxu0
        %v1571 = vadd.f32 0.0, %v1570
        %1572 = vmatmul.f32.gmra.mxu0 %v1551
        %v1573 = vpop.f32.mrf.mxu0
        %v1574 = vadd.f32 0.0, %v1573
        %1575 = vdwg.mxu0
        %v1576 = vadd.f32 %v1543, %v1571
        %v1577 = vadd.f32 %v1544, %v1574
        %v1578 = vld [vmem:[%s4] sm:$0x1]
        %v1580 = vperm.slane %v1578, 0
        %v1582 = vadd.f32 %v1576, %v1580
        %v1583 = vadd.f32 %v1577, %v1580
        %vm1584 = vcmp.ge.f32.partialorder %v1582, 0.0
        %vm1585 = vcmp.ge.f32.partialorder %v1583, 0.0
        %v1586 = vmul.f32 %v1582, 0.01
        %v1587 = vmul.f32 %v1583, 0.01
        %v1588 = vsel %vm1584, %v1582, %v1586
        %v1589 = vsel %vm1585, %v1583, %v1587
        %1590 = vst [vmem:[%s426] sm:$0xff] 0.0
        %vm1591 = vcmask 130048
        %1592 = vst.msk [vmem:[%s426 + $0x8] sm:$0xff] %vm1591, 0.0
        %1593 = vst [vmem:[%s426 + $0x10] sm:$0xff] 0.0
        %1594 = vst.msk [vmem:[%s426 + $0x18] sm:$0xff] %vm1591, 0.0
        %1595 = vst [vmem:[%s426 + $0x20] sm:$0x3] 0.0
        %vm1596 = vcmask 123904
        %1597 = vst.msk [vmem:[%s426 + $0x28] sm:$0x3] %vm1596, 0.0
        %vm1600 = vcmask 1040384
        %v1601 = vrot.slane %v1588, 7
        %v1602 = vrot.slane %v1589, 7
        %v1603 = vsel %vm1600, %v1601, %v1602
        %1604 = vrot.lane.b32.xlu0 %v1601, 8
        %v1605 = vpop.permute.xlu0 %1604
        %1606 = vrot.lane.b32.xlu0 %v1603, 8
        %v1607 = vpop.permute.xlu0 %1606
        %1608 = vrot.lane.b32.xlu0 %v1602, 8
        %v1609 = vpop.permute.xlu0 %1608
        %vm1613 = vcmask 1047617
        %1614 = vst.msk [vmem:[%s426] sm:$0xfe] %vm1613, %v1605
        %vm1615 = vcmask 64513
        %1616 = vst.msk [vmem:[%s426 + $0x8] sm:$0xfe] %vm1615, %v1605
        %vm1617 = vcmask 1047616
        %1618 = vst.msk [vmem:[%s426 + $0x10] sm:$0xff] %vm1617, %v1607
        %vm1619 = vcmask 64512
        %1620 = vst.msk [vmem:[%s426 + $0x18] sm:$0xff] %vm1619, %v1607
        %vm1621 = vcmask 1040448
        %1622 = vst.msk [vmem:[%s426 + $0x20] sm:$0x1] %vm1621, %v1609
        %vm1623 = vcmask 57344
        %1624 = vst.msk [vmem:[%s426 + $0x28] sm:$0x1] %vm1623, %v1609
      $region44: #{disblock3d_forward.2} parent=39 // pred_fallthru
        _
      // Predicated region
      $region45: #{disblock3d_forward.2} parent=39 // pred_check
        %p1625 = pneg %p429
      $region46: #{disblock3d_forward.2} parent=39 // pred_check_branch
        %1627 = sbr.rel (%p1625) target = $region48
      $region47: #{disblock3d_forward.2} parent=39 // pred_region
        %1628 = vst [vmem:[%s426] sm:$0xff] 0.0
        %vm1629 = vcmask 130048
        %1630 = vst.msk [vmem:[%s426 + $0x8] sm:$0xff] %vm1629, 0.0
        %1631 = vst [vmem:[%s426 + $0x10] sm:$0xff] 0.0
        %1632 = vst.msk [vmem:[%s426 + $0x18] sm:$0xff] %vm1629, 0.0
        %1633 = vst [vmem:[%s426 + $0x20] sm:$0x3] 0.0
        %vm1634 = vcmask 123904
        %1635 = vst.msk [vmem:[%s426 + $0x28] sm:$0x3] %vm1634, 0.0
      $region48: #{disblock3d_forward.2} parent=39 // pred_fallthru
        _
      %p1636 = scmp.lt.s32.totalorder %s20, 1
      %s1637 = scalar_select %p1636, %s20, 1
      %p1638 = scmp.lt.s32.totalorder %s21, 5
      %s1639 = scalar_select %p1638, %s21, 5
      %s1640 = smul.addr %s1639, 6
      %s1641 = smul.addr %s1637, 36
      %s1642 = sadd.s32 %s1640, %s1641
      %s1643 = smul.addr %s1642, 8
      %s1644 = scalar_lea.vmem %s5, %s1643
      // Predicated region
      $region49: #{disblock3d_forward.2} parent=39 // pred_check
        %p1645 = pneg %p202
      $region50: #{disblock3d_forward.2} parent=39 // pred_check_branch
        %1647 = sbr.rel (%p1645) target = $region52
      $region51: #{disblock3d_forward.2} parent=39 // pred_region
        _
      $region52: #{disblock3d_forward.2} parent=39 // pred_fallthru
        _
    $region40: #{disblock3d_forward.2} parent=5 // pred_fallthru
      _
    %p1648 = scmp.le.s32.totalorder 2, %s11
    // Predicated region
    $region53: #{disblock3d_forward.2} parent=5 // pred_check
      %p1649 = pneg %p1648
    $region54: #{disblock3d_forward.2} parent=5 // pred_check_branch
      %1651 = sbr.rel (%p1649) target = $region56
    $region55: #{disblock3d_forward.2} parent=5 // pred_region
      %s1652 = ssub.s32 %s11, 2
      // Predicated region
      $region57: #{disblock3d_forward.2} parent=55 // pred_check
        %p1653 = pneg %p208
      $region58: #{disblock3d_forward.2} parent=55 // pred_check_branch
        %1655 = sbr.rel (%p1653) target = $region60
      $region59: #{disblock3d_forward.2} parent=55 // pred_region
        %p1656 = scmp.lt.s32.totalorder %s22, 1
        %s1657 = scalar_select %p1656, %s22, 1
        %p1658 = scmp.lt.s32.totalorder %s23, 5
        %s1659 = scalar_select %p1658, %s23, 5
        %s1660 = smul.addr %s1659, 6
        %s1661 = smul.addr %s1657, 36
        %s1662 = sadd.s32 %s1660, %s1661
        %s1663 = smul.addr %s1662, 8
        %s1664 = scalar_lea.vmem %s5, %s1663
      $region60: #{disblock3d_forward.2} parent=55 // pred_fallthru
        _
    $region56: #{disblock3d_forward.2} parent=5 // pred_fallthru
      _
  $region6: #{disblock3d_forward.2} parent=0 // loop_footer
    %s15 = sadd.s32 1, %s11
  $region7: #{disblock3d_forward.2} parent=0 // loop_footer_branch
    %10 = sbr.rel target = $region3
  $region8: #{disblock3d_forward.2} parent=0 // loop_exit
    _

// kernel: disblock3d_forward.3
$region0: #{disblock3d_forward.3}
  #allocation0 [shape = 'u32[]', space=smem, size = 0x4, offset = 0x4, fixed_abs, tag = 'smem constant byte address 0x4 - core index']
  #allocation1 [shape = 'u32[72,128]{1,0:T(1,128)}', space=vmem, size = 0x9000, scoped, tag = 'internal scratch']
  %s0 = inlined_call_operand.vmem [shape: f32[2,6,18,144], index: 0, kind: input, shape index: {}, may-alias: {0,1,2,3}]
  %s1 = inlined_call_operand.vmem [shape: f32[2,6,18,144], index: 1, kind: input, shape index: {}, may-alias: {0,1,2,3}]
  %s2 = inlined_call_operand.vmem [shape: f32[2,6,18,144], index: 2, kind: input, shape index: {}, may-alias: {0,1,2,3}]
  %s3 = inlined_call_operand.vmem [shape: f32[2,6,18,144], index: 3, kind: input, shape index: {}, may-alias: {0,1,2,3}]
  %s4 = inlined_call_operand.vmem [shape: f32[2,6,18,72], index: 4, kind: input, shape index: {}, may-alias: {4,5}]
  %s5 = inlined_call_operand.vmem [shape: f32[2,6,18,72], index: 5, kind: input, shape index: {}, may-alias: {4,5}]
  %s6 = inlined_call_operand.vmem [shape: f32[27,128,128], index: 6, kind: input, shape index: {}]
  %s7 = inlined_call_operand.vmem [shape: f32[1,128], index: 7, kind: input, shape index: {}]
  %s8 = inlined_call_operand.vmem [shape: f32[64,128], index: 8, kind: input, shape index: {}]
  %s9 = inlined_call_operand.vmem [shape: f32[1,128], index: 9, kind: input, shape index: {}]
  %s10 = inlined_call_operand.vmem [shape: f32[8,16], index: 10, kind: input, shape index: {}]
  %s11 = inlined_call_operand.vmem [shape: f32[128,64], index: 11, kind: input, shape index: {}]
  %s12 = inlined_call_operand.vmem [shape: f32[2,2,8,64], index: 12, kind: output, shape index: {}]
  %s13 = sld [smem:[#allocation0]]
  $region81: #{disblock3d_forward.3} parent=0
    _
  %s15 = ssub.s32 1, %s13
  %s16 = scalar_select 0, %s15, %s13
  loop: start=0, step=1, limit=6
  $region2: #{disblock3d_forward.3} parent=0 // loop_pre_header
    _
  $region3: #{disblock3d_forward.3} parent=0 // loop_header
    %s18 = sphi 0, %s22
    %p19 = scmp.ge.s32.totalorder %s18, 6
    %s25 = sphi 0, %s37
    %s26 = sphi 0, %s33
    %s27 = sphi 0, %s25
    %s28 = sphi 0, %s26
    %s29 = sphi 0, %s27
    %s30 = sphi 0, %s28
    %s44 = sphi 0, %s46
    %s47 = sphi 0, %s44
    %s48 = sphi 0, %s47
    %s64 = sphi 0, %s48
    %s76 = sphi 0, %s78
    %s79 = sphi 0, %s76
    %s80 = sphi 0, %s79
    %s96 = sphi 0, %s80
    %s108 = sphi 0, %s110
    %s111 = sphi 0, %s108
    %s112 = sphi 0, %s111
    %s128 = sphi 0, %s112
    %s140 = sphi 0, %s142
    %s143 = sphi 0, %s140
    %s144 = sphi 0, %s143
    %s160 = sphi 0, %s144
    %s172 = sphi 0, %s174
    %s175 = sphi 0, %s172
    %s176 = sphi 0, %s175
    %s192 = sphi 0, %s176
    %s204 = sphi 0, %s206
    %s207 = sphi 0, %s204
    %s208 = sphi 0, %s207
    %s224 = sphi 0, %s208
    %s228 = sphi 0, %s228
    %s230 = sphi 0, %s228
    %s231 = sphi 0, %s230
    %s245 = sphi 0, %s231
    %s249 = sphi 0, %s249
    %s251 = sphi 0, %s249
    %s252 = sphi 0, %s251
    %s266 = sphi 0, %s252
    %s270 = sphi 0, %s270
    %s272 = sphi 0, %s270
    %s273 = sphi 0, %s272
    %s287 = sphi 0, %s273
    %s291 = sphi 0, %s291
    %s293 = sphi 0, %s291
    %s294 = sphi 0, %s293
    %s308 = sphi 0, %s294
    %s312 = sphi 0, %s312
    %s314 = sphi 0, %s312
    %s315 = sphi 0, %s314
    %s329 = sphi 0, %s315
    %s333 = sphi 0, %s333
    %s335 = sphi 0, %s333
    %s336 = sphi 0, %s335
    %s350 = sphi 0, %s336
    %s358 = sphi 0, %s360
    %s361 = sphi 0, %s358
    %s362 = sphi 0, %s361
    %s378 = sphi 0, %s362
  $region4: #{disblock3d_forward.3} parent=0 // loop_header_branch
    %21 = sbr.rel (%p19) target = $region8
  $region5: #{disblock3d_forward.3} parent=0 // loop_body
    %s23 = ssub.s32 %s18, 1
    %s24 = ssub.s32 %s18, 2
    %s31 = sadd.s32 1, %s26
    %p32 = scmp.ge.s32.totalorder %s31, 2
    %s33 = scalar_select %p32, 0, %s31
    %s34 = sadd.s32 1, %s25
    %s35 = scalar_select %p32, %s34, %s25
    %p36 = scmp.ge.s32.totalorder %s35, 2
    %s37 = scalar_select %p36, 0, %s35
    %s38 = smul.u32 %s26, 2
    %s39 = smul.u32 %s33, 2
    %s40 = ssub.s32 %s25, %s37
    %s41 = ssub.s32 %s38, %s39
    %s42 = sor.u32 %s40, %s41
    %p43 = scmp.eq.s32.totalorder %s42, 0
    %s45 = sadd.s32 %s44, 1
    %s46 = scalar_select %p43, %s44, %s45
    %p49 = pneg %p43
    %p50 = scmp.eq.s32.totalorder %s18, 3
    %p51 = por %p49, %p50
    %p52 = scmp.ne.s32.totalorder %s44, %s47
    %p53 = scmp.eq.s32.totalorder %s18, 0
    %p54 = por %p52, %p53
    %p55 = scmp.ne.s32.totalorder %s44, %s47
    %p56 = scmp.eq.s32.totalorder %s23, 3
    %p57 = por %p55, %p56
    %p58 = scmp.ne.s32.totalorder %s47, %s48
    %p59 = scmp.eq.s32.totalorder %s23, 0
    %p60 = por %p58, %p59
    %p61 = scmp.ne.s32.totalorder %s47, %s48
    %p62 = scmp.eq.s32.totalorder %s24, 3
    %p63 = por %p61, %p62
    %p65 = scmp.ne.s32.totalorder %s48, %s64
    %p66 = scmp.eq.s32.totalorder %s24, 0
    %p67 = por %p65, %p66
    %s68 = smul.u32 %s26, 2
    %s69 = sadd.s32 %s68, 1
    %s70 = smul.u32 %s33, 2
    %s71 = sadd.s32 %s70, 1
    %s72 = ssub.s32 %s25, %s37
    %s73 = ssub.s32 %s69, %s71
    %s74 = sor.u32 %s72, %s73
    %p75 = scmp.eq.s32.totalorder %s74, 0
    %s77 = sadd.s32 %s76, 1
    %s78 = scalar_select %p75, %s76, %s77
    %p81 = pneg %p75
    %p82 = scmp.eq.s32.totalorder %s18, 3
    %p83 = por %p81, %p82
    %p84 = scmp.ne.s32.totalorder %s76, %s79
    %p85 = scmp.eq.s32.totalorder %s18, 0
    %p86 = por %p84, %p85
    %p87 = scmp.ne.s32.totalorder %s76, %s79
    %p88 = scmp.eq.s32.totalorder %s23, 3
    %p89 = por %p87, %p88
    %p90 = scmp.ne.s32.totalorder %s79, %s80
    %p91 = scmp.eq.s32.totalorder %s23, 0
    %p92 = por %p90, %p91
    %p93 = scmp.ne.s32.totalorder %s79, %s80
    %p94 = scmp.eq.s32.totalorder %s24, 3
    %p95 = por %p93, %p94
    %p97 = scmp.ne.s32.totalorder %s80, %s96
    %p98 = scmp.eq.s32.totalorder %s24, 0
    %p99 = por %p97, %p98
    %s100 = smul.u32 %s26, 2
    %s101 = sadd.s32 %s100, 2
    %s102 = smul.u32 %s33, 2
    %s103 = sadd.s32 %s102, 2
    %s104 = ssub.s32 %s25, %s37
    %s105 = ssub.s32 %s101, %s103
    %s106 = sor.u32 %s104, %s105
    %p107 = scmp.eq.s32.totalorder %s106, 0
    %s109 = sadd.s32 %s108, 1
    %s110 = scalar_select %p107, %s108, %s109
    %p113 = pneg %p107
    %p114 = scmp.eq.s32.totalorder %s18, 3
    %p115 = por %p113, %p114
    %p116 = scmp.ne.s32.totalorder %s108, %s111
    %p117 = scmp.eq.s32.totalorder %s18, 0
    %p118 = por %p116, %p117
    %p119 = scmp.ne.s32.totalorder %s108, %s111
    %p120 = scmp.eq.s32.totalorder %s23, 3
    %p121 = por %p119, %p120
    %p122 = scmp.ne.s32.totalorder %s111, %s112
    %p123 = scmp.eq.s32.totalorder %s23, 0
    %p124 = por %p122, %p123
    %p125 = scmp.ne.s32.totalorder %s111, %s112
    %p126 = scmp.eq.s32.totalorder %s24, 3
    %p127 = por %p125, %p126
    %p129 = scmp.ne.s32.totalorder %s112, %s128
    %p130 = scmp.eq.s32.totalorder %s24, 0
    %p131 = por %p129, %p130
    %s132 = smul.u32 %s26, 2
    %s133 = sadd.s32 %s132, 3
    %s134 = smul.u32 %s33, 2
    %s135 = sadd.s32 %s134, 3
    %s136 = ssub.s32 %s25, %s37
    %s137 = ssub.s32 %s133, %s135
    %s138 = sor.u32 %s136, %s137
    %p139 = scmp.eq.s32.totalorder %s138, 0
    %s141 = sadd.s32 %s140, 1
    %s142 = scalar_select %p139, %s140, %s141
    %p145 = pneg %p139
    %p146 = scmp.eq.s32.totalorder %s18, 3
    %p147 = por %p145, %p146
    %p148 = scmp.ne.s32.totalorder %s140, %s143
    %p149 = scmp.eq.s32.totalorder %s18, 0
    %p150 = por %p148, %p149
    %p151 = scmp.ne.s32.totalorder %s140, %s143
    %p152 = scmp.eq.s32.totalorder %s23, 3
    %p153 = por %p151, %p152
    %p154 = scmp.ne.s32.totalorder %s143, %s144
    %p155 = scmp.eq.s32.totalorder %s23, 0
    %p156 = por %p154, %p155
    %p157 = scmp.ne.s32.totalorder %s143, %s144
    %p158 = scmp.eq.s32.totalorder %s24, 3
    %p159 = por %p157, %p158
    %p161 = scmp.ne.s32.totalorder %s144, %s160
    %p162 = scmp.eq.s32.totalorder %s24, 0
    %p163 = por %p161, %p162
    %s164 = smul.u32 %s26, 2
    %s165 = sadd.s32 %s164, 1
    %s166 = smul.u32 %s33, 2
    %s167 = sadd.s32 %s166, 1
    %s168 = ssub.s32 %s25, %s37
    %s169 = ssub.s32 %s165, %s167
    %s170 = sor.u32 %s168, %s169
    %p171 = scmp.eq.s32.totalorder %s170, 0
    %s173 = sadd.s32 %s172, 1
    %s174 = scalar_select %p171, %s172, %s173
    %p177 = pneg %p171
    %p178 = scmp.eq.s32.totalorder %s18, 3
    %p179 = por %p177, %p178
    %p180 = scmp.ne.s32.totalorder %s172, %s175
    %p181 = scmp.eq.s32.totalorder %s18, 0
    %p182 = por %p180, %p181
    %p183 = scmp.ne.s32.totalorder %s172, %s175
    %p184 = scmp.eq.s32.totalorder %s23, 3
    %p185 = por %p183, %p184
    %p186 = scmp.ne.s32.totalorder %s175, %s176
    %p187 = scmp.eq.s32.totalorder %s23, 0
    %p188 = por %p186, %p187
    %p189 = scmp.ne.s32.totalorder %s175, %s176
    %p190 = scmp.eq.s32.totalorder %s24, 3
    %p191 = por %p189, %p190
    %p193 = scmp.ne.s32.totalorder %s176, %s192
    %p194 = scmp.eq.s32.totalorder %s24, 0
    %p195 = por %p193, %p194
    %s196 = smul.u32 %s26, 2
    %s197 = sadd.s32 %s196, 2
    %s198 = smul.u32 %s33, 2
    %s199 = sadd.s32 %s198, 2
    %s200 = ssub.s32 %s25, %s37
    %s201 = ssub.s32 %s197, %s199
    %s202 = sor.u32 %s200, %s201
    %p203 = scmp.eq.s32.totalorder %s202, 0
    %s205 = sadd.s32 %s204, 1
    %s206 = scalar_select %p203, %s204, %s205
    %p209 = pneg %p203
    %p210 = scmp.eq.s32.totalorder %s18, 3
    %p211 = por %p209, %p210
    %p212 = scmp.ne.s32.totalorder %s204, %s207
    %p213 = scmp.eq.s32.totalorder %s18, 0
    %p214 = por %p212, %p213
    %p215 = scmp.ne.s32.totalorder %s204, %s207
    %p216 = scmp.eq.s32.totalorder %s23, 3
    %p217 = por %p215, %p216
    %p218 = scmp.ne.s32.totalorder %s207, %s208
    %p219 = scmp.eq.s32.totalorder %s23, 0
    %p220 = por %p218, %p219
    %p221 = scmp.ne.s32.totalorder %s207, %s208
    %p222 = scmp.eq.s32.totalorder %s24, 3
    %p223 = por %p221, %p222
    %p225 = scmp.ne.s32.totalorder %s208, %s224
    %p226 = scmp.eq.s32.totalorder %s24, 0
    %p227 = por %p225, %p226
    %s229 = sadd.s32 %s228, 1
    %p232 = scmp.eq.s32.totalorder %s18, 3
    %p233 = scmp.ne.s32.totalorder %s228, %s230
    %p234 = scmp.eq.s32.totalorder %s18, 0
    %p235 = por %p233, %p234
    %p236 = scmp.ne.s32.totalorder %s228, %s230
    %p237 = scmp.eq.s32.totalorder %s23, 3
    %p238 = por %p236, %p237
    %p239 = scmp.ne.s32.totalorder %s230, %s231
    %p240 = scmp.eq.s32.totalorder %s23, 0
    %p241 = por %p239, %p240
    %p242 = scmp.ne.s32.totalorder %s230, %s231
    %p243 = scmp.eq.s32.totalorder %s24, 3
    %p244 = por %p242, %p243
    %p246 = scmp.ne.s32.totalorder %s231, %s245
    %p247 = scmp.eq.s32.totalorder %s24, 0
    %p248 = por %p246, %p247
    %s250 = sadd.s32 %s249, 1
    %p253 = scmp.eq.s32.totalorder %s18, 3
    %p254 = scmp.ne.s32.totalorder %s249, %s251
    %p255 = scmp.eq.s32.totalorder %s18, 0
    %p256 = por %p254, %p255
    %p257 = scmp.ne.s32.totalorder %s249, %s251
    %p258 = scmp.eq.s32.totalorder %s23, 3
    %p259 = por %p257, %p258
    %p260 = scmp.ne.s32.totalorder %s251, %s252
    %p261 = scmp.eq.s32.totalorder %s23, 0
    %p262 = por %p260, %p261
    %p263 = scmp.ne.s32.totalorder %s251, %s252
    %p264 = scmp.eq.s32.totalorder %s24, 3
    %p265 = por %p263, %p264
    %p267 = scmp.ne.s32.totalorder %s252, %s266
    %p268 = scmp.eq.s32.totalorder %s24, 0
    %p269 = por %p267, %p268
    %s271 = sadd.s32 %s270, 1
    %p274 = scmp.eq.s32.totalorder %s18, 3
    %p275 = scmp.ne.s32.totalorder %s270, %s272
    %p276 = scmp.eq.s32.totalorder %s18, 0
    %p277 = por %p275, %p276
    %p278 = scmp.ne.s32.totalorder %s270, %s272
    %p279 = scmp.eq.s32.totalorder %s23, 3
    %p280 = por %p278, %p279
    %p281 = scmp.ne.s32.totalorder %s272, %s273
    %p282 = scmp.eq.s32.totalorder %s23, 0
    %p283 = por %p281, %p282
    %p284 = scmp.ne.s32.totalorder %s272, %s273
    %p285 = scmp.eq.s32.totalorder %s24, 3
    %p286 = por %p284, %p285
    %p288 = scmp.ne.s32.totalorder %s273, %s287
    %p289 = scmp.eq.s32.totalorder %s24, 0
    %p290 = por %p288, %p289
    %s292 = sadd.s32 %s291, 1
    %p295 = scmp.eq.s32.totalorder %s18, 3
    %p296 = scmp.ne.s32.totalorder %s291, %s293
    %p297 = scmp.eq.s32.totalorder %s18, 0
    %p298 = por %p296, %p297
    %p299 = scmp.ne.s32.totalorder %s291, %s293
    %p300 = scmp.eq.s32.totalorder %s23, 3
    %p301 = por %p299, %p300
    %p302 = scmp.ne.s32.totalorder %s293, %s294
    %p303 = scmp.eq.s32.totalorder %s23, 0
    %p304 = por %p302, %p303
    %p305 = scmp.ne.s32.totalorder %s293, %s294
    %p306 = scmp.eq.s32.totalorder %s24, 3
    %p307 = por %p305, %p306
    %p309 = scmp.ne.s32.totalorder %s294, %s308
    %p310 = scmp.eq.s32.totalorder %s24, 0
    %p311 = por %p309, %p310
    %s313 = sadd.s32 %s312, 1
    %p316 = scmp.eq.s32.totalorder %s18, 3
    %p317 = scmp.ne.s32.totalorder %s312, %s314
    %p318 = scmp.eq.s32.totalorder %s18, 0
    %p319 = por %p317, %p318
    %p320 = scmp.ne.s32.totalorder %s312, %s314
    %p321 = scmp.eq.s32.totalorder %s23, 3
    %p322 = por %p320, %p321
    %p323 = scmp.ne.s32.totalorder %s314, %s315
    %p324 = scmp.eq.s32.totalorder %s23, 0
    %p325 = por %p323, %p324
    %p326 = scmp.ne.s32.totalorder %s314, %s315
    %p327 = scmp.eq.s32.totalorder %s24, 3
    %p328 = por %p326, %p327
    %p330 = scmp.ne.s32.totalorder %s315, %s329
    %p331 = scmp.eq.s32.totalorder %s24, 0
    %p332 = por %p330, %p331
    %s334 = sadd.s32 %s333, 1
    %p337 = scmp.eq.s32.totalorder %s18, 3
    %p338 = scmp.ne.s32.totalorder %s333, %s335
    %p339 = scmp.eq.s32.totalorder %s18, 0
    %p340 = por %p338, %p339
    %p341 = scmp.ne.s32.totalorder %s333, %s335
    %p342 = scmp.eq.s32.totalorder %s23, 3
    %p343 = por %p341, %p342
    %p344 = scmp.ne.s32.totalorder %s335, %s336
    %p345 = scmp.eq.s32.totalorder %s23, 0
    %p346 = por %p344, %p345
    %p347 = scmp.ne.s32.totalorder %s335, %s336
    %p348 = scmp.eq.s32.totalorder %s24, 3
    %p349 = por %p347, %p348
    %p351 = scmp.ne.s32.totalorder %s336, %s350
    %p352 = scmp.eq.s32.totalorder %s24, 0
    %p353 = por %p351, %p352
    %s354 = ssub.s32 %s25, %s37
    %s355 = ssub.s32 %s26, %s33
    %s356 = sor.u32 %s354, %s355
    %p357 = scmp.eq.s32.totalorder %s356, 0
    %s359 = sadd.s32 %s358, 1
    %s360 = scalar_select %p357, %s358, %s359
    %p363 = pneg %p357
    %p364 = scmp.eq.s32.totalorder %s18, 3
    %p365 = por %p363, %p364
    %p366 = scmp.ne.s32.totalorder %s358, %s361
    %p367 = scmp.eq.s32.totalorder %s18, 0
    %p368 = por %p366, %p367
    %p369 = scmp.ne.s32.totalorder %s358, %s361
    %p370 = scmp.eq.s32.totalorder %s23, 3
    %p371 = por %p369, %p370
    %p372 = scmp.ne.s32.totalorder %s361, %s362
    %p373 = scmp.eq.s32.totalorder %s23, 0
    %p374 = por %p372, %p373
    %p375 = scmp.ne.s32.totalorder %s361, %s362
    %p376 = scmp.eq.s32.totalorder %s24, 3
    %p377 = por %p375, %p376
    %p379 = scmp.ne.s32.totalorder %s362, %s378
    %p380 = scmp.eq.s32.totalorder %s24, 0
    %p381 = por %p379, %p380
    %p382 = scmp.le.s32.totalorder 1, %s18
    %p383 = scmp.lt.s32.totalorder %s18, 5
    %p384 = pnand %p382, %p383
    %p385 = pneg %p384
    // Predicated region
    $region9: #{disblock3d_forward.3} parent=5 // pred_check
      _
    $region10: #{disblock3d_forward.3} parent=5 // pred_check_branch
      %387 = sbr.rel (%p384) target = $region12
    $region11: #{disblock3d_forward.3} parent=5 // pred_region
      %s388 = ssub.s32 %s18, 1
      // Predicated region
      $region13: #{disblock3d_forward.3} parent=11 // pred_check
        %p389 = pneg %p241
      $region14: #{disblock3d_forward.3} parent=11 // pred_check_branch
        %391 = sbr.rel (%p389) target = $region16
      $region15: #{disblock3d_forward.3} parent=11 // pred_region
        _
      $region16: #{disblock3d_forward.3} parent=11 // pred_fallthru
        _
      // Predicated region
      $region17: #{disblock3d_forward.3} parent=11 // pred_check
        %p392 = pneg %p262
      $region18: #{disblock3d_forward.3} parent=11 // pred_check_branch
        %394 = sbr.rel (%p392) target = $region20
      $region19: #{disblock3d_forward.3} parent=11 // pred_region
        _
      $region20: #{disblock3d_forward.3} parent=11 // pred_fallthru
        _
      // Predicated region
      $region21: #{disblock3d_forward.3} parent=11 // pred_check
        %p395 = pneg %p283
      $region22: #{disblock3d_forward.3} parent=11 // pred_check_branch
        %397 = sbr.rel (%p395) target = $region24
      $region23: #{disblock3d_forward.3} parent=11 // pred_region
        _
      $region24: #{disblock3d_forward.3} parent=11 // pred_fallthru
        _
      // Predicated region
      $region25: #{disblock3d_forward.3} parent=11 // pred_check
        %p398 = pneg %p304
      $region26: #{disblock3d_forward.3} parent=11 // pred_check_branch
        %400 = sbr.rel (%p398) target = $region28
      $region27: #{disblock3d_forward.3} parent=11 // pred_region
        _
      $region28: #{disblock3d_forward.3} parent=11 // pred_fallthru
        _
      // Predicated region
      $region29: #{disblock3d_forward.3} parent=11 // pred_check
        %p401 = pneg %p325
      $region30: #{disblock3d_forward.3} parent=11 // pred_check_branch
        %403 = sbr.rel (%p401) target = $region32
      $region31: #{disblock3d_forward.3} parent=11 // pred_region
        _
      $region32: #{disblock3d_forward.3} parent=11 // pred_fallthru
        _
      // Predicated region
      $region33: #{disblock3d_forward.3} parent=11 // pred_check
        %p404 = pneg %p346
      $region34: #{disblock3d_forward.3} parent=11 // pred_check_branch
        %406 = sbr.rel (%p404) target = $region36
      $region35: #{disblock3d_forward.3} parent=11 // pred_region
        _
      $region36: #{disblock3d_forward.3} parent=11 // pred_fallthru
        _
    $region12: #{disblock3d_forward.3} parent=5 // pred_fallthru
      _
    %p407 = scmp.lt.s32.totalorder %s18, 4
    // Predicated region
    $region37: #{disblock3d_forward.3} parent=5 // pred_check
      %p408 = pneg %p407
    $region38: #{disblock3d_forward.3} parent=5 // pred_check_branch
      %410 = sbr.rel (%p408) target = $region40
    $region39: #{disblock3d_forward.3} parent=5 // pred_region
      // Predicated region
      $region41: #{disblock3d_forward.3} parent=39 // pred_check
        %p411 = pneg %p54
      $region42: #{disblock3d_forward.3} parent=39 // pred_check_branch
        %413 = sbr.rel (%p411) target = $region44
      $region43: #{disblock3d_forward.3} parent=39 // pred_region
        %s414 = smul.u32 %s26, 2
        %p415 = scmp.lt.s32.totalorder %s25, 1
        %s416 = scalar_select %p415, %s25, 1
        %p417 = scmp.lt.s32.totalorder %s414, 5
        %s418 = scalar_select %p417, %s414, 5
        %s419 = smul.addr %s418, 6
        %s420 = smul.addr %s416, 36
        %s421 = sadd.s32 %s419, %s420
        %s422 = smul.addr %s421, 8
        %s423 = scalar_lea.vmem %s0, %s422
        %s424 = smul.u32 %s26, 2
      $region44: #{disblock3d_forward.3} parent=39 // pred_fallthru
        _
      // Predicated region
      $region45: #{disblock3d_forward.3} parent=39 // pred_check
        %p425 = pneg %p86
      $region46: #{disblock3d_forward.3} parent=39 // pred_check_branch
        %427 = sbr.rel (%p425) target = $region48
      $region47: #{disblock3d_forward.3} parent=39 // pred_region
        %s428 = smul.u32 %s26, 2
        %s429 = sadd.s32 %s428, 1
        %p430 = scmp.lt.s32.totalorder %s25, 1
        %s431 = scalar_select %p430, %s25, 1
        %p432 = scmp.lt.s32.totalorder %s429, 5
        %s433 = scalar_select %p432, %s429, 5
        %s434 = smul.addr %s433, 6
        %s435 = smul.addr %s431, 36
        %s436 = sadd.s32 %s434, %s435
        %s437 = smul.addr %s436, 8
        %s438 = scalar_lea.vmem %s1, %s437
        %s439 = smul.u32 %s26, 2
        %s440 = sadd.s32 %s439, 1
      $region48: #{disblock3d_forward.3} parent=39 // pred_fallthru
        _
      // Predicated region
      $region49: #{disblock3d_forward.3} parent=39 // pred_check
        %p441 = pneg %p118
      $region50: #{disblock3d_forward.3} parent=39 // pred_check_branch
        %443 = sbr.rel (%p441) target = $region52
      $region51: #{disblock3d_forward.3} parent=39 // pred_region
        %s444 = smul.u32 %s26, 2
        %s445 = sadd.s32 %s444, 2
        %p446 = scmp.lt.s32.totalorder %s25, 1
        %s447 = scalar_select %p446, %s25, 1
        %p448 = scmp.lt.s32.totalorder %s445, 5
        %s449 = scalar_select %p448, %s445, 5
        %s450 = smul.addr %s449, 6
        %s451 = smul.addr %s447, 36
        %s452 = sadd.s32 %s450, %s451
        %s453 = smul.addr %s452, 8
        %s454 = scalar_lea.vmem %s2, %s453
        %s455 = smul.u32 %s26, 2
        %s456 = sadd.s32 %s455, 2
      $region52: #{disblock3d_forward.3} parent=39 // pred_fallthru
        _
      // Predicated region
      $region53: #{disblock3d_forward.3} parent=39 // pred_check
        %p457 = pneg %p150
      $region54: #{disblock3d_forward.3} parent=39 // pred_check_branch
        %459 = sbr.rel (%p457) target = $region56
      $region55: #{disblock3d_forward.3} parent=39 // pred_region
        %s460 = smul.u32 %s26, 2
        %s461 = sadd.s32 %s460, 3
        %p462 = scmp.lt.s32.totalorder %s25, 1
        %s463 = scalar_select %p462, %s25, 1
        %p464 = scmp.lt.s32.totalorder %s461, 5
        %s465 = scalar_select %p464, %s461, 5
        %s466 = smul.addr %s465, 6
        %s467 = smul.addr %s463, 36
        %s468 = sadd.s32 %s466, %s467
        %s469 = smul.addr %s468, 8
        %s470 = scalar_lea.vmem %s3, %s469
        %s471 = smul.u32 %s26, 2
        %s472 = sadd.s32 %s471, 3
      $region56: #{disblock3d_forward.3} parent=39 // pred_fallthru
        _
      // Predicated region
      $region57: #{disblock3d_forward.3} parent=39 // pred_check
        %p473 = pneg %p182
      $region58: #{disblock3d_forward.3} parent=39 // pred_check_branch
        %475 = sbr.rel (%p473) target = $region60
      $region59: #{disblock3d_forward.3} parent=39 // pred_region
        %s476 = smul.u32 %s26, 2
        %s477 = sadd.s32 %s476, 1
        %p478 = scmp.lt.s32.totalorder %s25, 1
        %s479 = scalar_select %p478, %s25, 1
        %p480 = scmp.lt.s32.totalorder %s477, 5
        %s481 = scalar_select %p480, %s477, 5
        %s482 = smul.addr %s481, 3
        %s483 = smul.addr %s479, 18
        %s484 = sadd.s32 %s482, %s483
        %s485 = smul.addr %s484, 8
        %s486 = scalar_lea.vmem %s4, %s485
        %s487 = smul.u32 %s26, 2
        %s488 = sadd.s32 %s487, 1
      $region60: #{disblock3d_forward.3} parent=39 // pred_fallthru
        _
      // Predicated region
      $region61: #{disblock3d_forward.3} parent=39 // pred_check
        %p489 = pneg %p214
      $region62: #{disblock3d_forward.3} parent=39 // pred_check_branch
        %491 = sbr.rel (%p489) target = $region64
      $region63: #{disblock3d_forward.3} parent=39 // pred_region
        %s492 = smul.u32 %s26, 2
        %s493 = sadd.s32 %s492, 2
        %p494 = scmp.lt.s32.totalorder %s25, 1
        %s495 = scalar_select %p494, %s25, 1
        %p496 = scmp.lt.s32.totalorder %s493, 5
        %s497 = scalar_select %p496, %s493, 5
        %s498 = smul.addr %s497, 3
        %s499 = smul.addr %s495, 18
        %s500 = sadd.s32 %s498, %s499
        %s501 = smul.addr %s500, 8
        %s502 = scalar_lea.vmem %s5, %s501
        %s503 = smul.u32 %s26, 2
        %s504 = sadd.s32 %s503, 2
      $region64: #{disblock3d_forward.3} parent=39 // pred_fallthru
        _
    $region40: #{disblock3d_forward.3} parent=5 // pred_fallthru
      _
    %p505 = scmp.le.s32.totalorder 1, %s18
    %p506 = scmp.lt.s32.totalorder %s18, 5
    %p507 = pnand %p505, %p506
    %p508 = pneg %p507
    // Predicated region
    $region65: #{disblock3d_forward.3} parent=5 // pred_check
      _
    $region66: #{disblock3d_forward.3} parent=5 // pred_check_branch
      %510 = sbr.rel (%p507) target = $region68
    $region67: #{disblock3d_forward.3} parent=5 // pred_region
      %s511 = ssub.s32 %s18, 1
      %s512 = smul.u32 %s28, 2
      %p513 = scmp.lt.s32.totalorder %s27, 1
      %s514 = scalar_select %p513, %s27, 1
      %p515 = scmp.lt.s32.totalorder %s512, 5
      %s516 = scalar_select %p515, %s512, 5
      %s517 = smul.addr %s516, 6
      %s518 = smul.addr %s514, 36
      %s519 = sadd.s32 %s517, %s518
      %s520 = smul.addr %s519, 8
      %s521 = scalar_lea.vmem %s0, %s520
      %p522 = pneg %p60
      %p523 = pneg %p57
      %s524 = smul.u32 %s28, 2
      %s525 = sadd.s32 %s524, 1
      %p526 = scmp.lt.s32.totalorder %s27, 1
      %s527 = scalar_select %p526, %s27, 1
      %p528 = scmp.lt.s32.totalorder %s525, 5
      %s529 = scalar_select %p528, %s525, 5
      %s530 = smul.addr %s529, 6
      %s531 = smul.addr %s527, 36
      %s532 = sadd.s32 %s530, %s531
      %s533 = smul.addr %s532, 8
      %s534 = scalar_lea.vmem %s1, %s533
      %p535 = pneg %p92
      %p536 = pneg %p89
      %s537 = smul.u32 %s28, 2
      %s538 = sadd.s32 %s537, 2
      %p539 = scmp.lt.s32.totalorder %s27, 1
      %s540 = scalar_select %p539, %s27, 1
      %p541 = scmp.lt.s32.totalorder %s538, 5
      %s542 = scalar_select %p541, %s538, 5
      %s543 = smul.addr %s542, 6
      %s544 = smul.addr %s540, 36
      %s545 = sadd.s32 %s543, %s544
      %s546 = smul.addr %s545, 8
      %s547 = scalar_lea.vmem %s2, %s546
      %p548 = pneg %p124
      %p549 = pneg %p121
      %s550 = smul.u32 %s28, 2
      %s551 = sadd.s32 %s550, 3
      %p552 = scmp.lt.s32.totalorder %s27, 1
      %s553 = scalar_select %p552, %s27, 1
      %p554 = scmp.lt.s32.totalorder %s551, 5
      %s555 = scalar_select %p554, %s551, 5
      %s556 = smul.addr %s555, 6
      %s557 = smul.addr %s553, 36
      %s558 = sadd.s32 %s556, %s557
      %s559 = smul.addr %s558, 8
      %s560 = scalar_lea.vmem %s3, %s559
      %p561 = pneg %p156
      %p562 = pneg %p153
      %s563 = smul.u32 %s28, 2
      %s564 = sadd.s32 %s563, 1
      %p565 = scmp.lt.s32.totalorder %s27, 1
      %s566 = scalar_select %p565, %s27, 1
      %p567 = scmp.lt.s32.totalorder %s564, 5
      %s568 = scalar_select %p567, %s564, 5
      %s569 = smul.addr %s568, 3
      %s570 = smul.addr %s566, 18
      %s571 = sadd.s32 %s569, %s570
      %s572 = smul.addr %s571, 8
      %s573 = scalar_lea.vmem %s4, %s572
      %p574 = pneg %p188
      %p575 = pneg %p185
      %s576 = smul.u32 %s28, 2
      %s577 = sadd.s32 %s576, 2
      %p578 = scmp.lt.s32.totalorder %s27, 1
      %s579 = scalar_select %p578, %s27, 1
      %p580 = scmp.lt.s32.totalorder %s577, 5
      %s581 = scalar_select %p580, %s577, 5
      %s582 = smul.addr %s581, 3
      %s583 = smul.addr %s579, 18
      %s584 = sadd.s32 %s582, %s583
      %s585 = smul.addr %s584, 8
      %s586 = scalar_lea.vmem %s5, %s585
      %p587 = pneg %p220
      %p588 = pneg %p217
      %p589 = pneg %p241
      %p590 = pneg %p238
      %p591 = pneg %p262
      %p592 = pneg %p259
      %p593 = pneg %p283
      %p594 = pneg %p280
      %p595 = pneg %p304
      %p596 = pneg %p301
      %p597 = pneg %p325
      %p598 = pneg %p322
      %p599 = pneg %p346
      %p600 = pneg %p343
      %p601 = pneg %p374
      %p602 = pneg %p371
      %p603 = scmp.lt.s32.totalorder %s27, 1
      %s604 = scalar_select %p603, %s27, 1
      %p605 = scmp.lt.s32.totalorder %s28, 1
      %s606 = scalar_select %p605, %s28, 1
      %s607 = smul.addr %s604, 2
      %s608 = sadd.s32 %s606, %s607
      %s609 = smul.addr %s608, 8
      %s610 = scalar_lea.vmem %s12, %s609
      %s611 = smul.u32 %s28, 2
      %p612 = scmp.lt.s32.totalorder %s27, 1
      %s613 = scalar_select %p612, %s27, 1
      %p614 = scmp.lt.s32.totalorder %s611, 5
      %s615 = scalar_select %p614, %s611, 5
      %s616 = smul.addr %s615, 6
      %s617 = smul.addr %s613, 36
      %s618 = sadd.s32 %s616, %s617
      %s619 = smul.addr %s618, 8
      %s620 = scalar_lea.vmem %s0, %s619
      %s621 = smul.u32 %s28, 2
      %s622 = smul.u32 %s28, 2
      %s623 = sadd.s32 %s622, 1
      %p624 = scmp.lt.s32.totalorder %s27, 1
      %s625 = scalar_select %p624, %s27, 1
      %p626 = scmp.lt.s32.totalorder %s623, 5
      %s627 = scalar_select %p626, %s623, 5
      %s628 = smul.addr %s627, 6
      %s629 = smul.addr %s625, 36
      %s630 = sadd.s32 %s628, %s629
      %s631 = smul.addr %s630, 8
      %s632 = scalar_lea.vmem %s1, %s631
      %s633 = smul.u32 %s28, 2
      %s634 = sadd.s32 %s633, 1
      %s635 = smul.u32 %s28, 2
      %s636 = sadd.s32 %s635, 2
      %p637 = scmp.lt.s32.totalorder %s27, 1
      %s638 = scalar_select %p637, %s27, 1
      %p639 = scmp.lt.s32.totalorder %s636, 5
      %s640 = scalar_select %p639, %s636, 5
      %s641 = smul.addr %s640, 6
      %s642 = smul.addr %s638, 36
      %s643 = sadd.s32 %s641, %s642
      %s644 = smul.addr %s643, 8
      %s645 = scalar_lea.vmem %s2, %s644
      %s646 = smul.u32 %s28, 2
      %s647 = sadd.s32 %s646, 2
      %s648 = smul.u32 %s28, 2
      %s649 = sadd.s32 %s648, 3
      %p650 = scmp.lt.s32.totalorder %s27, 1
      %s651 = scalar_select %p650, %s27, 1
      %p652 = scmp.lt.s32.totalorder %s649, 5
      %s653 = scalar_select %p652, %s649, 5
      %s654 = smul.addr %s653, 6
      %s655 = smul.addr %s651, 36
      %s656 = sadd.s32 %s654, %s655
      %s657 = smul.addr %s656, 8
      %s658 = scalar_lea.vmem %s3, %s657
      %s659 = smul.u32 %s28, 2
      %s660 = sadd.s32 %s659, 3
      %s661 = smul.u32 %s28, 2
      %s662 = sadd.s32 %s661, 1
      %p663 = scmp.lt.s32.totalorder %s27, 1
      %s664 = scalar_select %p663, %s27, 1
      %p665 = scmp.lt.s32.totalorder %s662, 5
      %s666 = scalar_select %p665, %s662, 5
      %s667 = smul.addr %s666, 3
      %s668 = smul.addr %s664, 18
      %s669 = sadd.s32 %s667, %s668
      %s670 = smul.addr %s669, 8
      %s671 = scalar_lea.vmem %s4, %s670
      %s672 = smul.u32 %s28, 2
      %s673 = sadd.s32 %s672, 1
      %s674 = smul.u32 %s28, 2
      %s675 = sadd.s32 %s674, 2
      %p676 = scmp.lt.s32.totalorder %s27, 1
      %s677 = scalar_select %p676, %s27, 1
      %p678 = scmp.lt.s32.totalorder %s675, 5
      %s679 = scalar_select %p678, %s675, 5
      %s680 = smul.addr %s679, 3
      %s681 = smul.addr %s677, 18
      %s682 = sadd.s32 %s680, %s681
      %s683 = smul.addr %s682, 8
      %s684 = scalar_lea.vmem %s5, %s683
      %s685 = smul.u32 %s28, 2
      %s686 = sadd.s32 %s685, 2
      %p687 = scmp.lt.s32.totalorder %s27, 1
      %s688 = scalar_select %p687, %s27, 1
      %p689 = scmp.lt.s32.totalorder %s28, 1
      %s690 = scalar_select %p689, %s28, 1
      %s691 = smul.addr %s688, 2
      %s692 = sadd.s32 %s690, %s691
      %s693 = smul.addr %s692, 8
      %s694 = scalar_lea.vmem %s12, %s693
      %v695 = vld [vmem:[%s6] sm:$0xff]
      %v696 = vld [vmem:[%s6 + $0x8] sm:$0xff]
      %v697 = vld [vmem:[%s6 + $0x10] sm:$0xff]
      %v698 = vld [vmem:[%s6 + $0x18] sm:$0xff]
      %v699 = vld [vmem:[%s6 + $0x20] sm:$0xff]
      %v700 = vld [vmem:[%s6 + $0x28] sm:$0xff]
      %v701 = vld [vmem:[%s6 + $0x30] sm:$0xff]
      %v702 = vld [vmem:[%s6 + $0x38] sm:$0xff]
      %v703 = vld [vmem:[%s6 + $0x40] sm:$0xff]
      %v704 = vld [vmem:[%s6 + $0x48] sm:$0xff]
      %v705 = vld [vmem:[%s6 + $0x50] sm:$0xff]
      %v706 = vld [vmem:[%s6 + $0x58] sm:$0xff]
      %v707 = vld [vmem:[%s6 + $0x60] sm:$0xff]
      %v708 = vld [vmem:[%s6 + $0x68] sm:$0xff]
      %v709 = vld [vmem:[%s6 + $0x70] sm:$0xff]
      %v710 = vld [vmem:[%s6 + $0x78] sm:$0xff]
      %v711 = vld [vmem:[%s6 + $0x80] sm:$0xff]
      %v712 = vld [vmem:[%s6 + $0x88] sm:$0xff]
      %v713 = vld [vmem:[%s6 + $0x90] sm:$0xff]
      %v714 = vld [vmem:[%s6 + $0x98] sm:$0xff]
      %v715 = vld [vmem:[%s6 + $0xa0] sm:$0xff]
      %v716 = vld [vmem:[%s6 + $0xa8] sm:$0xff]
      %v717 = vld [vmem:[%s6 + $0xb0] sm:$0xff]
      %v718 = vld [vmem:[%s6 + $0xb8] sm:$0xff]
      %v719 = vld [vmem:[%s6 + $0xc0] sm:$0xff]
      %v720 = vld [vmem:[%s6 + $0xc8] sm:$0xff]
      %v721 = vld [vmem:[%s6 + $0xd0] sm:$0xff]
      %v722 = vld [vmem:[%s6 + $0xd8] sm:$0xff]
      %v723 = vld [vmem:[%s6 + $0xe0] sm:$0xff]
      %v724 = vld [vmem:[%s6 + $0xe8] sm:$0xff]
      %v725 = vld [vmem:[%s6 + $0xf0] sm:$0xff]
      %v726 = vld [vmem:[%s6 + $0xf8] sm:$0xff]
      %v727 = vld [vmem:[%s6 + $0x100] sm:$0xff]
      %v728 = vld [vmem:[%s6 + $0x108] sm:$0xff]
      %v729 = vld [vmem:[%s6 + $0x110] sm:$0xff]
      %v730 = vld [vmem:[%s6 + $0x118] sm:$0xff]
      %v731 = vld [vmem:[%s6 + $0x120] sm:$0xff]
      %v732 = vld [vmem:[%s6 + $0x128] sm:$0xff]
      %v733 = vld [vmem:[%s6 + $0x130] sm:$0xff]
      %v734 = vld [vmem:[%s6 + $0x138] sm:$0xff]
      %v735 = vld [vmem:[%s6 + $0x140] sm:$0xff]
      %v736 = vld [vmem:[%s6 + $0x148] sm:$0xff]
      %v737 = vld [vmem:[%s6 + $0x150] sm:$0xff]
      %v738 = vld [vmem:[%s6 + $0x158] sm:$0xff]
      %v739 = vld [vmem:[%s6 + $0x160] sm:$0xff]
      %v740 = vld [vmem:[%s6 + $0x168] sm:$0xff]
      %v741 = vld [vmem:[%s6 + $0x170] sm:$0xff]
      %v742 = vld [vmem:[%s6 + $0x178] sm:$0xff]
      %v743 = vld [vmem:[%s6 + $0x180] sm:$0xff]
      %v744 = vld [vmem:[%s6 + $0x188] sm:$0xff]
      %v745 = vld [vmem:[%s6 + $0x190] sm:$0xff]
      %v746 = vld [vmem:[%s6 + $0x198] sm:$0xff]
      %v747 = vld [vmem:[%s6 + $0x1a0] sm:$0xff]
      %v748 = vld [vmem:[%s6 + $0x1a8] sm:$0xff]
      %v749 = vld [vmem:[%s6 + $0x1b0] sm:$0xff]
      %v750 = vld [vmem:[%s6 + $0x1b8] sm:$0xff]
      %v751 = vld [vmem:[%s6 + $0x1c0] sm:$0xff]
      %v752 = vld [vmem:[%s6 + $0x1c8] sm:$0xff]
      %v753 = vld [vmem:[%s6 + $0x1d0] sm:$0xff]
      %v754 = vld [vmem:[%s6 + $0x1d8] sm:$0xff]
      %v755 = vld [vmem:[%s6 + $0x1e0] sm:$0xff]
      %v756 = vld [vmem:[%s6 + $0x1e8] sm:$0xff]
      %v757 = vld [vmem:[%s6 + $0x1f0] sm:$0xff]
      %v758 = vld [vmem:[%s6 + $0x1f8] sm:$0xff]
      %v759 = vld [vmem:[%s6 + $0x200] sm:$0xff]
      %v760 = vld [vmem:[%s6 + $0x208] sm:$0xff]
      %v761 = vld [vmem:[%s6 + $0x210] sm:$0xff]
      %v762 = vld [vmem:[%s6 + $0x218] sm:$0xff]
      %v763 = vld [vmem:[%s6 + $0x220] sm:$0xff]
      %v764 = vld [vmem:[%s6 + $0x228] sm:$0xff]
      %v765 = vld [vmem:[%s6 + $0x230] sm:$0xff]
      %v766 = vld [vmem:[%s6 + $0x238] sm:$0xff]
      %v767 = vld [vmem:[%s6 + $0x240] sm:$0xff]
      %v768 = vld [vmem:[%s6 + $0x248] sm:$0xff]
      %v769 = vld [vmem:[%s6 + $0x250] sm:$0xff]
      %v770 = vld [vmem:[%s6 + $0x258] sm:$0xff]
      %v771 = vld [vmem:[%s6 + $0x260] sm:$0xff]
      %v772 = vld [vmem:[%s6 + $0x268] sm:$0xff]
      %v773 = vld [vmem:[%s6 + $0x270] sm:$0xff]
      %v774 = vld [vmem:[%s6 + $0x278] sm:$0xff]
      %v775 = vld [vmem:[%s6 + $0x280] sm:$0xff]
      %v776 = vld [vmem:[%s6 + $0x288] sm:$0xff]
      %v777 = vld [vmem:[%s6 + $0x290] sm:$0xff]
      %v778 = vld [vmem:[%s6 + $0x298] sm:$0xff]
      %v779 = vld [vmem:[%s6 + $0x2a0] sm:$0xff]
      %v780 = vld [vmem:[%s6 + $0x2a8] sm:$0xff]
      %v781 = vld [vmem:[%s6 + $0x2b0] sm:$0xff]
      %v782 = vld [vmem:[%s6 + $0x2b8] sm:$0xff]
      %v783 = vld [vmem:[%s6 + $0x2c0] sm:$0xff]
      %v784 = vld [vmem:[%s6 + $0x2c8] sm:$0xff]
      %v785 = vld [vmem:[%s6 + $0x2d0] sm:$0xff]
      %v786 = vld [vmem:[%s6 + $0x2d8] sm:$0xff]
      %v787 = vld [vmem:[%s6 + $0x2e0] sm:$0xff]
      %v788 = vld [vmem:[%s6 + $0x2e8] sm:$0xff]
      %v789 = vld [vmem:[%s6 + $0x2f0] sm:$0xff]
      %v790 = vld [vmem:[%s6 + $0x2f8] sm:$0xff]
      %v791 = vld [vmem:[%s6 + $0x300] sm:$0xff]
      %v792 = vld [vmem:[%s6 + $0x308] sm:$0xff]
      %v793 = vld [vmem:[%s6 + $0x310] sm:$0xff]
      %v794 = vld [vmem:[%s6 + $0x318] sm:$0xff]
      %v795 = vld [vmem:[%s6 + $0x320] sm:$0xff]
      %v796 = vld [vmem:[%s6 + $0x328] sm:$0xff]
      %v797 = vld [vmem:[%s6 + $0x330] sm:$0xff]
      %v798 = vld [vmem:[%s6 + $0x338] sm:$0xff]
      %v799 = vld [vmem:[%s6 + $0x340] sm:$0xff]
      %v800 = vld [vmem:[%s6 + $0x348] sm:$0xff]
      %v801 = vld [vmem:[%s6 + $0x350] sm:$0xff]
      %v802 = vld [vmem:[%s6 + $0x358] sm:$0xff]
      %v803 = vld [vmem:[%s6 + $0x360] sm:$0xff]
      %v804 = vld [vmem:[%s6 + $0x368] sm:$0xff]
      %v805 = vld [vmem:[%s6 + $0x370] sm:$0xff]
      %v806 = vld [vmem:[%s6 + $0x378] sm:$0xff]
      %v807 = vld [vmem:[%s6 + $0x380] sm:$0xff]
      %v808 = vld [vmem:[%s6 + $0x388] sm:$0xff]
      %v809 = vld [vmem:[%s6 + $0x390] sm:$0xff]
      %v810 = vld [vmem:[%s6 + $0x398] sm:$0xff]
      %v811 = vld [vmem:[%s6 + $0x3a0] sm:$0xff]
      %v812 = vld [vmem:[%s6 + $0x3a8] sm:$0xff]
      %v813 = vld [vmem:[%s6 + $0x3b0] sm:$0xff]
      %v814 = vld [vmem:[%s6 + $0x3b8] sm:$0xff]
      %v815 = vld [vmem:[%s6 + $0x3c0] sm:$0xff]
      %v816 = vld [vmem:[%s6 + $0x3c8] sm:$0xff]
      %v817 = vld [vmem:[%s6 + $0x3d0] sm:$0xff]
      %v818 = vld [vmem:[%s6 + $0x3d8] sm:$0xff]
      %v819 = vld [vmem:[%s6 + $0x3e0] sm:$0xff]
      %v820 = vld [vmem:[%s6 + $0x3e8] sm:$0xff]
      %v821 = vld [vmem:[%s6 + $0x3f0] sm:$0xff]
      %v822 = vld [vmem:[%s6 + $0x3f8] sm:$0xff]
      %v823 = vld [vmem:[%s6 + $0x400] sm:$0xff]
      %v824 = vld [vmem:[%s6 + $0x408] sm:$0xff]
      %v825 = vld [vmem:[%s6 + $0x410] sm:$0xff]
      %v826 = vld [vmem:[%s6 + $0x418] sm:$0xff]
      %v827 = vld [vmem:[%s6 + $0x420] sm:$0xff]
      %v828 = vld [vmem:[%s6 + $0x428] sm:$0xff]
      %v829 = vld [vmem:[%s6 + $0x430] sm:$0xff]
      %v830 = vld [vmem:[%s6 + $0x438] sm:$0xff]
      %v831 = vld [vmem:[%s6 + $0x440] sm:$0xff]
      %v832 = vld [vmem:[%s6 + $0x448] sm:$0xff]
      %v833 = vld [vmem:[%s6 + $0x450] sm:$0xff]
      %v834 = vld [vmem:[%s6 + $0x458] sm:$0xff]
      %v835 = vld [vmem:[%s6 + $0x460] sm:$0xff]
      %v836 = vld [vmem:[%s6 + $0x468] sm:$0xff]
      %v837 = vld [vmem:[%s6 + $0x470] sm:$0xff]
      %v838 = vld [vmem:[%s6 + $0x478] sm:$0xff]
      %v839 = vld [vmem:[%s6 + $0x480] sm:$0xff]
      %v840 = vld [vmem:[%s6 + $0x488] sm:$0xff]
      %v841 = vld [vmem:[%s6 + $0x490] sm:$0xff]
      %v842 = vld [vmem:[%s6 + $0x498] sm:$0xff]
      %v843 = vld [vmem:[%s6 + $0x4a0] sm:$0xff]
      %v844 = vld [vmem:[%s6 + $0x4a8] sm:$0xff]
      %v845 = vld [vmem:[%s6 + $0x4b0] sm:$0xff]
      %v846 = vld [vmem:[%s6 + $0x4b8] sm:$0xff]
      %v847 = vld [vmem:[%s6 + $0x4c0] sm:$0xff]
      %v848 = vld [vmem:[%s6 + $0x4c8] sm:$0xff]
      %v849 = vld [vmem:[%s6 + $0x4d0] sm:$0xff]
      %v850 = vld [vmem:[%s6 + $0x4d8] sm:$0xff]
      %v851 = vld [vmem:[%s6 + $0x4e0] sm:$0xff]
      %v852 = vld [vmem:[%s6 + $0x4e8] sm:$0xff]
      %v853 = vld [vmem:[%s6 + $0x4f0] sm:$0xff]
      %v854 = vld [vmem:[%s6 + $0x4f8] sm:$0xff]
      %v855 = vld [vmem:[%s6 + $0x500] sm:$0xff]
      %v856 = vld [vmem:[%s6 + $0x508] sm:$0xff]
      %v857 = vld [vmem:[%s6 + $0x510] sm:$0xff]
      %v858 = vld [vmem:[%s6 + $0x518] sm:$0xff]
      %v859 = vld [vmem:[%s6 + $0x520] sm:$0xff]
      %v860 = vld [vmem:[%s6 + $0x528] sm:$0xff]
      %v861 = vld [vmem:[%s6 + $0x530] sm:$0xff]
      %v862 = vld [vmem:[%s6 + $0x538] sm:$0xff]
      %v863 = vld [vmem:[%s6 + $0x540] sm:$0xff]
      %v864 = vld [vmem:[%s6 + $0x548] sm:$0xff]
      %v865 = vld [vmem:[%s6 + $0x550] sm:$0xff]
      %v866 = vld [vmem:[%s6 + $0x558] sm:$0xff]
      %v867 = vld [vmem:[%s6 + $0x560] sm:$0xff]
      %v868 = vld [vmem:[%s6 + $0x568] sm:$0xff]
      %v869 = vld [vmem:[%s6 + $0x570] sm:$0xff]
      %v870 = vld [vmem:[%s6 + $0x578] sm:$0xff]
      %v871 = vld [vmem:[%s6 + $0x580] sm:$0xff]
      %v872 = vld [vmem:[%s6 + $0x588] sm:$0xff]
      %v873 = vld [vmem:[%s6 + $0x590] sm:$0xff]
      %v874 = vld [vmem:[%s6 + $0x598] sm:$0xff]
      %v875 = vld [vmem:[%s6 + $0x5a0] sm:$0xff]
      %v876 = vld [vmem:[%s6 + $0x5a8] sm:$0xff]
      %v877 = vld [vmem:[%s6 + $0x5b0] sm:$0xff]
      %v878 = vld [vmem:[%s6 + $0x5b8] sm:$0xff]
      %v879 = vld [vmem:[%s6 + $0x5c0] sm:$0xff]
      %v880 = vld [vmem:[%s6 + $0x5c8] sm:$0xff]
      %v881 = vld [vmem:[%s6 + $0x5d0] sm:$0xff]
      %v882 = vld [vmem:[%s6 + $0x5d8] sm:$0xff]
      %v883 = vld [vmem:[%s6 + $0x5e0] sm:$0xff]
      %v884 = vld [vmem:[%s6 + $0x5e8] sm:$0xff]
      %v885 = vld [vmem:[%s6 + $0x5f0] sm:$0xff]
      %v886 = vld [vmem:[%s6 + $0x5f8] sm:$0xff]
      %v887 = vld [vmem:[%s6 + $0x600] sm:$0xff]
      %v888 = vld [vmem:[%s6 + $0x608] sm:$0xff]
      %v889 = vld [vmem:[%s6 + $0x610] sm:$0xff]
      %v890 = vld [vmem:[%s6 + $0x618] sm:$0xff]
      %v891 = vld [vmem:[%s6 + $0x620] sm:$0xff]
      %v892 = vld [vmem:[%s6 + $0x628] sm:$0xff]
      %v893 = vld [vmem:[%s6 + $0x630] sm:$0xff]
      %v894 = vld [vmem:[%s6 + $0x638] sm:$0xff]
      %v895 = vld [vmem:[%s6 + $0x640] sm:$0xff]
      %v896 = vld [vmem:[%s6 + $0x648] sm:$0xff]
      %v897 = vld [vmem:[%s6 + $0x650] sm:$0xff]
      %v898 = vld [vmem:[%s6 + $0x658] sm:$0xff]
      %v899 = vld [vmem:[%s6 + $0x660] sm:$0xff]
      %v900 = vld [vmem:[%s6 + $0x668] sm:$0xff]
      %v901 = vld [vmem:[%s6 + $0x670] sm:$0xff]
      %v902 = vld [vmem:[%s6 + $0x678] sm:$0xff]
      %v903 = vld [vmem:[%s6 + $0x680] sm:$0xff]
      %v904 = vld [vmem:[%s6 + $0x688] sm:$0xff]
      %v905 = vld [vmem:[%s6 + $0x690] sm:$0xff]
      %v906 = vld [vmem:[%s6 + $0x698] sm:$0xff]
      %v907 = vld [vmem:[%s6 + $0x6a0] sm:$0xff]
      %v908 = vld [vmem:[%s6 + $0x6a8] sm:$0xff]
      %v909 = vld [vmem:[%s6 + $0x6b0] sm:$0xff]
      %v910 = vld [vmem:[%s6 + $0x6b8] sm:$0xff]
      %v911 = vld [vmem:[%s6 + $0x6c0] sm:$0xff]
      %v912 = vld [vmem:[%s6 + $0x6c8] sm:$0xff]
      %v913 = vld [vmem:[%s6 + $0x6d0] sm:$0xff]
      %v914 = vld [vmem:[%s6 + $0x6d8] sm:$0xff]
      %v915 = vld [vmem:[%s6 + $0x6e0] sm:$0xff]
      %v916 = vld [vmem:[%s6 + $0x6e8] sm:$0xff]
      %v917 = vld [vmem:[%s6 + $0x6f0] sm:$0xff]
      %v918 = vld [vmem:[%s6 + $0x6f8] sm:$0xff]
      %v919 = vld [vmem:[%s6 + $0x700] sm:$0xff]
      %v920 = vld [vmem:[%s6 + $0x708] sm:$0xff]
      %v921 = vld [vmem:[%s6 + $0x710] sm:$0xff]
      %v922 = vld [vmem:[%s6 + $0x718] sm:$0xff]
      %v923 = vld [vmem:[%s6 + $0x720] sm:$0xff]
      %v924 = vld [vmem:[%s6 + $0x728] sm:$0xff]
      %v925 = vld [vmem:[%s6 + $0x730] sm:$0xff]
      %v926 = vld [vmem:[%s6 + $0x738] sm:$0xff]
      %v927 = vld [vmem:[%s6 + $0x740] sm:$0xff]
      %v928 = vld [vmem:[%s6 + $0x748] sm:$0xff]
      %v929 = vld [vmem:[%s6 + $0x750] sm:$0xff]
      %v930 = vld [vmem:[%s6 + $0x758] sm:$0xff]
      %v931 = vld [vmem:[%s6 + $0x760] sm:$0xff]
      %v932 = vld [vmem:[%s6 + $0x768] sm:$0xff]
      %v933 = vld [vmem:[%s6 + $0x770] sm:$0xff]
      %v934 = vld [vmem:[%s6 + $0x778] sm:$0xff]
      %v935 = vld [vmem:[%s6 + $0x780] sm:$0xff]
      %v936 = vld [vmem:[%s6 + $0x788] sm:$0xff]
      %v937 = vld [vmem:[%s6 + $0x790] sm:$0xff]
      %v938 = vld [vmem:[%s6 + $0x798] sm:$0xff]
      %v939 = vld [vmem:[%s6 + $0x7a0] sm:$0xff]
      %v940 = vld [vmem:[%s6 + $0x7a8] sm:$0xff]
      %v941 = vld [vmem:[%s6 + $0x7b0] sm:$0xff]
      %v942 = vld [vmem:[%s6 + $0x7b8] sm:$0xff]
      %v943 = vld [vmem:[%s6 + $0x7c0] sm:$0xff]
      %v944 = vld [vmem:[%s6 + $0x7c8] sm:$0xff]
      %v945 = vld [vmem:[%s6 + $0x7d0] sm:$0xff]
      %v946 = vld [vmem:[%s6 + $0x7d8] sm:$0xff]
      %v947 = vld [vmem:[%s6 + $0x7e0] sm:$0xff]
      %v948 = vld [vmem:[%s6 + $0x7e8] sm:$0xff]
      %v949 = vld [vmem:[%s6 + $0x7f0] sm:$0xff]
      %v950 = vld [vmem:[%s6 + $0x7f8] sm:$0xff]
      %v951 = vld [vmem:[%s6 + $0x800] sm:$0xff]
      %v952 = vld [vmem:[%s6 + $0x808] sm:$0xff]
      %v953 = vld [vmem:[%s6 + $0x810] sm:$0xff]
      %v954 = vld [vmem:[%s6 + $0x818] sm:$0xff]
      %v955 = vld [vmem:[%s6 + $0x820] sm:$0xff]
      %v956 = vld [vmem:[%s6 + $0x828] sm:$0xff]
      %v957 = vld [vmem:[%s6 + $0x830] sm:$0xff]
      %v958 = vld [vmem:[%s6 + $0x838] sm:$0xff]
      %v959 = vld [vmem:[%s6 + $0x840] sm:$0xff]
      %v960 = vld [vmem:[%s6 + $0x848] sm:$0xff]
      %v961 = vld [vmem:[%s6 + $0x850] sm:$0xff]
      %v962 = vld [vmem:[%s6 + $0x858] sm:$0xff]
      %v963 = vld [vmem:[%s6 + $0x860] sm:$0xff]
      %v964 = vld [vmem:[%s6 + $0x868] sm:$0xff]
      %v965 = vld [vmem:[%s6 + $0x870] sm:$0xff]
      %v966 = vld [vmem:[%s6 + $0x878] sm:$0xff]
      %v967 = vld [vmem:[%s6 + $0x880] sm:$0xff]
      %v968 = vld [vmem:[%s6 + $0x888] sm:$0xff]
      %v969 = vld [vmem:[%s6 + $0x890] sm:$0xff]
      %v970 = vld [vmem:[%s6 + $0x898] sm:$0xff]
      %v971 = vld [vmem:[%s6 + $0x8a0] sm:$0xff]
      %v972 = vld [vmem:[%s6 + $0x8a8] sm:$0xff]
      %v973 = vld [vmem:[%s6 + $0x8b0] sm:$0xff]
      %v974 = vld [vmem:[%s6 + $0x8b8] sm:$0xff]
      %v975 = vld [vmem:[%s6 + $0x8c0] sm:$0xff]
      %v976 = vld [vmem:[%s6 + $0x8c8] sm:$0xff]
      %v977 = vld [vmem:[%s6 + $0x8d0] sm:$0xff]
      %v978 = vld [vmem:[%s6 + $0x8d8] sm:$0xff]
      %v979 = vld [vmem:[%s6 + $0x8e0] sm:$0xff]
      %v980 = vld [vmem:[%s6 + $0x8e8] sm:$0xff]
      %v981 = vld [vmem:[%s6 + $0x8f0] sm:$0xff]
      %v982 = vld [vmem:[%s6 + $0x8f8] sm:$0xff]
      %v983 = vld [vmem:[%s6 + $0x900] sm:$0xff]
      %v984 = vld [vmem:[%s6 + $0x908] sm:$0xff]
      %v985 = vld [vmem:[%s6 + $0x910] sm:$0xff]
      %v986 = vld [vmem:[%s6 + $0x918] sm:$0xff]
      %v987 = vld [vmem:[%s6 + $0x920] sm:$0xff]
      %v988 = vld [vmem:[%s6 + $0x928] sm:$0xff]
      %v989 = vld [vmem:[%s6 + $0x930] sm:$0xff]
      %v990 = vld [vmem:[%s6 + $0x938] sm:$0xff]
      %v991 = vld [vmem:[%s6 + $0x940] sm:$0xff]
      %v992 = vld [vmem:[%s6 + $0x948] sm:$0xff]
      %v993 = vld [vmem:[%s6 + $0x950] sm:$0xff]
      %v994 = vld [vmem:[%s6 + $0x958] sm:$0xff]
      %v995 = vld [vmem:[%s6 + $0x960] sm:$0xff]
      %v996 = vld [vmem:[%s6 + $0x968] sm:$0xff]
      %v997 = vld [vmem:[%s6 + $0x970] sm:$0xff]
      %v998 = vld [vmem:[%s6 + $0x978] sm:$0xff]
      %v999 = vld [vmem:[%s6 + $0x980] sm:$0xff]
      %v1000 = vld [vmem:[%s6 + $0x988] sm:$0xff]
      %v1001 = vld [vmem:[%s6 + $0x990] sm:$0xff]
      %v1002 = vld [vmem:[%s6 + $0x998] sm:$0xff]
      %v1003 = vld [vmem:[%s6 + $0x9a0] sm:$0xff]
      %v1004 = vld [vmem:[%s6 + $0x9a8] sm:$0xff]
      %v1005 = vld [vmem:[%s6 + $0x9b0] sm:$0xff]
      %v1006 = vld [vmem:[%s6 + $0x9b8] sm:$0xff]
      %v1007 = vld [vmem:[%s6 + $0x9c0] sm:$0xff]
      %v1008 = vld [vmem:[%s6 + $0x9c8] sm:$0xff]
      %v1009 = vld [vmem:[%s6 + $0x9d0] sm:$0xff]
      %v1010 = vld [vmem:[%s6 + $0x9d8] sm:$0xff]
      %v1011 = vld [vmem:[%s6 + $0x9e0] sm:$0xff]
      %v1012 = vld [vmem:[%s6 + $0x9e8] sm:$0xff]
      %v1013 = vld [vmem:[%s6 + $0x9f0] sm:$0xff]
      %v1014 = vld [vmem:[%s6 + $0x9f8] sm:$0xff]
      %v1015 = vld [vmem:[%s6 + $0xa00] sm:$0xff]
      %v1016 = vld [vmem:[%s6 + $0xa08] sm:$0xff]
      %v1017 = vld [vmem:[%s6 + $0xa10] sm:$0xff]
      %v1018 = vld [vmem:[%s6 + $0xa18] sm:$0xff]
      %v1019 = vld [vmem:[%s6 + $0xa20] sm:$0xff]
      %v1020 = vld [vmem:[%s6 + $0xa28] sm:$0xff]
      %v1021 = vld [vmem:[%s6 + $0xa30] sm:$0xff]
      %v1022 = vld [vmem:[%s6 + $0xa38] sm:$0xff]
      %v1023 = vld [vmem:[%s6 + $0xa40] sm:$0xff]
      %v1024 = vld [vmem:[%s6 + $0xa48] sm:$0xff]
      %v1025 = vld [vmem:[%s6 + $0xa50] sm:$0xff]
      %v1026 = vld [vmem:[%s6 + $0xa58] sm:$0xff]
      %v1027 = vld [vmem:[%s6 + $0xa60] sm:$0xff]
      %v1028 = vld [vmem:[%s6 + $0xa68] sm:$0xff]
      %v1029 = vld [vmem:[%s6 + $0xa70] sm:$0xff]
      %v1030 = vld [vmem:[%s6 + $0xa78] sm:$0xff]
      %v1031 = vld [vmem:[%s6 + $0xa80] sm:$0xff]
      %v1032 = vld [vmem:[%s6 + $0xa88] sm:$0xff]
      %v1033 = vld [vmem:[%s6 + $0xa90] sm:$0xff]
      %v1034 = vld [vmem:[%s6 + $0xa98] sm:$0xff]
      %v1035 = vld [vmem:[%s6 + $0xaa0] sm:$0xff]
      %v1036 = vld [vmem:[%s6 + $0xaa8] sm:$0xff]
      %v1037 = vld [vmem:[%s6 + $0xab0] sm:$0xff]
      %v1038 = vld [vmem:[%s6 + $0xab8] sm:$0xff]
      %v1039 = vld [vmem:[%s6 + $0xac0] sm:$0xff]
      %v1040 = vld [vmem:[%s6 + $0xac8] sm:$0xff]
      %v1041 = vld [vmem:[%s6 + $0xad0] sm:$0xff]
      %v1042 = vld [vmem:[%s6 + $0xad8] sm:$0xff]
      %v1043 = vld [vmem:[%s6 + $0xae0] sm:$0xff]
      %v1044 = vld [vmem:[%s6 + $0xae8] sm:$0xff]
      %v1045 = vld [vmem:[%s6 + $0xaf0] sm:$0xff]
      %v1046 = vld [vmem:[%s6 + $0xaf8] sm:$0xff]
      %v1047 = vld [vmem:[%s6 + $0xb00] sm:$0xff]
      %v1048 = vld [vmem:[%s6 + $0xb08] sm:$0xff]
      %v1049 = vld [vmem:[%s6 + $0xb10] sm:$0xff]
      %v1050 = vld [vmem:[%s6 + $0xb18] sm:$0xff]
      %v1051 = vld [vmem:[%s6 + $0xb20] sm:$0xff]
      %v1052 = vld [vmem:[%s6 + $0xb28] sm:$0xff]
      %v1053 = vld [vmem:[%s6 + $0xb30] sm:$0xff]
      %v1054 = vld [vmem:[%s6 + $0xb38] sm:$0xff]
      %v1055 = vld [vmem:[%s6 + $0xb40] sm:$0xff]
      %v1056 = vld [vmem:[%s6 + $0xb48] sm:$0xff]
      %v1057 = vld [vmem:[%s6 + $0xb50] sm:$0xff]
      %v1058 = vld [vmem:[%s6 + $0xb58] sm:$0xff]
      %v1059 = vld [vmem:[%s6 + $0xb60] sm:$0xff]
      %v1060 = vld [vmem:[%s6 + $0xb68] sm:$0xff]
      %v1061 = vld [vmem:[%s6 + $0xb70] sm:$0xff]
      %v1062 = vld [vmem:[%s6 + $0xb78] sm:$0xff]
      %v1063 = vld [vmem:[%s6 + $0xb80] sm:$0xff]
      %v1064 = vld [vmem:[%s6 + $0xb88] sm:$0xff]
      %v1065 = vld [vmem:[%s6 + $0xb90] sm:$0xff]
      %v1066 = vld [vmem:[%s6 + $0xb98] sm:$0xff]
      %v1067 = vld [vmem:[%s6 + $0xba0] sm:$0xff]
      %v1068 = vld [vmem:[%s6 + $0xba8] sm:$0xff]
      %v1069 = vld [vmem:[%s6 + $0xbb0] sm:$0xff]
      %v1070 = vld [vmem:[%s6 + $0xbb8] sm:$0xff]
      %v1071 = vld [vmem:[%s6 + $0xbc0] sm:$0xff]
      %v1072 = vld [vmem:[%s6 + $0xbc8] sm:$0xff]
      %v1073 = vld [vmem:[%s6 + $0xbd0] sm:$0xff]
      %v1074 = vld [vmem:[%s6 + $0xbd8] sm:$0xff]
      %v1075 = vld [vmem:[%s6 + $0xbe0] sm:$0xff]
      %v1076 = vld [vmem:[%s6 + $0xbe8] sm:$0xff]
      %v1077 = vld [vmem:[%s6 + $0xbf0] sm:$0xff]
      %v1078 = vld [vmem:[%s6 + $0xbf8] sm:$0xff]
      %v1079 = vld [vmem:[%s6 + $0xc00] sm:$0xff]
      %v1080 = vld [vmem:[%s6 + $0xc08] sm:$0xff]
      %v1081 = vld [vmem:[%s6 + $0xc10] sm:$0xff]
      %v1082 = vld [vmem:[%s6 + $0xc18] sm:$0xff]
      %v1083 = vld [vmem:[%s6 + $0xc20] sm:$0xff]
      %v1084 = vld [vmem:[%s6 + $0xc28] sm:$0xff]
      %v1085 = vld [vmem:[%s6 + $0xc30] sm:$0xff]
      %v1086 = vld [vmem:[%s6 + $0xc38] sm:$0xff]
      %v1087 = vld [vmem:[%s6 + $0xc40] sm:$0xff]
      %v1088 = vld [vmem:[%s6 + $0xc48] sm:$0xff]
      %v1089 = vld [vmem:[%s6 + $0xc50] sm:$0xff]
      %v1090 = vld [vmem:[%s6 + $0xc58] sm:$0xff]
      %v1091 = vld [vmem:[%s6 + $0xc60] sm:$0xff]
      %v1092 = vld [vmem:[%s6 + $0xc68] sm:$0xff]
      %v1093 = vld [vmem:[%s6 + $0xc70] sm:$0xff]
      %v1094 = vld [vmem:[%s6 + $0xc78] sm:$0xff]
      %v1095 = vld [vmem:[%s6 + $0xc80] sm:$0xff]
      %v1096 = vld [vmem:[%s6 + $0xc88] sm:$0xff]
      %v1097 = vld [vmem:[%s6 + $0xc90] sm:$0xff]
      %v1098 = vld [vmem:[%s6 + $0xc98] sm:$0xff]
      %v1099 = vld [vmem:[%s6 + $0xca0] sm:$0xff]
      %v1100 = vld [vmem:[%s6 + $0xca8] sm:$0xff]
      %v1101 = vld [vmem:[%s6 + $0xcb0] sm:$0xff]
      %v1102 = vld [vmem:[%s6 + $0xcb8] sm:$0xff]
      %v1103 = vld [vmem:[%s6 + $0xcc0] sm:$0xff]
      %v1104 = vld [vmem:[%s6 + $0xcc8] sm:$0xff]
      %v1105 = vld [vmem:[%s6 + $0xcd0] sm:$0xff]
      %v1106 = vld [vmem:[%s6 + $0xcd8] sm:$0xff]
      %v1107 = vld [vmem:[%s6 + $0xce0] sm:$0xff]
      %v1108 = vld [vmem:[%s6 + $0xce8] sm:$0xff]
      %v1109 = vld [vmem:[%s6 + $0xcf0] sm:$0xff]
      %v1110 = vld [vmem:[%s6 + $0xcf8] sm:$0xff]
      %v1111 = vld [vmem:[%s6 + $0xd00] sm:$0xff]
      %v1112 = vld [vmem:[%s6 + $0xd08] sm:$0xff]
      %v1113 = vld [vmem:[%s6 + $0xd10] sm:$0xff]
      %v1114 = vld [vmem:[%s6 + $0xd18] sm:$0xff]
      %v1115 = vld [vmem:[%s6 + $0xd20] sm:$0xff]
      %v1116 = vld [vmem:[%s6 + $0xd28] sm:$0xff]
      %v1117 = vld [vmem:[%s6 + $0xd30] sm:$0xff]
      %v1118 = vld [vmem:[%s6 + $0xd38] sm:$0xff]
      %v1119 = vld [vmem:[%s6 + $0xd40] sm:$0xff]
      %v1120 = vld [vmem:[%s6 + $0xd48] sm:$0xff]
      %v1121 = vld [vmem:[%s6 + $0xd50] sm:$0xff]
      %v1122 = vld [vmem:[%s6 + $0xd58] sm:$0xff]
      %v1123 = vld [vmem:[%s6 + $0xd60] sm:$0xff]
      %v1124 = vld [vmem:[%s6 + $0xd68] sm:$0xff]
      %v1125 = vld [vmem:[%s6 + $0xd70] sm:$0xff]
      %v1126 = vld [vmem:[%s6 + $0xd78] sm:$0xff]
      %v1127 = vld [vmem:[%s7] sm:$0x1]
      %v1128 = vld [vmem:[%s8] sm:$0xff]
      %v1129 = vld [vmem:[%s8 + $0x8] sm:$0xff]
      %v1130 = vld [vmem:[%s8 + $0x10] sm:$0xff]
      %v1131 = vld [vmem:[%s8 + $0x18] sm:$0xff]
      %v1132 = vld [vmem:[%s8 + $0x20] sm:$0xff]
      %v1133 = vld [vmem:[%s8 + $0x28] sm:$0xff]
      %v1134 = vld [vmem:[%s8 + $0x30] sm:$0xff]
      %v1135 = vld [vmem:[%s8 + $0x38] sm:$0xff]
      %v1136 = vld [vmem:[%s9] sm:$0x1]
      %v1137 = vld [vmem:[%s10] sm:$0xff]
      %v1138 = vld [vmem:[%s11] sm:$0xff]
      %v1139 = vld [vmem:[%s11 + $0x8] sm:$0xff]
      %v1140 = vld [vmem:[%s11 + $0x10] sm:$0xff]
      %v1141 = vld [vmem:[%s11 + $0x18] sm:$0xff]
      %v1142 = vld [vmem:[%s11 + $0x20] sm:$0xff]
      %v1143 = vld [vmem:[%s11 + $0x28] sm:$0xff]
      %v1144 = vld [vmem:[%s11 + $0x30] sm:$0xff]
      %v1145 = vld [vmem:[%s11 + $0x38] sm:$0xff]
      %v1146 = vld [vmem:[%s11 + $0x40] sm:$0xff]
      %v1147 = vld [vmem:[%s11 + $0x48] sm:$0xff]
      %v1148 = vld [vmem:[%s11 + $0x50] sm:$0xff]
      %v1149 = vld [vmem:[%s11 + $0x58] sm:$0xff]
      %v1150 = vld [vmem:[%s11 + $0x60] sm:$0xff]
      %v1151 = vld [vmem:[%s11 + $0x68] sm:$0xff]
      %v1152 = vld [vmem:[%s11 + $0x70] sm:$0xff]
      %v1153 = vld [vmem:[%s11 + $0x78] sm:$0xff]
      %v1154 = vld [vmem:[%s620] sm:$0xff]
      %v1155 = vld [vmem:[%s620 + $0x8] sm:$0xff]
      %v1156 = vld [vmem:[%s620 + $0x10] sm:$0xff]
      %v1157 = vld [vmem:[%s620 + $0x18] sm:$0xff]
      %v1158 = vld [vmem:[%s620 + $0x20] sm:$0x3]
      %v1159 = vld [vmem:[%s620 + $0x28] sm:$0x3]
      %1164 = vrot.lane.b32.xlu0 %v1154, 120
      %v1165 = vpop.permute.xlu0 %1164
      %1166 = vrot.lane.b32.xlu0 %v1155, 120
      %v1167 = vpop.permute.xlu0 %1166
      %1168 = vrot.lane.b32.xlu0 %v1156, 120
      %v1169 = vpop.permute.xlu0 %1168
      %1170 = vrot.lane.b32.xlu0 %v1157, 120
      %v1171 = vpop.permute.xlu0 %1170
      %vm1172 = vcmask 982016
      %v1173 = vsel %vm1172, %v1165, %v1167
      %v1174 = vsel %vm1172, %v1169, %v1171
      %1177 = vmatpush.msra.mxu0 %v726
      %1178 = vmatpush.msra.mxu0 %v725
      %1179 = vmatpush.msra.mxu0 %v724
      %1180 = vmatpush.msra.mxu0 %v723
      %1181 = vmatpush.msra.mxu0 %v722
      %1182 = vmatpush.msra.mxu0 %v721
      %1183 = vmatpush.msra.mxu0 %v720
      %1184 = vmatpush.msra.mxu0 %v719
      %1185 = vmatpush.msra.mxu0 %v718
      %1186 = vmatpush.msra.mxu0 %v717
      %1187 = vmatpush.msra.mxu0 %v716
      %1188 = vmatpush.msra.mxu0 %v715
      %1189 = vmatpush.msra.mxu0 %v714
      %1190 = vmatpush.msra.mxu0 %v713
      %1191 = vmatpush.msra.mxu0 %v712
      %1192 = vmatpush.msra.mxu0 %v711
      %1193 = vmatmul.f32.gmra.mxu0 %v1173
      %v1194 = vpop.f32.mrf.mxu0
      %v1195 = vadd.f32 0.0, %v1194
      %1196 = vmatmul.f32.gmra.mxu0 %v1174
      %v1197 = vpop.f32.mrf.mxu0
      %v1198 = vadd.f32 0.0, %v1197
      %1199 = vdwg.mxu0
      %1200 = vmatpush.msra.mxu0 %v710
      %1201 = vmatpush.msra.mxu0 %v709
      %1202 = vmatpush.msra.mxu0 %v708
      %1203 = vmatpush.msra.mxu0 %v707
      %1204 = vmatpush.msra.mxu0 %v706
      %1205 = vmatpush.msra.mxu0 %v705
      %1206 = vmatpush.msra.mxu0 %v704
      %1207 = vmatpush.msra.mxu0 %v703
      %1208 = vmatpush.msra.mxu0 %v702
      %1209 = vmatpush.msra.mxu0 %v701
      %1210 = vmatpush.msra.mxu0 %v700
      %1211 = vmatpush.msra.mxu0 %v699
      %1212 = vmatpush.msra.mxu0 %v698
      %1213 = vmatpush.msra.mxu0 %v697
      %1214 = vmatpush.msra.mxu0 %v696
      %1215 = vmatpush.msra.mxu0 %v695
      %1216 = vmatmul.f32.gmra.mxu0 %v1154
      %v1217 = vpop.f32.mrf.mxu0
      %v1218 = vadd.f32 %v1195, %v1217
      %1219 = vmatmul.f32.gmra.mxu0 %v1156
      %v1220 = vpop.f32.mrf.mxu0
      %v1221 = vadd.f32 %v1198, %v1220
      %1222 = vdwg.mxu0
      %1223 = vrot.lane.b32.xlu0 %v1154, 112
      %v1224 = vpop.permute.xlu0 %1223
      %1225 = vrot.lane.b32.xlu0 %v1155, 112
      %v1226 = vpop.permute.xlu0 %1225
      %1227 = vrot.lane.b32.xlu0 %v1156, 112
      %v1228 = vpop.permute.xlu0 %1227
      %1229 = vrot.lane.b32.xlu0 %v1157, 112
      %v1230 = vpop.permute.xlu0 %1229
      %vm1231 = vcmask 916480
      %v1232 = vsel %vm1231, %v1224, %v1226
      %v1233 = vsel %vm1231, %v1228, %v1230
      %1236 = vmatpush.msra.mxu0 %v742
      %1237 = vmatpush.msra.mxu0 %v741
      %1238 = vmatpush.msra.mxu0 %v740
      %1239 = vmatpush.msra.mxu0 %v739
      %1240 = vmatpush.msra.mxu0 %v738
      %1241 = vmatpush.msra.mxu0 %v737
      %1242 = vmatpush.msra.mxu0 %v736
      %1243 = vmatpush.msra.mxu0 %v735
      %1244 = vmatpush.msra.mxu0 %v734
      %1245 = vmatpush.msra.mxu0 %v733
      %1246 = vmatpush.msra.mxu0 %v732
      %1247 = vmatpush.msra.mxu0 %v731
      %1248 = vmatpush.msra.mxu0 %v730
      %1249 = vmatpush.msra.mxu0 %v729
      %1250 = vmatpush.msra.mxu0 %v728
      %1251 = vmatpush.msra.mxu0 %v727
      %1252 = vmatmul.f32.gmra.mxu0 %v1232
      %v1253 = vpop.f32.mrf.mxu0
      %v1254 = vadd.f32 0.0, %v1253
      %1255 = vmatmul.f32.gmra.mxu0 %v1233
      %v1256 = vpop.f32.mrf.mxu0
      %v1257 = vadd.f32 0.0, %v1256
      %1258 = vdwg.mxu0
      %v1259 = vadd.f32 %v1218, %v1254
      %v1260 = vadd.f32 %v1221, %v1257
      %vm1262 = vcmask 1046528
      %v1263 = vrot.slane %v1154, 1
      %v1264 = vrot.slane %v1156, 1
      %v1265 = vsel %vm1262, %v1263, %v1264
      %v1266 = vrot.slane %v1158, 1
      %v1267 = vsel %vm1262, %v1264, %v1266
      %1270 = vmatpush.msra.mxu0 %v758
      %1271 = vmatpush.msra.mxu0 %v757
      %1272 = vmatpush.msra.mxu0 %v756
      %1273 = vmatpush.msra.mxu0 %v755
      %1274 = vmatpush.msra.mxu0 %v754
      %1275 = vmatpush.msra.mxu0 %v753
      %1276 = vmatpush.msra.mxu0 %v752
      %1277 = vmatpush.msra.mxu0 %v751
      %1278 = vmatpush.msra.mxu0 %v750
      %1279 = vmatpush.msra.mxu0 %v749
      %1280 = vmatpush.msra.mxu0 %v748
      %1281 = vmatpush.msra.mxu0 %v747
      %1282 = vmatpush.msra.mxu0 %v746
      %1283 = vmatpush.msra.mxu0 %v745
      %1284 = vmatpush.msra.mxu0 %v744
      %1285 = vmatpush.msra.mxu0 %v743
      %1286 = vmatmul.f32.gmra.mxu0 %v1265
      %v1287 = vpop.f32.mrf.mxu0
      %v1288 = vadd.f32 0.0, %v1287
      %1289 = vmatmul.f32.gmra.mxu0 %v1267
      %v1290 = vpop.f32.mrf.mxu0
      %v1291 = vadd.f32 0.0, %v1290
      %1292 = vdwg.mxu0
      %v1293 = vadd.f32 %v1259, %v1288
      %v1294 = vadd.f32 %v1260, %v1291
      %v1296 = vrot.slane %v1155, 1
      %v1297 = vrot.slane %v1157, 1
      %v1298 = vsel %vm1262, %v1296, %v1297
      %v1299 = vrot.slane %v1159, 1
      %v1300 = vsel %vm1262, %v1297, %v1299
      %1301 = vrot.lane.b32.xlu0 %v1265, 120
      %v1302 = vpop.permute.xlu0 %1301
      %1303 = vrot.lane.b32.xlu0 %v1298, 120
      %v1304 = vpop.permute.xlu0 %1303
      %1305 = vrot.lane.b32.xlu0 %v1267, 120
      %v1306 = vpop.permute.xlu0 %1305
      %1307 = vrot.lane.b32.xlu0 %v1300, 120
      %v1308 = vpop.permute.xlu0 %1307
      %v1309 = vsel %vm1172, %v1302, %v1304
      %v1310 = vsel %vm1172, %v1306, %v1308
      %1313 = vmatpush.msra.mxu0 %v774
      %1314 = vmatpush.msra.mxu0 %v773
      %1315 = vmatpush.msra.mxu0 %v772
      %1316 = vmatpush.msra.mxu0 %v771
      %1317 = vmatpush.msra.mxu0 %v770
      %1318 = vmatpush.msra.mxu0 %v769
      %1319 = vmatpush.msra.mxu0 %v768
      %1320 = vmatpush.msra.mxu0 %v767
      %1321 = vmatpush.msra.mxu0 %v766
      %1322 = vmatpush.msra.mxu0 %v765
      %1323 = vmatpush.msra.mxu0 %v764
      %1324 = vmatpush.msra.mxu0 %v763
      %1325 = vmatpush.msra.mxu0 %v762
      %1326 = vmatpush.msra.mxu0 %v761
      %1327 = vmatpush.msra.mxu0 %v760
      %1328 = vmatpush.msra.mxu0 %v759
      %1329 = vmatmul.f32.gmra.mxu0 %v1309
      %v1330 = vpop.f32.mrf.mxu0
      %v1331 = vadd.f32 0.0, %v1330
      %1332 = vmatmul.f32.gmra.mxu0 %v1310
      %v1333 = vpop.f32.mrf.mxu0
      %v1334 = vadd.f32 0.0, %v1333
      %1335 = vdwg.mxu0
      %v1336 = vadd.f32 %v1293, %v1331
      %v1337 = vadd.f32 %v1294, %v1334
      %1338 = vrot.lane.b32.xlu0 %v1265, 112
      %v1339 = vpop.permute.xlu0 %1338
      %1340 = vrot.lane.b32.xlu0 %v1298, 112
      %v1341 = vpop.permute.xlu0 %1340
      %1342 = vrot.lane.b32.xlu0 %v1267, 112
      %v1343 = vpop.permute.xlu0 %1342
      %1344 = vrot.lane.b32.xlu0 %v1300, 112
      %v1345 = vpop.permute.xlu0 %1344
      %v1346 = vsel %vm1231, %v1339, %v1341
      %v1347 = vsel %vm1231, %v1343, %v1345
      %1350 = vmatpush.msra.mxu0 %v790
      %1351 = vmatpush.msra.mxu0 %v789
      %1352 = vmatpush.msra.mxu0 %v788
      %1353 = vmatpush.msra.mxu0 %v787
      %1354 = vmatpush.msra.mxu0 %v786
      %1355 = vmatpush.msra.mxu0 %v785
      %1356 = vmatpush.msra.mxu0 %v784
      %1357 = vmatpush.msra.mxu0 %v783
      %1358 = vmatpush.msra.mxu0 %v782
      %1359 = vmatpush.msra.mxu0 %v781
      %1360 = vmatpush.msra.mxu0 %v780
      %1361 = vmatpush.msra.mxu0 %v779
      %1362 = vmatpush.msra.mxu0 %v778
      %1363 = vmatpush.msra.mxu0 %v777
      %1364 = vmatpush.msra.mxu0 %v776
      %1365 = vmatpush.msra.mxu0 %v775
      %1366 = vmatmul.f32.gmra.mxu0 %v1346
      %v1367 = vpop.f32.mrf.mxu0
      %v1368 = vadd.f32 0.0, %v1367
      %1369 = vmatmul.f32.gmra.mxu0 %v1347
      %v1370 = vpop.f32.mrf.mxu0
      %v1371 = vadd.f32 0.0, %v1370
      %1372 = vdwg.mxu0
      %v1373 = vadd.f32 %v1336, %v1368
      %v1374 = vadd.f32 %v1337, %v1371
      %vm1375 = vcmask 1045504
      %v1376 = vrot.slane %v1154, 2
      %v1377 = vrot.slane %v1156, 2
      %v1378 = vsel %vm1375, %v1376, %v1377
      %v1379 = vrot.slane %v1158, 2
      %v1380 = vsel %vm1375, %v1377, %v1379
      %1383 = vmatpush.msra.mxu0 %v806
      %1384 = vmatpush.msra.mxu0 %v805
      %1385 = vmatpush.msra.mxu0 %v804
      %1386 = vmatpush.msra.mxu0 %v803
      %1387 = vmatpush.msra.mxu0 %v802
      %1388 = vmatpush.msra.mxu0 %v801
      %1389 = vmatpush.msra.mxu0 %v800
      %1390 = vmatpush.msra.mxu0 %v799
      %1391 = vmatpush.msra.mxu0 %v798
      %1392 = vmatpush.msra.mxu0 %v797
      %1393 = vmatpush.msra.mxu0 %v796
      %1394 = vmatpush.msra.mxu0 %v795
      %1395 = vmatpush.msra.mxu0 %v794
      %1396 = vmatpush.msra.mxu0 %v793
      %1397 = vmatpush.msra.mxu0 %v792
      %1398 = vmatpush.msra.mxu0 %v791
      %1399 = vmatmul.f32.gmra.mxu0 %v1378
      %v1400 = vpop.f32.mrf.mxu0
      %v1401 = vadd.f32 0.0, %v1400
      %1402 = vmatmul.f32.gmra.mxu0 %v1380
      %v1403 = vpop.f32.mrf.mxu0
      %v1404 = vadd.f32 0.0, %v1403
      %1405 = vdwg.mxu0
      %v1406 = vadd.f32 %v1373, %v1401
      %v1407 = vadd.f32 %v1374, %v1404
      %v1408 = vrot.slane %v1155, 2
      %v1409 = vrot.slane %v1157, 2
      %v1410 = vsel %vm1375, %v1408, %v1409
      %v1411 = vrot.slane %v1159, 2
      %v1412 = vsel %vm1375, %v1409, %v1411
      %1413 = vrot.lane.b32.xlu0 %v1378, 120
      %v1414 = vpop.permute.xlu0 %1413
      %1415 = vrot.lane.b32.xlu0 %v1410, 120
      %v1416 = vpop.permute.xlu0 %1415
      %1417 = vrot.lane.b32.xlu0 %v1380, 120
      %v1418 = vpop.permute.xlu0 %1417
      %1419 = vrot.lane.b32.xlu0 %v1412, 120
      %v1420 = vpop.permute.xlu0 %1419
      %v1421 = vsel %vm1172, %v1414, %v1416
      %v1422 = vsel %vm1172, %v1418, %v1420
      %1425 = vmatpush.msra.mxu0 %v822
      %1426 = vmatpush.msra.mxu0 %v821
      %1427 = vmatpush.msra.mxu0 %v820
      %1428 = vmatpush.msra.mxu0 %v819
      %1429 = vmatpush.msra.mxu0 %v818
      %1430 = vmatpush.msra.mxu0 %v817
      %1431 = vmatpush.msra.mxu0 %v816
      %1432 = vmatpush.msra.mxu0 %v815
      %1433 = vmatpush.msra.mxu0 %v814
      %1434 = vmatpush.msra.mxu0 %v813
      %1435 = vmatpush.msra.mxu0 %v812
      %1436 = vmatpush.msra.mxu0 %v811
      %1437 = vmatpush.msra.mxu0 %v810
      %1438 = vmatpush.msra.mxu0 %v809
      %1439 = vmatpush.msra.mxu0 %v808
      %1440 = vmatpush.msra.mxu0 %v807
      %1441 = vmatmul.f32.gmra.mxu0 %v1421
      %v1442 = vpop.f32.mrf.mxu0
      %v1443 = vadd.f32 0.0, %v1442
      %1444 = vmatmul.f32.gmra.mxu0 %v1422
      %v1445 = vpop.f32.mrf.mxu0
      %v1446 = vadd.f32 0.0, %v1445
      %1447 = vdwg.mxu0
      %v1448 = vadd.f32 %v1406, %v1443
      %v1449 = vadd.f32 %v1407, %v1446
      %1450 = vrot.lane.b32.xlu0 %v1378, 112
      %v1451 = vpop.permute.xlu0 %1450
      %1452 = vrot.lane.b32.xlu0 %v1410, 112
      %v1453 = vpop.permute.xlu0 %1452
      %1454 = vrot.lane.b32.xlu0 %v1380, 112
      %v1455 = vpop.permute.xlu0 %1454
      %1456 = vrot.lane.b32.xlu0 %v1412, 112
      %v1457 = vpop.permute.xlu0 %1456
      %v1458 = vsel %vm1231, %v1451, %v1453
      %v1459 = vsel %vm1231, %v1455, %v1457
      %1462 = vmatpush.msra.mxu0 %v838
      %1463 = vmatpush.msra.mxu0 %v837
      %1464 = vmatpush.msra.mxu0 %v836
      %1465 = vmatpush.msra.mxu0 %v835
      %1466 = vmatpush.msra.mxu0 %v834
      %1467 = vmatpush.msra.mxu0 %v833
      %1468 = vmatpush.msra.mxu0 %v832
      %1469 = vmatpush.msra.mxu0 %v831
      %1470 = vmatpush.msra.mxu0 %v830
      %1471 = vmatpush.msra.mxu0 %v829
      %1472 = vmatpush.msra.mxu0 %v828
      %1473 = vmatpush.msra.mxu0 %v827
      %1474 = vmatpush.msra.mxu0 %v826
      %1475 = vmatpush.msra.mxu0 %v825
      %1476 = vmatpush.msra.mxu0 %v824
      %1477 = vmatpush.msra.mxu0 %v823
      %1478 = vmatmul.f32.gmra.mxu0 %v1458
      %v1479 = vpop.f32.mrf.mxu0
      %v1480 = vadd.f32 0.0, %v1479
      %1481 = vmatmul.f32.gmra.mxu0 %v1459
      %v1482 = vpop.f32.mrf.mxu0
      %v1483 = vadd.f32 0.0, %v1482
      %1484 = vdwg.mxu0
      %v1485 = vadd.f32 %v1448, %v1480
      %v1486 = vadd.f32 %v1449, %v1483
      %v1487 = vld [vmem:[%s632] sm:$0xff]
      %v1488 = vld [vmem:[%s632 + $0x8] sm:$0xff]
      %v1489 = vld [vmem:[%s632 + $0x10] sm:$0xff]
      %v1490 = vld [vmem:[%s632 + $0x18] sm:$0xff]
      %v1491 = vld [vmem:[%s632 + $0x20] sm:$0x3]
      %v1492 = vld [vmem:[%s632 + $0x28] sm:$0x3]
      %1493 = vmatpush.msra.mxu0 %v854
      %1494 = vmatpush.msra.mxu0 %v853
      %1495 = vmatpush.msra.mxu0 %v852
      %1496 = vmatpush.msra.mxu0 %v851
      %1497 = vmatpush.msra.mxu0 %v850
      %1498 = vmatpush.msra.mxu0 %v849
      %1499 = vmatpush.msra.mxu0 %v848
      %1500 = vmatpush.msra.mxu0 %v847
      %1501 = vmatpush.msra.mxu0 %v846
      %1502 = vmatpush.msra.mxu0 %v845
      %1503 = vmatpush.msra.mxu0 %v844
      %1504 = vmatpush.msra.mxu0 %v843
      %1505 = vmatpush.msra.mxu0 %v842
      %1506 = vmatpush.msra.mxu0 %v841
      %1507 = vmatpush.msra.mxu0 %v840
      %1508 = vmatpush.msra.mxu0 %v839
      %1509 = vmatmul.f32.gmra.mxu0 %v1487
      %v1510 = vpop.f32.mrf.mxu0
      %v1511 = vadd.f32 0.0, %v1510
      %1512 = vmatmul.f32.gmra.mxu0 %v1489
      %v1513 = vpop.f32.mrf.mxu0
      %v1514 = vadd.f32 0.0, %v1513
      %1515 = vdwg.mxu0
      %v1516 = vadd.f32 %v1485, %v1511
      %v1517 = vadd.f32 %v1486, %v1514
      %1522 = vrot.lane.b32.xlu0 %v1487, 120
      %v1523 = vpop.permute.xlu0 %1522
      %1524 = vrot.lane.b32.xlu0 %v1488, 120
      %v1525 = vpop.permute.xlu0 %1524
      %1526 = vrot.lane.b32.xlu0 %v1489, 120
      %v1527 = vpop.permute.xlu0 %1526
      %1528 = vrot.lane.b32.xlu0 %v1490, 120
      %v1529 = vpop.permute.xlu0 %1528
      %v1530 = vsel %vm1172, %v1523, %v1525
      %v1531 = vsel %vm1172, %v1527, %v1529
      %1534 = vmatpush.msra.mxu0 %v870
      %1535 = vmatpush.msra.mxu0 %v869
      %1536 = vmatpush.msra.mxu0 %v868
      %1537 = vmatpush.msra.mxu0 %v867
      %1538 = vmatpush.msra.mxu0 %v866
      %1539 = vmatpush.msra.mxu0 %v865
      %1540 = vmatpush.msra.mxu0 %v864
      %1541 = vmatpush.msra.mxu0 %v863
      %1542 = vmatpush.msra.mxu0 %v862
      %1543 = vmatpush.msra.mxu0 %v861
      %1544 = vmatpush.msra.mxu0 %v860
      %1545 = vmatpush.msra.mxu0 %v859
      %1546 = vmatpush.msra.mxu0 %v858
      %1547 = vmatpush.msra.mxu0 %v857
      %1548 = vmatpush.msra.mxu0 %v856
      %1549 = vmatpush.msra.mxu0 %v855
      %1550 = vmatmul.f32.gmra.mxu0 %v1530
      %v1551 = vpop.f32.mrf.mxu0
      %v1552 = vadd.f32 0.0, %v1551
      %1553 = vmatmul.f32.gmra.mxu0 %v1531
      %v1554 = vpop.f32.mrf.mxu0
      %v1555 = vadd.f32 0.0, %v1554
      %1556 = vdwg.mxu0
      %v1557 = vadd.f32 %v1516, %v1552
      %v1558 = vadd.f32 %v1517, %v1555
      %1559 = vrot.lane.b32.xlu0 %v1487, 112
      %v1560 = vpop.permute.xlu0 %1559
      %1561 = vrot.lane.b32.xlu0 %v1488, 112
      %v1562 = vpop.permute.xlu0 %1561
      %1563 = vrot.lane.b32.xlu0 %v1489, 112
      %v1564 = vpop.permute.xlu0 %1563
      %1565 = vrot.lane.b32.xlu0 %v1490, 112
      %v1566 = vpop.permute.xlu0 %1565
      %v1567 = vsel %vm1231, %v1560, %v1562
      %v1568 = vsel %vm1231, %v1564, %v1566
      %1571 = vmatpush.msra.mxu0 %v886
      %1572 = vmatpush.msra.mxu0 %v885
      %1573 = vmatpush.msra.mxu0 %v884
      %1574 = vmatpush.msra.mxu0 %v883
      %1575 = vmatpush.msra.mxu0 %v882
      %1576 = vmatpush.msra.mxu0 %v881
      %1577 = vmatpush.msra.mxu0 %v880
      %1578 = vmatpush.msra.mxu0 %v879
      %1579 = vmatpush.msra.mxu0 %v878
      %1580 = vmatpush.msra.mxu0 %v877
      %1581 = vmatpush.msra.mxu0 %v876
      %1582 = vmatpush.msra.mxu0 %v875
      %1583 = vmatpush.msra.mxu0 %v874
      %1584 = vmatpush.msra.mxu0 %v873
      %1585 = vmatpush.msra.mxu0 %v872
      %1586 = vmatpush.msra.mxu0 %v871
      %1587 = vmatmul.f32.gmra.mxu0 %v1567
      %v1588 = vpop.f32.mrf.mxu0
      %v1589 = vadd.f32 0.0, %v1588
      %1590 = vmatmul.f32.gmra.mxu0 %v1568
      %v1591 = vpop.f32.mrf.mxu0
      %v1592 = vadd.f32 0.0, %v1591
      %1593 = vdwg.mxu0
      %v1594 = vadd.f32 %v1557, %v1589
      %v1595 = vadd.f32 %v1558, %v1592
      %v1597 = vrot.slane %v1487, 1
      %v1598 = vrot.slane %v1489, 1
      %v1599 = vsel %vm1262, %v1597, %v1598
      %v1600 = vrot.slane %v1491, 1
      %v1601 = vsel %vm1262, %v1598, %v1600
      %1604 = vmatpush.msra.mxu0 %v902
      %1605 = vmatpush.msra.mxu0 %v901
      %1606 = vmatpush.msra.mxu0 %v900
      %1607 = vmatpush.msra.mxu0 %v899
      %1608 = vmatpush.msra.mxu0 %v898
      %1609 = vmatpush.msra.mxu0 %v897
      %1610 = vmatpush.msra.mxu0 %v896
      %1611 = vmatpush.msra.mxu0 %v895
      %1612 = vmatpush.msra.mxu0 %v894
      %1613 = vmatpush.msra.mxu0 %v893
      %1614 = vmatpush.msra.mxu0 %v892
      %1615 = vmatpush.msra.mxu0 %v891
      %1616 = vmatpush.msra.mxu0 %v890
      %1617 = vmatpush.msra.mxu0 %v889
      %1618 = vmatpush.msra.mxu0 %v888
      %1619 = vmatpush.msra.mxu0 %v887
      %1620 = vmatmul.f32.gmra.mxu0 %v1599
      %v1621 = vpop.f32.mrf.mxu0
      %v1622 = vadd.f32 0.0, %v1621
      %1623 = vmatmul.f32.gmra.mxu0 %v1601
      %v1624 = vpop.f32.mrf.mxu0
      %v1625 = vadd.f32 0.0, %v1624
      %1626 = vdwg.mxu0
      %v1627 = vadd.f32 %v1594, %v1622
      %v1628 = vadd.f32 %v1595, %v1625
      %v1630 = vrot.slane %v1488, 1
      %v1631 = vrot.slane %v1490, 1
      %v1632 = vsel %vm1262, %v1630, %v1631
      %v1633 = vrot.slane %v1492, 1
      %v1634 = vsel %vm1262, %v1631, %v1633
      %1635 = vrot.lane.b32.xlu0 %v1599, 120
      %v1636 = vpop.permute.xlu0 %1635
      %1637 = vrot.lane.b32.xlu0 %v1632, 120
      %v1638 = vpop.permute.xlu0 %1637
      %1639 = vrot.lane.b32.xlu0 %v1601, 120
      %v1640 = vpop.permute.xlu0 %1639
      %1641 = vrot.lane.b32.xlu0 %v1634, 120
      %v1642 = vpop.permute.xlu0 %1641
      %v1643 = vsel %vm1172, %v1636, %v1638
      %v1644 = vsel %vm1172, %v1640, %v1642
      %1647 = vmatpush.msra.mxu0 %v918
      %1648 = vmatpush.msra.mxu0 %v917
      %1649 = vmatpush.msra.mxu0 %v916
      %1650 = vmatpush.msra.mxu0 %v915
      %1651 = vmatpush.msra.mxu0 %v914
      %1652 = vmatpush.msra.mxu0 %v913
      %1653 = vmatpush.msra.mxu0 %v912
      %1654 = vmatpush.msra.mxu0 %v911
      %1655 = vmatpush.msra.mxu0 %v910
      %1656 = vmatpush.msra.mxu0 %v909
      %1657 = vmatpush.msra.mxu0 %v908
      %1658 = vmatpush.msra.mxu0 %v907
      %1659 = vmatpush.msra.mxu0 %v906
      %1660 = vmatpush.msra.mxu0 %v905
      %1661 = vmatpush.msra.mxu0 %v904
      %1662 = vmatpush.msra.mxu0 %v903
      %1663 = vmatmul.f32.gmra.mxu0 %v1643
      %v1664 = vpop.f32.mrf.mxu0
      %v1665 = vadd.f32 0.0, %v1664
      %1666 = vmatmul.f32.gmra.mxu0 %v1644
      %v1667 = vpop.f32.mrf.mxu0
      %v1668 = vadd.f32 0.0, %v1667
      %1669 = vdwg.mxu0
      %v1670 = vadd.f32 %v1627, %v1665
      %v1671 = vadd.f32 %v1628, %v1668
      %1672 = vrot.lane.b32.xlu0 %v1599, 112
      %v1673 = vpop.permute.xlu0 %1672
      %1674 = vrot.lane.b32.xlu0 %v1632, 112
      %v1675 = vpop.permute.xlu0 %1674
      %1676 = vrot.lane.b32.xlu0 %v1601, 112
      %v1677 = vpop.permute.xlu0 %1676
      %1678 = vrot.lane.b32.xlu0 %v1634, 112
      %v1679 = vpop.permute.xlu0 %1678
      %v1680 = vsel %vm1231, %v1673, %v1675
      %v1681 = vsel %vm1231, %v1677, %v1679
      %1684 = vmatpush.msra.mxu0 %v934
      %1685 = vmatpush.msra.mxu0 %v933
      %1686 = vmatpush.msra.mxu0 %v932
      %1687 = vmatpush.msra.mxu0 %v931
      %1688 = vmatpush.msra.mxu0 %v930
      %1689 = vmatpush.msra.mxu0 %v929
      %1690 = vmatpush.msra.mxu0 %v928
      %1691 = vmatpush.msra.mxu0 %v927
      %1692 = vmatpush.msra.mxu0 %v926
      %1693 = vmatpush.msra.mxu0 %v925
      %1694 = vmatpush.msra.mxu0 %v924
      %1695 = vmatpush.msra.mxu0 %v923
      %1696 = vmatpush.msra.mxu0 %v922
      %1697 = vmatpush.msra.mxu0 %v921
      %1698 = vmatpush.msra.mxu0 %v920
      %1699 = vmatpush.msra.mxu0 %v919
      %1700 = vmatmul.f32.gmra.mxu0 %v1680
      %v1701 = vpop.f32.mrf.mxu0
      %v1702 = vadd.f32 0.0, %v1701
      %1703 = vmatmul.f32.gmra.mxu0 %v1681
      %v1704 = vpop.f32.mrf.mxu0
      %v1705 = vadd.f32 0.0, %v1704
      %1706 = vdwg.mxu0
      %v1707 = vadd.f32 %v1670, %v1702
      %v1708 = vadd.f32 %v1671, %v1705
      %v1709 = vrot.slane %v1487, 2
      %v1710 = vrot.slane %v1489, 2
      %v1711 = vsel %vm1375, %v1709, %v1710
      %v1712 = vrot.slane %v1491, 2
      %v1713 = vsel %vm1375, %v1710, %v1712
      %1716 = vmatpush.msra.mxu0 %v950
      %1717 = vmatpush.msra.mxu0 %v949
      %1718 = vmatpush.msra.mxu0 %v948
      %1719 = vmatpush.msra.mxu0 %v947
      %1720 = vmatpush.msra.mxu0 %v946
      %1721 = vmatpush.msra.mxu0 %v945
      %1722 = vmatpush.msra.mxu0 %v944
      %1723 = vmatpush.msra.mxu0 %v943
      %1724 = vmatpush.msra.mxu0 %v942
      %1725 = vmatpush.msra.mxu0 %v941
      %1726 = vmatpush.msra.mxu0 %v940
      %1727 = vmatpush.msra.mxu0 %v939
      %1728 = vmatpush.msra.mxu0 %v938
      %1729 = vmatpush.msra.mxu0 %v937
      %1730 = vmatpush.msra.mxu0 %v936
      %1731 = vmatpush.msra.mxu0 %v935
      %1732 = vmatmul.f32.gmra.mxu0 %v1711
      %v1733 = vpop.f32.mrf.mxu0
      %v1734 = vadd.f32 0.0, %v1733
      %1735 = vmatmul.f32.gmra.mxu0 %v1713
      %v1736 = vpop.f32.mrf.mxu0
      %v1737 = vadd.f32 0.0, %v1736
      %1738 = vdwg.mxu0
      %v1739 = vadd.f32 %v1707, %v1734
      %v1740 = vadd.f32 %v1708, %v1737
      %v1741 = vrot.slane %v1488, 2
      %v1742 = vrot.slane %v1490, 2
      %v1743 = vsel %vm1375, %v1741, %v1742
      %v1744 = vrot.slane %v1492, 2
      %v1745 = vsel %vm1375, %v1742, %v1744
      %1746 = vrot.lane.b32.xlu0 %v1711, 120
      %v1747 = vpop.permute.xlu0 %1746
      %1748 = vrot.lane.b32.xlu0 %v1743, 120
      %v1749 = vpop.permute.xlu0 %1748
      %1750 = vrot.lane.b32.xlu0 %v1713, 120
      %v1751 = vpop.permute.xlu0 %1750
      %1752 = vrot.lane.b32.xlu0 %v1745, 120
      %v1753 = vpop.permute.xlu0 %1752
      %v1754 = vsel %vm1172, %v1747, %v1749
      %v1755 = vsel %vm1172, %v1751, %v1753
      %1758 = vmatpush.msra.mxu0 %v966
      %1759 = vmatpush.msra.mxu0 %v965
      %1760 = vmatpush.msra.mxu0 %v964
      %1761 = vmatpush.msra.mxu0 %v963
      %1762 = vmatpush.msra.mxu0 %v962
      %1763 = vmatpush.msra.mxu0 %v961
      %1764 = vmatpush.msra.mxu0 %v960
      %1765 = vmatpush.msra.mxu0 %v959
      %1766 = vmatpush.msra.mxu0 %v958
      %1767 = vmatpush.msra.mxu0 %v957
      %1768 = vmatpush.msra.mxu0 %v956
      %1769 = vmatpush.msra.mxu0 %v955
      %1770 = vmatpush.msra.mxu0 %v954
      %1771 = vmatpush.msra.mxu0 %v953
      %1772 = vmatpush.msra.mxu0 %v952
      %1773 = vmatpush.msra.mxu0 %v951
      %1774 = vmatmul.f32.gmra.mxu0 %v1754
      %v1775 = vpop.f32.mrf.mxu0
      %v1776 = vadd.f32 0.0, %v1775
      %1777 = vmatmul.f32.gmra.mxu0 %v1755
      %v1778 = vpop.f32.mrf.mxu0
      %v1779 = vadd.f32 0.0, %v1778
      %1780 = vdwg.mxu0
      %v1781 = vadd.f32 %v1739, %v1776
      %v1782 = vadd.f32 %v1740, %v1779
      %1783 = vrot.lane.b32.xlu0 %v1711, 112
      %v1784 = vpop.permute.xlu0 %1783
      %1785 = vrot.lane.b32.xlu0 %v1743, 112
      %v1786 = vpop.permute.xlu0 %1785
      %1787 = vrot.lane.b32.xlu0 %v1713, 112
      %v1788 = vpop.permute.xlu0 %1787
      %1789 = vrot.lane.b32.xlu0 %v1745, 112
      %v1790 = vpop.permute.xlu0 %1789
      %v1791 = vsel %vm1231, %v1784, %v1786
      %v1792 = vsel %vm1231, %v1788, %v1790
      %1795 = vmatpush.msra.mxu0 %v982
      %1796 = vmatpush.msra.mxu0 %v981
      %1797 = vmatpush.msra.mxu0 %v980
      %1798 = vmatpush.msra.mxu0 %v979
      %1799 = vmatpush.msra.mxu0 %v978
      %1800 = vmatpush.msra.mxu0 %v977
      %1801 = vmatpush.msra.mxu0 %v976
      %1802 = vmatpush.msra.mxu0 %v975
      %1803 = vmatpush.msra.mxu0 %v974
      %1804 = vmatpush.msra.mxu0 %v973
      %1805 = vmatpush.msra.mxu0 %v972
      %1806 = vmatpush.msra.mxu0 %v971
      %1807 = vmatpush.msra.mxu0 %v970
      %1808 = vmatpush.msra.mxu0 %v969
      %1809 = vmatpush.msra.mxu0 %v968
      %1810 = vmatpush.msra.mxu0 %v967
      %1811 = vmatmul.f32.gmra.mxu0 %v1791
      %v1812 = vpop.f32.mrf.mxu0
      %v1813 = vadd.f32 0.0, %v1812
      %1814 = vmatmul.f32.gmra.mxu0 %v1792
      %v1815 = vpop.f32.mrf.mxu0
      %v1816 = vadd.f32 0.0, %v1815
      %1817 = vdwg.mxu0
      %v1818 = vadd.f32 %v1781, %v1813
      %v1819 = vadd.f32 %v1782, %v1816
      %v1820 = vld [vmem:[%s645] sm:$0xff]
      %v1821 = vld [vmem:[%s645 + $0x8] sm:$0xff]
      %v1822 = vld [vmem:[%s645 + $0x10] sm:$0xff]
      %v1823 = vld [vmem:[%s645 + $0x18] sm:$0xff]
      %v1824 = vld [vmem:[%s645 + $0x20] sm:$0x3]
      %v1825 = vld [vmem:[%s645 + $0x28] sm:$0x3]
      %1826 = vmatpush.msra.mxu0 %v998
      %1827 = vmatpush.msra.mxu0 %v997
      %1828 = vmatpush.msra.mxu0 %v996
      %1829 = vmatpush.msra.mxu0 %v995
      %1830 = vmatpush.msra.mxu0 %v994
      %1831 = vmatpush.msra.mxu0 %v993
      %1832 = vmatpush.msra.mxu0 %v992
      %1833 = vmatpush.msra.mxu0 %v991
      %1834 = vmatpush.msra.mxu0 %v990
      %1835 = vmatpush.msra.mxu0 %v989
      %1836 = vmatpush.msra.mxu0 %v988
      %1837 = vmatpush.msra.mxu0 %v987
      %1838 = vmatpush.msra.mxu0 %v986
      %1839 = vmatpush.msra.mxu0 %v985
      %1840 = vmatpush.msra.mxu0 %v984
      %1841 = vmatpush.msra.mxu0 %v983
      %1842 = vmatmul.f32.gmra.mxu0 %v1820
      %v1843 = vpop.f32.mrf.mxu0
      %v1844 = vadd.f32 0.0, %v1843
      %1845 = vmatmul.f32.gmra.mxu0 %v1822
      %v1846 = vpop.f32.mrf.mxu0
      %v1847 = vadd.f32 0.0, %v1846
      %1848 = vdwg.mxu0
      %v1849 = vadd.f32 %v1818, %v1844
      %v1850 = vadd.f32 %v1819, %v1847
      %1855 = vrot.lane.b32.xlu0 %v1820, 120
      %v1856 = vpop.permute.xlu0 %1855
      %1857 = vrot.lane.b32.xlu0 %v1821, 120
      %v1858 = vpop.permute.xlu0 %1857
      %1859 = vrot.lane.b32.xlu0 %v1822, 120
      %v1860 = vpop.permute.xlu0 %1859
      %1861 = vrot.lane.b32.xlu0 %v1823, 120
      %v1862 = vpop.permute.xlu0 %1861
      %v1863 = vsel %vm1172, %v1856, %v1858
      %v1864 = vsel %vm1172, %v1860, %v1862
      %1867 = vmatpush.msra.mxu0 %v1014
      %1868 = vmatpush.msra.mxu0 %v1013
      %1869 = vmatpush.msra.mxu0 %v1012
      %1870 = vmatpush.msra.mxu0 %v1011
      %1871 = vmatpush.msra.mxu0 %v1010
      %1872 = vmatpush.msra.mxu0 %v1009
      %1873 = vmatpush.msra.mxu0 %v1008
      %1874 = vmatpush.msra.mxu0 %v1007
      %1875 = vmatpush.msra.mxu0 %v1006
      %1876 = vmatpush.msra.mxu0 %v1005
      %1877 = vmatpush.msra.mxu0 %v1004
      %1878 = vmatpush.msra.mxu0 %v1003
      %1879 = vmatpush.msra.mxu0 %v1002
      %1880 = vmatpush.msra.mxu0 %v1001
      %1881 = vmatpush.msra.mxu0 %v1000
      %1882 = vmatpush.msra.mxu0 %v999
      %1883 = vmatmul.f32.gmra.mxu0 %v1863
      %v1884 = vpop.f32.mrf.mxu0
      %v1885 = vadd.f32 0.0, %v1884
      %1886 = vmatmul.f32.gmra.mxu0 %v1864
      %v1887 = vpop.f32.mrf.mxu0
      %v1888 = vadd.f32 0.0, %v1887
      %1889 = vdwg.mxu0
      %v1890 = vadd.f32 %v1849, %v1885
      %v1891 = vadd.f32 %v1850, %v1888
      %1892 = vrot.lane.b32.xlu0 %v1820, 112
      %v1893 = vpop.permute.xlu0 %1892
      %1894 = vrot.lane.b32.xlu0 %v1821, 112
      %v1895 = vpop.permute.xlu0 %1894
      %1896 = vrot.lane.b32.xlu0 %v1822, 112
      %v1897 = vpop.permute.xlu0 %1896
      %1898 = vrot.lane.b32.xlu0 %v1823, 112
      %v1899 = vpop.permute.xlu0 %1898
      %v1900 = vsel %vm1231, %v1893, %v1895
      %v1901 = vsel %vm1231, %v1897, %v1899
      %1904 = vmatpush.msra.mxu0 %v1030
      %1905 = vmatpush.msra.mxu0 %v1029
      %1906 = vmatpush.msra.mxu0 %v1028
      %1907 = vmatpush.msra.mxu0 %v1027
      %1908 = vmatpush.msra.mxu0 %v1026
      %1909 = vmatpush.msra.mxu0 %v1025
      %1910 = vmatpush.msra.mxu0 %v1024
      %1911 = vmatpush.msra.mxu0 %v1023
      %1912 = vmatpush.msra.mxu0 %v1022
      %1913 = vmatpush.msra.mxu0 %v1021
      %1914 = vmatpush.msra.mxu0 %v1020
      %1915 = vmatpush.msra.mxu0 %v1019
      %1916 = vmatpush.msra.mxu0 %v1018
      %1917 = vmatpush.msra.mxu0 %v1017
      %1918 = vmatpush.msra.mxu0 %v1016
      %1919 = vmatpush.msra.mxu0 %v1015
      %1920 = vmatmul.f32.gmra.mxu0 %v1900
      %v1921 = vpop.f32.mrf.mxu0
      %v1922 = vadd.f32 0.0, %v1921
      %1923 = vmatmul.f32.gmra.mxu0 %v1901
      %v1924 = vpop.f32.mrf.mxu0
      %v1925 = vadd.f32 0.0, %v1924
      %1926 = vdwg.mxu0
      %v1927 = vadd.f32 %v1890, %v1922
      %v1928 = vadd.f32 %v1891, %v1925
      %v1930 = vrot.slane %v1820, 1
      %v1931 = vrot.slane %v1822, 1
      %v1932 = vsel %vm1262, %v1930, %v1931
      %v1933 = vrot.slane %v1824, 1
      %v1934 = vsel %vm1262, %v1931, %v1933
      %1937 = vmatpush.msra.mxu0 %v1046
      %1938 = vmatpush.msra.mxu0 %v1045
      %1939 = vmatpush.msra.mxu0 %v1044
      %1940 = vmatpush.msra.mxu0 %v1043
      %1941 = vmatpush.msra.mxu0 %v1042
      %1942 = vmatpush.msra.mxu0 %v1041
      %1943 = vmatpush.msra.mxu0 %v1040
      %1944 = vmatpush.msra.mxu0 %v1039
      %1945 = vmatpush.msra.mxu0 %v1038
      %1946 = vmatpush.msra.mxu0 %v1037
      %1947 = vmatpush.msra.mxu0 %v1036
      %1948 = vmatpush.msra.mxu0 %v1035
      %1949 = vmatpush.msra.mxu0 %v1034
      %1950 = vmatpush.msra.mxu0 %v1033
      %1951 = vmatpush.msra.mxu0 %v1032
      %1952 = vmatpush.msra.mxu0 %v1031
      %1953 = vmatmul.f32.gmra.mxu0 %v1932
      %v1954 = vpop.f32.mrf.mxu0
      %v1955 = vadd.f32 0.0, %v1954
      %1956 = vmatmul.f32.gmra.mxu0 %v1934
      %v1957 = vpop.f32.mrf.mxu0
      %v1958 = vadd.f32 0.0, %v1957
      %1959 = vdwg.mxu0
      %v1960 = vadd.f32 %v1927, %v1955
      %v1961 = vadd.f32 %v1928, %v1958
      %v1963 = vrot.slane %v1821, 1
      %v1964 = vrot.slane %v1823, 1
      %v1965 = vsel %vm1262, %v1963, %v1964
      %v1966 = vrot.slane %v1825, 1
      %v1967 = vsel %vm1262, %v1964, %v1966
      %1968 = vrot.lane.b32.xlu0 %v1932, 120
      %v1969 = vpop.permute.xlu0 %1968
      %1970 = vrot.lane.b32.xlu0 %v1965, 120
      %v1971 = vpop.permute.xlu0 %1970
      %1972 = vrot.lane.b32.xlu0 %v1934, 120
      %v1973 = vpop.permute.xlu0 %1972
      %1974 = vrot.lane.b32.xlu0 %v1967, 120
      %v1975 = vpop.permute.xlu0 %1974
      %v1976 = vsel %vm1172, %v1969, %v1971
      %v1977 = vsel %vm1172, %v1973, %v1975
      %1980 = vmatpush.msra.mxu0 %v1062
      %1981 = vmatpush.msra.mxu0 %v1061
      %1982 = vmatpush.msra.mxu0 %v1060
      %1983 = vmatpush.msra.mxu0 %v1059
      %1984 = vmatpush.msra.mxu0 %v1058
      %1985 = vmatpush.msra.mxu0 %v1057
      %1986 = vmatpush.msra.mxu0 %v1056
      %1987 = vmatpush.msra.mxu0 %v1055
      %1988 = vmatpush.msra.mxu0 %v1054
      %1989 = vmatpush.msra.mxu0 %v1053
      %1990 = vmatpush.msra.mxu0 %v1052
      %1991 = vmatpush.msra.mxu0 %v1051
      %1992 = vmatpush.msra.mxu0 %v1050
      %1993 = vmatpush.msra.mxu0 %v1049
      %1994 = vmatpush.msra.mxu0 %v1048
      %1995 = vmatpush.msra.mxu0 %v1047
      %1996 = vmatmul.f32.gmra.mxu0 %v1976
      %v1997 = vpop.f32.mrf.mxu0
      %v1998 = vadd.f32 0.0, %v1997
      %1999 = vmatmul.f32.gmra.mxu0 %v1977
      %v2000 = vpop.f32.mrf.mxu0
      %v2001 = vadd.f32 0.0, %v2000
      %2002 = vdwg.mxu0
      %v2003 = vadd.f32 %v1960, %v1998
      %v2004 = vadd.f32 %v1961, %v2001
      %2005 = vrot.lane.b32.xlu0 %v1932, 112
      %v2006 = vpop.permute.xlu0 %2005
      %2007 = vrot.lane.b32.xlu0 %v1965, 112
      %v2008 = vpop.permute.xlu0 %2007
      %2009 = vrot.lane.b32.xlu0 %v1934, 112
      %v2010 = vpop.permute.xlu0 %2009
      %2011 = vrot.lane.b32.xlu0 %v1967, 112
      %v2012 = vpop.permute.xlu0 %2011
      %v2013 = vsel %vm1231, %v2006, %v2008
      %v2014 = vsel %vm1231, %v2010, %v2012
      %2017 = vmatpush.msra.mxu0 %v1078
      %2018 = vmatpush.msra.mxu0 %v1077
      %2019 = vmatpush.msra.mxu0 %v1076
      %2020 = vmatpush.msra.mxu0 %v1075
      %2021 = vmatpush.msra.mxu0 %v1074
      %2022 = vmatpush.msra.mxu0 %v1073
      %2023 = vmatpush.msra.mxu0 %v1072
      %2024 = vmatpush.msra.mxu0 %v1071
      %2025 = vmatpush.msra.mxu0 %v1070
      %2026 = vmatpush.msra.mxu0 %v1069
      %2027 = vmatpush.msra.mxu0 %v1068
      %2028 = vmatpush.msra.mxu0 %v1067
      %2029 = vmatpush.msra.mxu0 %v1066
      %2030 = vmatpush.msra.mxu0 %v1065
      %2031 = vmatpush.msra.mxu0 %v1064
      %2032 = vmatpush.msra.mxu0 %v1063
      %2033 = vmatmul.f32.gmra.mxu0 %v2013
      %v2034 = vpop.f32.mrf.mxu0
      %v2035 = vadd.f32 0.0, %v2034
      %2036 = vmatmul.f32.gmra.mxu0 %v2014
      %v2037 = vpop.f32.mrf.mxu0
      %v2038 = vadd.f32 0.0, %v2037
      %2039 = vdwg.mxu0
      %v2040 = vadd.f32 %v2003, %v2035
      %v2041 = vadd.f32 %v2004, %v2038
      %v2042 = vrot.slane %v1820, 2
      %v2043 = vrot.slane %v1822, 2
      %v2044 = vsel %vm1375, %v2042, %v2043
      %v2045 = vrot.slane %v1824, 2
      %v2046 = vsel %vm1375, %v2043, %v2045
      %2049 = vmatpush.msra.mxu0 %v1094
      %2050 = vmatpush.msra.mxu0 %v1093
      %2051 = vmatpush.msra.mxu0 %v1092
      %2052 = vmatpush.msra.mxu0 %v1091
      %2053 = vmatpush.msra.mxu0 %v1090
      %2054 = vmatpush.msra.mxu0 %v1089
      %2055 = vmatpush.msra.mxu0 %v1088
      %2056 = vmatpush.msra.mxu0 %v1087
      %2057 = vmatpush.msra.mxu0 %v1086
      %2058 = vmatpush.msra.mxu0 %v1085
      %2059 = vmatpush.msra.mxu0 %v1084
      %2060 = vmatpush.msra.mxu0 %v1083
      %2061 = vmatpush.msra.mxu0 %v1082
      %2062 = vmatpush.msra.mxu0 %v1081
      %2063 = vmatpush.msra.mxu0 %v1080
      %2064 = vmatpush.msra.mxu0 %v1079
      %2065 = vmatmul.f32.gmra.mxu0 %v2044
      %v2066 = vpop.f32.mrf.mxu0
      %v2067 = vadd.f32 0.0, %v2066
      %2068 = vmatmul.f32.gmra.mxu0 %v2046
      %v2069 = vpop.f32.mrf.mxu0
      %v2070 = vadd.f32 0.0, %v2069
      %2071 = vdwg.mxu0
      %v2072 = vadd.f32 %v2040, %v2067
      %v2073 = vadd.f32 %v2041, %v2070
      %v2074 = vrot.slane %v1821, 2
      %v2075 = vrot.slane %v1823, 2
      %v2076 = vsel %vm1375, %v2074, %v2075
      %v2077 = vrot.slane %v1825, 2
      %v2078 = vsel %vm1375, %v2075, %v2077
      %2079 = vrot.lane.b32.xlu0 %v2044, 120
      %v2080 = vpop.permute.xlu0 %2079
      %2081 = vrot.lane.b32.xlu0 %v2076, 120
      %v2082 = vpop.permute.xlu0 %2081
      %2083 = vrot.lane.b32.xlu0 %v2046, 120
      %v2084 = vpop.permute.xlu0 %2083
      %2085 = vrot.lane.b32.xlu0 %v2078, 120
      %v2086 = vpop.permute.xlu0 %2085
      %v2087 = vsel %vm1172, %v2080, %v2082
      %v2088 = vsel %vm1172, %v2084, %v2086
      %2091 = vmatpush.msra.mxu0 %v1110
      %2092 = vmatpush.msra.mxu0 %v1109
      %2093 = vmatpush.msra.mxu0 %v1108
      %2094 = vmatpush.msra.mxu0 %v1107
      %2095 = vmatpush.msra.mxu0 %v1106
      %2096 = vmatpush.msra.mxu0 %v1105
      %2097 = vmatpush.msra.mxu0 %v1104
      %2098 = vmatpush.msra.mxu0 %v1103
      %2099 = vmatpush.msra.mxu0 %v1102
      %2100 = vmatpush.msra.mxu0 %v1101
      %2101 = vmatpush.msra.mxu0 %v1100
      %2102 = vmatpush.msra.mxu0 %v1099
      %2103 = vmatpush.msra.mxu0 %v1098
      %2104 = vmatpush.msra.mxu0 %v1097
      %2105 = vmatpush.msra.mxu0 %v1096
      %2106 = vmatpush.msra.mxu0 %v1095
      %2107 = vmatmul.f32.gmra.mxu0 %v2087
      %v2108 = vpop.f32.mrf.mxu0
      %v2109 = vadd.f32 0.0, %v2108
      %2110 = vmatmul.f32.gmra.mxu0 %v2088
      %v2111 = vpop.f32.mrf.mxu0
      %v2112 = vadd.f32 0.0, %v2111
      %2113 = vdwg.mxu0
      %v2114 = vadd.f32 %v2072, %v2109
      %v2115 = vadd.f32 %v2073, %v2112
      %2116 = vrot.lane.b32.xlu0 %v2044, 112
      %v2117 = vpop.permute.xlu0 %2116
      %2118 = vrot.lane.b32.xlu0 %v2076, 112
      %v2119 = vpop.permute.xlu0 %2118
      %2120 = vrot.lane.b32.xlu0 %v2046, 112
      %v2121 = vpop.permute.xlu0 %2120
      %2122 = vrot.lane.b32.xlu0 %v2078, 112
      %v2123 = vpop.permute.xlu0 %2122
      %v2124 = vsel %vm1231, %v2117, %v2119
      %v2125 = vsel %vm1231, %v2121, %v2123
      %2128 = vmatpush.msra.mxu0 %v1126
      %2129 = vmatpush.msra.mxu0 %v1125
      %2130 = vmatpush.msra.mxu0 %v1124
      %2131 = vmatpush.msra.mxu0 %v1123
      %2132 = vmatpush.msra.mxu0 %v1122
      %2133 = vmatpush.msra.mxu0 %v1121
      %2134 = vmatpush.msra.mxu0 %v1120
      %2135 = vmatpush.msra.mxu0 %v1119
      %2136 = vmatpush.msra.mxu0 %v1118
      %2137 = vmatpush.msra.mxu0 %v1117
      %2138 = vmatpush.msra.mxu0 %v1116
      %2139 = vmatpush.msra.mxu0 %v1115
      %2140 = vmatpush.msra.mxu0 %v1114
      %2141 = vmatpush.msra.mxu0 %v1113
      %2142 = vmatpush.msra.mxu0 %v1112
      %2143 = vmatpush.msra.mxu0 %v1111
      %2144 = vmatmul.f32.gmra.mxu0 %v2124
      %v2145 = vpop.f32.mrf.mxu0
      %v2146 = vadd.f32 0.0, %v2145
      %2147 = vmatmul.f32.gmra.mxu0 %v2125
      %v2148 = vpop.f32.mrf.mxu0
      %v2149 = vadd.f32 0.0, %v2148
      %2150 = vdwg.mxu0
      %v2151 = vadd.f32 %v2114, %v2146
      %v2152 = vadd.f32 %v2115, %v2149
      %v2154 = vperm.slane %v1127, 0
      %v2156 = vadd.f32 %v2151, %v2154
      %v2157 = vadd.f32 %v2152, %v2154
      %v2158 = vld [vmem:[%s671 + $0x1] sm:$0xff]
      %v2159 = vld [vmem:[%s671 + $0x9] sm:$0xff]
      %v2161 = vperm.slane %v1136, 0
      %2165 = vrot.lane.b32.xlu0 %v2158, 124
      %v2166 = vpop.permute.xlu0 %2165
      %2167 = vrot.lane.b32.xlu0 %v2159, 124
      %v2168 = vpop.permute.xlu0 %2167
      %vm2169 = vcmask 523264
      %v2170 = vsel %vm2169, %v2166, 0
      %v2172 = vsel %vm2169, %v2168, 0
      %2174 = vmatpush.msra.mxu0 0.0
      %2175 = vmatpush.msra.mxu0 0.0
      %2176 = vmatpush.msra.mxu0 0.0
      %2177 = vmatpush.msra.mxu0 0.0
      %2178 = vmatpush.msra.mxu0 0.0
      %2179 = vmatpush.msra.mxu0 0.0
      %2180 = vmatpush.msra.mxu0 0.0
      %2181 = vmatpush.msra.mxu0 0.0
      %2182 = vmatpush.msra.mxu0 %v1135
      %2183 = vmatpush.msra.mxu0 %v1134
      %2184 = vmatpush.msra.mxu0 %v1133
      %2185 = vmatpush.msra.mxu0 %v1132
      %2186 = vmatpush.msra.mxu0 %v1131
      %2187 = vmatpush.msra.mxu0 %v1130
      %2188 = vmatpush.msra.mxu0 %v1129
      %2189 = vmatpush.msra.mxu0 %v1128
      %2190 = vmatmul.f32.gmra.mxu0 %v2170
      %v2191 = vpop.f32.mrf.mxu0
      %v2192 = vadd.f32 %v2161, %v2191
      %2193 = vmatmul.f32.gmra.mxu0 %v2172
      %v2194 = vpop.f32.mrf.mxu0
      %v2195 = vadd.f32 %v2161, %v2194
      %2196 = vdwg.mxu0
      %v2197 = vadd.f32 %v2156, %v2192
      %v2198 = vadd.f32 %v2157, %v2195
      %2199 = vmatpush.msra.mxu0 %v726
      %2200 = vmatpush.msra.mxu0 %v725
      %2201 = vmatpush.msra.mxu0 %v724
      %2202 = vmatpush.msra.mxu0 %v723
      %2203 = vmatpush.msra.mxu0 %v722
      %2204 = vmatpush.msra.mxu0 %v721
      %2205 = vmatpush.msra.mxu0 %v720
      %2206 = vmatpush.msra.mxu0 %v719
      %2207 = vmatpush.msra.mxu0 %v718
      %2208 = vmatpush.msra.mxu0 %v717
      %2209 = vmatpush.msra.mxu0 %v716
      %2210 = vmatpush.msra.mxu0 %v715
      %2211 = vmatpush.msra.mxu0 %v714
      %2212 = vmatpush.msra.mxu0 %v713
      %2213 = vmatpush.msra.mxu0 %v712
      %2214 = vmatpush.msra.mxu0 %v711
      %2215 = vmatmul.f32.gmra.mxu0 %v1530
      %v2216 = vpop.f32.mrf.mxu0
      %v2217 = vadd.f32 0.0, %v2216
      %2218 = vmatmul.f32.gmra.mxu0 %v1531
      %v2219 = vpop.f32.mrf.mxu0
      %v2220 = vadd.f32 0.0, %v2219
      %2221 = vdwg.mxu0
      %2222 = vmatpush.msra.mxu0 %v710
      %2223 = vmatpush.msra.mxu0 %v709
      %2224 = vmatpush.msra.mxu0 %v708
      %2225 = vmatpush.msra.mxu0 %v707
      %2226 = vmatpush.msra.mxu0 %v706
      %2227 = vmatpush.msra.mxu0 %v705
      %2228 = vmatpush.msra.mxu0 %v704
      %2229 = vmatpush.msra.mxu0 %v703
      %2230 = vmatpush.msra.mxu0 %v702
      %2231 = vmatpush.msra.mxu0 %v701
      %2232 = vmatpush.msra.mxu0 %v700
      %2233 = vmatpush.msra.mxu0 %v699
      %2234 = vmatpush.msra.mxu0 %v698
      %2235 = vmatpush.msra.mxu0 %v697
      %2236 = vmatpush.msra.mxu0 %v696
      %2237 = vmatpush.msra.mxu0 %v695
      %2238 = vmatmul.f32.gmra.mxu0 %v1487
      %v2239 = vpop.f32.mrf.mxu0
      %v2240 = vadd.f32 %v2217, %v2239
      %2241 = vmatmul.f32.gmra.mxu0 %v1489
      %v2242 = vpop.f32.mrf.mxu0
      %v2243 = vadd.f32 %v2220, %v2242
      %2244 = vdwg.mxu0
      %2245 = vmatpush.msra.mxu0 %v742
      %2246 = vmatpush.msra.mxu0 %v741
      %2247 = vmatpush.msra.mxu0 %v740
      %2248 = vmatpush.msra.mxu0 %v739
      %2249 = vmatpush.msra.mxu0 %v738
      %2250 = vmatpush.msra.mxu0 %v737
      %2251 = vmatpush.msra.mxu0 %v736
      %2252 = vmatpush.msra.mxu0 %v735
      %2253 = vmatpush.msra.mxu0 %v734
      %2254 = vmatpush.msra.mxu0 %v733
      %2255 = vmatpush.msra.mxu0 %v732
      %2256 = vmatpush.msra.mxu0 %v731
      %2257 = vmatpush.msra.mxu0 %v730
      %2258 = vmatpush.msra.mxu0 %v729
      %2259 = vmatpush.msra.mxu0 %v728
      %2260 = vmatpush.msra.mxu0 %v727
      %2261 = vmatmul.f32.gmra.mxu0 %v1567
      %v2262 = vpop.f32.mrf.mxu0
      %v2263 = vadd.f32 0.0, %v2262
      %2264 = vmatmul.f32.gmra.mxu0 %v1568
      %v2265 = vpop.f32.mrf.mxu0
      %v2266 = vadd.f32 0.0, %v2265
      %2267 = vdwg.mxu0
      %v2268 = vadd.f32 %v2240, %v2263
      %v2269 = vadd.f32 %v2243, %v2266
      %2270 = vmatpush.msra.mxu0 %v758
      %2271 = vmatpush.msra.mxu0 %v757
      %2272 = vmatpush.msra.mxu0 %v756
      %2273 = vmatpush.msra.mxu0 %v755
      %2274 = vmatpush.msra.mxu0 %v754
      %2275 = vmatpush.msra.mxu0 %v753
      %2276 = vmatpush.msra.mxu0 %v752
      %2277 = vmatpush.msra.mxu0 %v751
      %2278 = vmatpush.msra.mxu0 %v750
      %2279 = vmatpush.msra.mxu0 %v749
      %2280 = vmatpush.msra.mxu0 %v748
      %2281 = vmatpush.msra.mxu0 %v747
      %2282 = vmatpush.msra.mxu0 %v746
      %2283 = vmatpush.msra.mxu0 %v745
      %2284 = vmatpush.msra.mxu0 %v744
      %2285 = vmatpush.msra.mxu0 %v743
      %2286 = vmatmul.f32.gmra.mxu0 %v1599
      %v2287 = vpop.f32.mrf.mxu0
      %v2288 = vadd.f32 0.0, %v2287
      %2289 = vmatmul.f32.gmra.mxu0 %v1601
      %v2290 = vpop.f32.mrf.mxu0
      %v2291 = vadd.f32 0.0, %v2290
      %2292 = vdwg.mxu0
      %v2293 = vadd.f32 %v2268, %v2288
      %v2294 = vadd.f32 %v2269, %v2291
      %2295 = vmatpush.msra.mxu0 %v774
      %2296 = vmatpush.msra.mxu0 %v773
      %2297 = vmatpush.msra.mxu0 %v772
      %2298 = vmatpush.msra.mxu0 %v771
      %2299 = vmatpush.msra.mxu0 %v770
      %2300 = vmatpush.msra.mxu0 %v769
      %2301 = vmatpush.msra.mxu0 %v768
      %2302 = vmatpush.msra.mxu0 %v767
      %2303 = vmatpush.msra.mxu0 %v766
      %2304 = vmatpush.msra.mxu0 %v765
      %2305 = vmatpush.msra.mxu0 %v764
      %2306 = vmatpush.msra.mxu0 %v763
      %2307 = vmatpush.msra.mxu0 %v762
      %2308 = vmatpush.msra.mxu0 %v761
      %2309 = vmatpush.msra.mxu0 %v760
      %2310 = vmatpush.msra.mxu0 %v759
      %2311 = vmatmul.f32.gmra.mxu0 %v1643
      %v2312 = vpop.f32.mrf.mxu0
      %v2313 = vadd.f32 0.0, %v2312
      %2314 = vmatmul.f32.gmra.mxu0 %v1644
      %v2315 = vpop.f32.mrf.mxu0
      %v2316 = vadd.f32 0.0, %v2315
      %2317 = vdwg.mxu0
      %v2318 = vadd.f32 %v2293, %v2313
      %v2319 = vadd.f32 %v2294, %v2316
      %2320 = vmatpush.msra.mxu0 %v790
      %2321 = vmatpush.msra.mxu0 %v789
      %2322 = vmatpush.msra.mxu0 %v788
      %2323 = vmatpush.msra.mxu0 %v787
      %2324 = vmatpush.msra.mxu0 %v786
      %2325 = vmatpush.msra.mxu0 %v785
      %2326 = vmatpush.msra.mxu0 %v784
      %2327 = vmatpush.msra.mxu0 %v783
      %2328 = vmatpush.msra.mxu0 %v782
      %2329 = vmatpush.msra.mxu0 %v781
      %2330 = vmatpush.msra.mxu0 %v780
      %2331 = vmatpush.msra.mxu0 %v779
      %2332 = vmatpush.msra.mxu0 %v778
      %2333 = vmatpush.msra.mxu0 %v777
      %2334 = vmatpush.msra.mxu0 %v776
      %2335 = vmatpush.msra.mxu0 %v775
      %2336 = vmatmul.f32.gmra.mxu0 %v1680
      %v2337 = vpop.f32.mrf.mxu0
      %v2338 = vadd.f32 0.0, %v2337
      %2339 = vmatmul.f32.gmra.mxu0 %v1681
      %v2340 = vpop.f32.mrf.mxu0
      %v2341 = vadd.f32 0.0, %v2340
      %2342 = vdwg.mxu0
      %v2343 = vadd.f32 %v2318, %v2338
      %v2344 = vadd.f32 %v2319, %v2341
      %2345 = vmatpush.msra.mxu0 %v806
      %2346 = vmatpush.msra.mxu0 %v805
      %2347 = vmatpush.msra.mxu0 %v804
      %2348 = vmatpush.msra.mxu0 %v803
      %2349 = vmatpush.msra.mxu0 %v802
      %2350 = vmatpush.msra.mxu0 %v801
      %2351 = vmatpush.msra.mxu0 %v800
      %2352 = vmatpush.msra.mxu0 %v799
      %2353 = vmatpush.msra.mxu0 %v798
      %2354 = vmatpush.msra.mxu0 %v797
      %2355 = vmatpush.msra.mxu0 %v796
      %2356 = vmatpush.msra.mxu0 %v795
      %2357 = vmatpush.msra.mxu0 %v794
      %2358 = vmatpush.msra.mxu0 %v793
      %2359 = vmatpush.msra.mxu0 %v792
      %2360 = vmatpush.msra.mxu0 %v791
      %2361 = vmatmul.f32.gmra.mxu0 %v1711
      %v2362 = vpop.f32.mrf.mxu0
      %v2363 = vadd.f32 0.0, %v2362
      %2364 = vmatmul.f32.gmra.mxu0 %v1713
      %v2365 = vpop.f32.mrf.mxu0
      %v2366 = vadd.f32 0.0, %v2365
      %2367 = vdwg.mxu0
      %v2368 = vadd.f32 %v2343, %v2363
      %v2369 = vadd.f32 %v2344, %v2366
      %2370 = vmatpush.msra.mxu0 %v822
      %2371 = vmatpush.msra.mxu0 %v821
      %2372 = vmatpush.msra.mxu0 %v820
      %2373 = vmatpush.msra.mxu0 %v819
      %2374 = vmatpush.msra.mxu0 %v818
      %2375 = vmatpush.msra.mxu0 %v817
      %2376 = vmatpush.msra.mxu0 %v816
      %2377 = vmatpush.msra.mxu0 %v815
      %2378 = vmatpush.msra.mxu0 %v814
      %2379 = vmatpush.msra.mxu0 %v813
      %2380 = vmatpush.msra.mxu0 %v812
      %2381 = vmatpush.msra.mxu0 %v811
      %2382 = vmatpush.msra.mxu0 %v810
      %2383 = vmatpush.msra.mxu0 %v809
      %2384 = vmatpush.msra.mxu0 %v808
      %2385 = vmatpush.msra.mxu0 %v807
      %2386 = vmatmul.f32.gmra.mxu0 %v1754
      %v2387 = vpop.f32.mrf.mxu0
      %v2388 = vadd.f32 0.0, %v2387
      %2389 = vmatmul.f32.gmra.mxu0 %v1755
      %v2390 = vpop.f32.mrf.mxu0
      %v2391 = vadd.f32 0.0, %v2390
      %2392 = vdwg.mxu0
      %v2393 = vadd.f32 %v2368, %v2388
      %v2394 = vadd.f32 %v2369, %v2391
      %2395 = vmatpush.msra.mxu0 %v838
      %2396 = vmatpush.msra.mxu0 %v837
      %2397 = vmatpush.msra.mxu0 %v836
      %2398 = vmatpush.msra.mxu0 %v835
      %2399 = vmatpush.msra.mxu0 %v834
      %2400 = vmatpush.msra.mxu0 %v833
      %2401 = vmatpush.msra.mxu0 %v832
      %2402 = vmatpush.msra.mxu0 %v831
      %2403 = vmatpush.msra.mxu0 %v830
      %2404 = vmatpush.msra.mxu0 %v829
      %2405 = vmatpush.msra.mxu0 %v828
      %2406 = vmatpush.msra.mxu0 %v827
      %2407 = vmatpush.msra.mxu0 %v826
      %2408 = vmatpush.msra.mxu0 %v825
      %2409 = vmatpush.msra.mxu0 %v824
      %2410 = vmatpush.msra.mxu0 %v823
      %2411 = vmatmul.f32.gmra.mxu0 %v1791
      %v2412 = vpop.f32.mrf.mxu0
      %v2413 = vadd.f32 0.0, %v2412
      %2414 = vmatmul.f32.gmra.mxu0 %v1792
      %v2415 = vpop.f32.mrf.mxu0
      %v2416 = vadd.f32 0.0, %v2415
      %2417 = vdwg.mxu0
      %v2418 = vadd.f32 %v2393, %v2413
      %v2419 = vadd.f32 %v2394, %v2416
      %2420 = vmatpush.msra.mxu0 %v854
      %2421 = vmatpush.msra.mxu0 %v853
      %2422 = vmatpush.msra.mxu0 %v852
      %2423 = vmatpush.msra.mxu0 %v851
      %2424 = vmatpush.msra.mxu0 %v850
      %2425 = vmatpush.msra.mxu0 %v849
      %2426 = vmatpush.msra.mxu0 %v848
      %2427 = vmatpush.msra.mxu0 %v847
      %2428 = vmatpush.msra.mxu0 %v846
      %2429 = vmatpush.msra.mxu0 %v845
      %2430 = vmatpush.msra.mxu0 %v844
      %2431 = vmatpush.msra.mxu0 %v843
      %2432 = vmatpush.msra.mxu0 %v842
      %2433 = vmatpush.msra.mxu0 %v841
      %2434 = vmatpush.msra.mxu0 %v840
      %2435 = vmatpush.msra.mxu0 %v839
      %2436 = vmatmul.f32.gmra.mxu0 %v1820
      %v2437 = vpop.f32.mrf.mxu0
      %v2438 = vadd.f32 0.0, %v2437
      %2439 = vmatmul.f32.gmra.mxu0 %v1822
      %v2440 = vpop.f32.mrf.mxu0
      %v2441 = vadd.f32 0.0, %v2440
      %2442 = vdwg.mxu0
      %v2443 = vadd.f32 %v2418, %v2438
      %v2444 = vadd.f32 %v2419, %v2441
      %2445 = vmatpush.msra.mxu0 %v870
      %2446 = vmatpush.msra.mxu0 %v869
      %2447 = vmatpush.msra.mxu0 %v868
      %2448 = vmatpush.msra.mxu0 %v867
      %2449 = vmatpush.msra.mxu0 %v866
      %2450 = vmatpush.msra.mxu0 %v865
      %2451 = vmatpush.msra.mxu0 %v864
      %2452 = vmatpush.msra.mxu0 %v863
      %2453 = vmatpush.msra.mxu0 %v862
      %2454 = vmatpush.msra.mxu0 %v861
      %2455 = vmatpush.msra.mxu0 %v860
      %2456 = vmatpush.msra.mxu0 %v859
      %2457 = vmatpush.msra.mxu0 %v858
      %2458 = vmatpush.msra.mxu0 %v857
      %2459 = vmatpush.msra.mxu0 %v856
      %2460 = vmatpush.msra.mxu0 %v855
      %2461 = vmatmul.f32.gmra.mxu0 %v1863
      %v2462 = vpop.f32.mrf.mxu0
      %v2463 = vadd.f32 0.0, %v2462
      %2464 = vmatmul.f32.gmra.mxu0 %v1864
      %v2465 = vpop.f32.mrf.mxu0
      %v2466 = vadd.f32 0.0, %v2465
      %2467 = vdwg.mxu0
      %v2468 = vadd.f32 %v2443, %v2463
      %v2469 = vadd.f32 %v2444, %v2466
      %2470 = vmatpush.msra.mxu0 %v886
      %2471 = vmatpush.msra.mxu0 %v885
      %2472 = vmatpush.msra.mxu0 %v884
      %2473 = vmatpush.msra.mxu0 %v883
      %2474 = vmatpush.msra.mxu0 %v882
      %2475 = vmatpush.msra.mxu0 %v881
      %2476 = vmatpush.msra.mxu0 %v880
      %2477 = vmatpush.msra.mxu0 %v879
      %2478 = vmatpush.msra.mxu0 %v878
      %2479 = vmatpush.msra.mxu0 %v877
      %2480 = vmatpush.msra.mxu0 %v876
      %2481 = vmatpush.msra.mxu0 %v875
      %2482 = vmatpush.msra.mxu0 %v874
      %2483 = vmatpush.msra.mxu0 %v873
      %2484 = vmatpush.msra.mxu0 %v872
      %2485 = vmatpush.msra.mxu0 %v871
      %2486 = vmatmul.f32.gmra.mxu0 %v1900
      %v2487 = vpop.f32.mrf.mxu0
      %v2488 = vadd.f32 0.0, %v2487
      %2489 = vmatmul.f32.gmra.mxu0 %v1901
      %v2490 = vpop.f32.mrf.mxu0
      %v2491 = vadd.f32 0.0, %v2490
      %2492 = vdwg.mxu0
      %v2493 = vadd.f32 %v2468, %v2488
      %v2494 = vadd.f32 %v2469, %v2491
      %2495 = vmatpush.msra.mxu0 %v902
      %2496 = vmatpush.msra.mxu0 %v901
      %2497 = vmatpush.msra.mxu0 %v900
      %2498 = vmatpush.msra.mxu0 %v899
      %2499 = vmatpush.msra.mxu0 %v898
      %2500 = vmatpush.msra.mxu0 %v897
      %2501 = vmatpush.msra.mxu0 %v896
      %2502 = vmatpush.msra.mxu0 %v895
      %2503 = vmatpush.msra.mxu0 %v894
      %2504 = vmatpush.msra.mxu0 %v893
      %2505 = vmatpush.msra.mxu0 %v892
      %2506 = vmatpush.msra.mxu0 %v891
      %2507 = vmatpush.msra.mxu0 %v890
      %2508 = vmatpush.msra.mxu0 %v889
      %2509 = vmatpush.msra.mxu0 %v888
      %2510 = vmatpush.msra.mxu0 %v887
      %2511 = vmatmul.f32.gmra.mxu0 %v1932
      %v2512 = vpop.f32.mrf.mxu0
      %v2513 = vadd.f32 0.0, %v2512
      %2514 = vmatmul.f32.gmra.mxu0 %v1934
      %v2515 = vpop.f32.mrf.mxu0
      %v2516 = vadd.f32 0.0, %v2515
      %2517 = vdwg.mxu0
      %v2518 = vadd.f32 %v2493, %v2513
      %v2519 = vadd.f32 %v2494, %v2516
      %2520 = vmatpush.msra.mxu0 %v918
      %2521 = vmatpush.msra.mxu0 %v917
      %2522 = vmatpush.msra.mxu0 %v916
      %2523 = vmatpush.msra.mxu0 %v915
      %2524 = vmatpush.msra.mxu0 %v914
      %2525 = vmatpush.msra.mxu0 %v913
      %2526 = vmatpush.msra.mxu0 %v912
      %2527 = vmatpush.msra.mxu0 %v911
      %2528 = vmatpush.msra.mxu0 %v910
      %2529 = vmatpush.msra.mxu0 %v909
      %2530 = vmatpush.msra.mxu0 %v908
      %2531 = vmatpush.msra.mxu0 %v907
      %2532 = vmatpush.msra.mxu0 %v906
      %2533 = vmatpush.msra.mxu0 %v905
      %2534 = vmatpush.msra.mxu0 %v904
      %2535 = vmatpush.msra.mxu0 %v903
      %2536 = vmatmul.f32.gmra.mxu0 %v1976
      %v2537 = vpop.f32.mrf.mxu0
      %v2538 = vadd.f32 0.0, %v2537
      %2539 = vmatmul.f32.gmra.mxu0 %v1977
      %v2540 = vpop.f32.mrf.mxu0
      %v2541 = vadd.f32 0.0, %v2540
      %2542 = vdwg.mxu0
      %v2543 = vadd.f32 %v2518, %v2538
      %v2544 = vadd.f32 %v2519, %v2541
      %2545 = vmatpush.msra.mxu0 %v934
      %2546 = vmatpush.msra.mxu0 %v933
      %2547 = vmatpush.msra.mxu0 %v932
      %2548 = vmatpush.msra.mxu0 %v931
      %2549 = vmatpush.msra.mxu0 %v930
      %2550 = vmatpush.msra.mxu0 %v929
      %2551 = vmatpush.msra.mxu0 %v928
      %2552 = vmatpush.msra.mxu0 %v927
      %2553 = vmatpush.msra.mxu0 %v926
      %2554 = vmatpush.msra.mxu0 %v925
      %2555 = vmatpush.msra.mxu0 %v924
      %2556 = vmatpush.msra.mxu0 %v923
      %2557 = vmatpush.msra.mxu0 %v922
      %2558 = vmatpush.msra.mxu0 %v921
      %2559 = vmatpush.msra.mxu0 %v920
      %2560 = vmatpush.msra.mxu0 %v919
      %2561 = vmatmul.f32.gmra.mxu0 %v2013
      %v2562 = vpop.f32.mrf.mxu0
      %v2563 = vadd.f32 0.0, %v2562
      %2564 = vmatmul.f32.gmra.mxu0 %v2014
      %v2565 = vpop.f32.mrf.mxu0
      %v2566 = vadd.f32 0.0, %v2565
      %2567 = vdwg.mxu0
      %v2568 = vadd.f32 %v2543, %v2563
      %v2569 = vadd.f32 %v2544, %v2566
      %2570 = vmatpush.msra.mxu0 %v950
      %2571 = vmatpush.msra.mxu0 %v949
      %2572 = vmatpush.msra.mxu0 %v948
      %2573 = vmatpush.msra.mxu0 %v947
      %2574 = vmatpush.msra.mxu0 %v946
      %2575 = vmatpush.msra.mxu0 %v945
      %2576 = vmatpush.msra.mxu0 %v944
      %2577 = vmatpush.msra.mxu0 %v943
      %2578 = vmatpush.msra.mxu0 %v942
      %2579 = vmatpush.msra.mxu0 %v941
      %2580 = vmatpush.msra.mxu0 %v940
      %2581 = vmatpush.msra.mxu0 %v939
      %2582 = vmatpush.msra.mxu0 %v938
      %2583 = vmatpush.msra.mxu0 %v937
      %2584 = vmatpush.msra.mxu0 %v936
      %2585 = vmatpush.msra.mxu0 %v935
      %2586 = vmatmul.f32.gmra.mxu0 %v2044
      %v2587 = vpop.f32.mrf.mxu0
      %v2588 = vadd.f32 0.0, %v2587
      %2589 = vmatmul.f32.gmra.mxu0 %v2046
      %v2590 = vpop.f32.mrf.mxu0
      %v2591 = vadd.f32 0.0, %v2590
      %2592 = vdwg.mxu0
      %v2593 = vadd.f32 %v2568, %v2588
      %v2594 = vadd.f32 %v2569, %v2591
      %2595 = vmatpush.msra.mxu0 %v966
      %2596 = vmatpush.msra.mxu0 %v965
      %2597 = vmatpush.msra.mxu0 %v964
      %2598 = vmatpush.msra.mxu0 %v963
      %2599 = vmatpush.msra.mxu0 %v962
      %2600 = vmatpush.msra.mxu0 %v961
      %2601 = vmatpush.msra.mxu0 %v960
      %2602 = vmatpush.msra.mxu0 %v959
      %2603 = vmatpush.msra.mxu0 %v958
      %2604 = vmatpush.msra.mxu0 %v957
      %2605 = vmatpush.msra.mxu0 %v956
      %2606 = vmatpush.msra.mxu0 %v955
      %2607 = vmatpush.msra.mxu0 %v954
      %2608 = vmatpush.msra.mxu0 %v953
      %2609 = vmatpush.msra.mxu0 %v952
      %2610 = vmatpush.msra.mxu0 %v951
      %2611 = vmatmul.f32.gmra.mxu0 %v2087
      %v2612 = vpop.f32.mrf.mxu0
      %v2613 = vadd.f32 0.0, %v2612
      %2614 = vmatmul.f32.gmra.mxu0 %v2088
      %v2615 = vpop.f32.mrf.mxu0
      %v2616 = vadd.f32 0.0, %v2615
      %2617 = vdwg.mxu0
      %v2618 = vadd.f32 %v2593, %v2613
      %v2619 = vadd.f32 %v2594, %v2616
      %2620 = vmatpush.msra.mxu0 %v982
      %2621 = vmatpush.msra.mxu0 %v981
      %2622 = vmatpush.msra.mxu0 %v980
      %2623 = vmatpush.msra.mxu0 %v979
      %2624 = vmatpush.msra.mxu0 %v978
      %2625 = vmatpush.msra.mxu0 %v977
      %2626 = vmatpush.msra.mxu0 %v976
      %2627 = vmatpush.msra.mxu0 %v975
      %2628 = vmatpush.msra.mxu0 %v974
      %2629 = vmatpush.msra.mxu0 %v973
      %2630 = vmatpush.msra.mxu0 %v972
      %2631 = vmatpush.msra.mxu0 %v971
      %2632 = vmatpush.msra.mxu0 %v970
      %2633 = vmatpush.msra.mxu0 %v969
      %2634 = vmatpush.msra.mxu0 %v968
      %2635 = vmatpush.msra.mxu0 %v967
      %2636 = vmatmul.f32.gmra.mxu0 %v2124
      %v2637 = vpop.f32.mrf.mxu0
      %v2638 = vadd.f32 0.0, %v2637
      %2639 = vmatmul.f32.gmra.mxu0 %v2125
      %v2640 = vpop.f32.mrf.mxu0
      %v2641 = vadd.f32 0.0, %v2640
      %2642 = vdwg.mxu0
      %v2643 = vadd.f32 %v2618, %v2638
      %v2644 = vadd.f32 %v2619, %v2641
      %v2645 = vld [vmem:[%s658] sm:$0xff]
      %v2646 = vld [vmem:[%s658 + $0x8] sm:$0xff]
      %v2647 = vld [vmem:[%s658 + $0x10] sm:$0xff]
      %v2648 = vld [vmem:[%s658 + $0x18] sm:$0xff]
      %v2649 = vld [vmem:[%s658 + $0x20] sm:$0x3]
      %v2650 = vld [vmem:[%s658 + $0x28] sm:$0x3]
      %2651 = vmatpush.msra.mxu0 %v998
      %2652 = vmatpush.msra.mxu0 %v997
      %2653 = vmatpush.msra.mxu0 %v996
      %2654 = vmatpush.msra.mxu0 %v995
      %2655 = vmatpush.msra.mxu0 %v994
      %2656 = vmatpush.msra.mxu0 %v993
      %2657 = vmatpush.msra.mxu0 %v992
      %2658 = vmatpush.msra.mxu0 %v991
      %2659 = vmatpush.msra.mxu0 %v990
      %2660 = vmatpush.msra.mxu0 %v989
      %2661 = vmatpush.msra.mxu0 %v988
      %2662 = vmatpush.msra.mxu0 %v987
      %2663 = vmatpush.msra.mxu0 %v986
      %2664 = vmatpush.msra.mxu0 %v985
      %2665 = vmatpush.msra.mxu0 %v984
      %2666 = vmatpush.msra.mxu0 %v983
      %2667 = vmatmul.f32.gmra.mxu0 %v2645
      %v2668 = vpop.f32.mrf.mxu0
      %v2669 = vadd.f32 0.0, %v2668
      %2670 = vmatmul.f32.gmra.mxu0 %v2647
      %v2671 = vpop.f32.mrf.mxu0
      %v2672 = vadd.f32 0.0, %v2671
      %2673 = vdwg.mxu0
      %v2674 = vadd.f32 %v2643, %v2669
      %v2675 = vadd.f32 %v2644, %v2672
      %2680 = vrot.lane.b32.xlu0 %v2645, 120
      %v2681 = vpop.permute.xlu0 %2680
      %2682 = vrot.lane.b32.xlu0 %v2646, 120
      %v2683 = vpop.permute.xlu0 %2682
      %2684 = vrot.lane.b32.xlu0 %v2647, 120
      %v2685 = vpop.permute.xlu0 %2684
      %2686 = vrot.lane.b32.xlu0 %v2648, 120
      %v2687 = vpop.permute.xlu0 %2686
      %v2688 = vsel %vm1172, %v2681, %v2683
      %v2689 = vsel %vm1172, %v2685, %v2687
      %2692 = vmatpush.msra.mxu0 %v1014
      %2693 = vmatpush.msra.mxu0 %v1013
      %2694 = vmatpush.msra.mxu0 %v1012
      %2695 = vmatpush.msra.mxu0 %v1011
      %2696 = vmatpush.msra.mxu0 %v1010
      %2697 = vmatpush.msra.mxu0 %v1009
      %2698 = vmatpush.msra.mxu0 %v1008
      %2699 = vmatpush.msra.mxu0 %v1007
      %2700 = vmatpush.msra.mxu0 %v1006
      %2701 = vmatpush.msra.mxu0 %v1005
      %2702 = vmatpush.msra.mxu0 %v1004
      %2703 = vmatpush.msra.mxu0 %v1003
      %2704 = vmatpush.msra.mxu0 %v1002
      %2705 = vmatpush.msra.mxu0 %v1001
      %2706 = vmatpush.msra.mxu0 %v1000
      %2707 = vmatpush.msra.mxu0 %v999
      %2708 = vmatmul.f32.gmra.mxu0 %v2688
      %v2709 = vpop.f32.mrf.mxu0
      %v2710 = vadd.f32 0.0, %v2709
      %2711 = vmatmul.f32.gmra.mxu0 %v2689
      %v2712 = vpop.f32.mrf.mxu0
      %v2713 = vadd.f32 0.0, %v2712
      %2714 = vdwg.mxu0
      %v2715 = vadd.f32 %v2674, %v2710
      %v2716 = vadd.f32 %v2675, %v2713
      %2717 = vrot.lane.b32.xlu0 %v2645, 112
      %v2718 = vpop.permute.xlu0 %2717
      %2719 = vrot.lane.b32.xlu0 %v2646, 112
      %v2720 = vpop.permute.xlu0 %2719
      %2721 = vrot.lane.b32.xlu0 %v2647, 112
      %v2722 = vpop.permute.xlu0 %2721
      %2723 = vrot.lane.b32.xlu0 %v2648, 112
      %v2724 = vpop.permute.xlu0 %2723
      %v2725 = vsel %vm1231, %v2718, %v2720
      %v2726 = vsel %vm1231, %v2722, %v2724
      %2729 = vmatpush.msra.mxu0 %v1030
      %2730 = vmatpush.msra.mxu0 %v1029
      %2731 = vmatpush.msra.mxu0 %v1028
      %2732 = vmatpush.msra.mxu0 %v1027
      %2733 = vmatpush.msra.mxu0 %v1026
      %2734 = vmatpush.msra.mxu0 %v1025
      %2735 = vmatpush.msra.mxu0 %v1024
      %2736 = vmatpush.msra.mxu0 %v1023
      %2737 = vmatpush.msra.mxu0 %v1022
      %2738 = vmatpush.msra.mxu0 %v1021
      %2739 = vmatpush.msra.mxu0 %v1020
      %2740 = vmatpush.msra.mxu0 %v1019
      %2741 = vmatpush.msra.mxu0 %v1018
      %2742 = vmatpush.msra.mxu0 %v1017
      %2743 = vmatpush.msra.mxu0 %v1016
      %2744 = vmatpush.msra.mxu0 %v1015
      %2745 = vmatmul.f32.gmra.mxu0 %v2725
      %v2746 = vpop.f32.mrf.mxu0
      %v2747 = vadd.f32 0.0, %v2746
      %2748 = vmatmul.f32.gmra.mxu0 %v2726
      %v2749 = vpop.f32.mrf.mxu0
      %v2750 = vadd.f32 0.0, %v2749
      %2751 = vdwg.mxu0
      %v2752 = vadd.f32 %v2715, %v2747
      %v2753 = vadd.f32 %v2716, %v2750
      %v2755 = vrot.slane %v2645, 1
      %v2756 = vrot.slane %v2647, 1
      %v2757 = vsel %vm1262, %v2755, %v2756
      %v2758 = vrot.slane %v2649, 1
      %v2759 = vsel %vm1262, %v2756, %v2758
      %2762 = vmatpush.msra.mxu0 %v1046
      %2763 = vmatpush.msra.mxu0 %v1045
      %2764 = vmatpush.msra.mxu0 %v1044
      %2765 = vmatpush.msra.mxu0 %v1043
      %2766 = vmatpush.msra.mxu0 %v1042
      %2767 = vmatpush.msra.mxu0 %v1041
      %2768 = vmatpush.msra.mxu0 %v1040
      %2769 = vmatpush.msra.mxu0 %v1039
      %2770 = vmatpush.msra.mxu0 %v1038
      %2771 = vmatpush.msra.mxu0 %v1037
      %2772 = vmatpush.msra.mxu0 %v1036
      %2773 = vmatpush.msra.mxu0 %v1035
      %2774 = vmatpush.msra.mxu0 %v1034
      %2775 = vmatpush.msra.mxu0 %v1033
      %2776 = vmatpush.msra.mxu0 %v1032
      %2777 = vmatpush.msra.mxu0 %v1031
      %2778 = vmatmul.f32.gmra.mxu0 %v2757
      %v2779 = vpop.f32.mrf.mxu0
      %v2780 = vadd.f32 0.0, %v2779
      %2781 = vmatmul.f32.gmra.mxu0 %v2759
      %v2782 = vpop.f32.mrf.mxu0
      %v2783 = vadd.f32 0.0, %v2782
      %2784 = vdwg.mxu0
      %v2785 = vadd.f32 %v2752, %v2780
      %v2786 = vadd.f32 %v2753, %v2783
      %v2788 = vrot.slane %v2646, 1
      %v2789 = vrot.slane %v2648, 1
      %v2790 = vsel %vm1262, %v2788, %v2789
      %v2791 = vrot.slane %v2650, 1
      %v2792 = vsel %vm1262, %v2789, %v2791
      %2793 = vrot.lane.b32.xlu0 %v2757, 120
      %v2794 = vpop.permute.xlu0 %2793
      %2795 = vrot.lane.b32.xlu0 %v2790, 120
      %v2796 = vpop.permute.xlu0 %2795
      %2797 = vrot.lane.b32.xlu0 %v2759, 120
      %v2798 = vpop.permute.xlu0 %2797
      %2799 = vrot.lane.b32.xlu0 %v2792, 120
      %v2800 = vpop.permute.xlu0 %2799
      %v2801 = vsel %vm1172, %v2794, %v2796
      %v2802 = vsel %vm1172, %v2798, %v2800
      %2805 = vmatpush.msra.mxu0 %v1062
      %2806 = vmatpush.msra.mxu0 %v1061
      %2807 = vmatpush.msra.mxu0 %v1060
      %2808 = vmatpush.msra.mxu0 %v1059
      %2809 = vmatpush.msra.mxu0 %v1058
      %2810 = vmatpush.msra.mxu0 %v1057
      %2811 = vmatpush.msra.mxu0 %v1056
      %2812 = vmatpush.msra.mxu0 %v1055
      %2813 = vmatpush.msra.mxu0 %v1054
      %2814 = vmatpush.msra.mxu0 %v1053
      %2815 = vmatpush.msra.mxu0 %v1052
      %2816 = vmatpush.msra.mxu0 %v1051
      %2817 = vmatpush.msra.mxu0 %v1050
      %2818 = vmatpush.msra.mxu0 %v1049
      %2819 = vmatpush.msra.mxu0 %v1048
      %2820 = vmatpush.msra.mxu0 %v1047
      %2821 = vmatmul.f32.gmra.mxu0 %v2801
      %v2822 = vpop.f32.mrf.mxu0
      %v2823 = vadd.f32 0.0, %v2822
      %2824 = vmatmul.f32.gmra.mxu0 %v2802
      %v2825 = vpop.f32.mrf.mxu0
      %v2826 = vadd.f32 0.0, %v2825
      %2827 = vdwg.mxu0
      %v2828 = vadd.f32 %v2785, %v2823
      %v2829 = vadd.f32 %v2786, %v2826
      %2830 = vrot.lane.b32.xlu0 %v2757, 112
      %v2831 = vpop.permute.xlu0 %2830
      %2832 = vrot.lane.b32.xlu0 %v2790, 112
      %v2833 = vpop.permute.xlu0 %2832
      %2834 = vrot.lane.b32.xlu0 %v2759, 112
      %v2835 = vpop.permute.xlu0 %2834
      %2836 = vrot.lane.b32.xlu0 %v2792, 112
      %v2837 = vpop.permute.xlu0 %2836
      %v2838 = vsel %vm1231, %v2831, %v2833
      %v2839 = vsel %vm1231, %v2835, %v2837
      %2842 = vmatpush.msra.mxu0 %v1078
      %2843 = vmatpush.msra.mxu0 %v1077
      %2844 = vmatpush.msra.mxu0 %v1076
      %2845 = vmatpush.msra.mxu0 %v1075
      %2846 = vmatpush.msra.mxu0 %v1074
      %2847 = vmatpush.msra.mxu0 %v1073
      %2848 = vmatpush.msra.mxu0 %v1072
      %2849 = vmatpush.msra.mxu0 %v1071
      %2850 = vmatpush.msra.mxu0 %v1070
      %2851 = vmatpush.msra.mxu0 %v1069
      %2852 = vmatpush.msra.mxu0 %v1068
      %2853 = vmatpush.msra.mxu0 %v1067
      %2854 = vmatpush.msra.mxu0 %v1066
      %2855 = vmatpush.msra.mxu0 %v1065
      %2856 = vmatpush.msra.mxu0 %v1064
      %2857 = vmatpush.msra.mxu0 %v1063
      %2858 = vmatmul.f32.gmra.mxu0 %v2838
      %v2859 = vpop.f32.mrf.mxu0
      %v2860 = vadd.f32 0.0, %v2859
      %2861 = vmatmul.f32.gmra.mxu0 %v2839
      %v2862 = vpop.f32.mrf.mxu0
      %v2863 = vadd.f32 0.0, %v2862
      %2864 = vdwg.mxu0
      %v2865 = vadd.f32 %v2828, %v2860
      %v2866 = vadd.f32 %v2829, %v2863
      %v2867 = vrot.slane %v2645, 2
      %v2868 = vrot.slane %v2647, 2
      %v2869 = vsel %vm1375, %v2867, %v2868
      %v2870 = vrot.slane %v2649, 2
      %v2871 = vsel %vm1375, %v2868, %v2870
      %2874 = vmatpush.msra.mxu0 %v1094
      %2875 = vmatpush.msra.mxu0 %v1093
      %2876 = vmatpush.msra.mxu0 %v1092
      %2877 = vmatpush.msra.mxu0 %v1091
      %2878 = vmatpush.msra.mxu0 %v1090
      %2879 = vmatpush.msra.mxu0 %v1089
      %2880 = vmatpush.msra.mxu0 %v1088
      %2881 = vmatpush.msra.mxu0 %v1087
      %2882 = vmatpush.msra.mxu0 %v1086
      %2883 = vmatpush.msra.mxu0 %v1085
      %2884 = vmatpush.msra.mxu0 %v1084
      %2885 = vmatpush.msra.mxu0 %v1083
      %2886 = vmatpush.msra.mxu0 %v1082
      %2887 = vmatpush.msra.mxu0 %v1081
      %2888 = vmatpush.msra.mxu0 %v1080
      %2889 = vmatpush.msra.mxu0 %v1079
      %2890 = vmatmul.f32.gmra.mxu0 %v2869
      %v2891 = vpop.f32.mrf.mxu0
      %v2892 = vadd.f32 0.0, %v2891
      %2893 = vmatmul.f32.gmra.mxu0 %v2871
      %v2894 = vpop.f32.mrf.mxu0
      %v2895 = vadd.f32 0.0, %v2894
      %2896 = vdwg.mxu0
      %v2897 = vadd.f32 %v2865, %v2892
      %v2898 = vadd.f32 %v2866, %v2895
      %v2899 = vrot.slane %v2646, 2
      %v2900 = vrot.slane %v2648, 2
      %v2901 = vsel %vm1375, %v2899, %v2900
      %v2902 = vrot.slane %v2650, 2
      %v2903 = vsel %vm1375, %v2900, %v2902
      %2904 = vrot.lane.b32.xlu0 %v2869, 120
      %v2905 = vpop.permute.xlu0 %2904
      %2906 = vrot.lane.b32.xlu0 %v2901, 120
      %v2907 = vpop.permute.xlu0 %2906
      %2908 = vrot.lane.b32.xlu0 %v2871, 120
      %v2909 = vpop.permute.xlu0 %2908
      %2910 = vrot.lane.b32.xlu0 %v2903, 120
      %v2911 = vpop.permute.xlu0 %2910
      %v2912 = vsel %vm1172, %v2905, %v2907
      %v2913 = vsel %vm1172, %v2909, %v2911
      %2916 = vmatpush.msra.mxu0 %v1110
      %2917 = vmatpush.msra.mxu0 %v1109
      %2918 = vmatpush.msra.mxu0 %v1108
      %2919 = vmatpush.msra.mxu0 %v1107
      %2920 = vmatpush.msra.mxu0 %v1106
      %2921 = vmatpush.msra.mxu0 %v1105
      %2922 = vmatpush.msra.mxu0 %v1104
      %2923 = vmatpush.msra.mxu0 %v1103
      %2924 = vmatpush.msra.mxu0 %v1102
      %2925 = vmatpush.msra.mxu0 %v1101
      %2926 = vmatpush.msra.mxu0 %v1100
      %2927 = vmatpush.msra.mxu0 %v1099
      %2928 = vmatpush.msra.mxu0 %v1098
      %2929 = vmatpush.msra.mxu0 %v1097
      %2930 = vmatpush.msra.mxu0 %v1096
      %2931 = vmatpush.msra.mxu0 %v1095
      %2932 = vmatmul.f32.gmra.mxu0 %v2912
      %v2933 = vpop.f32.mrf.mxu0
      %v2934 = vadd.f32 0.0, %v2933
      %2935 = vmatmul.f32.gmra.mxu0 %v2913
      %v2936 = vpop.f32.mrf.mxu0
      %v2937 = vadd.f32 0.0, %v2936
      %2938 = vdwg.mxu0
      %v2939 = vadd.f32 %v2897, %v2934
      %v2940 = vadd.f32 %v2898, %v2937
      %2941 = vrot.lane.b32.xlu0 %v2869, 112
      %v2942 = vpop.permute.xlu0 %2941
      %2943 = vrot.lane.b32.xlu0 %v2901, 112
      %v2944 = vpop.permute.xlu0 %2943
      %2945 = vrot.lane.b32.xlu0 %v2871, 112
      %v2946 = vpop.permute.xlu0 %2945
      %2947 = vrot.lane.b32.xlu0 %v2903, 112
      %v2948 = vpop.permute.xlu0 %2947
      %v2949 = vsel %vm1231, %v2942, %v2944
      %v2950 = vsel %vm1231, %v2946, %v2948
      %2953 = vmatpush.msra.mxu0 %v1126
      %2954 = vmatpush.msra.mxu0 %v1125
      %2955 = vmatpush.msra.mxu0 %v1124
      %2956 = vmatpush.msra.mxu0 %v1123
      %2957 = vmatpush.msra.mxu0 %v1122
      %2958 = vmatpush.msra.mxu0 %v1121
      %2959 = vmatpush.msra.mxu0 %v1120
      %2960 = vmatpush.msra.mxu0 %v1119
      %2961 = vmatpush.msra.mxu0 %v1118
      %2962 = vmatpush.msra.mxu0 %v1117
      %2963 = vmatpush.msra.mxu0 %v1116
      %2964 = vmatpush.msra.mxu0 %v1115
      %2965 = vmatpush.msra.mxu0 %v1114
      %2966 = vmatpush.msra.mxu0 %v1113
      %2967 = vmatpush.msra.mxu0 %v1112
      %2968 = vmatpush.msra.mxu0 %v1111
      %2969 = vmatmul.f32.gmra.mxu0 %v2949
      %v2970 = vpop.f32.mrf.mxu0
      %v2971 = vadd.f32 0.0, %v2970
      %2972 = vmatmul.f32.gmra.mxu0 %v2950
      %v2973 = vpop.f32.mrf.mxu0
      %v2974 = vadd.f32 0.0, %v2973
      %2975 = vdwg.mxu0
      %v2976 = vadd.f32 %v2939, %v2971
      %v2977 = vadd.f32 %v2940, %v2974
      %v2978 = vadd.f32 %v2976, %v2154
      %v2979 = vadd.f32 %v2977, %v2154
      %v2980 = vld [vmem:[%s684 + $0x1] sm:$0xff]
      %v2981 = vld [vmem:[%s684 + $0x9] sm:$0xff]
      %2984 = vrot.lane.b32.xlu0 %v2980, 124
      %v2985 = vpop.permute.xlu0 %2984
      %2986 = vrot.lane.b32.xlu0 %v2981, 124
      %v2987 = vpop.permute.xlu0 %2986
      %v2988 = vsel %vm2169, %v2985, 0
      %v2990 = vsel %vm2169, %v2987, 0
      %2992 = vmatpush.msra.mxu0 0.0
      %2993 = vmatpush.msra.mxu0 0.0
      %2994 = vmatpush.msra.mxu0 0.0
      %2995 = vmatpush.msra.mxu0 0.0
      %2996 = vmatpush.msra.mxu0 0.0
      %2997 = vmatpush.msra.mxu0 0.0
      %2998 = vmatpush.msra.mxu0 0.0
      %2999 = vmatpush.msra.mxu0 0.0
      %3000 = vmatpush.msra.mxu0 %v1135
      %3001 = vmatpush.msra.mxu0 %v1134
      %3002 = vmatpush.msra.mxu0 %v1133
      %3003 = vmatpush.msra.mxu0 %v1132
      %3004 = vmatpush.msra.mxu0 %v1131
      %3005 = vmatpush.msra.mxu0 %v1130
      %3006 = vmatpush.msra.mxu0 %v1129
      %3007 = vmatpush.msra.mxu0 %v1128
      %3008 = vmatmul.f32.gmra.mxu0 %v2988
      %v3009 = vpop.f32.mrf.mxu0
      %v3010 = vadd.f32 %v2161, %v3009
      %3011 = vmatmul.f32.gmra.mxu0 %v2990
      %v3012 = vpop.f32.mrf.mxu0
      %v3013 = vadd.f32 %v2161, %v3012
      %3014 = vdwg.mxu0
      %v3015 = vadd.f32 %v2978, %v3010
      %v3016 = vadd.f32 %v2979, %v3013
      %vm3017 = vcmask 130048
      %v3019 = vsel %vm3017, %v1137, 0
      %3021 = vmatpush.msra.mxu0 0.0
      %3022 = vmatpush.msra.mxu0 0.0
      %3023 = vmatpush.msra.mxu0 0.0
      %3024 = vmatpush.msra.mxu0 0.0
      %3025 = vmatpush.msra.mxu0 0.0
      %3026 = vmatpush.msra.mxu0 0.0
      %3027 = vmatpush.msra.mxu0 0.0
      %3028 = vmatpush.msra.mxu0 0.0
      %3029 = vmatpush.msra.mxu0 0.0
      %3030 = vmatpush.msra.mxu0 0.0
      %3031 = vmatpush.msra.mxu0 0.0
      %3032 = vmatpush.msra.mxu0 0.0
      %3033 = vmatpush.msra.mxu0 0.0
      %3034 = vmatpush.msra.mxu0 0.0
      %3035 = vmatpush.msra.mxu0 %v3016
      %3036 = vmatpush.msra.mxu0 %v3015
      %3037 = vmatmul.f32.gmra.mxu0 %v3019
      %v3038 = vpop.f32.mrf.mxu0
      %v3039 = vadd.f32 0.0, %v3038
      %3040 = vdwg.mxu0
      %3041 = vmatpush.msra.mxu0 0.0
      %3042 = vmatpush.msra.mxu0 0.0
      %3043 = vmatpush.msra.mxu0 0.0
      %3044 = vmatpush.msra.mxu0 0.0
      %3045 = vmatpush.msra.mxu0 0.0
      %3046 = vmatpush.msra.mxu0 0.0
      %3047 = vmatpush.msra.mxu0 0.0
      %3048 = vmatpush.msra.mxu0 0.0
      %3049 = vmatpush.msra.mxu0 0.0
      %3050 = vmatpush.msra.mxu0 0.0
      %3051 = vmatpush.msra.mxu0 0.0
      %3052 = vmatpush.msra.mxu0 0.0
      %3053 = vmatpush.msra.mxu0 0.0
      %3054 = vmatpush.msra.mxu0 0.0
      %3055 = vmatpush.msra.mxu0 %v2198
      %3056 = vmatpush.msra.mxu0 %v2197
      %3057 = vmatmul.f32.gmra.mxu0 %v3019
      %v3058 = vpop.f32.mrf.mxu0
      %v3059 = vadd.f32 %v3039, %v3058
      %3060 = vdwg.mxu0
      %3061 = vmatpush.msra.mxu0 %v1153
      %3062 = vmatpush.msra.mxu0 %v1152
      %3063 = vmatpush.msra.mxu0 %v1151
      %3064 = vmatpush.msra.mxu0 %v1150
      %3065 = vmatpush.msra.mxu0 %v1149
      %3066 = vmatpush.msra.mxu0 %v1148
      %3067 = vmatpush.msra.mxu0 %v1147
      %3068 = vmatpush.msra.mxu0 %v1146
      %3069 = vmatpush.msra.mxu0 %v1145
      %3070 = vmatpush.msra.mxu0 %v1144
      %3071 = vmatpush.msra.mxu0 %v1143
      %3072 = vmatpush.msra.mxu0 %v1142
      %3073 = vmatpush.msra.mxu0 %v1141
      %3074 = vmatpush.msra.mxu0 %v1140
      %3075 = vmatpush.msra.mxu0 %v1139
      %3076 = vmatpush.msra.mxu0 %v1138
      %3077 = vmatmul.f32.gmra.mxu0 %v3059
      %v3078 = vpop.f32.mrf.mxu0
      %v3079 = vadd.f32 0.0, %v3078
      %3080 = vdwg.mxu0
      %3081 = vst.msk [vmem:[%s694] sm:$0xff] %vm2169, %v3079
      %p3082 = scmp.lt.s32.totalorder %s27, 1
      %s3083 = scalar_select %p3082, %s27, 1
      %p3084 = scmp.lt.s32.totalorder %s28, 1
      %s3085 = scalar_select %p3084, %s28, 1
      %s3086 = smul.addr %s3083, 2
      %s3087 = sadd.s32 %s3085, %s3086
      %s3088 = smul.addr %s3087, 8
      %s3089 = scalar_lea.vmem %s12, %s3088
      // Predicated region
      $region69: #{disblock3d_forward.3} parent=67 // pred_check
        %p3090 = pneg %p371
      $region70: #{disblock3d_forward.3} parent=67 // pred_check_branch
        %3092 = sbr.rel (%p3090) target = $region72
      $region71: #{disblock3d_forward.3} parent=67 // pred_region
        _
      $region72: #{disblock3d_forward.3} parent=67 // pred_fallthru
        _
    $region68: #{disblock3d_forward.3} parent=5 // pred_fallthru
      _
    %p3093 = scmp.le.s32.totalorder 2, %s18
    // Predicated region
    $region73: #{disblock3d_forward.3} parent=5 // pred_check
      %p3094 = pneg %p3093
    $region74: #{disblock3d_forward.3} parent=5 // pred_check_branch
      %3096 = sbr.rel (%p3094) target = $region76
    $region75: #{disblock3d_forward.3} parent=5 // pred_region
      %s3097 = ssub.s32 %s18, 2
      // Predicated region
      $region77: #{disblock3d_forward.3} parent=75 // pred_check
        %p3098 = pneg %p377
      $region78: #{disblock3d_forward.3} parent=75 // pred_check_branch
        %3100 = sbr.rel (%p3098) target = $region80
      $region79: #{disblock3d_forward.3} parent=75 // pred_region
        %p3101 = scmp.lt.s32.totalorder %s29, 1
        %s3102 = scalar_select %p3101, %s29, 1
        %p3103 = scmp.lt.s32.totalorder %s30, 1
        %s3104 = scalar_select %p3103, %s30, 1
        %s3105 = smul.addr %s3102, 2
        %s3106 = sadd.s32 %s3104, %s3105
        %s3107 = smul.addr %s3106, 8
        %s3108 = scalar_lea.vmem %s12, %s3107
      $region80: #{disblock3d_forward.3} parent=75 // pred_fallthru
        _
    $region76: #{disblock3d_forward.3} parent=5 // pred_fallthru
      _
  $region6: #{disblock3d_forward.3} parent=0 // loop_footer
    %s22 = sadd.s32 1, %s18
  $region7: #{disblock3d_forward.3} parent=0 // loop_footer_branch
    %17 = sbr.rel target = $region3
  $region8: #{disblock3d_forward.3} parent=0 // loop_exit
    _

</llo_original>
